<compile_context>
chip_gen: v7x
topology: tpu7x:2x2x1
jax: 0.10.0
libtpu: 0.0.40
codegen_flags: <defaults>
</compile_context>

<pallas_src>
import functools

import jax
import jax.numpy as jnp
import numpy as np
from jax.experimental import pallas as pl
from jax.experimental.pallas import tpu as pltpu


def _round_up(n, m):
    return ((n + m - 1) // m) * m


# ------------------------------ Pallas kernel ------------------------------ #

def _resblock_kernel(*refs, H, W, has_skip):
    """Fused ResBlock forward for one batch element (flat padded layout)."""
    if has_skip:
        (x_ref, t_ref, m_ref, w1_ref, b1_ref, w2_ref, b2_ref,
         wsk_ref, bsk_ref, o_ref, xf_ref, h_ref) = refs
    else:
        (x_ref, t_ref, m_ref, w1_ref, b1_ref, w2_ref, b2_ref,
         o_ref, xf_ref, h_ref) = refs
        wsk_ref = bsk_ref = None

    P = W + 2                      # padded width
    L = (H - 1) * P + W            # contiguous run covering all interior pixels
    HP = H * P
    CPO = o_ref.shape[-1]

    # Cast the whole (padded, flattened) bf16 input block to an f32 scratch once.
    xf_ref[...] = x_ref[0].astype(jnp.float32)

    # ---- conv1: 9 contiguous-row-slice matmuls over the flat padded layout ----
    acc = jnp.zeros((L, CPO), jnp.float32)
    for ty in range(3):
        for tx in range(3):
            s = ty * P + tx
            acc = acc + jnp.dot(xf_ref[pl.ds(s, L), :], w1_ref[3 * ty + tx],
                                preferred_element_type=jnp.float32)

    # relu(conv1 + b1) + time_emb, then zero the rows that sit on padding
    # columns so conv2 sees proper SAME zero padding.
    h = jnp.maximum(acc + b1_ref[...], 0.0) + t_ref[0]
    h = h * m_ref[...]

    h_ref[...] = jnp.zeros_like(h_ref)
    h_ref[pl.ds(P + 1, L), :] = h

    # ---- conv2: same 9-tap trick on the VMEM-resident h ----
    acc2 = jnp.zeros((L, CPO), jnp.float32)
    for ty in range(3):
        for tx in range(3):
            s = ty * P + tx
            acc2 = acc2 + jnp.dot(h_ref[pl.ds(s, L), :], w2_ref[3 * ty + tx],
                                  preferred_element_type=jnp.float32)

    # TODO(synk): training-mode dropout (Bernoulli mask + 1/(1-p) rescale) not
    # implemented; eval-mode dropout is the identity, which is what we compute.
    out = jnp.maximum(acc2 + b2_ref[...], 0.0)

    # ---- skip connection (1x1 conv or identity) on the interior rows of x ----
    xi = xf_ref[pl.ds(P + 1, L), :]
    if has_skip:
        out = out + jnp.dot(xi, wsk_ref[...],
                            preferred_element_type=jnp.float32) + bsk_ref[...]
    else:
        out = out + xi

    # Lane-dense store.  Rows [L, HP) are layout padding (discarded in wrapper).
    o_ref[0, pl.ds(0, L), :] = out.astype(o_ref.dtype)
    o_ref[0, pl.ds(L, HP - L), :] = jnp.zeros((HP - L, CPO), o_ref.dtype)


# --------------------------------- wrapper --------------------------------- #

def resblock_forward(x_nchw, time_emb, params):
    w1, b1 = params["w1"], params["b1"]          # (3,3,Cin,Cout), (Cout,)
    wt, bt = params["wt"], params["bt"]          # (Tc,Cout), (Cout,)
    w2, b2 = params["w2"], params["b2"]          # (3,3,Cout,Cout), (Cout,)

    B, Cin, H, W = x_nchw.shape
    Cout = w1.shape[-1]
    has_skip = (Cin != Cout)

    P = W + 2
    Np = (H + 2) * P
    L = (H - 1) * P + W
    HP = H * P
    CPI = _round_up(Cin, 128)
    CPO = _round_up(Cout, 128)

    # ---- cheap layout-only glue (no im2col, no 9x inflation) ----
    x = jnp.transpose(x_nchw, (0, 2, 3, 1))                         # NHWC
    x_pad = jnp.pad(x, ((0, 0), (1, 1), (1, 1), (0, CPI - Cin)))    # halo + lanes
    x_flat = x_pad.reshape(B, Np, CPI).astype(jnp.bfloat16)         # bf16 in HBM

    # Time-embedding projection hoisted out of the kernel.
    t = jnp.dot(time_emb, wt, precision=jax.lax.Precision.HIGHEST) + bt
    t = jnp.pad(t, ((0, 0), (0, CPO - Cout))).reshape(B, 1, CPO)

    w1p = jnp.pad(w1, ((0, 0), (0, 0), (0, CPI - Cin), (0, CPO - Cout)))
    w1p = w1p.reshape(9, CPI, CPO)
    w2p = jnp.pad(w2, ((0, 0), (0, 0), (0, CPO - Cout), (0, CPO - Cout)))
    w2p = w2p.reshape(9, CPO, CPO)
    b1p = jnp.pad(b1, (0, CPO - Cout)).reshape(1, CPO)
    b2p = jnp.pad(b2, (0, CPO - Cout)).reshape(1, CPO)

    # Interior-column mask: rows of the flat run that fall on halo columns -> 0.
    col = (np.arange(L) + (P + 1)) % P
    mask = jnp.asarray(((col >= 1) & (col <= W)).astype(np.float32).reshape(L, 1))

    inputs = [x_flat, t, mask, w1p, b1p, w2p, b2p]
    in_specs = [
        pl.BlockSpec((1, Np, CPI), lambda b: (b, 0, 0)),     # x (bf16, flat padded)
        pl.BlockSpec((1, 1, CPO), lambda b: (b, 0, 0)),      # precomputed time proj
        pl.BlockSpec((L, 1), lambda b: (0, 0)),              # interior mask
        pl.BlockSpec((9, CPI, CPO), lambda b: (0, 0, 0)),    # conv1 weights (taps)
        pl.BlockSpec((1, CPO), lambda b: (0, 0)),            # conv1 bias
        pl.BlockSpec((9, CPO, CPO), lambda b: (0, 0, 0)),    # conv2 weights (taps)
        pl.BlockSpec((1, CPO), lambda b: (0, 0)),            # conv2 bias
    ]
    if has_skip:
        wskp = jnp.pad(params["wsk"], ((0, CPI - Cin), (0, CPO - Cout)))
        bskp = jnp.pad(params["bsk"], (0, CPO - Cout)).reshape(1, CPO)
        inputs += [wskp, bskp]
        in_specs += [
            pl.BlockSpec((CPI, CPO), lambda b: (0, 0)),      # 1x1 skip weight
            pl.BlockSpec((1, CPO), lambda b: (0, 0)),        # 1x1 skip bias
        ]

    kernel = functools.partial(_resblock_kernel, H=H, W=W, has_skip=has_skip)

    out_flat = pl.pallas_call(
        kernel,
        out_shape=jax.ShapeDtypeStruct((B, HP, CPO), jnp.float32),
        grid_spec=pltpu.PrefetchScalarGridSpec(
            num_scalar_prefetch=0,
            grid=(B,),
            in_specs=in_specs,
            out_specs=pl.BlockSpec((1, HP, CPO), lambda b: (b, 0, 0)),
            scratch_shapes=[
                pltpu.VMEM((Np, CPI), jnp.float32),   # f32 copy of padded input
                pltpu.VMEM((Np, CPO), jnp.float32),   # h (never leaves VMEM)
            ],
        ),
        compiler_params=pltpu.CompilerParams(dimension_semantics=("parallel",)),
    )(*inputs)

    out = out_flat.reshape(B, H, P, CPO)[:, :, :W, :Cout]
    return jnp.transpose(out, (0, 3, 1, 2))      # back to NCHW


# ------------------------- params & pure-JAX reference ---------------------- #

def init_params(key, in_ch, out_ch, time_ch):
    ks = jax.random.split(key, 8)
    s = 0.1
    params = {
        "w1": s * jax.random.normal(ks[0], (3, 3, in_ch, out_ch), jnp.float32),
        "b1": s * jax.random.normal(ks[1], (out_ch,), jnp.float32),
        "wt": s * jax.random.normal(ks[2], (time_ch, out_ch), jnp.float32),
        "bt": s * jax.random.normal(ks[3], (out_ch,), jnp.float32),
        "w2": s * jax.random.normal(ks[4], (3, 3, out_ch, out_ch), jnp.float32),
        "b2": s * jax.random.normal(ks[5], (out_ch,), jnp.float32),
    }
    if in_ch != out_ch:
        params["wsk"] = s * jax.random.normal(ks[6], (in_ch, out_ch), jnp.float32)
        params["bsk"] = s * jax.random.normal(ks[7], (out_ch,), jnp.float32)
    return params


def reference_forward(x_nchw, temb, params):
    x = jnp.transpose(x_nchw, (0, 2, 3, 1))
    dn = ("NHWC", "HWIO", "NHWC")
    prec = jax.lax.Precision.HIGHEST
    h = jax.lax.conv_general_dilated(x, params["w1"], (1, 1), "SAME",
                                     dimension_numbers=dn, precision=prec)
    h = jnp.maximum(h + params["b1"], 0.0)
    t = jnp.dot(temb, params["wt"], precision=prec) + params["bt"]
    h = h + t[:, None, None, :]
    h2 = jax.lax.conv_general_dilated(h, params["w2"], (1, 1), "SAME",
                                      dimension_numbers=dn, precision=prec)
    h2 = jnp.maximum(h2 + params["b2"], 0.0)
    if "wsk" in params:
        skip = jnp.einsum("bhwc,cd->bhwd", x, params["wsk"],
                          precision=prec) + params["bsk"]
    else:
        skip = x
    out = h2 + skip
    return jnp.transpose(out, (0, 3, 1, 2))


if __name__ == "__main__":
    key = jax.random.PRNGKey(0)
    B, Cin, Cout, Tc, H, W = 2, 4, 8, 32, 16, 16
    kx, kt, kp, kp2, kx2 = jax.random.split(key, 5)
    x = jax.random.normal(kx, (B, Cin, H, W), jnp.float32)
    temb = jax.random.normal(kt, (B, Tc), jnp.float32)

    fwd = jax.jit(resblock_forward)

    # Case 1: Cin != Cout  ->  1x1-conv skip path.
    params = init_params(kp, Cin, Cout, Tc)
    out = jax.block_until_ready(fwd(x, temb, params))
    ref = reference_forward(x, temb, params)
    assert out.shape == (B, Cout, H, W)
    np.testing.assert_allclose(np.asarray(out), np.asarray(ref),
                               atol=2e-2, rtol=2e-2)

    # Case 2: Cin == Cout  ->  identity skip path (no skip weights passed).
    x2 = jax.random.normal(kx2, (B, Cout, H, W), jnp.float32)
    params2 = init_params(kp2, Cout, Cout, Tc)
    out2 = jax.block_until_ready(fwd(x2, temb, params2))
    ref2 = reference_forward(x2, temb, params2)
    np.testing.assert_allclose(np.asarray(out2), np.asarray(ref2),
                               atol=2e-2, rtol=2e-2)

    print("KERNEL_OK")
</pallas_src>

<mosaic_0001>
module attributes {stable_mosaic.version = 11 : i64} {
  func.func @_resblock_kernel(%arg0: i32, %arg1: memref<1x324x128xbf16, #tpu.memory_space<vmem>>, %arg2: memref<1x1x128xf32, #tpu.memory_space<vmem>>, %arg3: memref<286x1xf32, #tpu.memory_space<vmem>>, %arg4: memref<9x128x128xf32, #tpu.memory_space<vmem>>, %arg5: memref<1x128xf32, #tpu.memory_space<vmem>>, %arg6: memref<9x128x128xf32, #tpu.memory_space<vmem>>, %arg7: memref<1x128xf32, #tpu.memory_space<vmem>>, %arg8: memref<128x128xf32, #tpu.memory_space<vmem>>, %arg9: memref<1x128xf32, #tpu.memory_space<vmem>>, %arg10: memref<1x288x128xf32, #tpu.memory_space<vmem>>, %arg11: memref<324x128xf32, #tpu.memory_space<vmem>>, %arg12: memref<324x128xf32, #tpu.memory_space<vmem>>) attributes {dimension_semantics = [#tpu.dimension_semantics<parallel>], iteration_bounds = array<i64: 2>, scalar_prefetch = 0 : i64, scratch_operands = 2 : i64, tpu.core_type = #tpu.core_type<tc>, window_params = [{transform_indices = @transform_0, window_bounds = array<i64: 1, 324, 128>}, {transform_indices = @transform_1, window_bounds = array<i64: 1, 1, 128>}, {pipeline_mode = #tpu.pipeline_mode<synchronous>, transform_indices = @transform_2, window_bounds = array<i64: 286, 1>}, {pipeline_mode = #tpu.pipeline_mode<synchronous>, transform_indices = @transform_3, window_bounds = array<i64: 9, 128, 128>}, {pipeline_mode = #tpu.pipeline_mode<synchronous>, transform_indices = @transform_4, window_bounds = array<i64: 1, 128>}, {pipeline_mode = #tpu.pipeline_mode<synchronous>, transform_indices = @transform_5, window_bounds = array<i64: 9, 128, 128>}, {pipeline_mode = #tpu.pipeline_mode<synchronous>, transform_indices = @transform_6, window_bounds = array<i64: 1, 128>}, {pipeline_mode = #tpu.pipeline_mode<synchronous>, transform_indices = @transform_7, window_bounds = array<i64: 128, 128>}, {pipeline_mode = #tpu.pipeline_mode<synchronous>, transform_indices = @transform_8, window_bounds = array<i64: 1, 128>}, {transform_indices = @transform_9, window_bounds = array<i64: 1, 288, 128>}]} {
    %c0 = arith.constant 0 : index
    %c0_0 = arith.constant 0 : index
    %c0_1 = arith.constant 0 : index
    %0 = vector.load %arg1[%c0, %c0_0, %c0_1] : memref<1x324x128xbf16, #tpu.memory_space<vmem>>, vector<1x324x128xbf16>
    %1 = vector.shape_cast %0 : vector<1x324x128xbf16> to vector<324x128xbf16>
    %2 = arith.extf %1 : vector<324x128xbf16> to vector<324x128xf32>
    %c0_2 = arith.constant 0 : index
    %c0_3 = arith.constant 0 : index
    %3 = vector.load %arg11[%c0_2, %c0_3] : memref<324x128xf32, #tpu.memory_space<vmem>>, vector<324x128xf32>
    tpu.vector_store %arg11[%c0_2, %c0_3], %2 {strides = array<i32>} : memref<324x128xf32, #tpu.memory_space<vmem>>, vector<324x128xf32>,
    %cst = arith.constant 0.000000e+00 : f32
    %4 = vector.broadcast %cst : f32 to vector<286x128xf32>
    %c0_4 = arith.constant 0 : index
    %c0_5 = arith.constant 0 : index
    %5 = vector.load %arg11[%c0_4, %c0_5] : memref<324x128xf32, #tpu.memory_space<vmem>>, vector<286x128xf32>
    %c0_6 = arith.constant 0 : index
    %c0_7 = arith.constant 0 : index
    %c0_8 = arith.constant 0 : index
    %6 = vector.load %arg4[%c0_6, %c0_7, %c0_8] : memref<9x128x128xf32, #tpu.memory_space<vmem>>, vector<1x128x128xf32>
    %7 = vector.shape_cast %6 : vector<1x128x128xf32> to vector<128x128xf32>
    %cst_9 = arith.constant dense<0.000000e+00> : vector<286x128xf32>
    %8 = tpu.matmul %5, %7, %cst_9 {dimension_numbers = #tpu.dot_dimension_numbers<[1], [0], [0], [1], [0, 0, 1, 1], [], []>} : vector<286x128xf32>, vector<128x128xf32>, vector<286x128xf32> -> vector<286x128xf32>
    %9 = arith.addf %4, %8 : vector<286x128xf32>
    %c1 = arith.constant 1 : index
    %c0_10 = arith.constant 0 : index
    %10 = vector.load %arg11[%c1, %c0_10] : memref<324x128xf32, #tpu.memory_space<vmem>>, vector<286x128xf32>
    %c1_11 = arith.constant 1 : index
    %c0_12 = arith.constant 0 : index
    %c0_13 = arith.constant 0 : index
    %11 = vector.load %arg4[%c1_11, %c0_12, %c0_13] : memref<9x128x128xf32, #tpu.memory_space<vmem>>, vector<1x128x128xf32>
    %12 = vector.shape_cast %11 : vector<1x128x128xf32> to vector<128x128xf32>
    %cst_14 = arith.constant dense<0.000000e+00> : vector<286x128xf32>
    %13 = tpu.matmul %10, %12, %cst_14 {dimension_numbers = #tpu.dot_dimension_numbers<[1], [0], [0], [1], [0, 0, 1, 1], [], []>} : vector<286x128xf32>, vector<128x128xf32>, vector<286x128xf32> -> vector<286x128xf32>
    %14 = arith.addf %9, %13 : vector<286x128xf32>
    %c2 = arith.constant 2 : index
    %c0_15 = arith.constant 0 : index
    %15 = vector.load %arg11[%c2, %c0_15] : memref<324x128xf32, #tpu.memory_space<vmem>>, vector<286x128xf32>
    %c2_16 = arith.constant 2 : index
    %c0_17 = arith.constant 0 : index
    %c0_18 = arith.constant 0 : index
    %16 = vector.load %arg4[%c2_16, %c0_17, %c0_18] : memref<9x128x128xf32, #tpu.memory_space<vmem>>, vector<1x128x128xf32>
    %17 = vector.shape_cast %16 : vector<1x128x128xf32> to vector<128x128xf32>
    %cst_19 = arith.constant dense<0.000000e+00> : vector<286x128xf32>
    %18 = tpu.matmul %15, %17, %cst_19 {dimension_numbers = #tpu.dot_dimension_numbers<[1], [0], [0], [1], [0, 0, 1, 1], [], []>} : vector<286x128xf32>, vector<128x128xf32>, vector<286x128xf32> -> vector<286x128xf32>
    %19 = arith.addf %14, %18 : vector<286x128xf32>
    %c18 = arith.constant 18 : index
    %c0_20 = arith.constant 0 : index
    %20 = vector.load %arg11[%c18, %c0_20] : memref<324x128xf32, #tpu.memory_space<vmem>>, vector<286x128xf32>
    %c3 = arith.constant 3 : index
    %c0_21 = arith.constant 0 : index
    %c0_22 = arith.constant 0 : index
    %21 = vector.load %arg4[%c3, %c0_21, %c0_22] : memref<9x128x128xf32, #tpu.memory_space<vmem>>, vector<1x128x128xf32>
    %22 = vector.shape_cast %21 : vector<1x128x128xf32> to vector<128x128xf32>
    %cst_23 = arith.constant dense<0.000000e+00> : vector<286x128xf32>
    %23 = tpu.matmul %20, %22, %cst_23 {dimension_numbers = #tpu.dot_dimension_numbers<[1], [0], [0], [1], [0, 0, 1, 1], [], []>} : vector<286x128xf32>, vector<128x128xf32>, vector<286x128xf32> -> vector<286x128xf32>
    %24 = arith.addf %19, %23 : vector<286x128xf32>
    %c19 = arith.constant 19 : index
    %c0_24 = arith.constant 0 : index
    %25 = vector.load %arg11[%c19, %c0_24] : memref<324x128xf32, #tpu.memory_space<vmem>>, vector<286x128xf32>
    %c4 = arith.constant 4 : index
    %c0_25 = arith.constant 0 : index
    %c0_26 = arith.constant 0 : index
    %26 = vector.load %arg4[%c4, %c0_25, %c0_26] : memref<9x128x128xf32, #tpu.memory_space<vmem>>, vector<1x128x128xf32>
    %27 = vector.shape_cast %26 : vector<1x128x128xf32> to vector<128x128xf32>
    %cst_27 = arith.constant dense<0.000000e+00> : vector<286x128xf32>
    %28 = tpu.matmul %25, %27, %cst_27 {dimension_numbers = #tpu.dot_dimension_numbers<[1], [0], [0], [1], [0, 0, 1, 1], [], []>} : vector<286x128xf32>, vector<128x128xf32>, vector<286x128xf32> -> vector<286x128xf32>
    %29 = arith.addf %24, %28 : vector<286x128xf32>
    %c20 = arith.constant 20 : index
    %c0_28 = arith.constant 0 : index
    %30 = vector.load %arg11[%c20, %c0_28] : memref<324x128xf32, #tpu.memory_space<vmem>>, vector<286x128xf32>
    %c5 = arith.constant 5 : index
    %c0_29 = arith.constant 0 : index
    %c0_30 = arith.constant 0 : index
    %31 = vector.load %arg4[%c5, %c0_29, %c0_30] : memref<9x128x128xf32, #tpu.memory_space<vmem>>, vector<1x128x128xf32>
    %32 = vector.shape_cast %31 : vector<1x128x128xf32> to vector<128x128xf32>
    %cst_31 = arith.constant dense<0.000000e+00> : vector<286x128xf32>
    %33 = tpu.matmul %30, %32, %cst_31 {dimension_numbers = #tpu.dot_dimension_numbers<[1], [0], [0], [1], [0, 0, 1, 1], [], []>} : vector<286x128xf32>, vector<128x128xf32>, vector<286x128xf32> -> vector<286x128xf32>
    %34 = arith.addf %29, %33 : vector<286x128xf32>
    %c36 = arith.constant 36 : index
    %c0_32 = arith.constant 0 : index
    %35 = vector.load %arg11[%c36, %c0_32] : memref<324x128xf32, #tpu.memory_space<vmem>>, vector<286x128xf32>
    %c6 = arith.constant 6 : index
    %c0_33 = arith.constant 0 : index
    %c0_34 = arith.constant 0 : index
    %36 = vector.load %arg4[%c6, %c0_33, %c0_34] : memref<9x128x128xf32, #tpu.memory_space<vmem>>, vector<1x128x128xf32>
    %37 = vector.shape_cast %36 : vector<1x128x128xf32> to vector<128x128xf32>
    %cst_35 = arith.constant dense<0.000000e+00> : vector<286x128xf32>
    %38 = tpu.matmul %35, %37, %cst_35 {dimension_numbers = #tpu.dot_dimension_numbers<[1], [0], [0], [1], [0, 0, 1, 1], [], []>} : vector<286x128xf32>, vector<128x128xf32>, vector<286x128xf32> -> vector<286x128xf32>
    %39 = arith.addf %34, %38 : vector<286x128xf32>
    %c37 = arith.constant 37 : index
    %c0_36 = arith.constant 0 : index
    %40 = vector.load %arg11[%c37, %c0_36] : memref<324x128xf32, #tpu.memory_space<vmem>>, vector<286x128xf32>
    %c7 = arith.constant 7 : index
    %c0_37 = arith.constant 0 : index
    %c0_38 = arith.constant 0 : index
    %41 = vector.load %arg4[%c7, %c0_37, %c0_38] : memref<9x128x128xf32, #tpu.memory_space<vmem>>, vector<1x128x128xf32>
    %42 = vector.shape_cast %41 : vector<1x128x128xf32> to vector<128x128xf32>
    %cst_39 = arith.constant dense<0.000000e+00> : vector<286x128xf32>
    %43 = tpu.matmul %40, %42, %cst_39 {dimension_numbers = #tpu.dot_dimension_numbers<[1], [0], [0], [1], [0, 0, 1, 1], [], []>} : vector<286x128xf32>, vector<128x128xf32>, vector<286x128xf32> -> vector<286x128xf32>
    %44 = arith.addf %39, %43 : vector<286x128xf32>
    %c38 = arith.constant 38 : index
    %c0_40 = arith.constant 0 : index
    %45 = vector.load %arg11[%c38, %c0_40] : memref<324x128xf32, #tpu.memory_space<vmem>>, vector<286x128xf32>
    %c8 = arith.constant 8 : index
    %c0_41 = arith.constant 0 : index
    %c0_42 = arith.constant 0 : index
    %46 = vector.load %arg4[%c8, %c0_41, %c0_42] : memref<9x128x128xf32, #tpu.memory_space<vmem>>, vector<1x128x128xf32>
    %47 = vector.shape_cast %46 : vector<1x128x128xf32> to vector<128x128xf32>
    %cst_43 = arith.constant dense<0.000000e+00> : vector<286x128xf32>
    %48 = tpu.matmul %45, %47, %cst_43 {dimension_numbers = #tpu.dot_dimension_numbers<[1], [0], [0], [1], [0, 0, 1, 1], [], []>} : vector<286x128xf32>, vector<128x128xf32>, vector<286x128xf32> -> vector<286x128xf32>
    %49 = arith.addf %44, %48 : vector<286x128xf32>
    %c0_44 = arith.constant 0 : index
    %c0_45 = arith.constant 0 : index
    %50 = vector.load %arg5[%c0_44, %c0_45] : memref<1x128xf32, #tpu.memory_space<vmem>>, vector<1x128xf32>
    %51 = vector.broadcast %50 : vector<1x128xf32> to vector<286x128xf32>
    %52 = arith.addf %49, %51 : vector<286x128xf32>
    %cst_46 = arith.constant 0.000000e+00 : f32
    %53 = vector.broadcast %cst_46 : f32 to vector<286x128xf32>
    %54 = arith.maximumf %52, %53 : vector<286x128xf32>
    %c0_47 = arith.constant 0 : index
    %c0_48 = arith.constant 0 : index
    %c0_49 = arith.constant 0 : index
    %55 = vector.load %arg2[%c0_47, %c0_48, %c0_49] : memref<1x1x128xf32, #tpu.memory_space<vmem>>, vector<1x1x128xf32>
    %56 = vector.shape_cast %55 : vector<1x1x128xf32> to vector<1x128xf32>
    %57 = vector.broadcast %56 : vector<1x128xf32> to vector<286x128xf32>
    %58 = arith.addf %54, %57 : vector<286x128xf32>
    %c0_50 = arith.constant 0 : index
    %c0_51 = arith.constant 0 : index
    %59 = vector.load %arg3[%c0_50, %c0_51] : memref<286x1xf32, #tpu.memory_space<vmem>>, vector<286x1xf32>
    %60 = vector.broadcast %59 : vector<286x1xf32> to vector<286x128xf32>
    %61 = arith.mulf %58, %60 : vector<286x128xf32>
    %cst_52 = arith.constant 0.000000e+00 : f32
    %62 = vector.broadcast %cst_52 : f32 to vector<324x128xf32>
    %c0_53 = arith.constant 0 : index
    %c0_54 = arith.constant 0 : index
    %63 = vector.load %arg12[%c0_53, %c0_54] : memref<324x128xf32, #tpu.memory_space<vmem>>, vector<324x128xf32>
    tpu.vector_store %arg12[%c0_53, %c0_54], %62 {strides = array<i32>} : memref<324x128xf32, #tpu.memory_space<vmem>>, vector<324x128xf32>,
    %c19_55 = arith.constant 19 : index
    %c0_56 = arith.constant 0 : index
    %64 = vector.load %arg12[%c19_55, %c0_56] : memref<324x128xf32, #tpu.memory_space<vmem>>, vector<286x128xf32>
    tpu.vector_store %arg12[%c19_55, %c0_56], %61 {strides = array<i32>} : memref<324x128xf32, #tpu.memory_space<vmem>>, vector<286x128xf32>,
    %cst_57 = arith.constant 0.000000e+00 : f32
    %65 = vector.broadcast %cst_57 : f32 to vector<286x128xf32>
    %c0_58 = arith.constant 0 : index
    %c0_59 = arith.constant 0 : index
    %66 = vector.load %arg12[%c0_58, %c0_59] : memref<324x128xf32, #tpu.memory_space<vmem>>, vector<286x128xf32>
    %c0_60 = arith.constant 0 : index
    %c0_61 = arith.constant 0 : index
    %c0_62 = arith.constant 0 : index
    %67 = vector.load %arg6[%c0_60, %c0_61, %c0_62] : memref<9x128x128xf32, #tpu.memory_space<vmem>>, vector<1x128x128xf32>
    %68 = vector.shape_cast %67 : vector<1x128x128xf32> to vector<128x128xf32>
    %cst_63 = arith.constant dense<0.000000e+00> : vector<286x128xf32>
    %69 = tpu.matmul %66, %68, %cst_63 {dimension_numbers = #tpu.dot_dimension_numbers<[1], [0], [0], [1], [0, 0, 1, 1], [], []>} : vector<286x128xf32>, vector<128x128xf32>, vector<286x128xf32> -> vector<286x128xf32>
    %70 = arith.addf %65, %69 : vector<286x128xf32>
    %c1_64 = arith.constant 1 : index
    %c0_65 = arith.constant 0 : index
    %71 = vector.load %arg12[%c1_64, %c0_65] : memref<324x128xf32, #tpu.memory_space<vmem>>, vector<286x128xf32>
    %c1_66 = arith.constant 1 : index
    %c0_67 = arith.constant 0 : index
    %c0_68 = arith.constant 0 : index
    %72 = vector.load %arg6[%c1_66, %c0_67, %c0_68] : memref<9x128x128xf32, #tpu.memory_space<vmem>>, vector<1x128x128xf32>
    %73 = vector.shape_cast %72 : vector<1x128x128xf32> to vector<128x128xf32>
    %cst_69 = arith.constant dense<0.000000e+00> : vector<286x128xf32>
    %74 = tpu.matmul %71, %73, %cst_69 {dimension_numbers = #tpu.dot_dimension_numbers<[1], [0], [0], [1], [0, 0, 1, 1], [], []>} : vector<286x128xf32>, vector<128x128xf32>, vector<286x128xf32> -> vector<286x128xf32>
    %75 = arith.addf %70, %74 : vector<286x128xf32>
    %c2_70 = arith.constant 2 : index
    %c0_71 = arith.constant 0 : index
    %76 = vector.load %arg12[%c2_70, %c0_71] : memref<324x128xf32, #tpu.memory_space<vmem>>, vector<286x128xf32>
    %c2_72 = arith.constant 2 : index
    %c0_73 = arith.constant 0 : index
    %c0_74 = arith.constant 0 : index
    %77 = vector.load %arg6[%c2_72, %c0_73, %c0_74] : memref<9x128x128xf32, #tpu.memory_space<vmem>>, vector<1x128x128xf32>
    %78 = vector.shape_cast %77 : vector<1x128x128xf32> to vector<128x128xf32>
    %cst_75 = arith.constant dense<0.000000e+00> : vector<286x128xf32>
    %79 = tpu.matmul %76, %78, %cst_75 {dimension_numbers = #tpu.dot_dimension_numbers<[1], [0], [0], [1], [0, 0, 1, 1], [], []>} : vector<286x128xf32>, vector<128x128xf32>, vector<286x128xf32> -> vector<286x128xf32>
    %80 = arith.addf %75, %79 : vector<286x128xf32>
    %c18_76 = arith.constant 18 : index
    %c0_77 = arith.constant 0 : index
    %81 = vector.load %arg12[%c18_76, %c0_77] : memref<324x128xf32, #tpu.memory_space<vmem>>, vector<286x128xf32>
    %c3_78 = arith.constant 3 : index
    %c0_79 = arith.constant 0 : index
    %c0_80 = arith.constant 0 : index
    %82 = vector.load %arg6[%c3_78, %c0_79, %c0_80] : memref<9x128x128xf32, #tpu.memory_space<vmem>>, vector<1x128x128xf32>
    %83 = vector.shape_cast %82 : vector<1x128x128xf32> to vector<128x128xf32>
    %cst_81 = arith.constant dense<0.000000e+00> : vector<286x128xf32>
    %84 = tpu.matmul %81, %83, %cst_81 {dimension_numbers = #tpu.dot_dimension_numbers<[1], [0], [0], [1], [0, 0, 1, 1], [], []>} : vector<286x128xf32>, vector<128x128xf32>, vector<286x128xf32> -> vector<286x128xf32>
    %85 = arith.addf %80, %84 : vector<286x128xf32>
    %c19_82 = arith.constant 19 : index
    %c0_83 = arith.constant 0 : index
    %86 = vector.load %arg12[%c19_82, %c0_83] : memref<324x128xf32, #tpu.memory_space<vmem>>, vector<286x128xf32>
    %c4_84 = arith.constant 4 : index
    %c0_85 = arith.constant 0 : index
    %c0_86 = arith.constant 0 : index
    %87 = vector.load %arg6[%c4_84, %c0_85, %c0_86] : memref<9x128x128xf32, #tpu.memory_space<vmem>>, vector<1x128x128xf32>
    %88 = vector.shape_cast %87 : vector<1x128x128xf32> to vector<128x128xf32>
    %cst_87 = arith.constant dense<0.000000e+00> : vector<286x128xf32>
    %89 = tpu.matmul %86, %88, %cst_87 {dimension_numbers = #tpu.dot_dimension_numbers<[1], [0], [0], [1], [0, 0, 1, 1], [], []>} : vector<286x128xf32>, vector<128x128xf32>, vector<286x128xf32> -> vector<286x128xf32>
    %90 = arith.addf %85, %89 : vector<286x128xf32>
    %c20_88 = arith.constant 20 : index
    %c0_89 = arith.constant 0 : index
    %91 = vector.load %arg12[%c20_88, %c0_89] : memref<324x128xf32, #tpu.memory_space<vmem>>, vector<286x128xf32>
    %c5_90 = arith.constant 5 : index
    %c0_91 = arith.constant 0 : index
    %c0_92 = arith.constant 0 : index
    %92 = vector.load %arg6[%c5_90, %c0_91, %c0_92] : memref<9x128x128xf32, #tpu.memory_space<vmem>>, vector<1x128x128xf32>
    %93 = vector.shape_cast %92 : vector<1x128x128xf32> to vector<128x128xf32>
    %cst_93 = arith.constant dense<0.000000e+00> : vector<286x128xf32>
    %94 = tpu.matmul %91, %93, %cst_93 {dimension_numbers = #tpu.dot_dimension_numbers<[1], [0], [0], [1], [0, 0, 1, 1], [], []>} : vector<286x128xf32>, vector<128x128xf32>, vector<286x128xf32> -> vector<286x128xf32>
    %95 = arith.addf %90, %94 : vector<286x128xf32>
    %c36_94 = arith.constant 36 : index
    %c0_95 = arith.constant 0 : index
    %96 = vector.load %arg12[%c36_94, %c0_95] : memref<324x128xf32, #tpu.memory_space<vmem>>, vector<286x128xf32>
    %c6_96 = arith.constant 6 : index
    %c0_97 = arith.constant 0 : index
    %c0_98 = arith.constant 0 : index
    %97 = vector.load %arg6[%c6_96, %c0_97, %c0_98] : memref<9x128x128xf32, #tpu.memory_space<vmem>>, vector<1x128x128xf32>
    %98 = vector.shape_cast %97 : vector<1x128x128xf32> to vector<128x128xf32>
    %cst_99 = arith.constant dense<0.000000e+00> : vector<286x128xf32>
    %99 = tpu.matmul %96, %98, %cst_99 {dimension_numbers = #tpu.dot_dimension_numbers<[1], [0], [0], [1], [0, 0, 1, 1], [], []>} : vector<286x128xf32>, vector<128x128xf32>, vector<286x128xf32> -> vector<286x128xf32>
    %100 = arith.addf %95, %99 : vector<286x128xf32>
    %c37_100 = arith.constant 37 : index
    %c0_101 = arith.constant 0 : index
    %101 = vector.load %arg12[%c37_100, %c0_101] : memref<324x128xf32, #tpu.memory_space<vmem>>, vector<286x128xf32>
    %c7_102 = arith.constant 7 : index
    %c0_103 = arith.constant 0 : index
    %c0_104 = arith.constant 0 : index
    %102 = vector.load %arg6[%c7_102, %c0_103, %c0_104] : memref<9x128x128xf32, #tpu.memory_space<vmem>>, vector<1x128x128xf32>
    %103 = vector.shape_cast %102 : vector<1x128x128xf32> to vector<128x128xf32>
    %cst_105 = arith.constant dense<0.000000e+00> : vector<286x128xf32>
    %104 = tpu.matmul %101, %103, %cst_105 {dimension_numbers = #tpu.dot_dimension_numbers<[1], [0], [0], [1], [0, 0, 1, 1], [], []>} : vector<286x128xf32>, vector<128x128xf32>, vector<286x128xf32> -> vector<286x128xf32>
    %105 = arith.addf %100, %104 : vector<286x128xf32>
    %c38_106 = arith.constant 38 : index
    %c0_107 = arith.constant 0 : index
    %106 = vector.load %arg12[%c38_106, %c0_107] : memref<324x128xf32, #tpu.memory_space<vmem>>, vector<286x128xf32>
    %c8_108 = arith.constant 8 : index
    %c0_109 = arith.constant 0 : index
    %c0_110 = arith.constant 0 : index
    %107 = vector.load %arg6[%c8_108, %c0_109, %c0_110] : memref<9x128x128xf32, #tpu.memory_space<vmem>>, vector<1x128x128xf32>
    %108 = vector.shape_cast %107 : vector<1x128x128xf32> to vector<128x128xf32>
    %cst_111 = arith.constant dense<0.000000e+00> : vector<286x128xf32>
    %109 = tpu.matmul %106, %108, %cst_111 {dimension_numbers = #tpu.dot_dimension_numbers<[1], [0], [0], [1], [0, 0, 1, 1], [], []>} : vector<286x128xf32>, vector<128x128xf32>, vector<286x128xf32> -> vector<286x128xf32>
    %110 = arith.addf %105, %109 : vector<286x128xf32>
    %c0_112 = arith.constant 0 : index
    %c0_113 = arith.constant 0 : index
    %111 = vector.load %arg7[%c0_112, %c0_113] : memref<1x128xf32, #tpu.memory_space<vmem>>, vector<1x128xf32>
    %112 = vector.broadcast %111 : vector<1x128xf32> to vector<286x128xf32>
    %113 = arith.addf %110, %112 : vector<286x128xf32>
    %cst_114 = arith.constant 0.000000e+00 : f32
    %114 = vector.broadcast %cst_114 : f32 to vector<286x128xf32>
    %115 = arith.maximumf %113, %114 : vector<286x128xf32>
    %c19_115 = arith.constant 19 : index
    %c0_116 = arith.constant 0 : index
    %116 = vector.load %arg11[%c19_115, %c0_116] : memref<324x128xf32, #tpu.memory_space<vmem>>, vector<286x128xf32>
    %c0_117 = arith.constant 0 : index
    %c0_118 = arith.constant 0 : index
    %117 = vector.load %arg8[%c0_117, %c0_118] : memref<128x128xf32, #tpu.memory_space<vmem>>, vector<128x128xf32>
    %cst_119 = arith.constant dense<0.000000e+00> : vector<286x128xf32>
    %118 = tpu.matmul %116, %117, %cst_119 {dimension_numbers = #tpu.dot_dimension_numbers<[1], [0], [0], [1], [0, 0, 1, 1], [], []>} : vector<286x128xf32>, vector<128x128xf32>, vector<286x128xf32> -> vector<286x128xf32>
    %119 = arith.addf %115, %118 : vector<286x128xf32>
    %c0_120 = arith.constant 0 : index
    %c0_121 = arith.constant 0 : index
    %120 = vector.load %arg9[%c0_120, %c0_121] : memref<1x128xf32, #tpu.memory_space<vmem>>, vector<1x128xf32>
    %121 = vector.broadcast %120 : vector<1x128xf32> to vector<286x128xf32>
    %122 = arith.addf %119, %121 : vector<286x128xf32>
    %c0_122 = arith.constant 0 : index
    %c0_123 = arith.constant 0 : index
    %c0_124 = arith.constant 0 : index
    %123 = vector.load %arg10[%c0_122, %c0_123, %c0_124] : memref<1x288x128xf32, #tpu.memory_space<vmem>>, vector<1x286x128xf32>
    %124 = vector.shape_cast %123 : vector<1x286x128xf32> to vector<286x128xf32>
    %125 = vector.shape_cast %122 : vector<286x128xf32> to vector<1x286x128xf32>
    tpu.vector_store %arg10[%c0_122, %c0_123, %c0_124], %125 {strides = array<i32>} : memref<1x288x128xf32, #tpu.memory_space<vmem>>, vector<1x286x128xf32>,
    %cst_125 = arith.constant 0.000000e+00 : f32
    %126 = vector.broadcast %cst_125 : f32 to vector<2x128xf32>
    %c0_126 = arith.constant 0 : index
    %c286 = arith.constant 286 : index
    %c0_127 = arith.constant 0 : index
    %127 = vector.load %arg10[%c0_126, %c286, %c0_127] : memref<1x288x128xf32, #tpu.memory_space<vmem>>, vector<1x2x128xf32>
    %128 = vector.shape_cast %127 : vector<1x2x128xf32> to vector<2x128xf32>
    %129 = vector.shape_cast %126 : vector<2x128xf32> to vector<1x2x128xf32>
    tpu.vector_store %arg10[%c0_126, %c286, %c0_127], %129 {strides = array<i32>} : memref<1x288x128xf32, #tpu.memory_space<vmem>>, vector<1x2x128xf32>,
    return
  }
  func.func @transform_0(%arg0: i32) -> (i32, i32, i32) {
    %c0_i32 = arith.constant 0 : i32
    %c0_i32_0 = arith.constant 0 : i32
    %c0_i32_1 = arith.constant 0 : i32
    return %arg0, %c0_i32, %c0_i32_0 : i32, i32, i32
  }
  func.func @transform_1(%arg0: i32) -> (i32, i32, i32) {
    %c0_i32 = arith.constant 0 : i32
    %c0_i32_0 = arith.constant 0 : i32
    %c0_i32_1 = arith.constant 0 : i32
    return %arg0, %c0_i32, %c0_i32_0 : i32, i32, i32
  }
  func.func @transform_2(%arg0: i32) -> (i32, i32) {
    %c0_i32 = arith.constant 0 : i32
    %c0_i32_0 = arith.constant 0 : i32
    %c0_i32_1 = arith.constant 0 : i32
    return %c0_i32, %c0_i32_0 : i32, i32
  }
  func.func @transform_3(%arg0: i32) -> (i32, i32, i32) {
    %c0_i32 = arith.constant 0 : i32
    %c0_i32_0 = arith.constant 0 : i32
    %c0_i32_1 = arith.constant 0 : i32
    %c0_i32_2 = arith.constant 0 : i32
    return %c0_i32, %c0_i32_0, %c0_i32_1 : i32, i32, i32
  }
  func.func @transform_4(%arg0: i32) -> (i32, i32) {
    %c0_i32 = arith.constant 0 : i32
    %c0_i32_0 = arith.constant 0 : i32
    %c0_i32_1 = arith.constant 0 : i32
    return %c0_i32, %c0_i32_0 : i32, i32
  }
  func.func @transform_5(%arg0: i32) -> (i32, i32, i32) {
    %c0_i32 = arith.constant 0 : i32
    %c0_i32_0 = arith.constant 0 : i32
    %c0_i32_1 = arith.constant 0 : i32
    %c0_i32_2 = arith.constant 0 : i32
    return %c0_i32, %c0_i32_0, %c0_i32_1 : i32, i32, i32
  }
  func.func @transform_6(%arg0: i32) -> (i32, i32) {
    %c0_i32 = arith.constant 0 : i32
    %c0_i32_0 = arith.constant 0 : i32
    %c0_i32_1 = arith.constant 0 : i32
    return %c0_i32, %c0_i32_0 : i32, i32
  }
  func.func @transform_7(%arg0: i32) -> (i32, i32) {
    %c0_i32 = arith.constant 0 : i32
    %c0_i32_0 = arith.constant 0 : i32
    %c0_i32_1 = arith.constant 0 : i32
    return %c0_i32, %c0_i32_0 : i32, i32
  }
  func.func @transform_8(%arg0: i32) -> (i32, i32) {
    %c0_i32 = arith.constant 0 : i32
    %c0_i32_0 = arith.constant 0 : i32
    %c0_i32_1 = arith.constant 0 : i32
    return %c0_i32, %c0_i32_0 : i32, i32
  }
  func.func @transform_9(%arg0: i32) -> (i32, i32, i32) {
    %c0_i32 = arith.constant 0 : i32
    %c0_i32_0 = arith.constant 0 : i32
    %c0_i32_1 = arith.constant 0 : i32
    return %arg0, %c0_i32, %c0_i32_0 : i32, i32, i32
  }
}

</mosaic_0001>

<llo_original>
// kernel: resblock_forward.1
$region0: #{resblock_forward.1}
  #allocation0 [shape = 'u32[]', space=smem, size = 0x4, offset = 0x4, fixed_abs, tag = 'smem constant byte address 0x4 - core index']
  #allocation1 [shape = 'u32[144,128]{1,0:T(1,128)}', space=vmem, size = 0x12000, scoped, tag = 'internal scratch']
  #allocation2 [shape = 'f32[324,128]{1,0:T(8,128)}', space=vmem, size = 0x29000, scoped, tag = 'scratch operand']
  #allocation3 [shape = 'f32[324,128]{1,0:T(8,128)}', space=vmem, size = 0x29000, scoped, tag = 'scratch operand']
  %s0 = inlined_call_operand.vmem [shape: bf16[2,324,128], index: 0, kind: input, shape index: {}]
  %s1 = inlined_call_operand.vmem [shape: f32[2,1,128], index: 1, kind: input, shape index: {}]
  %s2 = inlined_call_operand.vmem [shape: f32[286,1], index: 2, kind: input, shape index: {}]
  %s3 = inlined_call_operand.vmem [shape: f32[9,128,128], index: 3, kind: input, shape index: {}]
  %s4 = inlined_call_operand.vmem [shape: f32[1,128], index: 4, kind: input, shape index: {}]
  %s5 = inlined_call_operand.vmem [shape: f32[9,128,128], index: 5, kind: input, shape index: {}]
  %s6 = inlined_call_operand.vmem [shape: f32[1,128], index: 6, kind: input, shape index: {}]
  %s7 = inlined_call_operand.vmem [shape: f32[128,128], index: 7, kind: input, shape index: {}]
  %s8 = inlined_call_operand.vmem [shape: f32[1,128], index: 8, kind: input, shape index: {}]
  %s9 = inlined_call_operand.vmem [shape: f32[2,288,128], index: 9, kind: output, shape index: {}]
  %s10 = sld [smem:[#allocation0]]
  $region69: #{resblock_forward.1} parent=0
    _
  %s12 = ssub.s32 1, %s10
  %s13 = scalar_select 0, %s12, %s10
  loop: start=0, step=1, limit=4
  $region2: #{resblock_forward.1} parent=0 // loop_pre_header
    _
  $region3: #{resblock_forward.1} parent=0 // loop_header
    %s15 = sphi 0, %s19
    %p16 = scmp.ge.s32.totalorder %s15, 4
    %s25 = sphi 0, %s27
    %s28 = sphi 0, %s25
    %s29 = sphi 0, %s28
    %s45 = sphi 0, %s29
    %s51 = sphi 0, %s53
    %s54 = sphi 0, %s51
    %s55 = sphi 0, %s54
    %s71 = sphi 0, %s55
    %s75 = sphi 0, %s75
    %s77 = sphi 0, %s75
    %s78 = sphi 0, %s77
    %s92 = sphi 0, %s78
    %s96 = sphi 0, %s96
    %s98 = sphi 0, %s96
    %s99 = sphi 0, %s98
    %s113 = sphi 0, %s99
    %s117 = sphi 0, %s117
    %s119 = sphi 0, %s117
    %s120 = sphi 0, %s119
    %s134 = sphi 0, %s120
    %s138 = sphi 0, %s138
    %s140 = sphi 0, %s138
    %s141 = sphi 0, %s140
    %s155 = sphi 0, %s141
    %s159 = sphi 0, %s159
    %s161 = sphi 0, %s159
    %s162 = sphi 0, %s161
    %s176 = sphi 0, %s162
    %s180 = sphi 0, %s180
    %s182 = sphi 0, %s180
    %s183 = sphi 0, %s182
    %s197 = sphi 0, %s183
    %s201 = sphi 0, %s201
    %s203 = sphi 0, %s201
    %s204 = sphi 0, %s203
    %s218 = sphi 0, %s204
    %s224 = sphi 0, %s226
    %s227 = sphi 0, %s224
    %s228 = sphi 0, %s227
    %s244 = sphi 0, %s228
  $region4: #{resblock_forward.1} parent=0 // loop_header_branch
    %18 = sbr.rel (%p16) target = $region8
  $region5: #{resblock_forward.1} parent=0 // loop_body
    %s20 = ssub.s32 %s15, 1
    %s21 = ssub.s32 %s15, 2
    %s22 = sadd.s32 %s15, 1
    %s23 = ssub.s32 %s15, %s22
    %p24 = scmp.eq.s32.totalorder %s23, 0
    %s26 = sadd.s32 %s25, 1
    %s27 = scalar_select %p24, %s25, %s26
    %p30 = pneg %p24
    %p31 = scmp.eq.s32.totalorder %s15, 1
    %p32 = por %p30, %p31
    %p33 = scmp.ne.s32.totalorder %s25, %s28
    %p34 = scmp.eq.s32.totalorder %s15, 0
    %p35 = por %p33, %p34
    %p36 = scmp.ne.s32.totalorder %s25, %s28
    %p37 = scmp.eq.s32.totalorder %s20, 1
    %p38 = por %p36, %p37
    %p39 = scmp.ne.s32.totalorder %s28, %s29
    %p40 = scmp.eq.s32.totalorder %s20, 0
    %p41 = por %p39, %p40
    %p42 = scmp.ne.s32.totalorder %s28, %s29
    %p43 = scmp.eq.s32.totalorder %s21, 1
    %p44 = por %p42, %p43
    %p46 = scmp.ne.s32.totalorder %s29, %s45
    %p47 = scmp.eq.s32.totalorder %s21, 0
    %p48 = por %p46, %p47
    %s49 = ssub.s32 %s15, %s22
    %p50 = scmp.eq.s32.totalorder %s49, 0
    %s52 = sadd.s32 %s51, 1
    %s53 = scalar_select %p50, %s51, %s52
    %p56 = pneg %p50
    %p57 = scmp.eq.s32.totalorder %s15, 1
    %p58 = por %p56, %p57
    %p59 = scmp.ne.s32.totalorder %s51, %s54
    %p60 = scmp.eq.s32.totalorder %s15, 0
    %p61 = por %p59, %p60
    %p62 = scmp.ne.s32.totalorder %s51, %s54
    %p63 = scmp.eq.s32.totalorder %s20, 1
    %p64 = por %p62, %p63
    %p65 = scmp.ne.s32.totalorder %s54, %s55
    %p66 = scmp.eq.s32.totalorder %s20, 0
    %p67 = por %p65, %p66
    %p68 = scmp.ne.s32.totalorder %s54, %s55
    %p69 = scmp.eq.s32.totalorder %s21, 1
    %p70 = por %p68, %p69
    %p72 = scmp.ne.s32.totalorder %s55, %s71
    %p73 = scmp.eq.s32.totalorder %s21, 0
    %p74 = por %p72, %p73
    %s76 = sadd.s32 %s75, 1
    %p79 = scmp.eq.s32.totalorder %s15, 1
    %p80 = scmp.ne.s32.totalorder %s75, %s77
    %p81 = scmp.eq.s32.totalorder %s15, 0
    %p82 = por %p80, %p81
    %p83 = scmp.ne.s32.totalorder %s75, %s77
    %p84 = scmp.eq.s32.totalorder %s20, 1
    %p85 = por %p83, %p84
    %p86 = scmp.ne.s32.totalorder %s77, %s78
    %p87 = scmp.eq.s32.totalorder %s20, 0
    %p88 = por %p86, %p87
    %p89 = scmp.ne.s32.totalorder %s77, %s78
    %p90 = scmp.eq.s32.totalorder %s21, 1
    %p91 = por %p89, %p90
    %p93 = scmp.ne.s32.totalorder %s78, %s92
    %p94 = scmp.eq.s32.totalorder %s21, 0
    %p95 = por %p93, %p94
    %s97 = sadd.s32 %s96, 1
    %p100 = scmp.eq.s32.totalorder %s15, 1
    %p101 = scmp.ne.s32.totalorder %s96, %s98
    %p102 = scmp.eq.s32.totalorder %s15, 0
    %p103 = por %p101, %p102
    %p104 = scmp.ne.s32.totalorder %s96, %s98
    %p105 = scmp.eq.s32.totalorder %s20, 1
    %p106 = por %p104, %p105
    %p107 = scmp.ne.s32.totalorder %s98, %s99
    %p108 = scmp.eq.s32.totalorder %s20, 0
    %p109 = por %p107, %p108
    %p110 = scmp.ne.s32.totalorder %s98, %s99
    %p111 = scmp.eq.s32.totalorder %s21, 1
    %p112 = por %p110, %p111
    %p114 = scmp.ne.s32.totalorder %s99, %s113
    %p115 = scmp.eq.s32.totalorder %s21, 0
    %p116 = por %p114, %p115
    %s118 = sadd.s32 %s117, 1
    %p121 = scmp.eq.s32.totalorder %s15, 1
    %p122 = scmp.ne.s32.totalorder %s117, %s119
    %p123 = scmp.eq.s32.totalorder %s15, 0
    %p124 = por %p122, %p123
    %p125 = scmp.ne.s32.totalorder %s117, %s119
    %p126 = scmp.eq.s32.totalorder %s20, 1
    %p127 = por %p125, %p126
    %p128 = scmp.ne.s32.totalorder %s119, %s120
    %p129 = scmp.eq.s32.totalorder %s20, 0
    %p130 = por %p128, %p129
    %p131 = scmp.ne.s32.totalorder %s119, %s120
    %p132 = scmp.eq.s32.totalorder %s21, 1
    %p133 = por %p131, %p132
    %p135 = scmp.ne.s32.totalorder %s120, %s134
    %p136 = scmp.eq.s32.totalorder %s21, 0
    %p137 = por %p135, %p136
    %s139 = sadd.s32 %s138, 1
    %p142 = scmp.eq.s32.totalorder %s15, 1
    %p143 = scmp.ne.s32.totalorder %s138, %s140
    %p144 = scmp.eq.s32.totalorder %s15, 0
    %p145 = por %p143, %p144
    %p146 = scmp.ne.s32.totalorder %s138, %s140
    %p147 = scmp.eq.s32.totalorder %s20, 1
    %p148 = por %p146, %p147
    %p149 = scmp.ne.s32.totalorder %s140, %s141
    %p150 = scmp.eq.s32.totalorder %s20, 0
    %p151 = por %p149, %p150
    %p152 = scmp.ne.s32.totalorder %s140, %s141
    %p153 = scmp.eq.s32.totalorder %s21, 1
    %p154 = por %p152, %p153
    %p156 = scmp.ne.s32.totalorder %s141, %s155
    %p157 = scmp.eq.s32.totalorder %s21, 0
    %p158 = por %p156, %p157
    %s160 = sadd.s32 %s159, 1
    %p163 = scmp.eq.s32.totalorder %s15, 1
    %p164 = scmp.ne.s32.totalorder %s159, %s161
    %p165 = scmp.eq.s32.totalorder %s15, 0
    %p166 = por %p164, %p165
    %p167 = scmp.ne.s32.totalorder %s159, %s161
    %p168 = scmp.eq.s32.totalorder %s20, 1
    %p169 = por %p167, %p168
    %p170 = scmp.ne.s32.totalorder %s161, %s162
    %p171 = scmp.eq.s32.totalorder %s20, 0
    %p172 = por %p170, %p171
    %p173 = scmp.ne.s32.totalorder %s161, %s162
    %p174 = scmp.eq.s32.totalorder %s21, 1
    %p175 = por %p173, %p174
    %p177 = scmp.ne.s32.totalorder %s162, %s176
    %p178 = scmp.eq.s32.totalorder %s21, 0
    %p179 = por %p177, %p178
    %s181 = sadd.s32 %s180, 1
    %p184 = scmp.eq.s32.totalorder %s15, 1
    %p185 = scmp.ne.s32.totalorder %s180, %s182
    %p186 = scmp.eq.s32.totalorder %s15, 0
    %p187 = por %p185, %p186
    %p188 = scmp.ne.s32.totalorder %s180, %s182
    %p189 = scmp.eq.s32.totalorder %s20, 1
    %p190 = por %p188, %p189
    %p191 = scmp.ne.s32.totalorder %s182, %s183
    %p192 = scmp.eq.s32.totalorder %s20, 0
    %p193 = por %p191, %p192
    %p194 = scmp.ne.s32.totalorder %s182, %s183
    %p195 = scmp.eq.s32.totalorder %s21, 1
    %p196 = por %p194, %p195
    %p198 = scmp.ne.s32.totalorder %s183, %s197
    %p199 = scmp.eq.s32.totalorder %s21, 0
    %p200 = por %p198, %p199
    %s202 = sadd.s32 %s201, 1
    %p205 = scmp.eq.s32.totalorder %s15, 1
    %p206 = scmp.ne.s32.totalorder %s201, %s203
    %p207 = scmp.eq.s32.totalorder %s15, 0
    %p208 = por %p206, %p207
    %p209 = scmp.ne.s32.totalorder %s201, %s203
    %p210 = scmp.eq.s32.totalorder %s20, 1
    %p211 = por %p209, %p210
    %p212 = scmp.ne.s32.totalorder %s203, %s204
    %p213 = scmp.eq.s32.totalorder %s20, 0
    %p214 = por %p212, %p213
    %p215 = scmp.ne.s32.totalorder %s203, %s204
    %p216 = scmp.eq.s32.totalorder %s21, 1
    %p217 = por %p215, %p216
    %p219 = scmp.ne.s32.totalorder %s204, %s218
    %p220 = scmp.eq.s32.totalorder %s21, 0
    %p221 = por %p219, %p220
    %s222 = ssub.s32 %s15, %s22
    %p223 = scmp.eq.s32.totalorder %s222, 0
    %s225 = sadd.s32 %s224, 1
    %s226 = scalar_select %p223, %s224, %s225
    %p229 = pneg %p223
    %p230 = scmp.eq.s32.totalorder %s15, 1
    %p231 = por %p229, %p230
    %p232 = scmp.ne.s32.totalorder %s224, %s227
    %p233 = scmp.eq.s32.totalorder %s15, 0
    %p234 = por %p232, %p233
    %p235 = scmp.ne.s32.totalorder %s224, %s227
    %p236 = scmp.eq.s32.totalorder %s20, 1
    %p237 = por %p235, %p236
    %p238 = scmp.ne.s32.totalorder %s227, %s228
    %p239 = scmp.eq.s32.totalorder %s20, 0
    %p240 = por %p238, %p239
    %p241 = scmp.ne.s32.totalorder %s227, %s228
    %p242 = scmp.eq.s32.totalorder %s21, 1
    %p243 = por %p241, %p242
    %p245 = scmp.ne.s32.totalorder %s228, %s244
    %p246 = scmp.eq.s32.totalorder %s21, 0
    %p247 = por %p245, %p246
    %p248 = scmp.le.s32.totalorder 1, %s15
    %p249 = scmp.lt.s32.totalorder %s15, 3
    %p250 = pnand %p248, %p249
    %p251 = pneg %p250
    // Predicated region
    $region9: #{resblock_forward.1} parent=5 // pred_check
      _
    $region10: #{resblock_forward.1} parent=5 // pred_check_branch
      %253 = sbr.rel (%p250) target = $region12
    $region11: #{resblock_forward.1} parent=5 // pred_region
      %s254 = ssub.s32 %s15, 1
      // Predicated region
      $region13: #{resblock_forward.1} parent=11 // pred_check
        %p255 = pneg %p88
      $region14: #{resblock_forward.1} parent=11 // pred_check_branch
        %257 = sbr.rel (%p255) target = $region16
      $region15: #{resblock_forward.1} parent=11 // pred_region
        _
      $region16: #{resblock_forward.1} parent=11 // pred_fallthru
        _
      // Predicated region
      $region17: #{resblock_forward.1} parent=11 // pred_check
        %p258 = pneg %p109
      $region18: #{resblock_forward.1} parent=11 // pred_check_branch
        %260 = sbr.rel (%p258) target = $region20
      $region19: #{resblock_forward.1} parent=11 // pred_region
        _
      $region20: #{resblock_forward.1} parent=11 // pred_fallthru
        _
      // Predicated region
      $region21: #{resblock_forward.1} parent=11 // pred_check
        %p261 = pneg %p130
      $region22: #{resblock_forward.1} parent=11 // pred_check_branch
        %263 = sbr.rel (%p261) target = $region24
      $region23: #{resblock_forward.1} parent=11 // pred_region
        _
      $region24: #{resblock_forward.1} parent=11 // pred_fallthru
        _
      // Predicated region
      $region25: #{resblock_forward.1} parent=11 // pred_check
        %p264 = pneg %p151
      $region26: #{resblock_forward.1} parent=11 // pred_check_branch
        %266 = sbr.rel (%p264) target = $region28
      $region27: #{resblock_forward.1} parent=11 // pred_region
        _
      $region28: #{resblock_forward.1} parent=11 // pred_fallthru
        _
      // Predicated region
      $region29: #{resblock_forward.1} parent=11 // pred_check
        %p267 = pneg %p172
      $region30: #{resblock_forward.1} parent=11 // pred_check_branch
        %269 = sbr.rel (%p267) target = $region32
      $region31: #{resblock_forward.1} parent=11 // pred_region
        _
      $region32: #{resblock_forward.1} parent=11 // pred_fallthru
        _
      // Predicated region
      $region33: #{resblock_forward.1} parent=11 // pred_check
        %p270 = pneg %p193
      $region34: #{resblock_forward.1} parent=11 // pred_check_branch
        %272 = sbr.rel (%p270) target = $region36
      $region35: #{resblock_forward.1} parent=11 // pred_region
        _
      $region36: #{resblock_forward.1} parent=11 // pred_fallthru
        _
      // Predicated region
      $region37: #{resblock_forward.1} parent=11 // pred_check
        %p273 = pneg %p214
      $region38: #{resblock_forward.1} parent=11 // pred_check_branch
        %275 = sbr.rel (%p273) target = $region40
      $region39: #{resblock_forward.1} parent=11 // pred_region
        _
      $region40: #{resblock_forward.1} parent=11 // pred_fallthru
        _
    $region12: #{resblock_forward.1} parent=5 // pred_fallthru
      _
    %p276 = scmp.lt.s32.totalorder %s15, 2
    // Predicated region
    $region41: #{resblock_forward.1} parent=5 // pred_check
      %p277 = pneg %p276
    $region42: #{resblock_forward.1} parent=5 // pred_check_branch
      %279 = sbr.rel (%p277) target = $region44
    $region43: #{resblock_forward.1} parent=5 // pred_region
      // Predicated region
      $region45: #{resblock_forward.1} parent=43 // pred_check
        %p280 = pneg %p35
      $region46: #{resblock_forward.1} parent=43 // pred_check_branch
        %282 = sbr.rel (%p280) target = $region48
      $region47: #{resblock_forward.1} parent=43 // pred_region
        %p283 = scmp.lt.s32.totalorder %s15, 1
        %s284 = scalar_select %p283, %s15, 1
        %s285 = smul.addr %s284, 41
        %s286 = smul.addr %s285, 4
        %s287 = scalar_lea.vmem %s0, %s286
      $region48: #{resblock_forward.1} parent=43 // pred_fallthru
        _
      // Predicated region
      $region49: #{resblock_forward.1} parent=43 // pred_check
        %p288 = pneg %p61
      $region50: #{resblock_forward.1} parent=43 // pred_check_branch
        %290 = sbr.rel (%p288) target = $region52
      $region51: #{resblock_forward.1} parent=43 // pred_region
        %p291 = scmp.lt.s32.totalorder %s15, 1
        %s292 = scalar_select %p291, %s15, 1
        %s293 = scalar_lea.vmem %s1, %s292
      $region52: #{resblock_forward.1} parent=43 // pred_fallthru
        _
    $region44: #{resblock_forward.1} parent=5 // pred_fallthru
      _
    %p294 = scmp.le.s32.totalorder 1, %s15
    %p295 = scmp.lt.s32.totalorder %s15, 3
    %p296 = pnand %p294, %p295
    %p297 = pneg %p296
    // Predicated region
    $region53: #{resblock_forward.1} parent=5 // pred_check
      _
    $region54: #{resblock_forward.1} parent=5 // pred_check_branch
      %299 = sbr.rel (%p296) target = $region56
    $region55: #{resblock_forward.1} parent=5 // pred_region
      %s300 = ssub.s32 %s15, 1
      %p301 = scmp.lt.s32.totalorder %s20, 1
      %s302 = scalar_select %p301, %s20, 1
      %s303 = smul.addr %s302, 41
      %s304 = smul.addr %s303, 4
      %s305 = scalar_lea.vmem %s0, %s304
      %p306 = pneg %p41
      %p307 = pneg %p38
      %p308 = scmp.lt.s32.totalorder %s20, 1
      %s309 = scalar_select %p308, %s20, 1
      %s310 = scalar_lea.vmem %s1, %s309
      %p311 = pneg %p67
      %p312 = pneg %p64
      %p313 = pneg %p88
      %p314 = pneg %p85
      %p315 = pneg %p109
      %p316 = pneg %p106
      %p317 = pneg %p130
      %p318 = pneg %p127
      %p319 = pneg %p151
      %p320 = pneg %p148
      %p321 = pneg %p172
      %p322 = pneg %p169
      %p323 = pneg %p193
      %p324 = pneg %p190
      %p325 = pneg %p214
      %p326 = pneg %p211
      %p327 = pneg %p240
      %p328 = pneg %p237
      %p329 = scmp.lt.s32.totalorder %s20, 1
      %s330 = scalar_select %p329, %s20, 1
      %s331 = smul.addr %s330, 36
      %s332 = smul.addr %s331, 8
      %s333 = scalar_lea.vmem %s9, %s332
      %p334 = scmp.lt.s32.totalorder %s20, 1
      %s335 = scalar_select %p334, %s20, 1
      %s336 = smul.addr %s335, 41
      %s337 = smul.addr %s336, 4
      %s338 = scalar_lea.vmem %s0, %s337
      %p339 = scmp.lt.s32.totalorder %s20, 1
      %s340 = scalar_select %p339, %s20, 1
      %s341 = scalar_lea.vmem %s1, %s340
      %p342 = scmp.lt.s32.totalorder %s20, 1
      %s343 = scalar_select %p342, %s20, 1
      %s344 = smul.addr %s343, 36
      %s345 = smul.addr %s344, 8
      %s346 = scalar_lea.vmem %s9, %s345
      %v347 = vld [vmem:[%s338] sm:$0xf]
      %v348 = vld [vmem:[%s338 + $0x4] sm:$0xf]
      %v349 = vld [vmem:[%s338 + $0x8] sm:$0xf]
      %v350 = vld [vmem:[%s338 + $0xc] sm:$0xf]
      %v351 = vld [vmem:[%s338 + $0x10] sm:$0xf]
      %v352 = vld [vmem:[%s338 + $0x14] sm:$0xf]
      %v353 = vld [vmem:[%s338 + $0x18] sm:$0xf]
      %v354 = vld [vmem:[%s338 + $0x1c] sm:$0xf]
      %v355 = vld [vmem:[%s338 + $0x20] sm:$0xf]
      %v356 = vld [vmem:[%s338 + $0x24] sm:$0xf]
      %v357 = vld [vmem:[%s338 + $0x28] sm:$0xf]
      %v358 = vld [vmem:[%s338 + $0x2c] sm:$0xf]
      %v359 = vld [vmem:[%s338 + $0x30] sm:$0xf]
      %v360 = vld [vmem:[%s338 + $0x34] sm:$0xf]
      %v361 = vld [vmem:[%s338 + $0x38] sm:$0xf]
      %v362 = vld [vmem:[%s338 + $0x3c] sm:$0xf]
      %v363 = vld [vmem:[%s338 + $0x40] sm:$0xf]
      %v364 = vld [vmem:[%s338 + $0x44] sm:$0xf]
      %v365 = vld [vmem:[%s338 + $0x48] sm:$0xf]
      %v366 = vld [vmem:[%s338 + $0x4c] sm:$0xf]
      %v367 = vld [vmem:[%s338 + $0x50] sm:$0xf]
      %v368 = vld [vmem:[%s338 + $0x54] sm:$0xf]
      %v369 = vld [vmem:[%s338 + $0x58] sm:$0xf]
      %v370 = vld [vmem:[%s338 + $0x5c] sm:$0xf]
      %v371 = vld [vmem:[%s338 + $0x60] sm:$0xf]
      %v372 = vld [vmem:[%s338 + $0x64] sm:$0xf]
      %v373 = vld [vmem:[%s338 + $0x68] sm:$0xf]
      %v374 = vld [vmem:[%s338 + $0x6c] sm:$0xf]
      %v375 = vld [vmem:[%s338 + $0x70] sm:$0xf]
      %v376 = vld [vmem:[%s338 + $0x74] sm:$0xf]
      %v377 = vld [vmem:[%s338 + $0x78] sm:$0xf]
      %v378 = vld [vmem:[%s338 + $0x7c] sm:$0xf]
      %v379 = vld [vmem:[%s338 + $0x80] sm:$0xf]
      %v380 = vld [vmem:[%s338 + $0x84] sm:$0xf]
      %v381 = vld [vmem:[%s338 + $0x88] sm:$0xf]
      %v382 = vld [vmem:[%s338 + $0x8c] sm:$0xf]
      %v383 = vld [vmem:[%s338 + $0x90] sm:$0xf]
      %v384 = vld [vmem:[%s338 + $0x94] sm:$0xf]
      %v385 = vld [vmem:[%s338 + $0x98] sm:$0xf]
      %v386 = vld [vmem:[%s338 + $0x9c] sm:$0xf]
      %v387 = vld [vmem:[%s338 + $0xa0] sm:$0x3]
      %v388 = vunpack.c.l.bf16 %v347
      %v389 = vunpack.c.l.bf16 %v348
      %v390 = vunpack.c.l.bf16 %v349
      %v391 = vunpack.c.l.bf16 %v350
      %v392 = vunpack.c.l.bf16 %v351
      %v393 = vunpack.c.l.bf16 %v352
      %v394 = vunpack.c.l.bf16 %v353
      %v395 = vunpack.c.l.bf16 %v354
      %v396 = vunpack.c.l.bf16 %v355
      %v397 = vunpack.c.l.bf16 %v356
      %v398 = vunpack.c.l.bf16 %v357
      %v399 = vunpack.c.l.bf16 %v358
      %v400 = vunpack.c.l.bf16 %v359
      %v401 = vunpack.c.l.bf16 %v360
      %v402 = vunpack.c.l.bf16 %v361
      %v403 = vunpack.c.l.bf16 %v362
      %v404 = vunpack.c.l.bf16 %v363
      %v405 = vunpack.c.l.bf16 %v364
      %v406 = vunpack.c.l.bf16 %v365
      %v407 = vunpack.c.l.bf16 %v366
      %v408 = vunpack.c.l.bf16 %v367
      %v409 = vunpack.c.l.bf16 %v368
      %v410 = vunpack.c.l.bf16 %v369
      %v411 = vunpack.c.l.bf16 %v370
      %v412 = vunpack.c.l.bf16 %v371
      %v413 = vunpack.c.l.bf16 %v372
      %v414 = vunpack.c.l.bf16 %v373
      %v415 = vunpack.c.l.bf16 %v374
      %v416 = vunpack.c.l.bf16 %v375
      %v417 = vunpack.c.l.bf16 %v376
      %v418 = vunpack.c.l.bf16 %v377
      %v419 = vunpack.c.l.bf16 %v378
      %v420 = vunpack.c.l.bf16 %v379
      %v421 = vunpack.c.l.bf16 %v380
      %v422 = vunpack.c.l.bf16 %v381
      %v423 = vunpack.c.l.bf16 %v382
      %v424 = vunpack.c.l.bf16 %v383
      %v425 = vunpack.c.l.bf16 %v384
      %v426 = vunpack.c.l.bf16 %v385
      %v427 = vunpack.c.l.bf16 %v386
      %v428 = vunpack.c.l.bf16 %v387
      %429 = vst [vmem:[#allocation2] sm:$0xff] %v388
      %430 = vst [vmem:[#allocation2 + $0x8] sm:$0xff] %v389
      %431 = vst [vmem:[#allocation2 + $0x10] sm:$0xff] %v390
      %432 = vst [vmem:[#allocation2 + $0x18] sm:$0xff] %v391
      %433 = vst [vmem:[#allocation2 + $0x20] sm:$0xff] %v392
      %434 = vst [vmem:[#allocation2 + $0x28] sm:$0xff] %v393
      %435 = vst [vmem:[#allocation2 + $0x30] sm:$0xff] %v394
      %436 = vst [vmem:[#allocation2 + $0x38] sm:$0xff] %v395
      %437 = vst [vmem:[#allocation2 + $0x40] sm:$0xff] %v396
      %438 = vst [vmem:[#allocation2 + $0x48] sm:$0xff] %v397
      %439 = vst [vmem:[#allocation2 + $0x50] sm:$0xff] %v398
      %440 = vst [vmem:[#allocation2 + $0x58] sm:$0xff] %v399
      %441 = vst [vmem:[#allocation2 + $0x60] sm:$0xff] %v400
      %442 = vst [vmem:[#allocation2 + $0x68] sm:$0xff] %v401
      %443 = vst [vmem:[#allocation2 + $0x70] sm:$0xff] %v402
      %444 = vst [vmem:[#allocation2 + $0x78] sm:$0xff] %v403
      %445 = vst [vmem:[#allocation2 + $0x80] sm:$0xff] %v404
      %446 = vst [vmem:[#allocation2 + $0x88] sm:$0xff] %v405
      %447 = vst [vmem:[#allocation2 + $0x90] sm:$0xff] %v406
      %448 = vst [vmem:[#allocation2 + $0x98] sm:$0xff] %v407
      %449 = vst [vmem:[#allocation2 + $0xa0] sm:$0xff] %v408
      %450 = vst [vmem:[#allocation2 + $0xa8] sm:$0xff] %v409
      %451 = vst [vmem:[#allocation2 + $0xb0] sm:$0xff] %v410
      %452 = vst [vmem:[#allocation2 + $0xb8] sm:$0xff] %v411
      %453 = vst [vmem:[#allocation2 + $0xc0] sm:$0xff] %v412
      %454 = vst [vmem:[#allocation2 + $0xc8] sm:$0xff] %v413
      %455 = vst [vmem:[#allocation2 + $0xd0] sm:$0xff] %v414
      %456 = vst [vmem:[#allocation2 + $0xd8] sm:$0xff] %v415
      %457 = vst [vmem:[#allocation2 + $0xe0] sm:$0xff] %v416
      %458 = vst [vmem:[#allocation2 + $0xe8] sm:$0xff] %v417
      %459 = vst [vmem:[#allocation2 + $0xf0] sm:$0xff] %v418
      %460 = vst [vmem:[#allocation2 + $0xf8] sm:$0xff] %v419
      %461 = vst [vmem:[#allocation2 + $0x100] sm:$0xff] %v420
      %462 = vst [vmem:[#allocation2 + $0x108] sm:$0xff] %v421
      %463 = vst [vmem:[#allocation2 + $0x110] sm:$0xff] %v422
      %464 = vst [vmem:[#allocation2 + $0x118] sm:$0xff] %v423
      %465 = vst [vmem:[#allocation2 + $0x120] sm:$0xff] %v424
      %466 = vst [vmem:[#allocation2 + $0x128] sm:$0xff] %v425
      %467 = vst [vmem:[#allocation2 + $0x130] sm:$0xff] %v426
      %468 = vst [vmem:[#allocation2 + $0x138] sm:$0xff] %v427
      %469 = vst [vmem:[#allocation2 + $0x140] sm:$0xf] %v428
      %v470 = vld [vmem:[#allocation2] sm:$0xff]
      %v471 = vld [vmem:[#allocation2 + $0x8] sm:$0xff]
      %v472 = vld [vmem:[#allocation2 + $0x10] sm:$0xff]
      %v473 = vld [vmem:[#allocation2 + $0x18] sm:$0xff]
      %v474 = vld [vmem:[#allocation2 + $0x20] sm:$0xff]
      %v475 = vld [vmem:[#allocation2 + $0x28] sm:$0xff]
      %v476 = vld [vmem:[#allocation2 + $0x30] sm:$0xff]
      %v477 = vld [vmem:[#allocation2 + $0x38] sm:$0xff]
      %v478 = vld [vmem:[#allocation2 + $0x40] sm:$0xff]
      %v479 = vld [vmem:[#allocation2 + $0x48] sm:$0xff]
      %v480 = vld [vmem:[#allocation2 + $0x50] sm:$0xff]
      %v481 = vld [vmem:[#allocation2 + $0x58] sm:$0xff]
      %v482 = vld [vmem:[#allocation2 + $0x60] sm:$0xff]
      %v483 = vld [vmem:[#allocation2 + $0x68] sm:$0xff]
      %v484 = vld [vmem:[#allocation2 + $0x70] sm:$0xff]
      %v485 = vld [vmem:[#allocation2 + $0x78] sm:$0xff]
      %v486 = vld [vmem:[#allocation2 + $0x80] sm:$0xff]
      %v487 = vld [vmem:[#allocation2 + $0x88] sm:$0xff]
      %v488 = vld [vmem:[#allocation2 + $0x90] sm:$0xff]
      %v489 = vld [vmem:[#allocation2 + $0x98] sm:$0xff]
      %v490 = vld [vmem:[#allocation2 + $0xa0] sm:$0xff]
      %v491 = vld [vmem:[#allocation2 + $0xa8] sm:$0xff]
      %v492 = vld [vmem:[#allocation2 + $0xb0] sm:$0xff]
      %v493 = vld [vmem:[#allocation2 + $0xb8] sm:$0xff]
      %v494 = vld [vmem:[#allocation2 + $0xc0] sm:$0xff]
      %v495 = vld [vmem:[#allocation2 + $0xc8] sm:$0xff]
      %v496 = vld [vmem:[#allocation2 + $0xd0] sm:$0xff]
      %v497 = vld [vmem:[#allocation2 + $0xd8] sm:$0xff]
      %v498 = vld [vmem:[#allocation2 + $0xe0] sm:$0xff]
      %v499 = vld [vmem:[#allocation2 + $0xe8] sm:$0xff]
      %v500 = vld [vmem:[#allocation2 + $0xf0] sm:$0xff]
      %v501 = vld [vmem:[#allocation2 + $0xf8] sm:$0xff]
      %v502 = vld [vmem:[#allocation2 + $0x100] sm:$0xff]
      %v503 = vld [vmem:[#allocation2 + $0x108] sm:$0xff]
      %v504 = vld [vmem:[#allocation2 + $0x110] sm:$0xff]
      %v505 = vld [vmem:[#allocation2 + $0x118] sm:$0x3f]
      %v506 = vld [vmem:[%s3] sm:$0xff]
      %v507 = vld [vmem:[%s3 + $0x8] sm:$0xff]
      %v508 = vld [vmem:[%s3 + $0x10] sm:$0xff]
      %v509 = vld [vmem:[%s3 + $0x18] sm:$0xff]
      %v510 = vld [vmem:[%s3 + $0x20] sm:$0xff]
      %v511 = vld [vmem:[%s3 + $0x28] sm:$0xff]
      %v512 = vld [vmem:[%s3 + $0x30] sm:$0xff]
      %v513 = vld [vmem:[%s3 + $0x38] sm:$0xff]
      %v514 = vld [vmem:[%s3 + $0x40] sm:$0xff]
      %v515 = vld [vmem:[%s3 + $0x48] sm:$0xff]
      %v516 = vld [vmem:[%s3 + $0x50] sm:$0xff]
      %v517 = vld [vmem:[%s3 + $0x58] sm:$0xff]
      %v518 = vld [vmem:[%s3 + $0x60] sm:$0xff]
      %v519 = vld [vmem:[%s3 + $0x68] sm:$0xff]
      %v520 = vld [vmem:[%s3 + $0x70] sm:$0xff]
      %v521 = vld [vmem:[%s3 + $0x78] sm:$0xff]
      %v522 = vld [vmem:[#allocation2 + $0x1] sm:$0xff]
      %v523 = vld [vmem:[#allocation2 + $0x9] sm:$0xff]
      %v524 = vld [vmem:[#allocation2 + $0x11] sm:$0xff]
      %v525 = vld [vmem:[#allocation2 + $0x19] sm:$0xff]
      %v526 = vld [vmem:[#allocation2 + $0x21] sm:$0xff]
      %v527 = vld [vmem:[#allocation2 + $0x29] sm:$0xff]
      %v528 = vld [vmem:[#allocation2 + $0x31] sm:$0xff]
      %v529 = vld [vmem:[#allocation2 + $0x39] sm:$0xff]
      %v530 = vld [vmem:[#allocation2 + $0x41] sm:$0xff]
      %v531 = vld [vmem:[#allocation2 + $0x49] sm:$0xff]
      %v532 = vld [vmem:[#allocation2 + $0x51] sm:$0xff]
      %v533 = vld [vmem:[#allocation2 + $0x59] sm:$0xff]
      %v534 = vld [vmem:[#allocation2 + $0x61] sm:$0xff]
      %v535 = vld [vmem:[#allocation2 + $0x69] sm:$0xff]
      %v536 = vld [vmem:[#allocation2 + $0x71] sm:$0xff]
      %v537 = vld [vmem:[#allocation2 + $0x79] sm:$0xff]
      %v538 = vld [vmem:[#allocation2 + $0x81] sm:$0xff]
      %v539 = vld [vmem:[#allocation2 + $0x89] sm:$0xff]
      %v540 = vld [vmem:[#allocation2 + $0x91] sm:$0xff]
      %v541 = vld [vmem:[#allocation2 + $0x99] sm:$0xff]
      %v542 = vld [vmem:[#allocation2 + $0xa1] sm:$0xff]
      %v543 = vld [vmem:[#allocation2 + $0xa9] sm:$0xff]
      %v544 = vld [vmem:[#allocation2 + $0xb1] sm:$0xff]
      %v545 = vld [vmem:[#allocation2 + $0xb9] sm:$0xff]
      %v546 = vld [vmem:[#allocation2 + $0xc1] sm:$0xff]
      %v547 = vld [vmem:[#allocation2 + $0xc9] sm:$0xff]
      %v548 = vld [vmem:[#allocation2 + $0xd1] sm:$0xff]
      %v549 = vld [vmem:[#allocation2 + $0xd9] sm:$0xff]
      %v550 = vld [vmem:[#allocation2 + $0xe1] sm:$0xff]
      %v551 = vld [vmem:[#allocation2 + $0xe9] sm:$0xff]
      %v552 = vld [vmem:[#allocation2 + $0xf1] sm:$0xff]
      %v553 = vld [vmem:[#allocation2 + $0xf9] sm:$0xff]
      %v554 = vld [vmem:[#allocation2 + $0x101] sm:$0xff]
      %v555 = vld [vmem:[#allocation2 + $0x109] sm:$0xff]
      %v556 = vld [vmem:[#allocation2 + $0x111] sm:$0xff]
      %v557 = vld [vmem:[#allocation2 + $0x119] sm:$0x3f]
      %s558 = scalar_lea.vmem %s3, 128
      %v559 = vld [vmem:[%s558] sm:$0xff]
      %v560 = vld [vmem:[%s558 + $0x8] sm:$0xff]
      %v561 = vld [vmem:[%s558 + $0x10] sm:$0xff]
      %v562 = vld [vmem:[%s558 + $0x18] sm:$0xff]
      %v563 = vld [vmem:[%s558 + $0x20] sm:$0xff]
      %v564 = vld [vmem:[%s558 + $0x28] sm:$0xff]
      %v565 = vld [vmem:[%s558 + $0x30] sm:$0xff]
      %v566 = vld [vmem:[%s558 + $0x38] sm:$0xff]
      %v567 = vld [vmem:[%s558 + $0x40] sm:$0xff]
      %v568 = vld [vmem:[%s558 + $0x48] sm:$0xff]
      %v569 = vld [vmem:[%s558 + $0x50] sm:$0xff]
      %v570 = vld [vmem:[%s558 + $0x58] sm:$0xff]
      %v571 = vld [vmem:[%s558 + $0x60] sm:$0xff]
      %v572 = vld [vmem:[%s558 + $0x68] sm:$0xff]
      %v573 = vld [vmem:[%s558 + $0x70] sm:$0xff]
      %v574 = vld [vmem:[%s558 + $0x78] sm:$0xff]
      %575 = vmatprep.subr.mxu0 0.0
      %576 = vmatpush1.msra.mxu0 %v559
      %577 = vmatprep.subr.mxu0 0.0
      %578 = vmatpush1.msra.mxu0 %v560
      %579 = vmatprep.subr.mxu0 0.0
      %580 = vmatpush1.msra.mxu0 %v561
      %581 = vmatprep.subr.mxu0 0.0
      %582 = vmatpush1.msra.mxu0 %v562
      %583 = vmatprep.subr.mxu0 0.0
      %584 = vmatpush1.msra.mxu0 %v563
      %585 = vmatprep.subr.mxu0 0.0
      %586 = vmatpush1.msra.mxu0 %v564
      %587 = vmatprep.subr.mxu0 0.0
      %588 = vmatpush1.msra.mxu0 %v565
      %589 = vmatprep.subr.mxu0 0.0
      %590 = vmatpush1.msra.mxu0 %v566
      %591 = vmatprep.subr.mxu0 0.0
      %592 = vmatpush1.msra.mxu0 %v567
      %593 = vmatprep.subr.mxu0 0.0
      %594 = vmatpush1.msra.mxu0 %v568
      %595 = vmatprep.subr.mxu0 0.0
      %596 = vmatpush1.msra.mxu0 %v569
      %597 = vmatprep.subr.mxu0 0.0
      %598 = vmatpush1.msra.mxu0 %v570
      %599 = vmatprep.subr.mxu0 0.0
      %600 = vmatpush1.msra.mxu0 %v571
      %601 = vmatprep.subr.mxu0 0.0
      %602 = vmatpush1.msra.mxu0 %v572
      %603 = vmatprep.subr.mxu0 0.0
      %604 = vmatpush1.msra.mxu0 %v573
      %605 = vmatprep.subr.mxu0 0.0
      %606 = vmatpush1.msra.mxu0 %v574
      %607 = vmatprep.subr.mxu0 0.0
      %608 = vmatpush1.msra.mxu0 0.0
      %609 = vmatprep.subr.mxu0 0.0
      %610 = vmatpush1.msra.mxu0 0.0
      %611 = vmatprep.subr.mxu0 0.0
      %612 = vmatpush1.msra.mxu0 0.0
      %613 = vmatprep.subr.mxu0 0.0
      %614 = vmatpush1.msra.mxu0 0.0
      %615 = vmatprep.subr.mxu0 0.0
      %616 = vmatpush1.msra.mxu0 0.0
      %617 = vmatprep.subr.mxu0 0.0
      %618 = vmatpush1.msra.mxu0 0.0
      %619 = vmatprep.subr.mxu0 0.0
      %620 = vmatpush1.msra.mxu0 0.0
      %621 = vmatprep.subr.mxu0 0.0
      %622 = vmatpush1.msra.mxu0 0.0
      %623 = vmatprep.subr.mxu0 0.0
      %624 = vmatpush1.msra.mxu0 0.0
      %625 = vmatprep.subr.mxu0 0.0
      %626 = vmatpush1.msra.mxu0 0.0
      %627 = vmatprep.subr.mxu0 0.0
      %628 = vmatpush1.msra.mxu0 0.0
      %629 = vmatprep.subr.mxu0 0.0
      %630 = vmatpush1.msra.mxu0 0.0
      %631 = vmatprep.subr.mxu0 0.0
      %632 = vmatpush1.msra.mxu0 0.0
      %633 = vmatprep.subr.mxu0 0.0
      %634 = vmatpush1.msra.mxu0 0.0
      %635 = vmatprep.subr.mxu0 0.0
      %636 = vmatpush1.msra.mxu0 0.0
      %637 = vmatprep.subr.mxu0 0.0
      %638 = vmatpush1.msra.mxu0 0.0
      %639 = vmatprep.mubr.f32.mxu0 0.0
      %640 = vmatmul.mubr.f32.gmra.mrb[0].mxu0 %v522
      %v641 = vpop.f32.mrb[0].mxu0
      %v642 = vadd.f32 0.0, %v641
      %v643 = vpop.f32.mrb[0].mxu0
      %644 = vmatprep.mubr.f32.mxu0 0.0
      %645 = vmatmul.mubr.f32.gmra.mrb[0].mxu0 %v523
      %v646 = vpop.f32.mrb[0].mxu0
      %v647 = vadd.f32 0.0, %v646
      %v648 = vpop.f32.mrb[0].mxu0
      %649 = vmatprep.mubr.f32.mxu0 0.0
      %650 = vmatmul.mubr.f32.gmra.mrb[0].mxu0 %v524
      %v651 = vpop.f32.mrb[0].mxu0
      %v652 = vadd.f32 0.0, %v651
      %v653 = vpop.f32.mrb[0].mxu0
      %654 = vmatprep.mubr.f32.mxu0 0.0
      %655 = vmatmul.mubr.f32.gmra.mrb[0].mxu0 %v525
      %v656 = vpop.f32.mrb[0].mxu0
      %v657 = vadd.f32 0.0, %v656
      %v658 = vpop.f32.mrb[0].mxu0
      %659 = vmatprep.mubr.f32.mxu0 0.0
      %660 = vmatmul.mubr.f32.gmra.mrb[0].mxu0 %v526
      %v661 = vpop.f32.mrb[0].mxu0
      %v662 = vadd.f32 0.0, %v661
      %v663 = vpop.f32.mrb[0].mxu0
      %664 = vmatprep.mubr.f32.mxu0 0.0
      %665 = vmatmul.mubr.f32.gmra.mrb[0].mxu0 %v527
      %v666 = vpop.f32.mrb[0].mxu0
      %v667 = vadd.f32 0.0, %v666
      %v668 = vpop.f32.mrb[0].mxu0
      %669 = vmatprep.mubr.f32.mxu0 0.0
      %670 = vmatmul.mubr.f32.gmra.mrb[0].mxu0 %v528
      %v671 = vpop.f32.mrb[0].mxu0
      %v672 = vadd.f32 0.0, %v671
      %v673 = vpop.f32.mrb[0].mxu0
      %674 = vmatprep.mubr.f32.mxu0 0.0
      %675 = vmatmul.mubr.f32.gmra.mrb[0].mxu0 %v529
      %v676 = vpop.f32.mrb[0].mxu0
      %v677 = vadd.f32 0.0, %v676
      %v678 = vpop.f32.mrb[0].mxu0
      %679 = vmatprep.mubr.f32.mxu0 0.0
      %680 = vmatmul.mubr.f32.gmra.mrb[0].mxu0 %v530
      %v681 = vpop.f32.mrb[0].mxu0
      %v682 = vadd.f32 0.0, %v681
      %v683 = vpop.f32.mrb[0].mxu0
      %684 = vmatprep.mubr.f32.mxu0 0.0
      %685 = vmatmul.mubr.f32.gmra.mrb[0].mxu0 %v531
      %v686 = vpop.f32.mrb[0].mxu0
      %v687 = vadd.f32 0.0, %v686
      %v688 = vpop.f32.mrb[0].mxu0
      %689 = vmatprep.mubr.f32.mxu0 0.0
      %690 = vmatmul.mubr.f32.gmra.mrb[0].mxu0 %v532
      %v691 = vpop.f32.mrb[0].mxu0
      %v692 = vadd.f32 0.0, %v691
      %v693 = vpop.f32.mrb[0].mxu0
      %694 = vmatprep.mubr.f32.mxu0 0.0
      %695 = vmatmul.mubr.f32.gmra.mrb[0].mxu0 %v533
      %v696 = vpop.f32.mrb[0].mxu0
      %v697 = vadd.f32 0.0, %v696
      %v698 = vpop.f32.mrb[0].mxu0
      %699 = vmatprep.mubr.f32.mxu0 0.0
      %700 = vmatmul.mubr.f32.gmra.mrb[0].mxu0 %v534
      %v701 = vpop.f32.mrb[0].mxu0
      %v702 = vadd.f32 0.0, %v701
      %v703 = vpop.f32.mrb[0].mxu0
      %704 = vmatprep.mubr.f32.mxu0 0.0
      %705 = vmatmul.mubr.f32.gmra.mrb[0].mxu0 %v535
      %v706 = vpop.f32.mrb[0].mxu0
      %v707 = vadd.f32 0.0, %v706
      %v708 = vpop.f32.mrb[0].mxu0
      %709 = vmatprep.mubr.f32.mxu0 0.0
      %710 = vmatmul.mubr.f32.gmra.mrb[0].mxu0 %v536
      %v711 = vpop.f32.mrb[0].mxu0
      %v712 = vadd.f32 0.0, %v711
      %v713 = vpop.f32.mrb[0].mxu0
      %714 = vmatprep.mubr.f32.mxu0 0.0
      %715 = vmatmul.mubr.f32.gmra.mrb[0].mxu0 %v537
      %v716 = vpop.f32.mrb[0].mxu0
      %v717 = vadd.f32 0.0, %v716
      %v718 = vpop.f32.mrb[0].mxu0
      %719 = vmatprep.mubr.f32.mxu0 0.0
      %720 = vmatmul.mubr.f32.gmra.mrb[0].mxu0 %v538
      %v721 = vpop.f32.mrb[0].mxu0
      %v722 = vadd.f32 0.0, %v721
      %v723 = vpop.f32.mrb[0].mxu0
      %724 = vmatprep.mubr.f32.mxu0 0.0
      %725 = vmatmul.mubr.f32.gmra.mrb[0].mxu0 %v539
      %v726 = vpop.f32.mrb[0].mxu0
      %v727 = vadd.f32 0.0, %v726
      %v728 = vpop.f32.mrb[0].mxu0
      %729 = vmatprep.mubr.f32.mxu0 0.0
      %730 = vmatmul.mubr.f32.gmra.mrb[0].mxu0 %v540
      %v731 = vpop.f32.mrb[0].mxu0
      %v732 = vadd.f32 0.0, %v731
      %v733 = vpop.f32.mrb[0].mxu0
      %734 = vmatprep.mubr.f32.mxu0 0.0
      %735 = vmatmul.mubr.f32.gmra.mrb[0].mxu0 %v541
      %v736 = vpop.f32.mrb[0].mxu0
      %v737 = vadd.f32 0.0, %v736
      %v738 = vpop.f32.mrb[0].mxu0
      %739 = vmatprep.mubr.f32.mxu0 0.0
      %740 = vmatmul.mubr.f32.gmra.mrb[0].mxu0 %v542
      %v741 = vpop.f32.mrb[0].mxu0
      %v742 = vadd.f32 0.0, %v741
      %v743 = vpop.f32.mrb[0].mxu0
      %744 = vmatprep.mubr.f32.mxu0 0.0
      %745 = vmatmul.mubr.f32.gmra.mrb[0].mxu0 %v543
      %v746 = vpop.f32.mrb[0].mxu0
      %v747 = vadd.f32 0.0, %v746
      %v748 = vpop.f32.mrb[0].mxu0
      %749 = vmatprep.mubr.f32.mxu0 0.0
      %750 = vmatmul.mubr.f32.gmra.mrb[0].mxu0 %v544
      %v751 = vpop.f32.mrb[0].mxu0
      %v752 = vadd.f32 0.0, %v751
      %v753 = vpop.f32.mrb[0].mxu0
      %754 = vmatprep.mubr.f32.mxu0 0.0
      %755 = vmatmul.mubr.f32.gmra.mrb[0].mxu0 %v545
      %v756 = vpop.f32.mrb[0].mxu0
      %v757 = vadd.f32 0.0, %v756
      %v758 = vpop.f32.mrb[0].mxu0
      %759 = vmatprep.mubr.f32.mxu0 0.0
      %760 = vmatmul.mubr.f32.gmra.mrb[0].mxu0 %v546
      %v761 = vpop.f32.mrb[0].mxu0
      %v762 = vadd.f32 0.0, %v761
      %v763 = vpop.f32.mrb[0].mxu0
      %764 = vmatprep.mubr.f32.mxu0 0.0
      %765 = vmatmul.mubr.f32.gmra.mrb[0].mxu0 %v547
      %v766 = vpop.f32.mrb[0].mxu0
      %v767 = vadd.f32 0.0, %v766
      %v768 = vpop.f32.mrb[0].mxu0
      %769 = vmatprep.mubr.f32.mxu0 0.0
      %770 = vmatmul.mubr.f32.gmra.mrb[0].mxu0 %v548
      %v771 = vpop.f32.mrb[0].mxu0
      %v772 = vadd.f32 0.0, %v771
      %v773 = vpop.f32.mrb[0].mxu0
      %774 = vmatprep.mubr.f32.mxu0 0.0
      %775 = vmatmul.mubr.f32.gmra.mrb[0].mxu0 %v549
      %v776 = vpop.f32.mrb[0].mxu0
      %v777 = vadd.f32 0.0, %v776
      %v778 = vpop.f32.mrb[0].mxu0
      %779 = vmatprep.mubr.f32.mxu0 0.0
      %780 = vmatmul.mubr.f32.gmra.mrb[0].mxu0 %v550
      %v781 = vpop.f32.mrb[0].mxu0
      %v782 = vadd.f32 0.0, %v781
      %v783 = vpop.f32.mrb[0].mxu0
      %784 = vmatprep.mubr.f32.mxu0 0.0
      %785 = vmatmul.mubr.f32.gmra.mrb[0].mxu0 %v551
      %v786 = vpop.f32.mrb[0].mxu0
      %v787 = vadd.f32 0.0, %v786
      %v788 = vpop.f32.mrb[0].mxu0
      %789 = vmatprep.mubr.f32.mxu0 0.0
      %790 = vmatmul.mubr.f32.gmra.mrb[0].mxu0 %v552
      %v791 = vpop.f32.mrb[0].mxu0
      %v792 = vadd.f32 0.0, %v791
      %v793 = vpop.f32.mrb[0].mxu0
      %794 = vmatprep.mubr.f32.mxu0 0.0
      %795 = vmatmul.mubr.f32.gmra.mrb[0].mxu0 %v553
      %v796 = vpop.f32.mrb[0].mxu0
      %v797 = vadd.f32 0.0, %v796
      %v798 = vpop.f32.mrb[0].mxu0
      %799 = vmatprep.mubr.f32.mxu0 0.0
      %800 = vmatmul.mubr.f32.gmra.mrb[0].mxu0 %v554
      %v801 = vpop.f32.mrb[0].mxu0
      %v802 = vadd.f32 0.0, %v801
      %v803 = vpop.f32.mrb[0].mxu0
      %804 = vmatprep.mubr.f32.mxu0 0.0
      %805 = vmatmul.mubr.f32.gmra.mrb[0].mxu0 %v555
      %v806 = vpop.f32.mrb[0].mxu0
      %v807 = vadd.f32 0.0, %v806
      %v808 = vpop.f32.mrb[0].mxu0
      %809 = vmatprep.mubr.f32.mxu0 0.0
      %810 = vmatmul.mubr.f32.gmra.mrb[0].mxu0 %v556
      %v811 = vpop.f32.mrb[0].mxu0
      %v812 = vadd.f32 0.0, %v811
      %v813 = vpop.f32.mrb[0].mxu0
      %814 = vmatprep.mubr.f32.mxu0 0.0
      %815 = vmatmul.mubr.f32.gmra.mrb[0].mxu0 %v557
      %v816 = vpop.f32.mrb[0].mxu0
      %v817 = vadd.f32 0.0, %v816
      %v818 = vpop.f32.mrb[0].mxu0
      %819 = vdwg.mxu0
      %820 = vmatprep.subr.mxu0 0.0
      %821 = vmatpush1.msra.mxu0 %v506
      %822 = vmatprep.subr.mxu0 0.0
      %823 = vmatpush1.msra.mxu0 %v507
      %824 = vmatprep.subr.mxu0 0.0
      %825 = vmatpush1.msra.mxu0 %v508
      %826 = vmatprep.subr.mxu0 0.0
      %827 = vmatpush1.msra.mxu0 %v509
      %828 = vmatprep.subr.mxu0 0.0
      %829 = vmatpush1.msra.mxu0 %v510
      %830 = vmatprep.subr.mxu0 0.0
      %831 = vmatpush1.msra.mxu0 %v511
      %832 = vmatprep.subr.mxu0 0.0
      %833 = vmatpush1.msra.mxu0 %v512
      %834 = vmatprep.subr.mxu0 0.0
      %835 = vmatpush1.msra.mxu0 %v513
      %836 = vmatprep.subr.mxu0 0.0
      %837 = vmatpush1.msra.mxu0 %v514
      %838 = vmatprep.subr.mxu0 0.0
      %839 = vmatpush1.msra.mxu0 %v515
      %840 = vmatprep.subr.mxu0 0.0
      %841 = vmatpush1.msra.mxu0 %v516
      %842 = vmatprep.subr.mxu0 0.0
      %843 = vmatpush1.msra.mxu0 %v517
      %844 = vmatprep.subr.mxu0 0.0
      %845 = vmatpush1.msra.mxu0 %v518
      %846 = vmatprep.subr.mxu0 0.0
      %847 = vmatpush1.msra.mxu0 %v519
      %848 = vmatprep.subr.mxu0 0.0
      %849 = vmatpush1.msra.mxu0 %v520
      %850 = vmatprep.subr.mxu0 0.0
      %851 = vmatpush1.msra.mxu0 %v521
      %852 = vmatprep.subr.mxu0 0.0
      %853 = vmatpush1.msra.mxu0 0.0
      %854 = vmatprep.subr.mxu0 0.0
      %855 = vmatpush1.msra.mxu0 0.0
      %856 = vmatprep.subr.mxu0 0.0
      %857 = vmatpush1.msra.mxu0 0.0
      %858 = vmatprep.subr.mxu0 0.0
      %859 = vmatpush1.msra.mxu0 0.0
      %860 = vmatprep.subr.mxu0 0.0
      %861 = vmatpush1.msra.mxu0 0.0
      %862 = vmatprep.subr.mxu0 0.0
      %863 = vmatpush1.msra.mxu0 0.0
      %864 = vmatprep.subr.mxu0 0.0
      %865 = vmatpush1.msra.mxu0 0.0
      %866 = vmatprep.subr.mxu0 0.0
      %867 = vmatpush1.msra.mxu0 0.0
      %868 = vmatprep.subr.mxu0 0.0
      %869 = vmatpush1.msra.mxu0 0.0
      %870 = vmatprep.subr.mxu0 0.0
      %871 = vmatpush1.msra.mxu0 0.0
      %872 = vmatprep.subr.mxu0 0.0
      %873 = vmatpush1.msra.mxu0 0.0
      %874 = vmatprep.subr.mxu0 0.0
      %875 = vmatpush1.msra.mxu0 0.0
      %876 = vmatprep.subr.mxu0 0.0
      %877 = vmatpush1.msra.mxu0 0.0
      %878 = vmatprep.subr.mxu0 0.0
      %879 = vmatpush1.msra.mxu0 0.0
      %880 = vmatprep.subr.mxu0 0.0
      %881 = vmatpush1.msra.mxu0 0.0
      %882 = vmatprep.subr.mxu0 0.0
      %883 = vmatpush1.msra.mxu0 0.0
      %884 = vmatprep.mubr.f32.mxu0 0.0
      %885 = vmatmul.mubr.f32.gmra.mrb[0].mxu0 %v470
      %v886 = vpop.f32.mrb[0].mxu0
      %v887 = vadd.f32 %v642, %v886
      %v888 = vpop.f32.mrb[0].mxu0
      %889 = vmatprep.mubr.f32.mxu0 0.0
      %890 = vmatmul.mubr.f32.gmra.mrb[0].mxu0 %v471
      %v891 = vpop.f32.mrb[0].mxu0
      %v892 = vadd.f32 %v647, %v891
      %v893 = vpop.f32.mrb[0].mxu0
      %894 = vmatprep.mubr.f32.mxu0 0.0
      %895 = vmatmul.mubr.f32.gmra.mrb[0].mxu0 %v472
      %v896 = vpop.f32.mrb[0].mxu0
      %v897 = vadd.f32 %v652, %v896
      %v898 = vpop.f32.mrb[0].mxu0
      %899 = vmatprep.mubr.f32.mxu0 0.0
      %900 = vmatmul.mubr.f32.gmra.mrb[0].mxu0 %v473
      %v901 = vpop.f32.mrb[0].mxu0
      %v902 = vadd.f32 %v657, %v901
      %v903 = vpop.f32.mrb[0].mxu0
      %904 = vmatprep.mubr.f32.mxu0 0.0
      %905 = vmatmul.mubr.f32.gmra.mrb[0].mxu0 %v474
      %v906 = vpop.f32.mrb[0].mxu0
      %v907 = vadd.f32 %v662, %v906
      %v908 = vpop.f32.mrb[0].mxu0
      %909 = vmatprep.mubr.f32.mxu0 0.0
      %910 = vmatmul.mubr.f32.gmra.mrb[0].mxu0 %v475
      %v911 = vpop.f32.mrb[0].mxu0
      %v912 = vadd.f32 %v667, %v911
      %v913 = vpop.f32.mrb[0].mxu0
      %914 = vmatprep.mubr.f32.mxu0 0.0
      %915 = vmatmul.mubr.f32.gmra.mrb[0].mxu0 %v476
      %v916 = vpop.f32.mrb[0].mxu0
      %v917 = vadd.f32 %v672, %v916
      %v918 = vpop.f32.mrb[0].mxu0
      %919 = vmatprep.mubr.f32.mxu0 0.0
      %920 = vmatmul.mubr.f32.gmra.mrb[0].mxu0 %v477
      %v921 = vpop.f32.mrb[0].mxu0
      %v922 = vadd.f32 %v677, %v921
      %v923 = vpop.f32.mrb[0].mxu0
      %924 = vmatprep.mubr.f32.mxu0 0.0
      %925 = vmatmul.mubr.f32.gmra.mrb[0].mxu0 %v478
      %v926 = vpop.f32.mrb[0].mxu0
      %v927 = vadd.f32 %v682, %v926
      %v928 = vpop.f32.mrb[0].mxu0
      %929 = vmatprep.mubr.f32.mxu0 0.0
      %930 = vmatmul.mubr.f32.gmra.mrb[0].mxu0 %v479
      %v931 = vpop.f32.mrb[0].mxu0
      %v932 = vadd.f32 %v687, %v931
      %v933 = vpop.f32.mrb[0].mxu0
      %934 = vmatprep.mubr.f32.mxu0 0.0
      %935 = vmatmul.mubr.f32.gmra.mrb[0].mxu0 %v480
      %v936 = vpop.f32.mrb[0].mxu0
      %v937 = vadd.f32 %v692, %v936
      %v938 = vpop.f32.mrb[0].mxu0
      %939 = vmatprep.mubr.f32.mxu0 0.0
      %940 = vmatmul.mubr.f32.gmra.mrb[0].mxu0 %v481
      %v941 = vpop.f32.mrb[0].mxu0
      %v942 = vadd.f32 %v697, %v941
      %v943 = vpop.f32.mrb[0].mxu0
      %944 = vmatprep.mubr.f32.mxu0 0.0
      %945 = vmatmul.mubr.f32.gmra.mrb[0].mxu0 %v482
      %v946 = vpop.f32.mrb[0].mxu0
      %v947 = vadd.f32 %v702, %v946
      %v948 = vpop.f32.mrb[0].mxu0
      %949 = vmatprep.mubr.f32.mxu0 0.0
      %950 = vmatmul.mubr.f32.gmra.mrb[0].mxu0 %v483
      %v951 = vpop.f32.mrb[0].mxu0
      %v952 = vadd.f32 %v707, %v951
      %v953 = vpop.f32.mrb[0].mxu0
      %954 = vmatprep.mubr.f32.mxu0 0.0
      %955 = vmatmul.mubr.f32.gmra.mrb[0].mxu0 %v484
      %v956 = vpop.f32.mrb[0].mxu0
      %v957 = vadd.f32 %v712, %v956
      %v958 = vpop.f32.mrb[0].mxu0
      %959 = vmatprep.mubr.f32.mxu0 0.0
      %960 = vmatmul.mubr.f32.gmra.mrb[0].mxu0 %v485
      %v961 = vpop.f32.mrb[0].mxu0
      %v962 = vadd.f32 %v717, %v961
      %v963 = vpop.f32.mrb[0].mxu0
      %964 = vmatprep.mubr.f32.mxu0 0.0
      %965 = vmatmul.mubr.f32.gmra.mrb[0].mxu0 %v486
      %v966 = vpop.f32.mrb[0].mxu0
      %v967 = vadd.f32 %v722, %v966
      %v968 = vpop.f32.mrb[0].mxu0
      %969 = vmatprep.mubr.f32.mxu0 0.0
      %970 = vmatmul.mubr.f32.gmra.mrb[0].mxu0 %v487
      %v971 = vpop.f32.mrb[0].mxu0
      %v972 = vadd.f32 %v727, %v971
      %v973 = vpop.f32.mrb[0].mxu0
      %974 = vmatprep.mubr.f32.mxu0 0.0
      %975 = vmatmul.mubr.f32.gmra.mrb[0].mxu0 %v488
      %v976 = vpop.f32.mrb[0].mxu0
      %v977 = vadd.f32 %v732, %v976
      %v978 = vpop.f32.mrb[0].mxu0
      %979 = vmatprep.mubr.f32.mxu0 0.0
      %980 = vmatmul.mubr.f32.gmra.mrb[0].mxu0 %v489
      %v981 = vpop.f32.mrb[0].mxu0
      %v982 = vadd.f32 %v737, %v981
      %v983 = vpop.f32.mrb[0].mxu0
      %984 = vmatprep.mubr.f32.mxu0 0.0
      %985 = vmatmul.mubr.f32.gmra.mrb[0].mxu0 %v490
      %v986 = vpop.f32.mrb[0].mxu0
      %v987 = vadd.f32 %v742, %v986
      %v988 = vpop.f32.mrb[0].mxu0
      %989 = vmatprep.mubr.f32.mxu0 0.0
      %990 = vmatmul.mubr.f32.gmra.mrb[0].mxu0 %v491
      %v991 = vpop.f32.mrb[0].mxu0
      %v992 = vadd.f32 %v747, %v991
      %v993 = vpop.f32.mrb[0].mxu0
      %994 = vmatprep.mubr.f32.mxu0 0.0
      %995 = vmatmul.mubr.f32.gmra.mrb[0].mxu0 %v492
      %v996 = vpop.f32.mrb[0].mxu0
      %v997 = vadd.f32 %v752, %v996
      %v998 = vpop.f32.mrb[0].mxu0
      %999 = vmatprep.mubr.f32.mxu0 0.0
      %1000 = vmatmul.mubr.f32.gmra.mrb[0].mxu0 %v493
      %v1001 = vpop.f32.mrb[0].mxu0
      %v1002 = vadd.f32 %v757, %v1001
      %v1003 = vpop.f32.mrb[0].mxu0
      %1004 = vmatprep.mubr.f32.mxu0 0.0
      %1005 = vmatmul.mubr.f32.gmra.mrb[0].mxu0 %v494
      %v1006 = vpop.f32.mrb[0].mxu0
      %v1007 = vadd.f32 %v762, %v1006
      %v1008 = vpop.f32.mrb[0].mxu0
      %1009 = vmatprep.mubr.f32.mxu0 0.0
      %1010 = vmatmul.mubr.f32.gmra.mrb[0].mxu0 %v495
      %v1011 = vpop.f32.mrb[0].mxu0
      %v1012 = vadd.f32 %v767, %v1011
      %v1013 = vpop.f32.mrb[0].mxu0
      %1014 = vmatprep.mubr.f32.mxu0 0.0
      %1015 = vmatmul.mubr.f32.gmra.mrb[0].mxu0 %v496
      %v1016 = vpop.f32.mrb[0].mxu0
      %v1017 = vadd.f32 %v772, %v1016
      %v1018 = vpop.f32.mrb[0].mxu0
      %1019 = vmatprep.mubr.f32.mxu0 0.0
      %1020 = vmatmul.mubr.f32.gmra.mrb[0].mxu0 %v497
      %v1021 = vpop.f32.mrb[0].mxu0
      %v1022 = vadd.f32 %v777, %v1021
      %v1023 = vpop.f32.mrb[0].mxu0
      %1024 = vmatprep.mubr.f32.mxu0 0.0
      %1025 = vmatmul.mubr.f32.gmra.mrb[0].mxu0 %v498
      %v1026 = vpop.f32.mrb[0].mxu0
      %v1027 = vadd.f32 %v782, %v1026
      %v1028 = vpop.f32.mrb[0].mxu0
      %1029 = vmatprep.mubr.f32.mxu0 0.0
      %1030 = vmatmul.mubr.f32.gmra.mrb[0].mxu0 %v499
      %v1031 = vpop.f32.mrb[0].mxu0
      %v1032 = vadd.f32 %v787, %v1031
      %v1033 = vpop.f32.mrb[0].mxu0
      %1034 = vmatprep.mubr.f32.mxu0 0.0
      %1035 = vmatmul.mubr.f32.gmra.mrb[0].mxu0 %v500
      %v1036 = vpop.f32.mrb[0].mxu0
      %v1037 = vadd.f32 %v792, %v1036
      %v1038 = vpop.f32.mrb[0].mxu0
      %1039 = vmatprep.mubr.f32.mxu0 0.0
      %1040 = vmatmul.mubr.f32.gmra.mrb[0].mxu0 %v501
      %v1041 = vpop.f32.mrb[0].mxu0
      %v1042 = vadd.f32 %v797, %v1041
      %v1043 = vpop.f32.mrb[0].mxu0
      %1044 = vmatprep.mubr.f32.mxu0 0.0
      %1045 = vmatmul.mubr.f32.gmra.mrb[0].mxu0 %v502
      %v1046 = vpop.f32.mrb[0].mxu0
      %v1047 = vadd.f32 %v802, %v1046
      %v1048 = vpop.f32.mrb[0].mxu0
      %1049 = vmatprep.mubr.f32.mxu0 0.0
      %1050 = vmatmul.mubr.f32.gmra.mrb[0].mxu0 %v503
      %v1051 = vpop.f32.mrb[0].mxu0
      %v1052 = vadd.f32 %v807, %v1051
      %v1053 = vpop.f32.mrb[0].mxu0
      %1054 = vmatprep.mubr.f32.mxu0 0.0
      %1055 = vmatmul.mubr.f32.gmra.mrb[0].mxu0 %v504
      %v1056 = vpop.f32.mrb[0].mxu0
      %v1057 = vadd.f32 %v812, %v1056
      %v1058 = vpop.f32.mrb[0].mxu0
      %1059 = vmatprep.mubr.f32.mxu0 0.0
      %1060 = vmatmul.mubr.f32.gmra.mrb[0].mxu0 %v505
      %v1061 = vpop.f32.mrb[0].mxu0
      %v1062 = vadd.f32 %v817, %v1061
      %v1063 = vpop.f32.mrb[0].mxu0
      %1064 = vdwg.mxu0
      %v1065 = vld [vmem:[#allocation2 + $0x2] sm:$0xff]
      %v1066 = vld [vmem:[#allocation2 + $0xa] sm:$0xff]
      %v1067 = vld [vmem:[#allocation2 + $0x12] sm:$0xff]
      %v1068 = vld [vmem:[#allocation2 + $0x1a] sm:$0xff]
      %v1069 = vld [vmem:[#allocation2 + $0x22] sm:$0xff]
      %v1070 = vld [vmem:[#allocation2 + $0x2a] sm:$0xff]
      %v1071 = vld [vmem:[#allocation2 + $0x32] sm:$0xff]
      %v1072 = vld [vmem:[#allocation2 + $0x3a] sm:$0xff]
      %v1073 = vld [vmem:[#allocation2 + $0x42] sm:$0xff]
      %v1074 = vld [vmem:[#allocation2 + $0x4a] sm:$0xff]
      %v1075 = vld [vmem:[#allocation2 + $0x52] sm:$0xff]
      %v1076 = vld [vmem:[#allocation2 + $0x5a] sm:$0xff]
      %v1077 = vld [vmem:[#allocation2 + $0x62] sm:$0xff]
      %v1078 = vld [vmem:[#allocation2 + $0x6a] sm:$0xff]
      %v1079 = vld [vmem:[#allocation2 + $0x72] sm:$0xff]
      %v1080 = vld [vmem:[#allocation2 + $0x7a] sm:$0xff]
      %v1081 = vld [vmem:[#allocation2 + $0x82] sm:$0xff]
      %v1082 = vld [vmem:[#allocation2 + $0x8a] sm:$0xff]
      %v1083 = vld [vmem:[#allocation2 + $0x92] sm:$0xff]
      %v1084 = vld [vmem:[#allocation2 + $0x9a] sm:$0xff]
      %v1085 = vld [vmem:[#allocation2 + $0xa2] sm:$0xff]
      %v1086 = vld [vmem:[#allocation2 + $0xaa] sm:$0xff]
      %v1087 = vld [vmem:[#allocation2 + $0xb2] sm:$0xff]
      %v1088 = vld [vmem:[#allocation2 + $0xba] sm:$0xff]
      %v1089 = vld [vmem:[#allocation2 + $0xc2] sm:$0xff]
      %v1090 = vld [vmem:[#allocation2 + $0xca] sm:$0xff]
      %v1091 = vld [vmem:[#allocation2 + $0xd2] sm:$0xff]
      %v1092 = vld [vmem:[#allocation2 + $0xda] sm:$0xff]
      %v1093 = vld [vmem:[#allocation2 + $0xe2] sm:$0xff]
      %v1094 = vld [vmem:[#allocation2 + $0xea] sm:$0xff]
      %v1095 = vld [vmem:[#allocation2 + $0xf2] sm:$0xff]
      %v1096 = vld [vmem:[#allocation2 + $0xfa] sm:$0xff]
      %v1097 = vld [vmem:[#allocation2 + $0x102] sm:$0xff]
      %v1098 = vld [vmem:[#allocation2 + $0x10a] sm:$0xff]
      %v1099 = vld [vmem:[#allocation2 + $0x112] sm:$0xff]
      %v1100 = vld [vmem:[#allocation2 + $0x11a] sm:$0x3f]
      %s1101 = scalar_lea.vmem %s3, 256
      %v1102 = vld [vmem:[%s1101] sm:$0xff]
      %v1103 = vld [vmem:[%s1101 + $0x8] sm:$0xff]
      %v1104 = vld [vmem:[%s1101 + $0x10] sm:$0xff]
      %v1105 = vld [vmem:[%s1101 + $0x18] sm:$0xff]
      %v1106 = vld [vmem:[%s1101 + $0x20] sm:$0xff]
      %v1107 = vld [vmem:[%s1101 + $0x28] sm:$0xff]
      %v1108 = vld [vmem:[%s1101 + $0x30] sm:$0xff]
      %v1109 = vld [vmem:[%s1101 + $0x38] sm:$0xff]
      %v1110 = vld [vmem:[%s1101 + $0x40] sm:$0xff]
      %v1111 = vld [vmem:[%s1101 + $0x48] sm:$0xff]
      %v1112 = vld [vmem:[%s1101 + $0x50] sm:$0xff]
      %v1113 = vld [vmem:[%s1101 + $0x58] sm:$0xff]
      %v1114 = vld [vmem:[%s1101 + $0x60] sm:$0xff]
      %v1115 = vld [vmem:[%s1101 + $0x68] sm:$0xff]
      %v1116 = vld [vmem:[%s1101 + $0x70] sm:$0xff]
      %v1117 = vld [vmem:[%s1101 + $0x78] sm:$0xff]
      %1118 = vmatprep.subr.mxu0 0.0
      %1119 = vmatpush1.msra.mxu0 %v1102
      %1120 = vmatprep.subr.mxu0 0.0
      %1121 = vmatpush1.msra.mxu0 %v1103
      %1122 = vmatprep.subr.mxu0 0.0
      %1123 = vmatpush1.msra.mxu0 %v1104
      %1124 = vmatprep.subr.mxu0 0.0
      %1125 = vmatpush1.msra.mxu0 %v1105
      %1126 = vmatprep.subr.mxu0 0.0
      %1127 = vmatpush1.msra.mxu0 %v1106
      %1128 = vmatprep.subr.mxu0 0.0
      %1129 = vmatpush1.msra.mxu0 %v1107
      %1130 = vmatprep.subr.mxu0 0.0
      %1131 = vmatpush1.msra.mxu0 %v1108
      %1132 = vmatprep.subr.mxu0 0.0
      %1133 = vmatpush1.msra.mxu0 %v1109
      %1134 = vmatprep.subr.mxu0 0.0
      %1135 = vmatpush1.msra.mxu0 %v1110
      %1136 = vmatprep.subr.mxu0 0.0
      %1137 = vmatpush1.msra.mxu0 %v1111
      %1138 = vmatprep.subr.mxu0 0.0
      %1139 = vmatpush1.msra.mxu0 %v1112
      %1140 = vmatprep.subr.mxu0 0.0
      %1141 = vmatpush1.msra.mxu0 %v1113
      %1142 = vmatprep.subr.mxu0 0.0
      %1143 = vmatpush1.msra.mxu0 %v1114
      %1144 = vmatprep.subr.mxu0 0.0
      %1145 = vmatpush1.msra.mxu0 %v1115
      %1146 = vmatprep.subr.mxu0 0.0
      %1147 = vmatpush1.msra.mxu0 %v1116
      %1148 = vmatprep.subr.mxu0 0.0
      %1149 = vmatpush1.msra.mxu0 %v1117
      %1150 = vmatprep.subr.mxu0 0.0
      %1151 = vmatpush1.msra.mxu0 0.0
      %1152 = vmatprep.subr.mxu0 0.0
      %1153 = vmatpush1.msra.mxu0 0.0
      %1154 = vmatprep.subr.mxu0 0.0
      %1155 = vmatpush1.msra.mxu0 0.0
      %1156 = vmatprep.subr.mxu0 0.0
      %1157 = vmatpush1.msra.mxu0 0.0
      %1158 = vmatprep.subr.mxu0 0.0
      %1159 = vmatpush1.msra.mxu0 0.0
      %1160 = vmatprep.subr.mxu0 0.0
      %1161 = vmatpush1.msra.mxu0 0.0
      %1162 = vmatprep.subr.mxu0 0.0
      %1163 = vmatpush1.msra.mxu0 0.0
      %1164 = vmatprep.subr.mxu0 0.0
      %1165 = vmatpush1.msra.mxu0 0.0
      %1166 = vmatprep.subr.mxu0 0.0
      %1167 = vmatpush1.msra.mxu0 0.0
      %1168 = vmatprep.subr.mxu0 0.0
      %1169 = vmatpush1.msra.mxu0 0.0
      %1170 = vmatprep.subr.mxu0 0.0
      %1171 = vmatpush1.msra.mxu0 0.0
      %1172 = vmatprep.subr.mxu0 0.0
      %1173 = vmatpush1.msra.mxu0 0.0
      %1174 = vmatprep.subr.mxu0 0.0
      %1175 = vmatpush1.msra.mxu0 0.0
      %1176 = vmatprep.subr.mxu0 0.0
      %1177 = vmatpush1.msra.mxu0 0.0
      %1178 = vmatprep.subr.mxu0 0.0
      %1179 = vmatpush1.msra.mxu0 0.0
      %1180 = vmatprep.subr.mxu0 0.0
      %1181 = vmatpush1.msra.mxu0 0.0
      %1182 = vmatprep.mubr.f32.mxu0 0.0
      %1183 = vmatmul.mubr.f32.gmra.mrb[0].mxu0 %v1065
      %v1184 = vpop.f32.mrb[0].mxu0
      %v1185 = vadd.f32 0.0, %v1184
      %v1186 = vpop.f32.mrb[0].mxu0
      %1187 = vmatprep.mubr.f32.mxu0 0.0
      %1188 = vmatmul.mubr.f32.gmra.mrb[0].mxu0 %v1066
      %v1189 = vpop.f32.mrb[0].mxu0
      %v1190 = vadd.f32 0.0, %v1189
      %v1191 = vpop.f32.mrb[0].mxu0
      %1192 = vmatprep.mubr.f32.mxu0 0.0
      %1193 = vmatmul.mubr.f32.gmra.mrb[0].mxu0 %v1067
      %v1194 = vpop.f32.mrb[0].mxu0
      %v1195 = vadd.f32 0.0, %v1194
      %v1196 = vpop.f32.mrb[0].mxu0
      %1197 = vmatprep.mubr.f32.mxu0 0.0
      %1198 = vmatmul.mubr.f32.gmra.mrb[0].mxu0 %v1068
      %v1199 = vpop.f32.mrb[0].mxu0
      %v1200 = vadd.f32 0.0, %v1199
      %v1201 = vpop.f32.mrb[0].mxu0
      %1202 = vmatprep.mubr.f32.mxu0 0.0
      %1203 = vmatmul.mubr.f32.gmra.mrb[0].mxu0 %v1069
      %v1204 = vpop.f32.mrb[0].mxu0
      %v1205 = vadd.f32 0.0, %v1204
      %v1206 = vpop.f32.mrb[0].mxu0
      %1207 = vmatprep.mubr.f32.mxu0 0.0
      %1208 = vmatmul.mubr.f32.gmra.mrb[0].mxu0 %v1070
      %v1209 = vpop.f32.mrb[0].mxu0
      %v1210 = vadd.f32 0.0, %v1209
      %v1211 = vpop.f32.mrb[0].mxu0
      %1212 = vmatprep.mubr.f32.mxu0 0.0
      %1213 = vmatmul.mubr.f32.gmra.mrb[0].mxu0 %v1071
      %v1214 = vpop.f32.mrb[0].mxu0
      %v1215 = vadd.f32 0.0, %v1214
      %v1216 = vpop.f32.mrb[0].mxu0
      %1217 = vmatprep.mubr.f32.mxu0 0.0
      %1218 = vmatmul.mubr.f32.gmra.mrb[0].mxu0 %v1072
      %v1219 = vpop.f32.mrb[0].mxu0
      %v1220 = vadd.f32 0.0, %v1219
      %v1221 = vpop.f32.mrb[0].mxu0
      %1222 = vmatprep.mubr.f32.mxu0 0.0
      %1223 = vmatmul.mubr.f32.gmra.mrb[0].mxu0 %v1073
      %v1224 = vpop.f32.mrb[0].mxu0
      %v1225 = vadd.f32 0.0, %v1224
      %v1226 = vpop.f32.mrb[0].mxu0
      %1227 = vmatprep.mubr.f32.mxu0 0.0
      %1228 = vmatmul.mubr.f32.gmra.mrb[0].mxu0 %v1074
      %v1229 = vpop.f32.mrb[0].mxu0
      %v1230 = vadd.f32 0.0, %v1229
      %v1231 = vpop.f32.mrb[0].mxu0
      %1232 = vmatprep.mubr.f32.mxu0 0.0
      %1233 = vmatmul.mubr.f32.gmra.mrb[0].mxu0 %v1075
      %v1234 = vpop.f32.mrb[0].mxu0
      %v1235 = vadd.f32 0.0, %v1234
      %v1236 = vpop.f32.mrb[0].mxu0
      %1237 = vmatprep.mubr.f32.mxu0 0.0
      %1238 = vmatmul.mubr.f32.gmra.mrb[0].mxu0 %v1076
      %v1239 = vpop.f32.mrb[0].mxu0
      %v1240 = vadd.f32 0.0, %v1239
      %v1241 = vpop.f32.mrb[0].mxu0
      %1242 = vmatprep.mubr.f32.mxu0 0.0
      %1243 = vmatmul.mubr.f32.gmra.mrb[0].mxu0 %v1077
      %v1244 = vpop.f32.mrb[0].mxu0
      %v1245 = vadd.f32 0.0, %v1244
      %v1246 = vpop.f32.mrb[0].mxu0
      %1247 = vmatprep.mubr.f32.mxu0 0.0
      %1248 = vmatmul.mubr.f32.gmra.mrb[0].mxu0 %v1078
      %v1249 = vpop.f32.mrb[0].mxu0
      %v1250 = vadd.f32 0.0, %v1249
      %v1251 = vpop.f32.mrb[0].mxu0
      %1252 = vmatprep.mubr.f32.mxu0 0.0
      %1253 = vmatmul.mubr.f32.gmra.mrb[0].mxu0 %v1079
      %v1254 = vpop.f32.mrb[0].mxu0
      %v1255 = vadd.f32 0.0, %v1254
      %v1256 = vpop.f32.mrb[0].mxu0
      %1257 = vmatprep.mubr.f32.mxu0 0.0
      %1258 = vmatmul.mubr.f32.gmra.mrb[0].mxu0 %v1080
      %v1259 = vpop.f32.mrb[0].mxu0
      %v1260 = vadd.f32 0.0, %v1259
      %v1261 = vpop.f32.mrb[0].mxu0
      %1262 = vmatprep.mubr.f32.mxu0 0.0
      %1263 = vmatmul.mubr.f32.gmra.mrb[0].mxu0 %v1081
      %v1264 = vpop.f32.mrb[0].mxu0
      %v1265 = vadd.f32 0.0, %v1264
      %v1266 = vpop.f32.mrb[0].mxu0
      %1267 = vmatprep.mubr.f32.mxu0 0.0
      %1268 = vmatmul.mubr.f32.gmra.mrb[0].mxu0 %v1082
      %v1269 = vpop.f32.mrb[0].mxu0
      %v1270 = vadd.f32 0.0, %v1269
      %v1271 = vpop.f32.mrb[0].mxu0
      %1272 = vmatprep.mubr.f32.mxu0 0.0
      %1273 = vmatmul.mubr.f32.gmra.mrb[0].mxu0 %v1083
      %v1274 = vpop.f32.mrb[0].mxu0
      %v1275 = vadd.f32 0.0, %v1274
      %v1276 = vpop.f32.mrb[0].mxu0
      %1277 = vmatprep.mubr.f32.mxu0 0.0
      %1278 = vmatmul.mubr.f32.gmra.mrb[0].mxu0 %v1084
      %v1279 = vpop.f32.mrb[0].mxu0
      %v1280 = vadd.f32 0.0, %v1279
      %v1281 = vpop.f32.mrb[0].mxu0
      %1282 = vmatprep.mubr.f32.mxu0 0.0
      %1283 = vmatmul.mubr.f32.gmra.mrb[0].mxu0 %v1085
      %v1284 = vpop.f32.mrb[0].mxu0
      %v1285 = vadd.f32 0.0, %v1284
      %v1286 = vpop.f32.mrb[0].mxu0
      %1287 = vmatprep.mubr.f32.mxu0 0.0
      %1288 = vmatmul.mubr.f32.gmra.mrb[0].mxu0 %v1086
      %v1289 = vpop.f32.mrb[0].mxu0
      %v1290 = vadd.f32 0.0, %v1289
      %v1291 = vpop.f32.mrb[0].mxu0
      %1292 = vmatprep.mubr.f32.mxu0 0.0
      %1293 = vmatmul.mubr.f32.gmra.mrb[0].mxu0 %v1087
      %v1294 = vpop.f32.mrb[0].mxu0
      %v1295 = vadd.f32 0.0, %v1294
      %v1296 = vpop.f32.mrb[0].mxu0
      %1297 = vmatprep.mubr.f32.mxu0 0.0
      %1298 = vmatmul.mubr.f32.gmra.mrb[0].mxu0 %v1088
      %v1299 = vpop.f32.mrb[0].mxu0
      %v1300 = vadd.f32 0.0, %v1299
      %v1301 = vpop.f32.mrb[0].mxu0
      %1302 = vmatprep.mubr.f32.mxu0 0.0
      %1303 = vmatmul.mubr.f32.gmra.mrb[0].mxu0 %v1089
      %v1304 = vpop.f32.mrb[0].mxu0
      %v1305 = vadd.f32 0.0, %v1304
      %v1306 = vpop.f32.mrb[0].mxu0
      %1307 = vmatprep.mubr.f32.mxu0 0.0
      %1308 = vmatmul.mubr.f32.gmra.mrb[0].mxu0 %v1090
      %v1309 = vpop.f32.mrb[0].mxu0
      %v1310 = vadd.f32 0.0, %v1309
      %v1311 = vpop.f32.mrb[0].mxu0
      %1312 = vmatprep.mubr.f32.mxu0 0.0
      %1313 = vmatmul.mubr.f32.gmra.mrb[0].mxu0 %v1091
      %v1314 = vpop.f32.mrb[0].mxu0
      %v1315 = vadd.f32 0.0, %v1314
      %v1316 = vpop.f32.mrb[0].mxu0
      %1317 = vmatprep.mubr.f32.mxu0 0.0
      %1318 = vmatmul.mubr.f32.gmra.mrb[0].mxu0 %v1092
      %v1319 = vpop.f32.mrb[0].mxu0
      %v1320 = vadd.f32 0.0, %v1319
      %v1321 = vpop.f32.mrb[0].mxu0
      %1322 = vmatprep.mubr.f32.mxu0 0.0
      %1323 = vmatmul.mubr.f32.gmra.mrb[0].mxu0 %v1093
      %v1324 = vpop.f32.mrb[0].mxu0
      %v1325 = vadd.f32 0.0, %v1324
      %v1326 = vpop.f32.mrb[0].mxu0
      %1327 = vmatprep.mubr.f32.mxu0 0.0
      %1328 = vmatmul.mubr.f32.gmra.mrb[0].mxu0 %v1094
      %v1329 = vpop.f32.mrb[0].mxu0
      %v1330 = vadd.f32 0.0, %v1329
      %v1331 = vpop.f32.mrb[0].mxu0
      %1332 = vmatprep.mubr.f32.mxu0 0.0
      %1333 = vmatmul.mubr.f32.gmra.mrb[0].mxu0 %v1095
      %v1334 = vpop.f32.mrb[0].mxu0
      %v1335 = vadd.f32 0.0, %v1334
      %v1336 = vpop.f32.mrb[0].mxu0
      %1337 = vmatprep.mubr.f32.mxu0 0.0
      %1338 = vmatmul.mubr.f32.gmra.mrb[0].mxu0 %v1096
      %v1339 = vpop.f32.mrb[0].mxu0
      %v1340 = vadd.f32 0.0, %v1339
      %v1341 = vpop.f32.mrb[0].mxu0
      %1342 = vmatprep.mubr.f32.mxu0 0.0
      %1343 = vmatmul.mubr.f32.gmra.mrb[0].mxu0 %v1097
      %v1344 = vpop.f32.mrb[0].mxu0
      %v1345 = vadd.f32 0.0, %v1344
      %v1346 = vpop.f32.mrb[0].mxu0
      %1347 = vmatprep.mubr.f32.mxu0 0.0
      %1348 = vmatmul.mubr.f32.gmra.mrb[0].mxu0 %v1098
      %v1349 = vpop.f32.mrb[0].mxu0
      %v1350 = vadd.f32 0.0, %v1349
      %v1351 = vpop.f32.mrb[0].mxu0
      %1352 = vmatprep.mubr.f32.mxu0 0.0
      %1353 = vmatmul.mubr.f32.gmra.mrb[0].mxu0 %v1099
      %v1354 = vpop.f32.mrb[0].mxu0
      %v1355 = vadd.f32 0.0, %v1354
      %v1356 = vpop.f32.mrb[0].mxu0
      %1357 = vmatprep.mubr.f32.mxu0 0.0
      %1358 = vmatmul.mubr.f32.gmra.mrb[0].mxu0 %v1100
      %v1359 = vpop.f32.mrb[0].mxu0
      %v1360 = vadd.f32 0.0, %v1359
      %v1361 = vpop.f32.mrb[0].mxu0
      %1362 = vdwg.mxu0
      %v1363 = vadd.f32 %v887, %v1185
      %v1364 = vadd.f32 %v892, %v1190
      %v1365 = vadd.f32 %v897, %v1195
      %v1366 = vadd.f32 %v902, %v1200
      %v1367 = vadd.f32 %v907, %v1205
      %v1368 = vadd.f32 %v912, %v1210
      %v1369 = vadd.f32 %v917, %v1215
      %v1370 = vadd.f32 %v922, %v1220
      %v1371 = vadd.f32 %v927, %v1225
      %v1372 = vadd.f32 %v932, %v1230
      %v1373 = vadd.f32 %v937, %v1235
      %v1374 = vadd.f32 %v942, %v1240
      %v1375 = vadd.f32 %v947, %v1245
      %v1376 = vadd.f32 %v952, %v1250
      %v1377 = vadd.f32 %v957, %v1255
      %v1378 = vadd.f32 %v962, %v1260
      %v1379 = vadd.f32 %v967, %v1265
      %v1380 = vadd.f32 %v972, %v1270
      %v1381 = vadd.f32 %v977, %v1275
      %v1382 = vadd.f32 %v982, %v1280
      %v1383 = vadd.f32 %v987, %v1285
      %v1384 = vadd.f32 %v992, %v1290
      %v1385 = vadd.f32 %v997, %v1295
      %v1386 = vadd.f32 %v1002, %v1300
      %v1387 = vadd.f32 %v1007, %v1305
      %v1388 = vadd.f32 %v1012, %v1310
      %v1389 = vadd.f32 %v1017, %v1315
      %v1390 = vadd.f32 %v1022, %v1320
      %v1391 = vadd.f32 %v1027, %v1325
      %v1392 = vadd.f32 %v1032, %v1330
      %v1393 = vadd.f32 %v1037, %v1335
      %v1394 = vadd.f32 %v1042, %v1340
      %v1395 = vadd.f32 %v1047, %v1345
      %v1396 = vadd.f32 %v1052, %v1350
      %v1397 = vadd.f32 %v1057, %v1355
      %v1398 = vadd.f32 %v1062, %v1360
      %v1399 = vld [vmem:[#allocation2 + $0x12] sm:$0xff]
      %v1400 = vld [vmem:[#allocation2 + $0x1a] sm:$0xff]
      %v1401 = vld [vmem:[#allocation2 + $0x22] sm:$0xff]
      %v1402 = vld [vmem:[#allocation2 + $0x2a] sm:$0xff]
      %v1403 = vld [vmem:[#allocation2 + $0x32] sm:$0xff]
      %v1404 = vld [vmem:[#allocation2 + $0x3a] sm:$0xff]
      %v1405 = vld [vmem:[#allocation2 + $0x42] sm:$0xff]
      %v1406 = vld [vmem:[#allocation2 + $0x4a] sm:$0xff]
      %v1407 = vld [vmem:[#allocation2 + $0x52] sm:$0xff]
      %v1408 = vld [vmem:[#allocation2 + $0x5a] sm:$0xff]
      %v1409 = vld [vmem:[#allocation2 + $0x62] sm:$0xff]
      %v1410 = vld [vmem:[#allocation2 + $0x6a] sm:$0xff]
      %v1411 = vld [vmem:[#allocation2 + $0x72] sm:$0xff]
      %v1412 = vld [vmem:[#allocation2 + $0x7a] sm:$0xff]
      %v1413 = vld [vmem:[#allocation2 + $0x82] sm:$0xff]
      %v1414 = vld [vmem:[#allocation2 + $0x8a] sm:$0xff]
      %v1415 = vld [vmem:[#allocation2 + $0x92] sm:$0xff]
      %v1416 = vld [vmem:[#allocation2 + $0x9a] sm:$0xff]
      %v1417 = vld [vmem:[#allocation2 + $0xa2] sm:$0xff]
      %v1418 = vld [vmem:[#allocation2 + $0xaa] sm:$0xff]
      %v1419 = vld [vmem:[#allocation2 + $0xb2] sm:$0xff]
      %v1420 = vld [vmem:[#allocation2 + $0xba] sm:$0xff]
      %v1421 = vld [vmem:[#allocation2 + $0xc2] sm:$0xff]
      %v1422 = vld [vmem:[#allocation2 + $0xca] sm:$0xff]
      %v1423 = vld [vmem:[#allocation2 + $0xd2] sm:$0xff]
      %v1424 = vld [vmem:[#allocation2 + $0xda] sm:$0xff]
      %v1425 = vld [vmem:[#allocation2 + $0xe2] sm:$0xff]
      %v1426 = vld [vmem:[#allocation2 + $0xea] sm:$0xff]
      %v1427 = vld [vmem:[#allocation2 + $0xf2] sm:$0xff]
      %v1428 = vld [vmem:[#allocation2 + $0xfa] sm:$0xff]
      %v1429 = vld [vmem:[#allocation2 + $0x102] sm:$0xff]
      %v1430 = vld [vmem:[#allocation2 + $0x10a] sm:$0xff]
      %v1431 = vld [vmem:[#allocation2 + $0x112] sm:$0xff]
      %v1432 = vld [vmem:[#allocation2 + $0x11a] sm:$0xff]
      %v1433 = vld [vmem:[#allocation2 + $0x122] sm:$0xff]
      %v1434 = vld [vmem:[#allocation2 + $0x12a] sm:$0x3f]
      %s1435 = scalar_lea.vmem %s3, 384
      %v1436 = vld [vmem:[%s1435] sm:$0xff]
      %v1437 = vld [vmem:[%s1435 + $0x8] sm:$0xff]
      %v1438 = vld [vmem:[%s1435 + $0x10] sm:$0xff]
      %v1439 = vld [vmem:[%s1435 + $0x18] sm:$0xff]
      %v1440 = vld [vmem:[%s1435 + $0x20] sm:$0xff]
      %v1441 = vld [vmem:[%s1435 + $0x28] sm:$0xff]
      %v1442 = vld [vmem:[%s1435 + $0x30] sm:$0xff]
      %v1443 = vld [vmem:[%s1435 + $0x38] sm:$0xff]
      %v1444 = vld [vmem:[%s1435 + $0x40] sm:$0xff]
      %v1445 = vld [vmem:[%s1435 + $0x48] sm:$0xff]
      %v1446 = vld [vmem:[%s1435 + $0x50] sm:$0xff]
      %v1447 = vld [vmem:[%s1435 + $0x58] sm:$0xff]
      %v1448 = vld [vmem:[%s1435 + $0x60] sm:$0xff]
      %v1449 = vld [vmem:[%s1435 + $0x68] sm:$0xff]
      %v1450 = vld [vmem:[%s1435 + $0x70] sm:$0xff]
      %v1451 = vld [vmem:[%s1435 + $0x78] sm:$0xff]
      %1452 = vmatprep.subr.mxu0 0.0
      %1453 = vmatpush1.msra.mxu0 %v1436
      %1454 = vmatprep.subr.mxu0 0.0
      %1455 = vmatpush1.msra.mxu0 %v1437
      %1456 = vmatprep.subr.mxu0 0.0
      %1457 = vmatpush1.msra.mxu0 %v1438
      %1458 = vmatprep.subr.mxu0 0.0
      %1459 = vmatpush1.msra.mxu0 %v1439
      %1460 = vmatprep.subr.mxu0 0.0
      %1461 = vmatpush1.msra.mxu0 %v1440
      %1462 = vmatprep.subr.mxu0 0.0
      %1463 = vmatpush1.msra.mxu0 %v1441
      %1464 = vmatprep.subr.mxu0 0.0
      %1465 = vmatpush1.msra.mxu0 %v1442
      %1466 = vmatprep.subr.mxu0 0.0
      %1467 = vmatpush1.msra.mxu0 %v1443
      %1468 = vmatprep.subr.mxu0 0.0
      %1469 = vmatpush1.msra.mxu0 %v1444
      %1470 = vmatprep.subr.mxu0 0.0
      %1471 = vmatpush1.msra.mxu0 %v1445
      %1472 = vmatprep.subr.mxu0 0.0
      %1473 = vmatpush1.msra.mxu0 %v1446
      %1474 = vmatprep.subr.mxu0 0.0
      %1475 = vmatpush1.msra.mxu0 %v1447
      %1476 = vmatprep.subr.mxu0 0.0
      %1477 = vmatpush1.msra.mxu0 %v1448
      %1478 = vmatprep.subr.mxu0 0.0
      %1479 = vmatpush1.msra.mxu0 %v1449
      %1480 = vmatprep.subr.mxu0 0.0
      %1481 = vmatpush1.msra.mxu0 %v1450
      %1482 = vmatprep.subr.mxu0 0.0
      %1483 = vmatpush1.msra.mxu0 %v1451
      %1484 = vmatprep.subr.mxu0 0.0
      %1485 = vmatpush1.msra.mxu0 0.0
      %1486 = vmatprep.subr.mxu0 0.0
      %1487 = vmatpush1.msra.mxu0 0.0
      %1488 = vmatprep.subr.mxu0 0.0
      %1489 = vmatpush1.msra.mxu0 0.0
      %1490 = vmatprep.subr.mxu0 0.0
      %1491 = vmatpush1.msra.mxu0 0.0
      %1492 = vmatprep.subr.mxu0 0.0
      %1493 = vmatpush1.msra.mxu0 0.0
      %1494 = vmatprep.subr.mxu0 0.0
      %1495 = vmatpush1.msra.mxu0 0.0
      %1496 = vmatprep.subr.mxu0 0.0
      %1497 = vmatpush1.msra.mxu0 0.0
      %1498 = vmatprep.subr.mxu0 0.0
      %1499 = vmatpush1.msra.mxu0 0.0
      %1500 = vmatprep.subr.mxu0 0.0
      %1501 = vmatpush1.msra.mxu0 0.0
      %1502 = vmatprep.subr.mxu0 0.0
      %1503 = vmatpush1.msra.mxu0 0.0
      %1504 = vmatprep.subr.mxu0 0.0
      %1505 = vmatpush1.msra.mxu0 0.0
      %1506 = vmatprep.subr.mxu0 0.0
      %1507 = vmatpush1.msra.mxu0 0.0
      %1508 = vmatprep.subr.mxu0 0.0
      %1509 = vmatpush1.msra.mxu0 0.0
      %1510 = vmatprep.subr.mxu0 0.0
      %1511 = vmatpush1.msra.mxu0 0.0
      %1512 = vmatprep.subr.mxu0 0.0
      %1513 = vmatpush1.msra.mxu0 0.0
      %1514 = vmatprep.subr.mxu0 0.0
      %1515 = vmatpush1.msra.mxu0 0.0
      %1516 = vmatprep.mubr.f32.mxu0 0.0
      %1517 = vmatmul.mubr.f32.gmra.mrb[0].mxu0 %v1399
      %v1518 = vpop.f32.mrb[0].mxu0
      %v1519 = vadd.f32 0.0, %v1518
      %v1520 = vpop.f32.mrb[0].mxu0
      %1521 = vmatprep.mubr.f32.mxu0 0.0
      %1522 = vmatmul.mubr.f32.gmra.mrb[0].mxu0 %v1400
      %v1523 = vpop.f32.mrb[0].mxu0
      %v1524 = vadd.f32 0.0, %v1523
      %v1525 = vpop.f32.mrb[0].mxu0
      %1526 = vmatprep.mubr.f32.mxu0 0.0
      %1527 = vmatmul.mubr.f32.gmra.mrb[0].mxu0 %v1401
      %v1528 = vpop.f32.mrb[0].mxu0
      %v1529 = vadd.f32 0.0, %v1528
      %v1530 = vpop.f32.mrb[0].mxu0
      %1531 = vmatprep.mubr.f32.mxu0 0.0
      %1532 = vmatmul.mubr.f32.gmra.mrb[0].mxu0 %v1402
      %v1533 = vpop.f32.mrb[0].mxu0
      %v1534 = vadd.f32 0.0, %v1533
      %v1535 = vpop.f32.mrb[0].mxu0
      %1536 = vmatprep.mubr.f32.mxu0 0.0
      %1537 = vmatmul.mubr.f32.gmra.mrb[0].mxu0 %v1403
      %v1538 = vpop.f32.mrb[0].mxu0
      %v1539 = vadd.f32 0.0, %v1538
      %v1540 = vpop.f32.mrb[0].mxu0
      %1541 = vmatprep.mubr.f32.mxu0 0.0
      %1542 = vmatmul.mubr.f32.gmra.mrb[0].mxu0 %v1404
      %v1543 = vpop.f32.mrb[0].mxu0
      %v1544 = vadd.f32 0.0, %v1543
      %v1545 = vpop.f32.mrb[0].mxu0
      %1546 = vmatprep.mubr.f32.mxu0 0.0
      %1547 = vmatmul.mubr.f32.gmra.mrb[0].mxu0 %v1405
      %v1548 = vpop.f32.mrb[0].mxu0
      %v1549 = vadd.f32 0.0, %v1548
      %v1550 = vpop.f32.mrb[0].mxu0
      %1551 = vmatprep.mubr.f32.mxu0 0.0
      %1552 = vmatmul.mubr.f32.gmra.mrb[0].mxu0 %v1406
      %v1553 = vpop.f32.mrb[0].mxu0
      %v1554 = vadd.f32 0.0, %v1553
      %v1555 = vpop.f32.mrb[0].mxu0
      %1556 = vmatprep.mubr.f32.mxu0 0.0
      %1557 = vmatmul.mubr.f32.gmra.mrb[0].mxu0 %v1407
      %v1558 = vpop.f32.mrb[0].mxu0
      %v1559 = vadd.f32 0.0, %v1558
      %v1560 = vpop.f32.mrb[0].mxu0
      %1561 = vmatprep.mubr.f32.mxu0 0.0
      %1562 = vmatmul.mubr.f32.gmra.mrb[0].mxu0 %v1408
      %v1563 = vpop.f32.mrb[0].mxu0
      %v1564 = vadd.f32 0.0, %v1563
      %v1565 = vpop.f32.mrb[0].mxu0
      %1566 = vmatprep.mubr.f32.mxu0 0.0
      %1567 = vmatmul.mubr.f32.gmra.mrb[0].mxu0 %v1409
      %v1568 = vpop.f32.mrb[0].mxu0
      %v1569 = vadd.f32 0.0, %v1568
      %v1570 = vpop.f32.mrb[0].mxu0
      %1571 = vmatprep.mubr.f32.mxu0 0.0
      %1572 = vmatmul.mubr.f32.gmra.mrb[0].mxu0 %v1410
      %v1573 = vpop.f32.mrb[0].mxu0
      %v1574 = vadd.f32 0.0, %v1573
      %v1575 = vpop.f32.mrb[0].mxu0
      %1576 = vmatprep.mubr.f32.mxu0 0.0
      %1577 = vmatmul.mubr.f32.gmra.mrb[0].mxu0 %v1411
      %v1578 = vpop.f32.mrb[0].mxu0
      %v1579 = vadd.f32 0.0, %v1578
      %v1580 = vpop.f32.mrb[0].mxu0
      %1581 = vmatprep.mubr.f32.mxu0 0.0
      %1582 = vmatmul.mubr.f32.gmra.mrb[0].mxu0 %v1412
      %v1583 = vpop.f32.mrb[0].mxu0
      %v1584 = vadd.f32 0.0, %v1583
      %v1585 = vpop.f32.mrb[0].mxu0
      %1586 = vmatprep.mubr.f32.mxu0 0.0
      %1587 = vmatmul.mubr.f32.gmra.mrb[0].mxu0 %v1413
      %v1588 = vpop.f32.mrb[0].mxu0
      %v1589 = vadd.f32 0.0, %v1588
      %v1590 = vpop.f32.mrb[0].mxu0
      %1591 = vmatprep.mubr.f32.mxu0 0.0
      %1592 = vmatmul.mubr.f32.gmra.mrb[0].mxu0 %v1414
      %v1593 = vpop.f32.mrb[0].mxu0
      %v1594 = vadd.f32 0.0, %v1593
      %v1595 = vpop.f32.mrb[0].mxu0
      %1596 = vmatprep.mubr.f32.mxu0 0.0
      %1597 = vmatmul.mubr.f32.gmra.mrb[0].mxu0 %v1415
      %v1598 = vpop.f32.mrb[0].mxu0
      %v1599 = vadd.f32 0.0, %v1598
      %v1600 = vpop.f32.mrb[0].mxu0
      %1601 = vmatprep.mubr.f32.mxu0 0.0
      %1602 = vmatmul.mubr.f32.gmra.mrb[0].mxu0 %v1416
      %v1603 = vpop.f32.mrb[0].mxu0
      %v1604 = vadd.f32 0.0, %v1603
      %v1605 = vpop.f32.mrb[0].mxu0
      %1606 = vmatprep.mubr.f32.mxu0 0.0
      %1607 = vmatmul.mubr.f32.gmra.mrb[0].mxu0 %v1417
      %v1608 = vpop.f32.mrb[0].mxu0
      %v1609 = vadd.f32 0.0, %v1608
      %v1610 = vpop.f32.mrb[0].mxu0
      %1611 = vmatprep.mubr.f32.mxu0 0.0
      %1612 = vmatmul.mubr.f32.gmra.mrb[0].mxu0 %v1418
      %v1613 = vpop.f32.mrb[0].mxu0
      %v1614 = vadd.f32 0.0, %v1613
      %v1615 = vpop.f32.mrb[0].mxu0
      %1616 = vmatprep.mubr.f32.mxu0 0.0
      %1617 = vmatmul.mubr.f32.gmra.mrb[0].mxu0 %v1419
      %v1618 = vpop.f32.mrb[0].mxu0
      %v1619 = vadd.f32 0.0, %v1618
      %v1620 = vpop.f32.mrb[0].mxu0
      %1621 = vmatprep.mubr.f32.mxu0 0.0
      %1622 = vmatmul.mubr.f32.gmra.mrb[0].mxu0 %v1420
      %v1623 = vpop.f32.mrb[0].mxu0
      %v1624 = vadd.f32 0.0, %v1623
      %v1625 = vpop.f32.mrb[0].mxu0
      %1626 = vmatprep.mubr.f32.mxu0 0.0
      %1627 = vmatmul.mubr.f32.gmra.mrb[0].mxu0 %v1421
      %v1628 = vpop.f32.mrb[0].mxu0
      %v1629 = vadd.f32 0.0, %v1628
      %v1630 = vpop.f32.mrb[0].mxu0
      %1631 = vmatprep.mubr.f32.mxu0 0.0
      %1632 = vmatmul.mubr.f32.gmra.mrb[0].mxu0 %v1422
      %v1633 = vpop.f32.mrb[0].mxu0
      %v1634 = vadd.f32 0.0, %v1633
      %v1635 = vpop.f32.mrb[0].mxu0
      %1636 = vmatprep.mubr.f32.mxu0 0.0
      %1637 = vmatmul.mubr.f32.gmra.mrb[0].mxu0 %v1423
      %v1638 = vpop.f32.mrb[0].mxu0
      %v1639 = vadd.f32 0.0, %v1638
      %v1640 = vpop.f32.mrb[0].mxu0
      %1641 = vmatprep.mubr.f32.mxu0 0.0
      %1642 = vmatmul.mubr.f32.gmra.mrb[0].mxu0 %v1424
      %v1643 = vpop.f32.mrb[0].mxu0
      %v1644 = vadd.f32 0.0, %v1643
      %v1645 = vpop.f32.mrb[0].mxu0
      %1646 = vmatprep.mubr.f32.mxu0 0.0
      %1647 = vmatmul.mubr.f32.gmra.mrb[0].mxu0 %v1425
      %v1648 = vpop.f32.mrb[0].mxu0
      %v1649 = vadd.f32 0.0, %v1648
      %v1650 = vpop.f32.mrb[0].mxu0
      %1651 = vmatprep.mubr.f32.mxu0 0.0
      %1652 = vmatmul.mubr.f32.gmra.mrb[0].mxu0 %v1426
      %v1653 = vpop.f32.mrb[0].mxu0
      %v1654 = vadd.f32 0.0, %v1653
      %v1655 = vpop.f32.mrb[0].mxu0
      %1656 = vmatprep.mubr.f32.mxu0 0.0
      %1657 = vmatmul.mubr.f32.gmra.mrb[0].mxu0 %v1427
      %v1658 = vpop.f32.mrb[0].mxu0
      %v1659 = vadd.f32 0.0, %v1658
      %v1660 = vpop.f32.mrb[0].mxu0
      %1661 = vmatprep.mubr.f32.mxu0 0.0
      %1662 = vmatmul.mubr.f32.gmra.mrb[0].mxu0 %v1428
      %v1663 = vpop.f32.mrb[0].mxu0
      %v1664 = vadd.f32 0.0, %v1663
      %v1665 = vpop.f32.mrb[0].mxu0
      %1666 = vmatprep.mubr.f32.mxu0 0.0
      %1667 = vmatmul.mubr.f32.gmra.mrb[0].mxu0 %v1429
      %v1668 = vpop.f32.mrb[0].mxu0
      %v1669 = vadd.f32 0.0, %v1668
      %v1670 = vpop.f32.mrb[0].mxu0
      %1671 = vmatprep.mubr.f32.mxu0 0.0
      %1672 = vmatmul.mubr.f32.gmra.mrb[0].mxu0 %v1430
      %v1673 = vpop.f32.mrb[0].mxu0
      %v1674 = vadd.f32 0.0, %v1673
      %v1675 = vpop.f32.mrb[0].mxu0
      %1676 = vmatprep.mubr.f32.mxu0 0.0
      %1677 = vmatmul.mubr.f32.gmra.mrb[0].mxu0 %v1431
      %v1678 = vpop.f32.mrb[0].mxu0
      %v1679 = vadd.f32 0.0, %v1678
      %v1680 = vpop.f32.mrb[0].mxu0
      %1681 = vmatprep.mubr.f32.mxu0 0.0
      %1682 = vmatmul.mubr.f32.gmra.mrb[0].mxu0 %v1432
      %v1683 = vpop.f32.mrb[0].mxu0
      %v1684 = vadd.f32 0.0, %v1683
      %v1685 = vpop.f32.mrb[0].mxu0
      %1686 = vmatprep.mubr.f32.mxu0 0.0
      %1687 = vmatmul.mubr.f32.gmra.mrb[0].mxu0 %v1433
      %v1688 = vpop.f32.mrb[0].mxu0
      %v1689 = vadd.f32 0.0, %v1688
      %v1690 = vpop.f32.mrb[0].mxu0
      %1691 = vmatprep.mubr.f32.mxu0 0.0
      %1692 = vmatmul.mubr.f32.gmra.mrb[0].mxu0 %v1434
      %v1693 = vpop.f32.mrb[0].mxu0
      %v1694 = vadd.f32 0.0, %v1693
      %v1695 = vpop.f32.mrb[0].mxu0
      %1696 = vdwg.mxu0
      %v1697 = vadd.f32 %v1363, %v1519
      %v1698 = vadd.f32 %v1364, %v1524
      %v1699 = vadd.f32 %v1365, %v1529
      %v1700 = vadd.f32 %v1366, %v1534
      %v1701 = vadd.f32 %v1367, %v1539
      %v1702 = vadd.f32 %v1368, %v1544
      %v1703 = vadd.f32 %v1369, %v1549
      %v1704 = vadd.f32 %v1370, %v1554
      %v1705 = vadd.f32 %v1371, %v1559
      %v1706 = vadd.f32 %v1372, %v1564
      %v1707 = vadd.f32 %v1373, %v1569
      %v1708 = vadd.f32 %v1374, %v1574
      %v1709 = vadd.f32 %v1375, %v1579
      %v1710 = vadd.f32 %v1376, %v1584
      %v1711 = vadd.f32 %v1377, %v1589
      %v1712 = vadd.f32 %v1378, %v1594
      %v1713 = vadd.f32 %v1379, %v1599
      %v1714 = vadd.f32 %v1380, %v1604
      %v1715 = vadd.f32 %v1381, %v1609
      %v1716 = vadd.f32 %v1382, %v1614
      %v1717 = vadd.f32 %v1383, %v1619
      %v1718 = vadd.f32 %v1384, %v1624
      %v1719 = vadd.f32 %v1385, %v1629
      %v1720 = vadd.f32 %v1386, %v1634
      %v1721 = vadd.f32 %v1387, %v1639
      %v1722 = vadd.f32 %v1388, %v1644
      %v1723 = vadd.f32 %v1389, %v1649
      %v1724 = vadd.f32 %v1390, %v1654
      %v1725 = vadd.f32 %v1391, %v1659
      %v1726 = vadd.f32 %v1392, %v1664
      %v1727 = vadd.f32 %v1393, %v1669
      %v1728 = vadd.f32 %v1394, %v1674
      %v1729 = vadd.f32 %v1395, %v1679
      %v1730 = vadd.f32 %v1396, %v1684
      %v1731 = vadd.f32 %v1397, %v1689
      %v1732 = vadd.f32 %v1398, %v1694
      %v1733 = vld [vmem:[#allocation2 + $0x13] sm:$0xff]
      %v1734 = vld [vmem:[#allocation2 + $0x1b] sm:$0xff]
      %v1735 = vld [vmem:[#allocation2 + $0x23] sm:$0xff]
      %v1736 = vld [vmem:[#allocation2 + $0x2b] sm:$0xff]
      %v1737 = vld [vmem:[#allocation2 + $0x33] sm:$0xff]
      %v1738 = vld [vmem:[#allocation2 + $0x3b] sm:$0xff]
      %v1739 = vld [vmem:[#allocation2 + $0x43] sm:$0xff]
      %v1740 = vld [vmem:[#allocation2 + $0x4b] sm:$0xff]
      %v1741 = vld [vmem:[#allocation2 + $0x53] sm:$0xff]
      %v1742 = vld [vmem:[#allocation2 + $0x5b] sm:$0xff]
      %v1743 = vld [vmem:[#allocation2 + $0x63] sm:$0xff]
      %v1744 = vld [vmem:[#allocation2 + $0x6b] sm:$0xff]
      %v1745 = vld [vmem:[#allocation2 + $0x73] sm:$0xff]
      %v1746 = vld [vmem:[#allocation2 + $0x7b] sm:$0xff]
      %v1747 = vld [vmem:[#allocation2 + $0x83] sm:$0xff]
      %v1748 = vld [vmem:[#allocation2 + $0x8b] sm:$0xff]
      %v1749 = vld [vmem:[#allocation2 + $0x93] sm:$0xff]
      %v1750 = vld [vmem:[#allocation2 + $0x9b] sm:$0xff]
      %v1751 = vld [vmem:[#allocation2 + $0xa3] sm:$0xff]
      %v1752 = vld [vmem:[#allocation2 + $0xab] sm:$0xff]
      %v1753 = vld [vmem:[#allocation2 + $0xb3] sm:$0xff]
      %v1754 = vld [vmem:[#allocation2 + $0xbb] sm:$0xff]
      %v1755 = vld [vmem:[#allocation2 + $0xc3] sm:$0xff]
      %v1756 = vld [vmem:[#allocation2 + $0xcb] sm:$0xff]
      %v1757 = vld [vmem:[#allocation2 + $0xd3] sm:$0xff]
      %v1758 = vld [vmem:[#allocation2 + $0xdb] sm:$0xff]
      %v1759 = vld [vmem:[#allocation2 + $0xe3] sm:$0xff]
      %v1760 = vld [vmem:[#allocation2 + $0xeb] sm:$0xff]
      %v1761 = vld [vmem:[#allocation2 + $0xf3] sm:$0xff]
      %v1762 = vld [vmem:[#allocation2 + $0xfb] sm:$0xff]
      %v1763 = vld [vmem:[#allocation2 + $0x103] sm:$0xff]
      %v1764 = vld [vmem:[#allocation2 + $0x10b] sm:$0xff]
      %v1765 = vld [vmem:[#allocation2 + $0x113] sm:$0xff]
      %v1766 = vld [vmem:[#allocation2 + $0x11b] sm:$0xff]
      %v1767 = vld [vmem:[#allocation2 + $0x123] sm:$0xff]
      %v1768 = vld [vmem:[#allocation2 + $0x12b] sm:$0x3f]
      %s1769 = scalar_lea.vmem %s3, 512
      %v1770 = vld [vmem:[%s1769] sm:$0xff]
      %v1771 = vld [vmem:[%s1769 + $0x8] sm:$0xff]
      %v1772 = vld [vmem:[%s1769 + $0x10] sm:$0xff]
      %v1773 = vld [vmem:[%s1769 + $0x18] sm:$0xff]
      %v1774 = vld [vmem:[%s1769 + $0x20] sm:$0xff]
      %v1775 = vld [vmem:[%s1769 + $0x28] sm:$0xff]
      %v1776 = vld [vmem:[%s1769 + $0x30] sm:$0xff]
      %v1777 = vld [vmem:[%s1769 + $0x38] sm:$0xff]
      %v1778 = vld [vmem:[%s1769 + $0x40] sm:$0xff]
      %v1779 = vld [vmem:[%s1769 + $0x48] sm:$0xff]
      %v1780 = vld [vmem:[%s1769 + $0x50] sm:$0xff]
      %v1781 = vld [vmem:[%s1769 + $0x58] sm:$0xff]
      %v1782 = vld [vmem:[%s1769 + $0x60] sm:$0xff]
      %v1783 = vld [vmem:[%s1769 + $0x68] sm:$0xff]
      %v1784 = vld [vmem:[%s1769 + $0x70] sm:$0xff]
      %v1785 = vld [vmem:[%s1769 + $0x78] sm:$0xff]
      %1786 = vmatprep.subr.mxu0 0.0
      %1787 = vmatpush1.msra.mxu0 %v1770
      %1788 = vmatprep.subr.mxu0 0.0
      %1789 = vmatpush1.msra.mxu0 %v1771
      %1790 = vmatprep.subr.mxu0 0.0
      %1791 = vmatpush1.msra.mxu0 %v1772
      %1792 = vmatprep.subr.mxu0 0.0
      %1793 = vmatpush1.msra.mxu0 %v1773
      %1794 = vmatprep.subr.mxu0 0.0
      %1795 = vmatpush1.msra.mxu0 %v1774
      %1796 = vmatprep.subr.mxu0 0.0
      %1797 = vmatpush1.msra.mxu0 %v1775
      %1798 = vmatprep.subr.mxu0 0.0
      %1799 = vmatpush1.msra.mxu0 %v1776
      %1800 = vmatprep.subr.mxu0 0.0
      %1801 = vmatpush1.msra.mxu0 %v1777
      %1802 = vmatprep.subr.mxu0 0.0
      %1803 = vmatpush1.msra.mxu0 %v1778
      %1804 = vmatprep.subr.mxu0 0.0
      %1805 = vmatpush1.msra.mxu0 %v1779
      %1806 = vmatprep.subr.mxu0 0.0
      %1807 = vmatpush1.msra.mxu0 %v1780
      %1808 = vmatprep.subr.mxu0 0.0
      %1809 = vmatpush1.msra.mxu0 %v1781
      %1810 = vmatprep.subr.mxu0 0.0
      %1811 = vmatpush1.msra.mxu0 %v1782
      %1812 = vmatprep.subr.mxu0 0.0
      %1813 = vmatpush1.msra.mxu0 %v1783
      %1814 = vmatprep.subr.mxu0 0.0
      %1815 = vmatpush1.msra.mxu0 %v1784
      %1816 = vmatprep.subr.mxu0 0.0
      %1817 = vmatpush1.msra.mxu0 %v1785
      %1818 = vmatprep.subr.mxu0 0.0
      %1819 = vmatpush1.msra.mxu0 0.0
      %1820 = vmatprep.subr.mxu0 0.0
      %1821 = vmatpush1.msra.mxu0 0.0
      %1822 = vmatprep.subr.mxu0 0.0
      %1823 = vmatpush1.msra.mxu0 0.0
      %1824 = vmatprep.subr.mxu0 0.0
      %1825 = vmatpush1.msra.mxu0 0.0
      %1826 = vmatprep.subr.mxu0 0.0
      %1827 = vmatpush1.msra.mxu0 0.0
      %1828 = vmatprep.subr.mxu0 0.0
      %1829 = vmatpush1.msra.mxu0 0.0
      %1830 = vmatprep.subr.mxu0 0.0
      %1831 = vmatpush1.msra.mxu0 0.0
      %1832 = vmatprep.subr.mxu0 0.0
      %1833 = vmatpush1.msra.mxu0 0.0
      %1834 = vmatprep.subr.mxu0 0.0
      %1835 = vmatpush1.msra.mxu0 0.0
      %1836 = vmatprep.subr.mxu0 0.0
      %1837 = vmatpush1.msra.mxu0 0.0
      %1838 = vmatprep.subr.mxu0 0.0
      %1839 = vmatpush1.msra.mxu0 0.0
      %1840 = vmatprep.subr.mxu0 0.0
      %1841 = vmatpush1.msra.mxu0 0.0
      %1842 = vmatprep.subr.mxu0 0.0
      %1843 = vmatpush1.msra.mxu0 0.0
      %1844 = vmatprep.subr.mxu0 0.0
      %1845 = vmatpush1.msra.mxu0 0.0
      %1846 = vmatprep.subr.mxu0 0.0
      %1847 = vmatpush1.msra.mxu0 0.0
      %1848 = vmatprep.subr.mxu0 0.0
      %1849 = vmatpush1.msra.mxu0 0.0
      %1850 = vmatprep.mubr.f32.mxu0 0.0
      %1851 = vmatmul.mubr.f32.gmra.mrb[0].mxu0 %v1733
      %v1852 = vpop.f32.mrb[0].mxu0
      %v1853 = vadd.f32 0.0, %v1852
      %v1854 = vpop.f32.mrb[0].mxu0
      %1855 = vmatprep.mubr.f32.mxu0 0.0
      %1856 = vmatmul.mubr.f32.gmra.mrb[0].mxu0 %v1734
      %v1857 = vpop.f32.mrb[0].mxu0
      %v1858 = vadd.f32 0.0, %v1857
      %v1859 = vpop.f32.mrb[0].mxu0
      %1860 = vmatprep.mubr.f32.mxu0 0.0
      %1861 = vmatmul.mubr.f32.gmra.mrb[0].mxu0 %v1735
      %v1862 = vpop.f32.mrb[0].mxu0
      %v1863 = vadd.f32 0.0, %v1862
      %v1864 = vpop.f32.mrb[0].mxu0
      %1865 = vmatprep.mubr.f32.mxu0 0.0
      %1866 = vmatmul.mubr.f32.gmra.mrb[0].mxu0 %v1736
      %v1867 = vpop.f32.mrb[0].mxu0
      %v1868 = vadd.f32 0.0, %v1867
      %v1869 = vpop.f32.mrb[0].mxu0
      %1870 = vmatprep.mubr.f32.mxu0 0.0
      %1871 = vmatmul.mubr.f32.gmra.mrb[0].mxu0 %v1737
      %v1872 = vpop.f32.mrb[0].mxu0
      %v1873 = vadd.f32 0.0, %v1872
      %v1874 = vpop.f32.mrb[0].mxu0
      %1875 = vmatprep.mubr.f32.mxu0 0.0
      %1876 = vmatmul.mubr.f32.gmra.mrb[0].mxu0 %v1738
      %v1877 = vpop.f32.mrb[0].mxu0
      %v1878 = vadd.f32 0.0, %v1877
      %v1879 = vpop.f32.mrb[0].mxu0
      %1880 = vmatprep.mubr.f32.mxu0 0.0
      %1881 = vmatmul.mubr.f32.gmra.mrb[0].mxu0 %v1739
      %v1882 = vpop.f32.mrb[0].mxu0
      %v1883 = vadd.f32 0.0, %v1882
      %v1884 = vpop.f32.mrb[0].mxu0
      %1885 = vmatprep.mubr.f32.mxu0 0.0
      %1886 = vmatmul.mubr.f32.gmra.mrb[0].mxu0 %v1740
      %v1887 = vpop.f32.mrb[0].mxu0
      %v1888 = vadd.f32 0.0, %v1887
      %v1889 = vpop.f32.mrb[0].mxu0
      %1890 = vmatprep.mubr.f32.mxu0 0.0
      %1891 = vmatmul.mubr.f32.gmra.mrb[0].mxu0 %v1741
      %v1892 = vpop.f32.mrb[0].mxu0
      %v1893 = vadd.f32 0.0, %v1892
      %v1894 = vpop.f32.mrb[0].mxu0
      %1895 = vmatprep.mubr.f32.mxu0 0.0
      %1896 = vmatmul.mubr.f32.gmra.mrb[0].mxu0 %v1742
      %v1897 = vpop.f32.mrb[0].mxu0
      %v1898 = vadd.f32 0.0, %v1897
      %v1899 = vpop.f32.mrb[0].mxu0
      %1900 = vmatprep.mubr.f32.mxu0 0.0
      %1901 = vmatmul.mubr.f32.gmra.mrb[0].mxu0 %v1743
      %v1902 = vpop.f32.mrb[0].mxu0
      %v1903 = vadd.f32 0.0, %v1902
      %v1904 = vpop.f32.mrb[0].mxu0
      %1905 = vmatprep.mubr.f32.mxu0 0.0
      %1906 = vmatmul.mubr.f32.gmra.mrb[0].mxu0 %v1744
      %v1907 = vpop.f32.mrb[0].mxu0
      %v1908 = vadd.f32 0.0, %v1907
      %v1909 = vpop.f32.mrb[0].mxu0
      %1910 = vmatprep.mubr.f32.mxu0 0.0
      %1911 = vmatmul.mubr.f32.gmra.mrb[0].mxu0 %v1745
      %v1912 = vpop.f32.mrb[0].mxu0
      %v1913 = vadd.f32 0.0, %v1912
      %v1914 = vpop.f32.mrb[0].mxu0
      %1915 = vmatprep.mubr.f32.mxu0 0.0
      %1916 = vmatmul.mubr.f32.gmra.mrb[0].mxu0 %v1746
      %v1917 = vpop.f32.mrb[0].mxu0
      %v1918 = vadd.f32 0.0, %v1917
      %v1919 = vpop.f32.mrb[0].mxu0
      %1920 = vmatprep.mubr.f32.mxu0 0.0
      %1921 = vmatmul.mubr.f32.gmra.mrb[0].mxu0 %v1747
      %v1922 = vpop.f32.mrb[0].mxu0
      %v1923 = vadd.f32 0.0, %v1922
      %v1924 = vpop.f32.mrb[0].mxu0
      %1925 = vmatprep.mubr.f32.mxu0 0.0
      %1926 = vmatmul.mubr.f32.gmra.mrb[0].mxu0 %v1748
      %v1927 = vpop.f32.mrb[0].mxu0
      %v1928 = vadd.f32 0.0, %v1927
      %v1929 = vpop.f32.mrb[0].mxu0
      %1930 = vmatprep.mubr.f32.mxu0 0.0
      %1931 = vmatmul.mubr.f32.gmra.mrb[0].mxu0 %v1749
      %v1932 = vpop.f32.mrb[0].mxu0
      %v1933 = vadd.f32 0.0, %v1932
      %v1934 = vpop.f32.mrb[0].mxu0
      %1935 = vmatprep.mubr.f32.mxu0 0.0
      %1936 = vmatmul.mubr.f32.gmra.mrb[0].mxu0 %v1750
      %v1937 = vpop.f32.mrb[0].mxu0
      %v1938 = vadd.f32 0.0, %v1937
      %v1939 = vpop.f32.mrb[0].mxu0
      %1940 = vmatprep.mubr.f32.mxu0 0.0
      %1941 = vmatmul.mubr.f32.gmra.mrb[0].mxu0 %v1751
      %v1942 = vpop.f32.mrb[0].mxu0
      %v1943 = vadd.f32 0.0, %v1942
      %v1944 = vpop.f32.mrb[0].mxu0
      %1945 = vmatprep.mubr.f32.mxu0 0.0
      %1946 = vmatmul.mubr.f32.gmra.mrb[0].mxu0 %v1752
      %v1947 = vpop.f32.mrb[0].mxu0
      %v1948 = vadd.f32 0.0, %v1947
      %v1949 = vpop.f32.mrb[0].mxu0
      %1950 = vmatprep.mubr.f32.mxu0 0.0
      %1951 = vmatmul.mubr.f32.gmra.mrb[0].mxu0 %v1753
      %v1952 = vpop.f32.mrb[0].mxu0
      %v1953 = vadd.f32 0.0, %v1952
      %v1954 = vpop.f32.mrb[0].mxu0
      %1955 = vmatprep.mubr.f32.mxu0 0.0
      %1956 = vmatmul.mubr.f32.gmra.mrb[0].mxu0 %v1754
      %v1957 = vpop.f32.mrb[0].mxu0
      %v1958 = vadd.f32 0.0, %v1957
      %v1959 = vpop.f32.mrb[0].mxu0
      %1960 = vmatprep.mubr.f32.mxu0 0.0
      %1961 = vmatmul.mubr.f32.gmra.mrb[0].mxu0 %v1755
      %v1962 = vpop.f32.mrb[0].mxu0
      %v1963 = vadd.f32 0.0, %v1962
      %v1964 = vpop.f32.mrb[0].mxu0
      %1965 = vmatprep.mubr.f32.mxu0 0.0
      %1966 = vmatmul.mubr.f32.gmra.mrb[0].mxu0 %v1756
      %v1967 = vpop.f32.mrb[0].mxu0
      %v1968 = vadd.f32 0.0, %v1967
      %v1969 = vpop.f32.mrb[0].mxu0
      %1970 = vmatprep.mubr.f32.mxu0 0.0
      %1971 = vmatmul.mubr.f32.gmra.mrb[0].mxu0 %v1757
      %v1972 = vpop.f32.mrb[0].mxu0
      %v1973 = vadd.f32 0.0, %v1972
      %v1974 = vpop.f32.mrb[0].mxu0
      %1975 = vmatprep.mubr.f32.mxu0 0.0
      %1976 = vmatmul.mubr.f32.gmra.mrb[0].mxu0 %v1758
      %v1977 = vpop.f32.mrb[0].mxu0
      %v1978 = vadd.f32 0.0, %v1977
      %v1979 = vpop.f32.mrb[0].mxu0
      %1980 = vmatprep.mubr.f32.mxu0 0.0
      %1981 = vmatmul.mubr.f32.gmra.mrb[0].mxu0 %v1759
      %v1982 = vpop.f32.mrb[0].mxu0
      %v1983 = vadd.f32 0.0, %v1982
      %v1984 = vpop.f32.mrb[0].mxu0
      %1985 = vmatprep.mubr.f32.mxu0 0.0
      %1986 = vmatmul.mubr.f32.gmra.mrb[0].mxu0 %v1760
      %v1987 = vpop.f32.mrb[0].mxu0
      %v1988 = vadd.f32 0.0, %v1987
      %v1989 = vpop.f32.mrb[0].mxu0
      %1990 = vmatprep.mubr.f32.mxu0 0.0
      %1991 = vmatmul.mubr.f32.gmra.mrb[0].mxu0 %v1761
      %v1992 = vpop.f32.mrb[0].mxu0
      %v1993 = vadd.f32 0.0, %v1992
      %v1994 = vpop.f32.mrb[0].mxu0
      %1995 = vmatprep.mubr.f32.mxu0 0.0
      %1996 = vmatmul.mubr.f32.gmra.mrb[0].mxu0 %v1762
      %v1997 = vpop.f32.mrb[0].mxu0
      %v1998 = vadd.f32 0.0, %v1997
      %v1999 = vpop.f32.mrb[0].mxu0
      %2000 = vmatprep.mubr.f32.mxu0 0.0
      %2001 = vmatmul.mubr.f32.gmra.mrb[0].mxu0 %v1763
      %v2002 = vpop.f32.mrb[0].mxu0
      %v2003 = vadd.f32 0.0, %v2002
      %v2004 = vpop.f32.mrb[0].mxu0
      %2005 = vmatprep.mubr.f32.mxu0 0.0
      %2006 = vmatmul.mubr.f32.gmra.mrb[0].mxu0 %v1764
      %v2007 = vpop.f32.mrb[0].mxu0
      %v2008 = vadd.f32 0.0, %v2007
      %v2009 = vpop.f32.mrb[0].mxu0
      %2010 = vmatprep.mubr.f32.mxu0 0.0
      %2011 = vmatmul.mubr.f32.gmra.mrb[0].mxu0 %v1765
      %v2012 = vpop.f32.mrb[0].mxu0
      %v2013 = vadd.f32 0.0, %v2012
      %v2014 = vpop.f32.mrb[0].mxu0
      %2015 = vmatprep.mubr.f32.mxu0 0.0
      %2016 = vmatmul.mubr.f32.gmra.mrb[0].mxu0 %v1766
      %v2017 = vpop.f32.mrb[0].mxu0
      %v2018 = vadd.f32 0.0, %v2017
      %v2019 = vpop.f32.mrb[0].mxu0
      %2020 = vmatprep.mubr.f32.mxu0 0.0
      %2021 = vmatmul.mubr.f32.gmra.mrb[0].mxu0 %v1767
      %v2022 = vpop.f32.mrb[0].mxu0
      %v2023 = vadd.f32 0.0, %v2022
      %v2024 = vpop.f32.mrb[0].mxu0
      %2025 = vmatprep.mubr.f32.mxu0 0.0
      %2026 = vmatmul.mubr.f32.gmra.mrb[0].mxu0 %v1768
      %v2027 = vpop.f32.mrb[0].mxu0
      %v2028 = vadd.f32 0.0, %v2027
      %v2029 = vpop.f32.mrb[0].mxu0
      %2030 = vdwg.mxu0
      %v2031 = vadd.f32 %v1697, %v1853
      %v2032 = vadd.f32 %v1698, %v1858
      %v2033 = vadd.f32 %v1699, %v1863
      %v2034 = vadd.f32 %v1700, %v1868
      %v2035 = vadd.f32 %v1701, %v1873
      %v2036 = vadd.f32 %v1702, %v1878
      %v2037 = vadd.f32 %v1703, %v1883
      %v2038 = vadd.f32 %v1704, %v1888
      %v2039 = vadd.f32 %v1705, %v1893
      %v2040 = vadd.f32 %v1706, %v1898
      %v2041 = vadd.f32 %v1707, %v1903
      %v2042 = vadd.f32 %v1708, %v1908
      %v2043 = vadd.f32 %v1709, %v1913
      %v2044 = vadd.f32 %v1710, %v1918
      %v2045 = vadd.f32 %v1711, %v1923
      %v2046 = vadd.f32 %v1712, %v1928
      %v2047 = vadd.f32 %v1713, %v1933
      %v2048 = vadd.f32 %v1714, %v1938
      %v2049 = vadd.f32 %v1715, %v1943
      %v2050 = vadd.f32 %v1716, %v1948
      %v2051 = vadd.f32 %v1717, %v1953
      %v2052 = vadd.f32 %v1718, %v1958
      %v2053 = vadd.f32 %v1719, %v1963
      %v2054 = vadd.f32 %v1720, %v1968
      %v2055 = vadd.f32 %v1721, %v1973
      %v2056 = vadd.f32 %v1722, %v1978
      %v2057 = vadd.f32 %v1723, %v1983
      %v2058 = vadd.f32 %v1724, %v1988
      %v2059 = vadd.f32 %v1725, %v1993
      %v2060 = vadd.f32 %v1726, %v1998
      %v2061 = vadd.f32 %v1727, %v2003
      %v2062 = vadd.f32 %v1728, %v2008
      %v2063 = vadd.f32 %v1729, %v2013
      %v2064 = vadd.f32 %v1730, %v2018
      %v2065 = vadd.f32 %v1731, %v2023
      %v2066 = vadd.f32 %v1732, %v2028
      %v2067 = vld [vmem:[#allocation2 + $0x14] sm:$0xff]
      %v2068 = vld [vmem:[#allocation2 + $0x1c] sm:$0xff]
      %v2069 = vld [vmem:[#allocation2 + $0x24] sm:$0xff]
      %v2070 = vld [vmem:[#allocation2 + $0x2c] sm:$0xff]
      %v2071 = vld [vmem:[#allocation2 + $0x34] sm:$0xff]
      %v2072 = vld [vmem:[#allocation2 + $0x3c] sm:$0xff]
      %v2073 = vld [vmem:[#allocation2 + $0x44] sm:$0xff]
      %v2074 = vld [vmem:[#allocation2 + $0x4c] sm:$0xff]
      %v2075 = vld [vmem:[#allocation2 + $0x54] sm:$0xff]
      %v2076 = vld [vmem:[#allocation2 + $0x5c] sm:$0xff]
      %v2077 = vld [vmem:[#allocation2 + $0x64] sm:$0xff]
      %v2078 = vld [vmem:[#allocation2 + $0x6c] sm:$0xff]
      %v2079 = vld [vmem:[#allocation2 + $0x74] sm:$0xff]
      %v2080 = vld [vmem:[#allocation2 + $0x7c] sm:$0xff]
      %v2081 = vld [vmem:[#allocation2 + $0x84] sm:$0xff]
      %v2082 = vld [vmem:[#allocation2 + $0x8c] sm:$0xff]
      %v2083 = vld [vmem:[#allocation2 + $0x94] sm:$0xff]
      %v2084 = vld [vmem:[#allocation2 + $0x9c] sm:$0xff]
      %v2085 = vld [vmem:[#allocation2 + $0xa4] sm:$0xff]
      %v2086 = vld [vmem:[#allocation2 + $0xac] sm:$0xff]
      %v2087 = vld [vmem:[#allocation2 + $0xb4] sm:$0xff]
      %v2088 = vld [vmem:[#allocation2 + $0xbc] sm:$0xff]
      %v2089 = vld [vmem:[#allocation2 + $0xc4] sm:$0xff]
      %v2090 = vld [vmem:[#allocation2 + $0xcc] sm:$0xff]
      %v2091 = vld [vmem:[#allocation2 + $0xd4] sm:$0xff]
      %v2092 = vld [vmem:[#allocation2 + $0xdc] sm:$0xff]
      %v2093 = vld [vmem:[#allocation2 + $0xe4] sm:$0xff]
      %v2094 = vld [vmem:[#allocation2 + $0xec] sm:$0xff]
      %v2095 = vld [vmem:[#allocation2 + $0xf4] sm:$0xff]
      %v2096 = vld [vmem:[#allocation2 + $0xfc] sm:$0xff]
      %v2097 = vld [vmem:[#allocation2 + $0x104] sm:$0xff]
      %v2098 = vld [vmem:[#allocation2 + $0x10c] sm:$0xff]
      %v2099 = vld [vmem:[#allocation2 + $0x114] sm:$0xff]
      %v2100 = vld [vmem:[#allocation2 + $0x11c] sm:$0xff]
      %v2101 = vld [vmem:[#allocation2 + $0x124] sm:$0xff]
      %v2102 = vld [vmem:[#allocation2 + $0x12c] sm:$0x3f]
      %s2103 = scalar_lea.vmem %s3, 640
      %v2104 = vld [vmem:[%s2103] sm:$0xff]
      %v2105 = vld [vmem:[%s2103 + $0x8] sm:$0xff]
      %v2106 = vld [vmem:[%s2103 + $0x10] sm:$0xff]
      %v2107 = vld [vmem:[%s2103 + $0x18] sm:$0xff]
      %v2108 = vld [vmem:[%s2103 + $0x20] sm:$0xff]
      %v2109 = vld [vmem:[%s2103 + $0x28] sm:$0xff]
      %v2110 = vld [vmem:[%s2103 + $0x30] sm:$0xff]
      %v2111 = vld [vmem:[%s2103 + $0x38] sm:$0xff]
      %v2112 = vld [vmem:[%s2103 + $0x40] sm:$0xff]
      %v2113 = vld [vmem:[%s2103 + $0x48] sm:$0xff]
      %v2114 = vld [vmem:[%s2103 + $0x50] sm:$0xff]
      %v2115 = vld [vmem:[%s2103 + $0x58] sm:$0xff]
      %v2116 = vld [vmem:[%s2103 + $0x60] sm:$0xff]
      %v2117 = vld [vmem:[%s2103 + $0x68] sm:$0xff]
      %v2118 = vld [vmem:[%s2103 + $0x70] sm:$0xff]
      %v2119 = vld [vmem:[%s2103 + $0x78] sm:$0xff]
      %2120 = vmatprep.subr.mxu0 0.0
      %2121 = vmatpush1.msra.mxu0 %v2104
      %2122 = vmatprep.subr.mxu0 0.0
      %2123 = vmatpush1.msra.mxu0 %v2105
      %2124 = vmatprep.subr.mxu0 0.0
      %2125 = vmatpush1.msra.mxu0 %v2106
      %2126 = vmatprep.subr.mxu0 0.0
      %2127 = vmatpush1.msra.mxu0 %v2107
      %2128 = vmatprep.subr.mxu0 0.0
      %2129 = vmatpush1.msra.mxu0 %v2108
      %2130 = vmatprep.subr.mxu0 0.0
      %2131 = vmatpush1.msra.mxu0 %v2109
      %2132 = vmatprep.subr.mxu0 0.0
      %2133 = vmatpush1.msra.mxu0 %v2110
      %2134 = vmatprep.subr.mxu0 0.0
      %2135 = vmatpush1.msra.mxu0 %v2111
      %2136 = vmatprep.subr.mxu0 0.0
      %2137 = vmatpush1.msra.mxu0 %v2112
      %2138 = vmatprep.subr.mxu0 0.0
      %2139 = vmatpush1.msra.mxu0 %v2113
      %2140 = vmatprep.subr.mxu0 0.0
      %2141 = vmatpush1.msra.mxu0 %v2114
      %2142 = vmatprep.subr.mxu0 0.0
      %2143 = vmatpush1.msra.mxu0 %v2115
      %2144 = vmatprep.subr.mxu0 0.0
      %2145 = vmatpush1.msra.mxu0 %v2116
      %2146 = vmatprep.subr.mxu0 0.0
      %2147 = vmatpush1.msra.mxu0 %v2117
      %2148 = vmatprep.subr.mxu0 0.0
      %2149 = vmatpush1.msra.mxu0 %v2118
      %2150 = vmatprep.subr.mxu0 0.0
      %2151 = vmatpush1.msra.mxu0 %v2119
      %2152 = vmatprep.subr.mxu0 0.0
      %2153 = vmatpush1.msra.mxu0 0.0
      %2154 = vmatprep.subr.mxu0 0.0
      %2155 = vmatpush1.msra.mxu0 0.0
      %2156 = vmatprep.subr.mxu0 0.0
      %2157 = vmatpush1.msra.mxu0 0.0
      %2158 = vmatprep.subr.mxu0 0.0
      %2159 = vmatpush1.msra.mxu0 0.0
      %2160 = vmatprep.subr.mxu0 0.0
      %2161 = vmatpush1.msra.mxu0 0.0
      %2162 = vmatprep.subr.mxu0 0.0
      %2163 = vmatpush1.msra.mxu0 0.0
      %2164 = vmatprep.subr.mxu0 0.0
      %2165 = vmatpush1.msra.mxu0 0.0
      %2166 = vmatprep.subr.mxu0 0.0
      %2167 = vmatpush1.msra.mxu0 0.0
      %2168 = vmatprep.subr.mxu0 0.0
      %2169 = vmatpush1.msra.mxu0 0.0
      %2170 = vmatprep.subr.mxu0 0.0
      %2171 = vmatpush1.msra.mxu0 0.0
      %2172 = vmatprep.subr.mxu0 0.0
      %2173 = vmatpush1.msra.mxu0 0.0
      %2174 = vmatprep.subr.mxu0 0.0
      %2175 = vmatpush1.msra.mxu0 0.0
      %2176 = vmatprep.subr.mxu0 0.0
      %2177 = vmatpush1.msra.mxu0 0.0
      %2178 = vmatprep.subr.mxu0 0.0
      %2179 = vmatpush1.msra.mxu0 0.0
      %2180 = vmatprep.subr.mxu0 0.0
      %2181 = vmatpush1.msra.mxu0 0.0
      %2182 = vmatprep.subr.mxu0 0.0
      %2183 = vmatpush1.msra.mxu0 0.0
      %2184 = vmatprep.mubr.f32.mxu0 0.0
      %2185 = vmatmul.mubr.f32.gmra.mrb[0].mxu0 %v2067
      %v2186 = vpop.f32.mrb[0].mxu0
      %v2187 = vadd.f32 0.0, %v2186
      %v2188 = vpop.f32.mrb[0].mxu0
      %2189 = vmatprep.mubr.f32.mxu0 0.0
      %2190 = vmatmul.mubr.f32.gmra.mrb[0].mxu0 %v2068
      %v2191 = vpop.f32.mrb[0].mxu0
      %v2192 = vadd.f32 0.0, %v2191
      %v2193 = vpop.f32.mrb[0].mxu0
      %2194 = vmatprep.mubr.f32.mxu0 0.0
      %2195 = vmatmul.mubr.f32.gmra.mrb[0].mxu0 %v2069
      %v2196 = vpop.f32.mrb[0].mxu0
      %v2197 = vadd.f32 0.0, %v2196
      %v2198 = vpop.f32.mrb[0].mxu0
      %2199 = vmatprep.mubr.f32.mxu0 0.0
      %2200 = vmatmul.mubr.f32.gmra.mrb[0].mxu0 %v2070
      %v2201 = vpop.f32.mrb[0].mxu0
      %v2202 = vadd.f32 0.0, %v2201
      %v2203 = vpop.f32.mrb[0].mxu0
      %2204 = vmatprep.mubr.f32.mxu0 0.0
      %2205 = vmatmul.mubr.f32.gmra.mrb[0].mxu0 %v2071
      %v2206 = vpop.f32.mrb[0].mxu0
      %v2207 = vadd.f32 0.0, %v2206
      %v2208 = vpop.f32.mrb[0].mxu0
      %2209 = vmatprep.mubr.f32.mxu0 0.0
      %2210 = vmatmul.mubr.f32.gmra.mrb[0].mxu0 %v2072
      %v2211 = vpop.f32.mrb[0].mxu0
      %v2212 = vadd.f32 0.0, %v2211
      %v2213 = vpop.f32.mrb[0].mxu0
      %2214 = vmatprep.mubr.f32.mxu0 0.0
      %2215 = vmatmul.mubr.f32.gmra.mrb[0].mxu0 %v2073
      %v2216 = vpop.f32.mrb[0].mxu0
      %v2217 = vadd.f32 0.0, %v2216
      %v2218 = vpop.f32.mrb[0].mxu0
      %2219 = vmatprep.mubr.f32.mxu0 0.0
      %2220 = vmatmul.mubr.f32.gmra.mrb[0].mxu0 %v2074
      %v2221 = vpop.f32.mrb[0].mxu0
      %v2222 = vadd.f32 0.0, %v2221
      %v2223 = vpop.f32.mrb[0].mxu0
      %2224 = vmatprep.mubr.f32.mxu0 0.0
      %2225 = vmatmul.mubr.f32.gmra.mrb[0].mxu0 %v2075
      %v2226 = vpop.f32.mrb[0].mxu0
      %v2227 = vadd.f32 0.0, %v2226
      %v2228 = vpop.f32.mrb[0].mxu0
      %2229 = vmatprep.mubr.f32.mxu0 0.0
      %2230 = vmatmul.mubr.f32.gmra.mrb[0].mxu0 %v2076
      %v2231 = vpop.f32.mrb[0].mxu0
      %v2232 = vadd.f32 0.0, %v2231
      %v2233 = vpop.f32.mrb[0].mxu0
      %2234 = vmatprep.mubr.f32.mxu0 0.0
      %2235 = vmatmul.mubr.f32.gmra.mrb[0].mxu0 %v2077
      %v2236 = vpop.f32.mrb[0].mxu0
      %v2237 = vadd.f32 0.0, %v2236
      %v2238 = vpop.f32.mrb[0].mxu0
      %2239 = vmatprep.mubr.f32.mxu0 0.0
      %2240 = vmatmul.mubr.f32.gmra.mrb[0].mxu0 %v2078
      %v2241 = vpop.f32.mrb[0].mxu0
      %v2242 = vadd.f32 0.0, %v2241
      %v2243 = vpop.f32.mrb[0].mxu0
      %2244 = vmatprep.mubr.f32.mxu0 0.0
      %2245 = vmatmul.mubr.f32.gmra.mrb[0].mxu0 %v2079
      %v2246 = vpop.f32.mrb[0].mxu0
      %v2247 = vadd.f32 0.0, %v2246
      %v2248 = vpop.f32.mrb[0].mxu0
      %2249 = vmatprep.mubr.f32.mxu0 0.0
      %2250 = vmatmul.mubr.f32.gmra.mrb[0].mxu0 %v2080
      %v2251 = vpop.f32.mrb[0].mxu0
      %v2252 = vadd.f32 0.0, %v2251
      %v2253 = vpop.f32.mrb[0].mxu0
      %2254 = vmatprep.mubr.f32.mxu0 0.0
      %2255 = vmatmul.mubr.f32.gmra.mrb[0].mxu0 %v2081
      %v2256 = vpop.f32.mrb[0].mxu0
      %v2257 = vadd.f32 0.0, %v2256
      %v2258 = vpop.f32.mrb[0].mxu0
      %2259 = vmatprep.mubr.f32.mxu0 0.0
      %2260 = vmatmul.mubr.f32.gmra.mrb[0].mxu0 %v2082
      %v2261 = vpop.f32.mrb[0].mxu0
      %v2262 = vadd.f32 0.0, %v2261
      %v2263 = vpop.f32.mrb[0].mxu0
      %2264 = vmatprep.mubr.f32.mxu0 0.0
      %2265 = vmatmul.mubr.f32.gmra.mrb[0].mxu0 %v2083
      %v2266 = vpop.f32.mrb[0].mxu0
      %v2267 = vadd.f32 0.0, %v2266
      %v2268 = vpop.f32.mrb[0].mxu0
      %2269 = vmatprep.mubr.f32.mxu0 0.0
      %2270 = vmatmul.mubr.f32.gmra.mrb[0].mxu0 %v2084
      %v2271 = vpop.f32.mrb[0].mxu0
      %v2272 = vadd.f32 0.0, %v2271
      %v2273 = vpop.f32.mrb[0].mxu0
      %2274 = vmatprep.mubr.f32.mxu0 0.0
      %2275 = vmatmul.mubr.f32.gmra.mrb[0].mxu0 %v2085
      %v2276 = vpop.f32.mrb[0].mxu0
      %v2277 = vadd.f32 0.0, %v2276
      %v2278 = vpop.f32.mrb[0].mxu0
      %2279 = vmatprep.mubr.f32.mxu0 0.0
      %2280 = vmatmul.mubr.f32.gmra.mrb[0].mxu0 %v2086
      %v2281 = vpop.f32.mrb[0].mxu0
      %v2282 = vadd.f32 0.0, %v2281
      %v2283 = vpop.f32.mrb[0].mxu0
      %2284 = vmatprep.mubr.f32.mxu0 0.0
      %2285 = vmatmul.mubr.f32.gmra.mrb[0].mxu0 %v2087
      %v2286 = vpop.f32.mrb[0].mxu0
      %v2287 = vadd.f32 0.0, %v2286
      %v2288 = vpop.f32.mrb[0].mxu0
      %2289 = vmatprep.mubr.f32.mxu0 0.0
      %2290 = vmatmul.mubr.f32.gmra.mrb[0].mxu0 %v2088
      %v2291 = vpop.f32.mrb[0].mxu0
      %v2292 = vadd.f32 0.0, %v2291
      %v2293 = vpop.f32.mrb[0].mxu0
      %2294 = vmatprep.mubr.f32.mxu0 0.0
      %2295 = vmatmul.mubr.f32.gmra.mrb[0].mxu0 %v2089
      %v2296 = vpop.f32.mrb[0].mxu0
      %v2297 = vadd.f32 0.0, %v2296
      %v2298 = vpop.f32.mrb[0].mxu0
      %2299 = vmatprep.mubr.f32.mxu0 0.0
      %2300 = vmatmul.mubr.f32.gmra.mrb[0].mxu0 %v2090
      %v2301 = vpop.f32.mrb[0].mxu0
      %v2302 = vadd.f32 0.0, %v2301
      %v2303 = vpop.f32.mrb[0].mxu0
      %2304 = vmatprep.mubr.f32.mxu0 0.0
      %2305 = vmatmul.mubr.f32.gmra.mrb[0].mxu0 %v2091
      %v2306 = vpop.f32.mrb[0].mxu0
      %v2307 = vadd.f32 0.0, %v2306
      %v2308 = vpop.f32.mrb[0].mxu0
      %2309 = vmatprep.mubr.f32.mxu0 0.0
      %2310 = vmatmul.mubr.f32.gmra.mrb[0].mxu0 %v2092
      %v2311 = vpop.f32.mrb[0].mxu0
      %v2312 = vadd.f32 0.0, %v2311
      %v2313 = vpop.f32.mrb[0].mxu0
      %2314 = vmatprep.mubr.f32.mxu0 0.0
      %2315 = vmatmul.mubr.f32.gmra.mrb[0].mxu0 %v2093
      %v2316 = vpop.f32.mrb[0].mxu0
      %v2317 = vadd.f32 0.0, %v2316
      %v2318 = vpop.f32.mrb[0].mxu0
      %2319 = vmatprep.mubr.f32.mxu0 0.0
      %2320 = vmatmul.mubr.f32.gmra.mrb[0].mxu0 %v2094
      %v2321 = vpop.f32.mrb[0].mxu0
      %v2322 = vadd.f32 0.0, %v2321
      %v2323 = vpop.f32.mrb[0].mxu0
      %2324 = vmatprep.mubr.f32.mxu0 0.0
      %2325 = vmatmul.mubr.f32.gmra.mrb[0].mxu0 %v2095
      %v2326 = vpop.f32.mrb[0].mxu0
      %v2327 = vadd.f32 0.0, %v2326
      %v2328 = vpop.f32.mrb[0].mxu0
      %2329 = vmatprep.mubr.f32.mxu0 0.0
      %2330 = vmatmul.mubr.f32.gmra.mrb[0].mxu0 %v2096
      %v2331 = vpop.f32.mrb[0].mxu0
      %v2332 = vadd.f32 0.0, %v2331
      %v2333 = vpop.f32.mrb[0].mxu0
      %2334 = vmatprep.mubr.f32.mxu0 0.0
      %2335 = vmatmul.mubr.f32.gmra.mrb[0].mxu0 %v2097
      %v2336 = vpop.f32.mrb[0].mxu0
      %v2337 = vadd.f32 0.0, %v2336
      %v2338 = vpop.f32.mrb[0].mxu0
      %2339 = vmatprep.mubr.f32.mxu0 0.0
      %2340 = vmatmul.mubr.f32.gmra.mrb[0].mxu0 %v2098
      %v2341 = vpop.f32.mrb[0].mxu0
      %v2342 = vadd.f32 0.0, %v2341
      %v2343 = vpop.f32.mrb[0].mxu0
      %2344 = vmatprep.mubr.f32.mxu0 0.0
      %2345 = vmatmul.mubr.f32.gmra.mrb[0].mxu0 %v2099
      %v2346 = vpop.f32.mrb[0].mxu0
      %v2347 = vadd.f32 0.0, %v2346
      %v2348 = vpop.f32.mrb[0].mxu0
      %2349 = vmatprep.mubr.f32.mxu0 0.0
      %2350 = vmatmul.mubr.f32.gmra.mrb[0].mxu0 %v2100
      %v2351 = vpop.f32.mrb[0].mxu0
      %v2352 = vadd.f32 0.0, %v2351
      %v2353 = vpop.f32.mrb[0].mxu0
      %2354 = vmatprep.mubr.f32.mxu0 0.0
      %2355 = vmatmul.mubr.f32.gmra.mrb[0].mxu0 %v2101
      %v2356 = vpop.f32.mrb[0].mxu0
      %v2357 = vadd.f32 0.0, %v2356
      %v2358 = vpop.f32.mrb[0].mxu0
      %2359 = vmatprep.mubr.f32.mxu0 0.0
      %2360 = vmatmul.mubr.f32.gmra.mrb[0].mxu0 %v2102
      %v2361 = vpop.f32.mrb[0].mxu0
      %v2362 = vadd.f32 0.0, %v2361
      %v2363 = vpop.f32.mrb[0].mxu0
      %2364 = vdwg.mxu0
      %v2365 = vadd.f32 %v2031, %v2187
      %v2366 = vadd.f32 %v2032, %v2192
      %v2367 = vadd.f32 %v2033, %v2197
      %v2368 = vadd.f32 %v2034, %v2202
      %v2369 = vadd.f32 %v2035, %v2207
      %v2370 = vadd.f32 %v2036, %v2212
      %v2371 = vadd.f32 %v2037, %v2217
      %v2372 = vadd.f32 %v2038, %v2222
      %v2373 = vadd.f32 %v2039, %v2227
      %v2374 = vadd.f32 %v2040, %v2232
      %v2375 = vadd.f32 %v2041, %v2237
      %v2376 = vadd.f32 %v2042, %v2242
      %v2377 = vadd.f32 %v2043, %v2247
      %v2378 = vadd.f32 %v2044, %v2252
      %v2379 = vadd.f32 %v2045, %v2257
      %v2380 = vadd.f32 %v2046, %v2262
      %v2381 = vadd.f32 %v2047, %v2267
      %v2382 = vadd.f32 %v2048, %v2272
      %v2383 = vadd.f32 %v2049, %v2277
      %v2384 = vadd.f32 %v2050, %v2282
      %v2385 = vadd.f32 %v2051, %v2287
      %v2386 = vadd.f32 %v2052, %v2292
      %v2387 = vadd.f32 %v2053, %v2297
      %v2388 = vadd.f32 %v2054, %v2302
      %v2389 = vadd.f32 %v2055, %v2307
      %v2390 = vadd.f32 %v2056, %v2312
      %v2391 = vadd.f32 %v2057, %v2317
      %v2392 = vadd.f32 %v2058, %v2322
      %v2393 = vadd.f32 %v2059, %v2327
      %v2394 = vadd.f32 %v2060, %v2332
      %v2395 = vadd.f32 %v2061, %v2337
      %v2396 = vadd.f32 %v2062, %v2342
      %v2397 = vadd.f32 %v2063, %v2347
      %v2398 = vadd.f32 %v2064, %v2352
      %v2399 = vadd.f32 %v2065, %v2357
      %v2400 = vadd.f32 %v2066, %v2362
      %v2401 = vld [vmem:[#allocation2 + $0x24] sm:$0xff]
      %v2402 = vld [vmem:[#allocation2 + $0x2c] sm:$0xff]
      %v2403 = vld [vmem:[#allocation2 + $0x34] sm:$0xff]
      %v2404 = vld [vmem:[#allocation2 + $0x3c] sm:$0xff]
      %v2405 = vld [vmem:[#allocation2 + $0x44] sm:$0xff]
      %v2406 = vld [vmem:[#allocation2 + $0x4c] sm:$0xff]
      %v2407 = vld [vmem:[#allocation2 + $0x54] sm:$0xff]
      %v2408 = vld [vmem:[#allocation2 + $0x5c] sm:$0xff]
      %v2409 = vld [vmem:[#allocation2 + $0x64] sm:$0xff]
      %v2410 = vld [vmem:[#allocation2 + $0x6c] sm:$0xff]
      %v2411 = vld [vmem:[#allocation2 + $0x74] sm:$0xff]
      %v2412 = vld [vmem:[#allocation2 + $0x7c] sm:$0xff]
      %v2413 = vld [vmem:[#allocation2 + $0x84] sm:$0xff]
      %v2414 = vld [vmem:[#allocation2 + $0x8c] sm:$0xff]
      %v2415 = vld [vmem:[#allocation2 + $0x94] sm:$0xff]
      %v2416 = vld [vmem:[#allocation2 + $0x9c] sm:$0xff]
      %v2417 = vld [vmem:[#allocation2 + $0xa4] sm:$0xff]
      %v2418 = vld [vmem:[#allocation2 + $0xac] sm:$0xff]
      %v2419 = vld [vmem:[#allocation2 + $0xb4] sm:$0xff]
      %v2420 = vld [vmem:[#allocation2 + $0xbc] sm:$0xff]
      %v2421 = vld [vmem:[#allocation2 + $0xc4] sm:$0xff]
      %v2422 = vld [vmem:[#allocation2 + $0xcc] sm:$0xff]
      %v2423 = vld [vmem:[#allocation2 + $0xd4] sm:$0xff]
      %v2424 = vld [vmem:[#allocation2 + $0xdc] sm:$0xff]
      %v2425 = vld [vmem:[#allocation2 + $0xe4] sm:$0xff]
      %v2426 = vld [vmem:[#allocation2 + $0xec] sm:$0xff]
      %v2427 = vld [vmem:[#allocation2 + $0xf4] sm:$0xff]
      %v2428 = vld [vmem:[#allocation2 + $0xfc] sm:$0xff]
      %v2429 = vld [vmem:[#allocation2 + $0x104] sm:$0xff]
      %v2430 = vld [vmem:[#allocation2 + $0x10c] sm:$0xff]
      %v2431 = vld [vmem:[#allocation2 + $0x114] sm:$0xff]
      %v2432 = vld [vmem:[#allocation2 + $0x11c] sm:$0xff]
      %v2433 = vld [vmem:[#allocation2 + $0x124] sm:$0xff]
      %v2434 = vld [vmem:[#allocation2 + $0x12c] sm:$0xff]
      %v2435 = vld [vmem:[#allocation2 + $0x134] sm:$0xff]
      %v2436 = vld [vmem:[#allocation2 + $0x13c] sm:$0x3f]
      %s2437 = scalar_lea.vmem %s3, 768
      %v2438 = vld [vmem:[%s2437] sm:$0xff]
      %v2439 = vld [vmem:[%s2437 + $0x8] sm:$0xff]
      %v2440 = vld [vmem:[%s2437 + $0x10] sm:$0xff]
      %v2441 = vld [vmem:[%s2437 + $0x18] sm:$0xff]
      %v2442 = vld [vmem:[%s2437 + $0x20] sm:$0xff]
      %v2443 = vld [vmem:[%s2437 + $0x28] sm:$0xff]
      %v2444 = vld [vmem:[%s2437 + $0x30] sm:$0xff]
      %v2445 = vld [vmem:[%s2437 + $0x38] sm:$0xff]
      %v2446 = vld [vmem:[%s2437 + $0x40] sm:$0xff]
      %v2447 = vld [vmem:[%s2437 + $0x48] sm:$0xff]
      %v2448 = vld [vmem:[%s2437 + $0x50] sm:$0xff]
      %v2449 = vld [vmem:[%s2437 + $0x58] sm:$0xff]
      %v2450 = vld [vmem:[%s2437 + $0x60] sm:$0xff]
      %v2451 = vld [vmem:[%s2437 + $0x68] sm:$0xff]
      %v2452 = vld [vmem:[%s2437 + $0x70] sm:$0xff]
      %v2453 = vld [vmem:[%s2437 + $0x78] sm:$0xff]
      %2454 = vmatprep.subr.mxu0 0.0
      %2455 = vmatpush1.msra.mxu0 %v2438
      %2456 = vmatprep.subr.mxu0 0.0
      %2457 = vmatpush1.msra.mxu0 %v2439
      %2458 = vmatprep.subr.mxu0 0.0
      %2459 = vmatpush1.msra.mxu0 %v2440
      %2460 = vmatprep.subr.mxu0 0.0
      %2461 = vmatpush1.msra.mxu0 %v2441
      %2462 = vmatprep.subr.mxu0 0.0
      %2463 = vmatpush1.msra.mxu0 %v2442
      %2464 = vmatprep.subr.mxu0 0.0
      %2465 = vmatpush1.msra.mxu0 %v2443
      %2466 = vmatprep.subr.mxu0 0.0
      %2467 = vmatpush1.msra.mxu0 %v2444
      %2468 = vmatprep.subr.mxu0 0.0
      %2469 = vmatpush1.msra.mxu0 %v2445
      %2470 = vmatprep.subr.mxu0 0.0
      %2471 = vmatpush1.msra.mxu0 %v2446
      %2472 = vmatprep.subr.mxu0 0.0
      %2473 = vmatpush1.msra.mxu0 %v2447
      %2474 = vmatprep.subr.mxu0 0.0
      %2475 = vmatpush1.msra.mxu0 %v2448
      %2476 = vmatprep.subr.mxu0 0.0
      %2477 = vmatpush1.msra.mxu0 %v2449
      %2478 = vmatprep.subr.mxu0 0.0
      %2479 = vmatpush1.msra.mxu0 %v2450
      %2480 = vmatprep.subr.mxu0 0.0
      %2481 = vmatpush1.msra.mxu0 %v2451
      %2482 = vmatprep.subr.mxu0 0.0
      %2483 = vmatpush1.msra.mxu0 %v2452
      %2484 = vmatprep.subr.mxu0 0.0
      %2485 = vmatpush1.msra.mxu0 %v2453
      %2486 = vmatprep.subr.mxu0 0.0
      %2487 = vmatpush1.msra.mxu0 0.0
      %2488 = vmatprep.subr.mxu0 0.0
      %2489 = vmatpush1.msra.mxu0 0.0
      %2490 = vmatprep.subr.mxu0 0.0
      %2491 = vmatpush1.msra.mxu0 0.0
      %2492 = vmatprep.subr.mxu0 0.0
      %2493 = vmatpush1.msra.mxu0 0.0
      %2494 = vmatprep.subr.mxu0 0.0
      %2495 = vmatpush1.msra.mxu0 0.0
      %2496 = vmatprep.subr.mxu0 0.0
      %2497 = vmatpush1.msra.mxu0 0.0
      %2498 = vmatprep.subr.mxu0 0.0
      %2499 = vmatpush1.msra.mxu0 0.0
      %2500 = vmatprep.subr.mxu0 0.0
      %2501 = vmatpush1.msra.mxu0 0.0
      %2502 = vmatprep.subr.mxu0 0.0
      %2503 = vmatpush1.msra.mxu0 0.0
      %2504 = vmatprep.subr.mxu0 0.0
      %2505 = vmatpush1.msra.mxu0 0.0
      %2506 = vmatprep.subr.mxu0 0.0
      %2507 = vmatpush1.msra.mxu0 0.0
      %2508 = vmatprep.subr.mxu0 0.0
      %2509 = vmatpush1.msra.mxu0 0.0
      %2510 = vmatprep.subr.mxu0 0.0
      %2511 = vmatpush1.msra.mxu0 0.0
      %2512 = vmatprep.subr.mxu0 0.0
      %2513 = vmatpush1.msra.mxu0 0.0
      %2514 = vmatprep.subr.mxu0 0.0
      %2515 = vmatpush1.msra.mxu0 0.0
      %2516 = vmatprep.subr.mxu0 0.0
      %2517 = vmatpush1.msra.mxu0 0.0
      %2518 = vmatprep.mubr.f32.mxu0 0.0
      %2519 = vmatmul.mubr.f32.gmra.mrb[0].mxu0 %v2401
      %v2520 = vpop.f32.mrb[0].mxu0
      %v2521 = vadd.f32 0.0, %v2520
      %v2522 = vpop.f32.mrb[0].mxu0
      %2523 = vmatprep.mubr.f32.mxu0 0.0
      %2524 = vmatmul.mubr.f32.gmra.mrb[0].mxu0 %v2402
      %v2525 = vpop.f32.mrb[0].mxu0
      %v2526 = vadd.f32 0.0, %v2525
      %v2527 = vpop.f32.mrb[0].mxu0
      %2528 = vmatprep.mubr.f32.mxu0 0.0
      %2529 = vmatmul.mubr.f32.gmra.mrb[0].mxu0 %v2403
      %v2530 = vpop.f32.mrb[0].mxu0
      %v2531 = vadd.f32 0.0, %v2530
      %v2532 = vpop.f32.mrb[0].mxu0
      %2533 = vmatprep.mubr.f32.mxu0 0.0
      %2534 = vmatmul.mubr.f32.gmra.mrb[0].mxu0 %v2404
      %v2535 = vpop.f32.mrb[0].mxu0
      %v2536 = vadd.f32 0.0, %v2535
      %v2537 = vpop.f32.mrb[0].mxu0
      %2538 = vmatprep.mubr.f32.mxu0 0.0
      %2539 = vmatmul.mubr.f32.gmra.mrb[0].mxu0 %v2405
      %v2540 = vpop.f32.mrb[0].mxu0
      %v2541 = vadd.f32 0.0, %v2540
      %v2542 = vpop.f32.mrb[0].mxu0
      %2543 = vmatprep.mubr.f32.mxu0 0.0
      %2544 = vmatmul.mubr.f32.gmra.mrb[0].mxu0 %v2406
      %v2545 = vpop.f32.mrb[0].mxu0
      %v2546 = vadd.f32 0.0, %v2545
      %v2547 = vpop.f32.mrb[0].mxu0
      %2548 = vmatprep.mubr.f32.mxu0 0.0
      %2549 = vmatmul.mubr.f32.gmra.mrb[0].mxu0 %v2407
      %v2550 = vpop.f32.mrb[0].mxu0
      %v2551 = vadd.f32 0.0, %v2550
      %v2552 = vpop.f32.mrb[0].mxu0
      %2553 = vmatprep.mubr.f32.mxu0 0.0
      %2554 = vmatmul.mubr.f32.gmra.mrb[0].mxu0 %v2408
      %v2555 = vpop.f32.mrb[0].mxu0
      %v2556 = vadd.f32 0.0, %v2555
      %v2557 = vpop.f32.mrb[0].mxu0
      %2558 = vmatprep.mubr.f32.mxu0 0.0
      %2559 = vmatmul.mubr.f32.gmra.mrb[0].mxu0 %v2409
      %v2560 = vpop.f32.mrb[0].mxu0
      %v2561 = vadd.f32 0.0, %v2560
      %v2562 = vpop.f32.mrb[0].mxu0
      %2563 = vmatprep.mubr.f32.mxu0 0.0
      %2564 = vmatmul.mubr.f32.gmra.mrb[0].mxu0 %v2410
      %v2565 = vpop.f32.mrb[0].mxu0
      %v2566 = vadd.f32 0.0, %v2565
      %v2567 = vpop.f32.mrb[0].mxu0
      %2568 = vmatprep.mubr.f32.mxu0 0.0
      %2569 = vmatmul.mubr.f32.gmra.mrb[0].mxu0 %v2411
      %v2570 = vpop.f32.mrb[0].mxu0
      %v2571 = vadd.f32 0.0, %v2570
      %v2572 = vpop.f32.mrb[0].mxu0
      %2573 = vmatprep.mubr.f32.mxu0 0.0
      %2574 = vmatmul.mubr.f32.gmra.mrb[0].mxu0 %v2412
      %v2575 = vpop.f32.mrb[0].mxu0
      %v2576 = vadd.f32 0.0, %v2575
      %v2577 = vpop.f32.mrb[0].mxu0
      %2578 = vmatprep.mubr.f32.mxu0 0.0
      %2579 = vmatmul.mubr.f32.gmra.mrb[0].mxu0 %v2413
      %v2580 = vpop.f32.mrb[0].mxu0
      %v2581 = vadd.f32 0.0, %v2580
      %v2582 = vpop.f32.mrb[0].mxu0
      %2583 = vmatprep.mubr.f32.mxu0 0.0
      %2584 = vmatmul.mubr.f32.gmra.mrb[0].mxu0 %v2414
      %v2585 = vpop.f32.mrb[0].mxu0
      %v2586 = vadd.f32 0.0, %v2585
      %v2587 = vpop.f32.mrb[0].mxu0
      %2588 = vmatprep.mubr.f32.mxu0 0.0
      %2589 = vmatmul.mubr.f32.gmra.mrb[0].mxu0 %v2415
      %v2590 = vpop.f32.mrb[0].mxu0
      %v2591 = vadd.f32 0.0, %v2590
      %v2592 = vpop.f32.mrb[0].mxu0
      %2593 = vmatprep.mubr.f32.mxu0 0.0
      %2594 = vmatmul.mubr.f32.gmra.mrb[0].mxu0 %v2416
      %v2595 = vpop.f32.mrb[0].mxu0
      %v2596 = vadd.f32 0.0, %v2595
      %v2597 = vpop.f32.mrb[0].mxu0
      %2598 = vmatprep.mubr.f32.mxu0 0.0
      %2599 = vmatmul.mubr.f32.gmra.mrb[0].mxu0 %v2417
      %v2600 = vpop.f32.mrb[0].mxu0
      %v2601 = vadd.f32 0.0, %v2600
      %v2602 = vpop.f32.mrb[0].mxu0
      %2603 = vmatprep.mubr.f32.mxu0 0.0
      %2604 = vmatmul.mubr.f32.gmra.mrb[0].mxu0 %v2418
      %v2605 = vpop.f32.mrb[0].mxu0
      %v2606 = vadd.f32 0.0, %v2605
      %v2607 = vpop.f32.mrb[0].mxu0
      %2608 = vmatprep.mubr.f32.mxu0 0.0
      %2609 = vmatmul.mubr.f32.gmra.mrb[0].mxu0 %v2419
      %v2610 = vpop.f32.mrb[0].mxu0
      %v2611 = vadd.f32 0.0, %v2610
      %v2612 = vpop.f32.mrb[0].mxu0
      %2613 = vmatprep.mubr.f32.mxu0 0.0
      %2614 = vmatmul.mubr.f32.gmra.mrb[0].mxu0 %v2420
      %v2615 = vpop.f32.mrb[0].mxu0
      %v2616 = vadd.f32 0.0, %v2615
      %v2617 = vpop.f32.mrb[0].mxu0
      %2618 = vmatprep.mubr.f32.mxu0 0.0
      %2619 = vmatmul.mubr.f32.gmra.mrb[0].mxu0 %v2421
      %v2620 = vpop.f32.mrb[0].mxu0
      %v2621 = vadd.f32 0.0, %v2620
      %v2622 = vpop.f32.mrb[0].mxu0
      %2623 = vmatprep.mubr.f32.mxu0 0.0
      %2624 = vmatmul.mubr.f32.gmra.mrb[0].mxu0 %v2422
      %v2625 = vpop.f32.mrb[0].mxu0
      %v2626 = vadd.f32 0.0, %v2625
      %v2627 = vpop.f32.mrb[0].mxu0
      %2628 = vmatprep.mubr.f32.mxu0 0.0
      %2629 = vmatmul.mubr.f32.gmra.mrb[0].mxu0 %v2423
      %v2630 = vpop.f32.mrb[0].mxu0
      %v2631 = vadd.f32 0.0, %v2630
      %v2632 = vpop.f32.mrb[0].mxu0
      %2633 = vmatprep.mubr.f32.mxu0 0.0
      %2634 = vmatmul.mubr.f32.gmra.mrb[0].mxu0 %v2424
      %v2635 = vpop.f32.mrb[0].mxu0
      %v2636 = vadd.f32 0.0, %v2635
      %v2637 = vpop.f32.mrb[0].mxu0
      %2638 = vmatprep.mubr.f32.mxu0 0.0
      %2639 = vmatmul.mubr.f32.gmra.mrb[0].mxu0 %v2425
      %v2640 = vpop.f32.mrb[0].mxu0
      %v2641 = vadd.f32 0.0, %v2640
      %v2642 = vpop.f32.mrb[0].mxu0
      %2643 = vmatprep.mubr.f32.mxu0 0.0
      %2644 = vmatmul.mubr.f32.gmra.mrb[0].mxu0 %v2426
      %v2645 = vpop.f32.mrb[0].mxu0
      %v2646 = vadd.f32 0.0, %v2645
      %v2647 = vpop.f32.mrb[0].mxu0
      %2648 = vmatprep.mubr.f32.mxu0 0.0
      %2649 = vmatmul.mubr.f32.gmra.mrb[0].mxu0 %v2427
      %v2650 = vpop.f32.mrb[0].mxu0
      %v2651 = vadd.f32 0.0, %v2650
      %v2652 = vpop.f32.mrb[0].mxu0
      %2653 = vmatprep.mubr.f32.mxu0 0.0
      %2654 = vmatmul.mubr.f32.gmra.mrb[0].mxu0 %v2428
      %v2655 = vpop.f32.mrb[0].mxu0
      %v2656 = vadd.f32 0.0, %v2655
      %v2657 = vpop.f32.mrb[0].mxu0
      %2658 = vmatprep.mubr.f32.mxu0 0.0
      %2659 = vmatmul.mubr.f32.gmra.mrb[0].mxu0 %v2429
      %v2660 = vpop.f32.mrb[0].mxu0
      %v2661 = vadd.f32 0.0, %v2660
      %v2662 = vpop.f32.mrb[0].mxu0
      %2663 = vmatprep.mubr.f32.mxu0 0.0
      %2664 = vmatmul.mubr.f32.gmra.mrb[0].mxu0 %v2430
      %v2665 = vpop.f32.mrb[0].mxu0
      %v2666 = vadd.f32 0.0, %v2665
      %v2667 = vpop.f32.mrb[0].mxu0
      %2668 = vmatprep.mubr.f32.mxu0 0.0
      %2669 = vmatmul.mubr.f32.gmra.mrb[0].mxu0 %v2431
      %v2670 = vpop.f32.mrb[0].mxu0
      %v2671 = vadd.f32 0.0, %v2670
      %v2672 = vpop.f32.mrb[0].mxu0
      %2673 = vmatprep.mubr.f32.mxu0 0.0
      %2674 = vmatmul.mubr.f32.gmra.mrb[0].mxu0 %v2432
      %v2675 = vpop.f32.mrb[0].mxu0
      %v2676 = vadd.f32 0.0, %v2675
      %v2677 = vpop.f32.mrb[0].mxu0
      %2678 = vmatprep.mubr.f32.mxu0 0.0
      %2679 = vmatmul.mubr.f32.gmra.mrb[0].mxu0 %v2433
      %v2680 = vpop.f32.mrb[0].mxu0
      %v2681 = vadd.f32 0.0, %v2680
      %v2682 = vpop.f32.mrb[0].mxu0
      %2683 = vmatprep.mubr.f32.mxu0 0.0
      %2684 = vmatmul.mubr.f32.gmra.mrb[0].mxu0 %v2434
      %v2685 = vpop.f32.mrb[0].mxu0
      %v2686 = vadd.f32 0.0, %v2685
      %v2687 = vpop.f32.mrb[0].mxu0
      %2688 = vmatprep.mubr.f32.mxu0 0.0
      %2689 = vmatmul.mubr.f32.gmra.mrb[0].mxu0 %v2435
      %v2690 = vpop.f32.mrb[0].mxu0
      %v2691 = vadd.f32 0.0, %v2690
      %v2692 = vpop.f32.mrb[0].mxu0
      %2693 = vmatprep.mubr.f32.mxu0 0.0
      %2694 = vmatmul.mubr.f32.gmra.mrb[0].mxu0 %v2436
      %v2695 = vpop.f32.mrb[0].mxu0
      %v2696 = vadd.f32 0.0, %v2695
      %v2697 = vpop.f32.mrb[0].mxu0
      %2698 = vdwg.mxu0
      %v2699 = vadd.f32 %v2365, %v2521
      %v2700 = vadd.f32 %v2366, %v2526
      %v2701 = vadd.f32 %v2367, %v2531
      %v2702 = vadd.f32 %v2368, %v2536
      %v2703 = vadd.f32 %v2369, %v2541
      %v2704 = vadd.f32 %v2370, %v2546
      %v2705 = vadd.f32 %v2371, %v2551
      %v2706 = vadd.f32 %v2372, %v2556
      %v2707 = vadd.f32 %v2373, %v2561
      %v2708 = vadd.f32 %v2374, %v2566
      %v2709 = vadd.f32 %v2375, %v2571
      %v2710 = vadd.f32 %v2376, %v2576
      %v2711 = vadd.f32 %v2377, %v2581
      %v2712 = vadd.f32 %v2378, %v2586
      %v2713 = vadd.f32 %v2379, %v2591
      %v2714 = vadd.f32 %v2380, %v2596
      %v2715 = vadd.f32 %v2381, %v2601
      %v2716 = vadd.f32 %v2382, %v2606
      %v2717 = vadd.f32 %v2383, %v2611
      %v2718 = vadd.f32 %v2384, %v2616
      %v2719 = vadd.f32 %v2385, %v2621
      %v2720 = vadd.f32 %v2386, %v2626
      %v2721 = vadd.f32 %v2387, %v2631
      %v2722 = vadd.f32 %v2388, %v2636
      %v2723 = vadd.f32 %v2389, %v2641
      %v2724 = vadd.f32 %v2390, %v2646
      %v2725 = vadd.f32 %v2391, %v2651
      %v2726 = vadd.f32 %v2392, %v2656
      %v2727 = vadd.f32 %v2393, %v2661
      %v2728 = vadd.f32 %v2394, %v2666
      %v2729 = vadd.f32 %v2395, %v2671
      %v2730 = vadd.f32 %v2396, %v2676
      %v2731 = vadd.f32 %v2397, %v2681
      %v2732 = vadd.f32 %v2398, %v2686
      %v2733 = vadd.f32 %v2399, %v2691
      %v2734 = vadd.f32 %v2400, %v2696
      %v2735 = vld [vmem:[#allocation2 + $0x25] sm:$0xff]
      %v2736 = vld [vmem:[#allocation2 + $0x2d] sm:$0xff]
      %v2737 = vld [vmem:[#allocation2 + $0x35] sm:$0xff]
      %v2738 = vld [vmem:[#allocation2 + $0x3d] sm:$0xff]
      %v2739 = vld [vmem:[#allocation2 + $0x45] sm:$0xff]
      %v2740 = vld [vmem:[#allocation2 + $0x4d] sm:$0xff]
      %v2741 = vld [vmem:[#allocation2 + $0x55] sm:$0xff]
      %v2742 = vld [vmem:[#allocation2 + $0x5d] sm:$0xff]
      %v2743 = vld [vmem:[#allocation2 + $0x65] sm:$0xff]
      %v2744 = vld [vmem:[#allocation2 + $0x6d] sm:$0xff]
      %v2745 = vld [vmem:[#allocation2 + $0x75] sm:$0xff]
      %v2746 = vld [vmem:[#allocation2 + $0x7d] sm:$0xff]
      %v2747 = vld [vmem:[#allocation2 + $0x85] sm:$0xff]
      %v2748 = vld [vmem:[#allocation2 + $0x8d] sm:$0xff]
      %v2749 = vld [vmem:[#allocation2 + $0x95] sm:$0xff]
      %v2750 = vld [vmem:[#allocation2 + $0x9d] sm:$0xff]
      %v2751 = vld [vmem:[#allocation2 + $0xa5] sm:$0xff]
      %v2752 = vld [vmem:[#allocation2 + $0xad] sm:$0xff]
      %v2753 = vld [vmem:[#allocation2 + $0xb5] sm:$0xff]
      %v2754 = vld [vmem:[#allocation2 + $0xbd] sm:$0xff]
      %v2755 = vld [vmem:[#allocation2 + $0xc5] sm:$0xff]
      %v2756 = vld [vmem:[#allocation2 + $0xcd] sm:$0xff]
      %v2757 = vld [vmem:[#allocation2 + $0xd5] sm:$0xff]
      %v2758 = vld [vmem:[#allocation2 + $0xdd] sm:$0xff]
      %v2759 = vld [vmem:[#allocation2 + $0xe5] sm:$0xff]
      %v2760 = vld [vmem:[#allocation2 + $0xed] sm:$0xff]
      %v2761 = vld [vmem:[#allocation2 + $0xf5] sm:$0xff]
      %v2762 = vld [vmem:[#allocation2 + $0xfd] sm:$0xff]
      %v2763 = vld [vmem:[#allocation2 + $0x105] sm:$0xff]
      %v2764 = vld [vmem:[#allocation2 + $0x10d] sm:$0xff]
      %v2765 = vld [vmem:[#allocation2 + $0x115] sm:$0xff]
      %v2766 = vld [vmem:[#allocation2 + $0x11d] sm:$0xff]
      %v2767 = vld [vmem:[#allocation2 + $0x125] sm:$0xff]
      %v2768 = vld [vmem:[#allocation2 + $0x12d] sm:$0xff]
      %v2769 = vld [vmem:[#allocation2 + $0x135] sm:$0xff]
      %v2770 = vld [vmem:[#allocation2 + $0x13d] sm:$0x3f]
      %s2771 = scalar_lea.vmem %s3, 896
      %v2772 = vld [vmem:[%s2771] sm:$0xff]
      %v2773 = vld [vmem:[%s2771 + $0x8] sm:$0xff]
      %v2774 = vld [vmem:[%s2771 + $0x10] sm:$0xff]
      %v2775 = vld [vmem:[%s2771 + $0x18] sm:$0xff]
      %v2776 = vld [vmem:[%s2771 + $0x20] sm:$0xff]
      %v2777 = vld [vmem:[%s2771 + $0x28] sm:$0xff]
      %v2778 = vld [vmem:[%s2771 + $0x30] sm:$0xff]
      %v2779 = vld [vmem:[%s2771 + $0x38] sm:$0xff]
      %v2780 = vld [vmem:[%s2771 + $0x40] sm:$0xff]
      %v2781 = vld [vmem:[%s2771 + $0x48] sm:$0xff]
      %v2782 = vld [vmem:[%s2771 + $0x50] sm:$0xff]
      %v2783 = vld [vmem:[%s2771 + $0x58] sm:$0xff]
      %v2784 = vld [vmem:[%s2771 + $0x60] sm:$0xff]
      %v2785 = vld [vmem:[%s2771 + $0x68] sm:$0xff]
      %v2786 = vld [vmem:[%s2771 + $0x70] sm:$0xff]
      %v2787 = vld [vmem:[%s2771 + $0x78] sm:$0xff]
      %2788 = vmatprep.subr.mxu0 0.0
      %2789 = vmatpush1.msra.mxu0 %v2772
      %2790 = vmatprep.subr.mxu0 0.0
      %2791 = vmatpush1.msra.mxu0 %v2773
      %2792 = vmatprep.subr.mxu0 0.0
      %2793 = vmatpush1.msra.mxu0 %v2774
      %2794 = vmatprep.subr.mxu0 0.0
      %2795 = vmatpush1.msra.mxu0 %v2775
      %2796 = vmatprep.subr.mxu0 0.0
      %2797 = vmatpush1.msra.mxu0 %v2776
      %2798 = vmatprep.subr.mxu0 0.0
      %2799 = vmatpush1.msra.mxu0 %v2777
      %2800 = vmatprep.subr.mxu0 0.0
      %2801 = vmatpush1.msra.mxu0 %v2778
      %2802 = vmatprep.subr.mxu0 0.0
      %2803 = vmatpush1.msra.mxu0 %v2779
      %2804 = vmatprep.subr.mxu0 0.0
      %2805 = vmatpush1.msra.mxu0 %v2780
      %2806 = vmatprep.subr.mxu0 0.0
      %2807 = vmatpush1.msra.mxu0 %v2781
      %2808 = vmatprep.subr.mxu0 0.0
      %2809 = vmatpush1.msra.mxu0 %v2782
      %2810 = vmatprep.subr.mxu0 0.0
      %2811 = vmatpush1.msra.mxu0 %v2783
      %2812 = vmatprep.subr.mxu0 0.0
      %2813 = vmatpush1.msra.mxu0 %v2784
      %2814 = vmatprep.subr.mxu0 0.0
      %2815 = vmatpush1.msra.mxu0 %v2785
      %2816 = vmatprep.subr.mxu0 0.0
      %2817 = vmatpush1.msra.mxu0 %v2786
      %2818 = vmatprep.subr.mxu0 0.0
      %2819 = vmatpush1.msra.mxu0 %v2787
      %2820 = vmatprep.subr.mxu0 0.0
      %2821 = vmatpush1.msra.mxu0 0.0
      %2822 = vmatprep.subr.mxu0 0.0
      %2823 = vmatpush1.msra.mxu0 0.0
      %2824 = vmatprep.subr.mxu0 0.0
      %2825 = vmatpush1.msra.mxu0 0.0
      %2826 = vmatprep.subr.mxu0 0.0
      %2827 = vmatpush1.msra.mxu0 0.0
      %2828 = vmatprep.subr.mxu0 0.0
      %2829 = vmatpush1.msra.mxu0 0.0
      %2830 = vmatprep.subr.mxu0 0.0
      %2831 = vmatpush1.msra.mxu0 0.0
      %2832 = vmatprep.subr.mxu0 0.0
      %2833 = vmatpush1.msra.mxu0 0.0
      %2834 = vmatprep.subr.mxu0 0.0
      %2835 = vmatpush1.msra.mxu0 0.0
      %2836 = vmatprep.subr.mxu0 0.0
      %2837 = vmatpush1.msra.mxu0 0.0
      %2838 = vmatprep.subr.mxu0 0.0
      %2839 = vmatpush1.msra.mxu0 0.0
      %2840 = vmatprep.subr.mxu0 0.0
      %2841 = vmatpush1.msra.mxu0 0.0
      %2842 = vmatprep.subr.mxu0 0.0
      %2843 = vmatpush1.msra.mxu0 0.0
      %2844 = vmatprep.subr.mxu0 0.0
      %2845 = vmatpush1.msra.mxu0 0.0
      %2846 = vmatprep.subr.mxu0 0.0
      %2847 = vmatpush1.msra.mxu0 0.0
      %2848 = vmatprep.subr.mxu0 0.0
      %2849 = vmatpush1.msra.mxu0 0.0
      %2850 = vmatprep.subr.mxu0 0.0
      %2851 = vmatpush1.msra.mxu0 0.0
      %2852 = vmatprep.mubr.f32.mxu0 0.0
      %2853 = vmatmul.mubr.f32.gmra.mrb[0].mxu0 %v2735
      %v2854 = vpop.f32.mrb[0].mxu0
      %v2855 = vadd.f32 0.0, %v2854
      %v2856 = vpop.f32.mrb[0].mxu0
      %2857 = vmatprep.mubr.f32.mxu0 0.0
      %2858 = vmatmul.mubr.f32.gmra.mrb[0].mxu0 %v2736
      %v2859 = vpop.f32.mrb[0].mxu0
      %v2860 = vadd.f32 0.0, %v2859
      %v2861 = vpop.f32.mrb[0].mxu0
      %2862 = vmatprep.mubr.f32.mxu0 0.0
      %2863 = vmatmul.mubr.f32.gmra.mrb[0].mxu0 %v2737
      %v2864 = vpop.f32.mrb[0].mxu0
      %v2865 = vadd.f32 0.0, %v2864
      %v2866 = vpop.f32.mrb[0].mxu0
      %2867 = vmatprep.mubr.f32.mxu0 0.0
      %2868 = vmatmul.mubr.f32.gmra.mrb[0].mxu0 %v2738
      %v2869 = vpop.f32.mrb[0].mxu0
      %v2870 = vadd.f32 0.0, %v2869
      %v2871 = vpop.f32.mrb[0].mxu0
      %2872 = vmatprep.mubr.f32.mxu0 0.0
      %2873 = vmatmul.mubr.f32.gmra.mrb[0].mxu0 %v2739
      %v2874 = vpop.f32.mrb[0].mxu0
      %v2875 = vadd.f32 0.0, %v2874
      %v2876 = vpop.f32.mrb[0].mxu0
      %2877 = vmatprep.mubr.f32.mxu0 0.0
      %2878 = vmatmul.mubr.f32.gmra.mrb[0].mxu0 %v2740
      %v2879 = vpop.f32.mrb[0].mxu0
      %v2880 = vadd.f32 0.0, %v2879
      %v2881 = vpop.f32.mrb[0].mxu0
      %2882 = vmatprep.mubr.f32.mxu0 0.0
      %2883 = vmatmul.mubr.f32.gmra.mrb[0].mxu0 %v2741
      %v2884 = vpop.f32.mrb[0].mxu0
      %v2885 = vadd.f32 0.0, %v2884
      %v2886 = vpop.f32.mrb[0].mxu0
      %2887 = vmatprep.mubr.f32.mxu0 0.0
      %2888 = vmatmul.mubr.f32.gmra.mrb[0].mxu0 %v2742
      %v2889 = vpop.f32.mrb[0].mxu0
      %v2890 = vadd.f32 0.0, %v2889
      %v2891 = vpop.f32.mrb[0].mxu0
      %2892 = vmatprep.mubr.f32.mxu0 0.0
      %2893 = vmatmul.mubr.f32.gmra.mrb[0].mxu0 %v2743
      %v2894 = vpop.f32.mrb[0].mxu0
      %v2895 = vadd.f32 0.0, %v2894
      %v2896 = vpop.f32.mrb[0].mxu0
      %2897 = vmatprep.mubr.f32.mxu0 0.0
      %2898 = vmatmul.mubr.f32.gmra.mrb[0].mxu0 %v2744
      %v2899 = vpop.f32.mrb[0].mxu0
      %v2900 = vadd.f32 0.0, %v2899
      %v2901 = vpop.f32.mrb[0].mxu0
      %2902 = vmatprep.mubr.f32.mxu0 0.0
      %2903 = vmatmul.mubr.f32.gmra.mrb[0].mxu0 %v2745
      %v2904 = vpop.f32.mrb[0].mxu0
      %v2905 = vadd.f32 0.0, %v2904
      %v2906 = vpop.f32.mrb[0].mxu0
      %2907 = vmatprep.mubr.f32.mxu0 0.0
      %2908 = vmatmul.mubr.f32.gmra.mrb[0].mxu0 %v2746
      %v2909 = vpop.f32.mrb[0].mxu0
      %v2910 = vadd.f32 0.0, %v2909
      %v2911 = vpop.f32.mrb[0].mxu0
      %2912 = vmatprep.mubr.f32.mxu0 0.0
      %2913 = vmatmul.mubr.f32.gmra.mrb[0].mxu0 %v2747
      %v2914 = vpop.f32.mrb[0].mxu0
      %v2915 = vadd.f32 0.0, %v2914
      %v2916 = vpop.f32.mrb[0].mxu0
      %2917 = vmatprep.mubr.f32.mxu0 0.0
      %2918 = vmatmul.mubr.f32.gmra.mrb[0].mxu0 %v2748
      %v2919 = vpop.f32.mrb[0].mxu0
      %v2920 = vadd.f32 0.0, %v2919
      %v2921 = vpop.f32.mrb[0].mxu0
      %2922 = vmatprep.mubr.f32.mxu0 0.0
      %2923 = vmatmul.mubr.f32.gmra.mrb[0].mxu0 %v2749
      %v2924 = vpop.f32.mrb[0].mxu0
      %v2925 = vadd.f32 0.0, %v2924
      %v2926 = vpop.f32.mrb[0].mxu0
      %2927 = vmatprep.mubr.f32.mxu0 0.0
      %2928 = vmatmul.mubr.f32.gmra.mrb[0].mxu0 %v2750
      %v2929 = vpop.f32.mrb[0].mxu0
      %v2930 = vadd.f32 0.0, %v2929
      %v2931 = vpop.f32.mrb[0].mxu0
      %2932 = vmatprep.mubr.f32.mxu0 0.0
      %2933 = vmatmul.mubr.f32.gmra.mrb[0].mxu0 %v2751
      %v2934 = vpop.f32.mrb[0].mxu0
      %v2935 = vadd.f32 0.0, %v2934
      %v2936 = vpop.f32.mrb[0].mxu0
      %2937 = vmatprep.mubr.f32.mxu0 0.0
      %2938 = vmatmul.mubr.f32.gmra.mrb[0].mxu0 %v2752
      %v2939 = vpop.f32.mrb[0].mxu0
      %v2940 = vadd.f32 0.0, %v2939
      %v2941 = vpop.f32.mrb[0].mxu0
      %2942 = vmatprep.mubr.f32.mxu0 0.0
      %2943 = vmatmul.mubr.f32.gmra.mrb[0].mxu0 %v2753
      %v2944 = vpop.f32.mrb[0].mxu0
      %v2945 = vadd.f32 0.0, %v2944
      %v2946 = vpop.f32.mrb[0].mxu0
      %2947 = vmatprep.mubr.f32.mxu0 0.0
      %2948 = vmatmul.mubr.f32.gmra.mrb[0].mxu0 %v2754
      %v2949 = vpop.f32.mrb[0].mxu0
      %v2950 = vadd.f32 0.0, %v2949
      %v2951 = vpop.f32.mrb[0].mxu0
      %2952 = vmatprep.mubr.f32.mxu0 0.0
      %2953 = vmatmul.mubr.f32.gmra.mrb[0].mxu0 %v2755
      %v2954 = vpop.f32.mrb[0].mxu0
      %v2955 = vadd.f32 0.0, %v2954
      %v2956 = vpop.f32.mrb[0].mxu0
      %2957 = vmatprep.mubr.f32.mxu0 0.0
      %2958 = vmatmul.mubr.f32.gmra.mrb[0].mxu0 %v2756
      %v2959 = vpop.f32.mrb[0].mxu0
      %v2960 = vadd.f32 0.0, %v2959
      %v2961 = vpop.f32.mrb[0].mxu0
      %2962 = vmatprep.mubr.f32.mxu0 0.0
      %2963 = vmatmul.mubr.f32.gmra.mrb[0].mxu0 %v2757
      %v2964 = vpop.f32.mrb[0].mxu0
      %v2965 = vadd.f32 0.0, %v2964
      %v2966 = vpop.f32.mrb[0].mxu0
      %2967 = vmatprep.mubr.f32.mxu0 0.0
      %2968 = vmatmul.mubr.f32.gmra.mrb[0].mxu0 %v2758
      %v2969 = vpop.f32.mrb[0].mxu0
      %v2970 = vadd.f32 0.0, %v2969
      %v2971 = vpop.f32.mrb[0].mxu0
      %2972 = vmatprep.mubr.f32.mxu0 0.0
      %2973 = vmatmul.mubr.f32.gmra.mrb[0].mxu0 %v2759
      %v2974 = vpop.f32.mrb[0].mxu0
      %v2975 = vadd.f32 0.0, %v2974
      %v2976 = vpop.f32.mrb[0].mxu0
      %2977 = vmatprep.mubr.f32.mxu0 0.0
      %2978 = vmatmul.mubr.f32.gmra.mrb[0].mxu0 %v2760
      %v2979 = vpop.f32.mrb[0].mxu0
      %v2980 = vadd.f32 0.0, %v2979
      %v2981 = vpop.f32.mrb[0].mxu0
      %2982 = vmatprep.mubr.f32.mxu0 0.0
      %2983 = vmatmul.mubr.f32.gmra.mrb[0].mxu0 %v2761
      %v2984 = vpop.f32.mrb[0].mxu0
      %v2985 = vadd.f32 0.0, %v2984
      %v2986 = vpop.f32.mrb[0].mxu0
      %2987 = vmatprep.mubr.f32.mxu0 0.0
      %2988 = vmatmul.mubr.f32.gmra.mrb[0].mxu0 %v2762
      %v2989 = vpop.f32.mrb[0].mxu0
      %v2990 = vadd.f32 0.0, %v2989
      %v2991 = vpop.f32.mrb[0].mxu0
      %2992 = vmatprep.mubr.f32.mxu0 0.0
      %2993 = vmatmul.mubr.f32.gmra.mrb[0].mxu0 %v2763
      %v2994 = vpop.f32.mrb[0].mxu0
      %v2995 = vadd.f32 0.0, %v2994
      %v2996 = vpop.f32.mrb[0].mxu0
      %2997 = vmatprep.mubr.f32.mxu0 0.0
      %2998 = vmatmul.mubr.f32.gmra.mrb[0].mxu0 %v2764
      %v2999 = vpop.f32.mrb[0].mxu0
      %v3000 = vadd.f32 0.0, %v2999
      %v3001 = vpop.f32.mrb[0].mxu0
      %3002 = vmatprep.mubr.f32.mxu0 0.0
      %3003 = vmatmul.mubr.f32.gmra.mrb[0].mxu0 %v2765
      %v3004 = vpop.f32.mrb[0].mxu0
      %v3005 = vadd.f32 0.0, %v3004
      %v3006 = vpop.f32.mrb[0].mxu0
      %3007 = vmatprep.mubr.f32.mxu0 0.0
      %3008 = vmatmul.mubr.f32.gmra.mrb[0].mxu0 %v2766
      %v3009 = vpop.f32.mrb[0].mxu0
      %v3010 = vadd.f32 0.0, %v3009
      %v3011 = vpop.f32.mrb[0].mxu0
      %3012 = vmatprep.mubr.f32.mxu0 0.0
      %3013 = vmatmul.mubr.f32.gmra.mrb[0].mxu0 %v2767
      %v3014 = vpop.f32.mrb[0].mxu0
      %v3015 = vadd.f32 0.0, %v3014
      %v3016 = vpop.f32.mrb[0].mxu0
      %3017 = vmatprep.mubr.f32.mxu0 0.0
      %3018 = vmatmul.mubr.f32.gmra.mrb[0].mxu0 %v2768
      %v3019 = vpop.f32.mrb[0].mxu0
      %v3020 = vadd.f32 0.0, %v3019
      %v3021 = vpop.f32.mrb[0].mxu0
      %3022 = vmatprep.mubr.f32.mxu0 0.0
      %3023 = vmatmul.mubr.f32.gmra.mrb[0].mxu0 %v2769
      %v3024 = vpop.f32.mrb[0].mxu0
      %v3025 = vadd.f32 0.0, %v3024
      %v3026 = vpop.f32.mrb[0].mxu0
      %3027 = vmatprep.mubr.f32.mxu0 0.0
      %3028 = vmatmul.mubr.f32.gmra.mrb[0].mxu0 %v2770
      %v3029 = vpop.f32.mrb[0].mxu0
      %v3030 = vadd.f32 0.0, %v3029
      %v3031 = vpop.f32.mrb[0].mxu0
      %3032 = vdwg.mxu0
      %v3033 = vadd.f32 %v2699, %v2855
      %v3034 = vadd.f32 %v2700, %v2860
      %v3035 = vadd.f32 %v2701, %v2865
      %v3036 = vadd.f32 %v2702, %v2870
      %v3037 = vadd.f32 %v2703, %v2875
      %v3038 = vadd.f32 %v2704, %v2880
      %v3039 = vadd.f32 %v2705, %v2885
      %v3040 = vadd.f32 %v2706, %v2890
      %v3041 = vadd.f32 %v2707, %v2895
      %v3042 = vadd.f32 %v2708, %v2900
      %v3043 = vadd.f32 %v2709, %v2905
      %v3044 = vadd.f32 %v2710, %v2910
      %v3045 = vadd.f32 %v2711, %v2915
      %v3046 = vadd.f32 %v2712, %v2920
      %v3047 = vadd.f32 %v2713, %v2925
      %v3048 = vadd.f32 %v2714, %v2930
      %v3049 = vadd.f32 %v2715, %v2935
      %v3050 = vadd.f32 %v2716, %v2940
      %v3051 = vadd.f32 %v2717, %v2945
      %v3052 = vadd.f32 %v2718, %v2950
      %v3053 = vadd.f32 %v2719, %v2955
      %v3054 = vadd.f32 %v2720, %v2960
      %v3055 = vadd.f32 %v2721, %v2965
      %v3056 = vadd.f32 %v2722, %v2970
      %v3057 = vadd.f32 %v2723, %v2975
      %v3058 = vadd.f32 %v2724, %v2980
      %v3059 = vadd.f32 %v2725, %v2985
      %v3060 = vadd.f32 %v2726, %v2990
      %v3061 = vadd.f32 %v2727, %v2995
      %v3062 = vadd.f32 %v2728, %v3000
      %v3063 = vadd.f32 %v2729, %v3005
      %v3064 = vadd.f32 %v2730, %v3010
      %v3065 = vadd.f32 %v2731, %v3015
      %v3066 = vadd.f32 %v2732, %v3020
      %v3067 = vadd.f32 %v2733, %v3025
      %v3068 = vadd.f32 %v2734, %v3030
      %v3069 = vld [vmem:[#allocation2 + $0x26] sm:$0xff]
      %v3070 = vld [vmem:[#allocation2 + $0x2e] sm:$0xff]
      %v3071 = vld [vmem:[#allocation2 + $0x36] sm:$0xff]
      %v3072 = vld [vmem:[#allocation2 + $0x3e] sm:$0xff]
      %v3073 = vld [vmem:[#allocation2 + $0x46] sm:$0xff]
      %v3074 = vld [vmem:[#allocation2 + $0x4e] sm:$0xff]
      %v3075 = vld [vmem:[#allocation2 + $0x56] sm:$0xff]
      %v3076 = vld [vmem:[#allocation2 + $0x5e] sm:$0xff]
      %v3077 = vld [vmem:[#allocation2 + $0x66] sm:$0xff]
      %v3078 = vld [vmem:[#allocation2 + $0x6e] sm:$0xff]
      %v3079 = vld [vmem:[#allocation2 + $0x76] sm:$0xff]
      %v3080 = vld [vmem:[#allocation2 + $0x7e] sm:$0xff]
      %v3081 = vld [vmem:[#allocation2 + $0x86] sm:$0xff]
      %v3082 = vld [vmem:[#allocation2 + $0x8e] sm:$0xff]
      %v3083 = vld [vmem:[#allocation2 + $0x96] sm:$0xff]
      %v3084 = vld [vmem:[#allocation2 + $0x9e] sm:$0xff]
      %v3085 = vld [vmem:[#allocation2 + $0xa6] sm:$0xff]
      %v3086 = vld [vmem:[#allocation2 + $0xae] sm:$0xff]
      %v3087 = vld [vmem:[#allocation2 + $0xb6] sm:$0xff]
      %v3088 = vld [vmem:[#allocation2 + $0xbe] sm:$0xff]
      %v3089 = vld [vmem:[#allocation2 + $0xc6] sm:$0xff]
      %v3090 = vld [vmem:[#allocation2 + $0xce] sm:$0xff]
      %v3091 = vld [vmem:[#allocation2 + $0xd6] sm:$0xff]
      %v3092 = vld [vmem:[#allocation2 + $0xde] sm:$0xff]
      %v3093 = vld [vmem:[#allocation2 + $0xe6] sm:$0xff]
      %v3094 = vld [vmem:[#allocation2 + $0xee] sm:$0xff]
      %v3095 = vld [vmem:[#allocation2 + $0xf6] sm:$0xff]
      %v3096 = vld [vmem:[#allocation2 + $0xfe] sm:$0xff]
      %v3097 = vld [vmem:[#allocation2 + $0x106] sm:$0xff]
      %v3098 = vld [vmem:[#allocation2 + $0x10e] sm:$0xff]
      %v3099 = vld [vmem:[#allocation2 + $0x116] sm:$0xff]
      %v3100 = vld [vmem:[#allocation2 + $0x11e] sm:$0xff]
      %v3101 = vld [vmem:[#allocation2 + $0x126] sm:$0xff]
      %v3102 = vld [vmem:[#allocation2 + $0x12e] sm:$0xff]
      %v3103 = vld [vmem:[#allocation2 + $0x136] sm:$0xff]
      %v3104 = vld [vmem:[#allocation2 + $0x13e] sm:$0x3f]
      %s3105 = scalar_lea.vmem %s3, 1024
      %v3106 = vld [vmem:[%s3105] sm:$0xff]
      %v3107 = vld [vmem:[%s3105 + $0x8] sm:$0xff]
      %v3108 = vld [vmem:[%s3105 + $0x10] sm:$0xff]
      %v3109 = vld [vmem:[%s3105 + $0x18] sm:$0xff]
      %v3110 = vld [vmem:[%s3105 + $0x20] sm:$0xff]
      %v3111 = vld [vmem:[%s3105 + $0x28] sm:$0xff]
      %v3112 = vld [vmem:[%s3105 + $0x30] sm:$0xff]
      %v3113 = vld [vmem:[%s3105 + $0x38] sm:$0xff]
      %v3114 = vld [vmem:[%s3105 + $0x40] sm:$0xff]
      %v3115 = vld [vmem:[%s3105 + $0x48] sm:$0xff]
      %v3116 = vld [vmem:[%s3105 + $0x50] sm:$0xff]
      %v3117 = vld [vmem:[%s3105 + $0x58] sm:$0xff]
      %v3118 = vld [vmem:[%s3105 + $0x60] sm:$0xff]
      %v3119 = vld [vmem:[%s3105 + $0x68] sm:$0xff]
      %v3120 = vld [vmem:[%s3105 + $0x70] sm:$0xff]
      %v3121 = vld [vmem:[%s3105 + $0x78] sm:$0xff]
      %3122 = vmatprep.subr.mxu0 0.0
      %3123 = vmatpush1.msra.mxu0 %v3106
      %3124 = vmatprep.subr.mxu0 0.0
      %3125 = vmatpush1.msra.mxu0 %v3107
      %3126 = vmatprep.subr.mxu0 0.0
      %3127 = vmatpush1.msra.mxu0 %v3108
      %3128 = vmatprep.subr.mxu0 0.0
      %3129 = vmatpush1.msra.mxu0 %v3109
      %3130 = vmatprep.subr.mxu0 0.0
      %3131 = vmatpush1.msra.mxu0 %v3110
      %3132 = vmatprep.subr.mxu0 0.0
      %3133 = vmatpush1.msra.mxu0 %v3111
      %3134 = vmatprep.subr.mxu0 0.0
      %3135 = vmatpush1.msra.mxu0 %v3112
      %3136 = vmatprep.subr.mxu0 0.0
      %3137 = vmatpush1.msra.mxu0 %v3113
      %3138 = vmatprep.subr.mxu0 0.0
      %3139 = vmatpush1.msra.mxu0 %v3114
      %3140 = vmatprep.subr.mxu0 0.0
      %3141 = vmatpush1.msra.mxu0 %v3115
      %3142 = vmatprep.subr.mxu0 0.0
      %3143 = vmatpush1.msra.mxu0 %v3116
      %3144 = vmatprep.subr.mxu0 0.0
      %3145 = vmatpush1.msra.mxu0 %v3117
      %3146 = vmatprep.subr.mxu0 0.0
      %3147 = vmatpush1.msra.mxu0 %v3118
      %3148 = vmatprep.subr.mxu0 0.0
      %3149 = vmatpush1.msra.mxu0 %v3119
      %3150 = vmatprep.subr.mxu0 0.0
      %3151 = vmatpush1.msra.mxu0 %v3120
      %3152 = vmatprep.subr.mxu0 0.0
      %3153 = vmatpush1.msra.mxu0 %v3121
      %3154 = vmatprep.subr.mxu0 0.0
      %3155 = vmatpush1.msra.mxu0 0.0
      %3156 = vmatprep.subr.mxu0 0.0
      %3157 = vmatpush1.msra.mxu0 0.0
      %3158 = vmatprep.subr.mxu0 0.0
      %3159 = vmatpush1.msra.mxu0 0.0
      %3160 = vmatprep.subr.mxu0 0.0
      %3161 = vmatpush1.msra.mxu0 0.0
      %3162 = vmatprep.subr.mxu0 0.0
      %3163 = vmatpush1.msra.mxu0 0.0
      %3164 = vmatprep.subr.mxu0 0.0
      %3165 = vmatpush1.msra.mxu0 0.0
      %3166 = vmatprep.subr.mxu0 0.0
      %3167 = vmatpush1.msra.mxu0 0.0
      %3168 = vmatprep.subr.mxu0 0.0
      %3169 = vmatpush1.msra.mxu0 0.0
      %3170 = vmatprep.subr.mxu0 0.0
      %3171 = vmatpush1.msra.mxu0 0.0
      %3172 = vmatprep.subr.mxu0 0.0
      %3173 = vmatpush1.msra.mxu0 0.0
      %3174 = vmatprep.subr.mxu0 0.0
      %3175 = vmatpush1.msra.mxu0 0.0
      %3176 = vmatprep.subr.mxu0 0.0
      %3177 = vmatpush1.msra.mxu0 0.0
      %3178 = vmatprep.subr.mxu0 0.0
      %3179 = vmatpush1.msra.mxu0 0.0
      %3180 = vmatprep.subr.mxu0 0.0
      %3181 = vmatpush1.msra.mxu0 0.0
      %3182 = vmatprep.subr.mxu0 0.0
      %3183 = vmatpush1.msra.mxu0 0.0
      %3184 = vmatprep.subr.mxu0 0.0
      %3185 = vmatpush1.msra.mxu0 0.0
      %3186 = vmatprep.mubr.f32.mxu0 0.0
      %3187 = vmatmul.mubr.f32.gmra.mrb[0].mxu0 %v3069
      %v3188 = vpop.f32.mrb[0].mxu0
      %v3189 = vadd.f32 0.0, %v3188
      %v3190 = vpop.f32.mrb[0].mxu0
      %3191 = vmatprep.mubr.f32.mxu0 0.0
      %3192 = vmatmul.mubr.f32.gmra.mrb[0].mxu0 %v3070
      %v3193 = vpop.f32.mrb[0].mxu0
      %v3194 = vadd.f32 0.0, %v3193
      %v3195 = vpop.f32.mrb[0].mxu0
      %3196 = vmatprep.mubr.f32.mxu0 0.0
      %3197 = vmatmul.mubr.f32.gmra.mrb[0].mxu0 %v3071
      %v3198 = vpop.f32.mrb[0].mxu0
      %v3199 = vadd.f32 0.0, %v3198
      %v3200 = vpop.f32.mrb[0].mxu0
      %3201 = vmatprep.mubr.f32.mxu0 0.0
      %3202 = vmatmul.mubr.f32.gmra.mrb[0].mxu0 %v3072
      %v3203 = vpop.f32.mrb[0].mxu0
      %v3204 = vadd.f32 0.0, %v3203
      %v3205 = vpop.f32.mrb[0].mxu0
      %3206 = vmatprep.mubr.f32.mxu0 0.0
      %3207 = vmatmul.mubr.f32.gmra.mrb[0].mxu0 %v3073
      %v3208 = vpop.f32.mrb[0].mxu0
      %v3209 = vadd.f32 0.0, %v3208
      %v3210 = vpop.f32.mrb[0].mxu0
      %3211 = vmatprep.mubr.f32.mxu0 0.0
      %3212 = vmatmul.mubr.f32.gmra.mrb[0].mxu0 %v3074
      %v3213 = vpop.f32.mrb[0].mxu0
      %v3214 = vadd.f32 0.0, %v3213
      %v3215 = vpop.f32.mrb[0].mxu0
      %3216 = vmatprep.mubr.f32.mxu0 0.0
      %3217 = vmatmul.mubr.f32.gmra.mrb[0].mxu0 %v3075
      %v3218 = vpop.f32.mrb[0].mxu0
      %v3219 = vadd.f32 0.0, %v3218
      %v3220 = vpop.f32.mrb[0].mxu0
      %3221 = vmatprep.mubr.f32.mxu0 0.0
      %3222 = vmatmul.mubr.f32.gmra.mrb[0].mxu0 %v3076
      %v3223 = vpop.f32.mrb[0].mxu0
      %v3224 = vadd.f32 0.0, %v3223
      %v3225 = vpop.f32.mrb[0].mxu0
      %3226 = vmatprep.mubr.f32.mxu0 0.0
      %3227 = vmatmul.mubr.f32.gmra.mrb[0].mxu0 %v3077
      %v3228 = vpop.f32.mrb[0].mxu0
      %v3229 = vadd.f32 0.0, %v3228
      %v3230 = vpop.f32.mrb[0].mxu0
      %3231 = vmatprep.mubr.f32.mxu0 0.0
      %3232 = vmatmul.mubr.f32.gmra.mrb[0].mxu0 %v3078
      %v3233 = vpop.f32.mrb[0].mxu0
      %v3234 = vadd.f32 0.0, %v3233
      %v3235 = vpop.f32.mrb[0].mxu0
      %3236 = vmatprep.mubr.f32.mxu0 0.0
      %3237 = vmatmul.mubr.f32.gmra.mrb[0].mxu0 %v3079
      %v3238 = vpop.f32.mrb[0].mxu0
      %v3239 = vadd.f32 0.0, %v3238
      %v3240 = vpop.f32.mrb[0].mxu0
      %3241 = vmatprep.mubr.f32.mxu0 0.0
      %3242 = vmatmul.mubr.f32.gmra.mrb[0].mxu0 %v3080
      %v3243 = vpop.f32.mrb[0].mxu0
      %v3244 = vadd.f32 0.0, %v3243
      %v3245 = vpop.f32.mrb[0].mxu0
      %3246 = vmatprep.mubr.f32.mxu0 0.0
      %3247 = vmatmul.mubr.f32.gmra.mrb[0].mxu0 %v3081
      %v3248 = vpop.f32.mrb[0].mxu0
      %v3249 = vadd.f32 0.0, %v3248
      %v3250 = vpop.f32.mrb[0].mxu0
      %3251 = vmatprep.mubr.f32.mxu0 0.0
      %3252 = vmatmul.mubr.f32.gmra.mrb[0].mxu0 %v3082
      %v3253 = vpop.f32.mrb[0].mxu0
      %v3254 = vadd.f32 0.0, %v3253
      %v3255 = vpop.f32.mrb[0].mxu0
      %3256 = vmatprep.mubr.f32.mxu0 0.0
      %3257 = vmatmul.mubr.f32.gmra.mrb[0].mxu0 %v3083
      %v3258 = vpop.f32.mrb[0].mxu0
      %v3259 = vadd.f32 0.0, %v3258
      %v3260 = vpop.f32.mrb[0].mxu0
      %3261 = vmatprep.mubr.f32.mxu0 0.0
      %3262 = vmatmul.mubr.f32.gmra.mrb[0].mxu0 %v3084
      %v3263 = vpop.f32.mrb[0].mxu0
      %v3264 = vadd.f32 0.0, %v3263
      %v3265 = vpop.f32.mrb[0].mxu0
      %3266 = vmatprep.mubr.f32.mxu0 0.0
      %3267 = vmatmul.mubr.f32.gmra.mrb[0].mxu0 %v3085
      %v3268 = vpop.f32.mrb[0].mxu0
      %v3269 = vadd.f32 0.0, %v3268
      %v3270 = vpop.f32.mrb[0].mxu0
      %3271 = vmatprep.mubr.f32.mxu0 0.0
      %3272 = vmatmul.mubr.f32.gmra.mrb[0].mxu0 %v3086
      %v3273 = vpop.f32.mrb[0].mxu0
      %v3274 = vadd.f32 0.0, %v3273
      %v3275 = vpop.f32.mrb[0].mxu0
      %3276 = vmatprep.mubr.f32.mxu0 0.0
      %3277 = vmatmul.mubr.f32.gmra.mrb[0].mxu0 %v3087
      %v3278 = vpop.f32.mrb[0].mxu0
      %v3279 = vadd.f32 0.0, %v3278
      %v3280 = vpop.f32.mrb[0].mxu0
      %3281 = vmatprep.mubr.f32.mxu0 0.0
      %3282 = vmatmul.mubr.f32.gmra.mrb[0].mxu0 %v3088
      %v3283 = vpop.f32.mrb[0].mxu0
      %v3284 = vadd.f32 0.0, %v3283
      %v3285 = vpop.f32.mrb[0].mxu0
      %3286 = vmatprep.mubr.f32.mxu0 0.0
      %3287 = vmatmul.mubr.f32.gmra.mrb[0].mxu0 %v3089
      %v3288 = vpop.f32.mrb[0].mxu0
      %v3289 = vadd.f32 0.0, %v3288
      %v3290 = vpop.f32.mrb[0].mxu0
      %3291 = vmatprep.mubr.f32.mxu0 0.0
      %3292 = vmatmul.mubr.f32.gmra.mrb[0].mxu0 %v3090
      %v3293 = vpop.f32.mrb[0].mxu0
      %v3294 = vadd.f32 0.0, %v3293
      %v3295 = vpop.f32.mrb[0].mxu0
      %3296 = vmatprep.mubr.f32.mxu0 0.0
      %3297 = vmatmul.mubr.f32.gmra.mrb[0].mxu0 %v3091
      %v3298 = vpop.f32.mrb[0].mxu0
      %v3299 = vadd.f32 0.0, %v3298
      %v3300 = vpop.f32.mrb[0].mxu0
      %3301 = vmatprep.mubr.f32.mxu0 0.0
      %3302 = vmatmul.mubr.f32.gmra.mrb[0].mxu0 %v3092
      %v3303 = vpop.f32.mrb[0].mxu0
      %v3304 = vadd.f32 0.0, %v3303
      %v3305 = vpop.f32.mrb[0].mxu0
      %3306 = vmatprep.mubr.f32.mxu0 0.0
      %3307 = vmatmul.mubr.f32.gmra.mrb[0].mxu0 %v3093
      %v3308 = vpop.f32.mrb[0].mxu0
      %v3309 = vadd.f32 0.0, %v3308
      %v3310 = vpop.f32.mrb[0].mxu0
      %3311 = vmatprep.mubr.f32.mxu0 0.0
      %3312 = vmatmul.mubr.f32.gmra.mrb[0].mxu0 %v3094
      %v3313 = vpop.f32.mrb[0].mxu0
      %v3314 = vadd.f32 0.0, %v3313
      %v3315 = vpop.f32.mrb[0].mxu0
      %3316 = vmatprep.mubr.f32.mxu0 0.0
      %3317 = vmatmul.mubr.f32.gmra.mrb[0].mxu0 %v3095
      %v3318 = vpop.f32.mrb[0].mxu0
      %v3319 = vadd.f32 0.0, %v3318
      %v3320 = vpop.f32.mrb[0].mxu0
      %3321 = vmatprep.mubr.f32.mxu0 0.0
      %3322 = vmatmul.mubr.f32.gmra.mrb[0].mxu0 %v3096
      %v3323 = vpop.f32.mrb[0].mxu0
      %v3324 = vadd.f32 0.0, %v3323
      %v3325 = vpop.f32.mrb[0].mxu0
      %3326 = vmatprep.mubr.f32.mxu0 0.0
      %3327 = vmatmul.mubr.f32.gmra.mrb[0].mxu0 %v3097
      %v3328 = vpop.f32.mrb[0].mxu0
      %v3329 = vadd.f32 0.0, %v3328
      %v3330 = vpop.f32.mrb[0].mxu0
      %3331 = vmatprep.mubr.f32.mxu0 0.0
      %3332 = vmatmul.mubr.f32.gmra.mrb[0].mxu0 %v3098
      %v3333 = vpop.f32.mrb[0].mxu0
      %v3334 = vadd.f32 0.0, %v3333
      %v3335 = vpop.f32.mrb[0].mxu0
      %3336 = vmatprep.mubr.f32.mxu0 0.0
      %3337 = vmatmul.mubr.f32.gmra.mrb[0].mxu0 %v3099
      %v3338 = vpop.f32.mrb[0].mxu0
      %v3339 = vadd.f32 0.0, %v3338
      %v3340 = vpop.f32.mrb[0].mxu0
      %3341 = vmatprep.mubr.f32.mxu0 0.0
      %3342 = vmatmul.mubr.f32.gmra.mrb[0].mxu0 %v3100
      %v3343 = vpop.f32.mrb[0].mxu0
      %v3344 = vadd.f32 0.0, %v3343
      %v3345 = vpop.f32.mrb[0].mxu0
      %3346 = vmatprep.mubr.f32.mxu0 0.0
      %3347 = vmatmul.mubr.f32.gmra.mrb[0].mxu0 %v3101
      %v3348 = vpop.f32.mrb[0].mxu0
      %v3349 = vadd.f32 0.0, %v3348
      %v3350 = vpop.f32.mrb[0].mxu0
      %3351 = vmatprep.mubr.f32.mxu0 0.0
      %3352 = vmatmul.mubr.f32.gmra.mrb[0].mxu0 %v3102
      %v3353 = vpop.f32.mrb[0].mxu0
      %v3354 = vadd.f32 0.0, %v3353
      %v3355 = vpop.f32.mrb[0].mxu0
      %3356 = vmatprep.mubr.f32.mxu0 0.0
      %3357 = vmatmul.mubr.f32.gmra.mrb[0].mxu0 %v3103
      %v3358 = vpop.f32.mrb[0].mxu0
      %v3359 = vadd.f32 0.0, %v3358
      %v3360 = vpop.f32.mrb[0].mxu0
      %3361 = vmatprep.mubr.f32.mxu0 0.0
      %3362 = vmatmul.mubr.f32.gmra.mrb[0].mxu0 %v3104
      %v3363 = vpop.f32.mrb[0].mxu0
      %v3364 = vadd.f32 0.0, %v3363
      %v3365 = vpop.f32.mrb[0].mxu0
      %3366 = vdwg.mxu0
      %v3367 = vadd.f32 %v3033, %v3189
      %v3368 = vadd.f32 %v3034, %v3194
      %v3369 = vadd.f32 %v3035, %v3199
      %v3370 = vadd.f32 %v3036, %v3204
      %v3371 = vadd.f32 %v3037, %v3209
      %v3372 = vadd.f32 %v3038, %v3214
      %v3373 = vadd.f32 %v3039, %v3219
      %v3374 = vadd.f32 %v3040, %v3224
      %v3375 = vadd.f32 %v3041, %v3229
      %v3376 = vadd.f32 %v3042, %v3234
      %v3377 = vadd.f32 %v3043, %v3239
      %v3378 = vadd.f32 %v3044, %v3244
      %v3379 = vadd.f32 %v3045, %v3249
      %v3380 = vadd.f32 %v3046, %v3254
      %v3381 = vadd.f32 %v3047, %v3259
      %v3382 = vadd.f32 %v3048, %v3264
      %v3383 = vadd.f32 %v3049, %v3269
      %v3384 = vadd.f32 %v3050, %v3274
      %v3385 = vadd.f32 %v3051, %v3279
      %v3386 = vadd.f32 %v3052, %v3284
      %v3387 = vadd.f32 %v3053, %v3289
      %v3388 = vadd.f32 %v3054, %v3294
      %v3389 = vadd.f32 %v3055, %v3299
      %v3390 = vadd.f32 %v3056, %v3304
      %v3391 = vadd.f32 %v3057, %v3309
      %v3392 = vadd.f32 %v3058, %v3314
      %v3393 = vadd.f32 %v3059, %v3319
      %v3394 = vadd.f32 %v3060, %v3324
      %v3395 = vadd.f32 %v3061, %v3329
      %v3396 = vadd.f32 %v3062, %v3334
      %v3397 = vadd.f32 %v3063, %v3339
      %v3398 = vadd.f32 %v3064, %v3344
      %v3399 = vadd.f32 %v3065, %v3349
      %v3400 = vadd.f32 %v3066, %v3354
      %v3401 = vadd.f32 %v3067, %v3359
      %v3402 = vadd.f32 %v3068, %v3364
      %v3403 = vld [vmem:[%s4] sm:$0x1]
      %v3405 = vlaneseq
      %v3406 = vshrl.u32 %v3405, 7
      %v3407 = vsub.s32 0, %v3406
      %v3408 = vrot.slane %v3403, %v3407
      %v3410 = vadd.f32 %v3367, %v3408
      %v3411 = vadd.f32 %v3368, %v3408
      %v3412 = vadd.f32 %v3369, %v3408
      %v3413 = vadd.f32 %v3370, %v3408
      %v3414 = vadd.f32 %v3371, %v3408
      %v3415 = vadd.f32 %v3372, %v3408
      %v3416 = vadd.f32 %v3373, %v3408
      %v3417 = vadd.f32 %v3374, %v3408
      %v3418 = vadd.f32 %v3375, %v3408
      %v3419 = vadd.f32 %v3376, %v3408
      %v3420 = vadd.f32 %v3377, %v3408
      %v3421 = vadd.f32 %v3378, %v3408
      %v3422 = vadd.f32 %v3379, %v3408
      %v3423 = vadd.f32 %v3380, %v3408
      %v3424 = vadd.f32 %v3381, %v3408
      %v3425 = vadd.f32 %v3382, %v3408
      %v3426 = vadd.f32 %v3383, %v3408
      %v3427 = vadd.f32 %v3384, %v3408
      %v3428 = vadd.f32 %v3385, %v3408
      %v3429 = vadd.f32 %v3386, %v3408
      %v3430 = vadd.f32 %v3387, %v3408
      %v3431 = vadd.f32 %v3388, %v3408
      %v3432 = vadd.f32 %v3389, %v3408
      %v3433 = vadd.f32 %v3390, %v3408
      %v3434 = vadd.f32 %v3391, %v3408
      %v3435 = vadd.f32 %v3392, %v3408
      %v3436 = vadd.f32 %v3393, %v3408
      %v3437 = vadd.f32 %v3394, %v3408
      %v3438 = vadd.f32 %v3395, %v3408
      %v3439 = vadd.f32 %v3396, %v3408
      %v3440 = vadd.f32 %v3397, %v3408
      %v3441 = vadd.f32 %v3398, %v3408
      %v3442 = vadd.f32 %v3399, %v3408
      %v3443 = vadd.f32 %v3400, %v3408
      %v3444 = vadd.f32 %v3401, %v3408
      %v3445 = vadd.f32 %v3402, %v3408
      %v3446 = vmax.f32 %v3410, 0.0
      %v3447 = vmax.f32 %v3411, 0.0
      %v3448 = vmax.f32 %v3412, 0.0
      %v3449 = vmax.f32 %v3413, 0.0
      %v3450 = vmax.f32 %v3414, 0.0
      %v3451 = vmax.f32 %v3415, 0.0
      %v3452 = vmax.f32 %v3416, 0.0
      %v3453 = vmax.f32 %v3417, 0.0
      %v3454 = vmax.f32 %v3418, 0.0
      %v3455 = vmax.f32 %v3419, 0.0
      %v3456 = vmax.f32 %v3420, 0.0
      %v3457 = vmax.f32 %v3421, 0.0
      %v3458 = vmax.f32 %v3422, 0.0
      %v3459 = vmax.f32 %v3423, 0.0
      %v3460 = vmax.f32 %v3424, 0.0
      %v3461 = vmax.f32 %v3425, 0.0
      %v3462 = vmax.f32 %v3426, 0.0
      %v3463 = vmax.f32 %v3427, 0.0
      %v3464 = vmax.f32 %v3428, 0.0
      %v3465 = vmax.f32 %v3429, 0.0
      %v3466 = vmax.f32 %v3430, 0.0
      %v3467 = vmax.f32 %v3431, 0.0
      %v3468 = vmax.f32 %v3432, 0.0
      %v3469 = vmax.f32 %v3433, 0.0
      %v3470 = vmax.f32 %v3434, 0.0
      %v3471 = vmax.f32 %v3435, 0.0
      %v3472 = vmax.f32 %v3436, 0.0
      %v3473 = vmax.f32 %v3437, 0.0
      %v3474 = vmax.f32 %v3438, 0.0
      %v3475 = vmax.f32 %v3439, 0.0
      %v3476 = vmax.f32 %v3440, 0.0
      %v3477 = vmax.f32 %v3441, 0.0
      %v3478 = vmax.f32 %v3442, 0.0
      %v3479 = vmax.f32 %v3443, 0.0
      %v3480 = vmax.f32 %v3444, 0.0
      %v3481 = vmax.f32 %v3445, 0.0
      %v3482 = vld [vmem:[%s341] sm:$0x1]
      %v3484 = vlaneseq
      %v3485 = vshrl.u32 %v3484, 7
      %v3486 = vsub.s32 0, %v3485
      %v3487 = vrot.slane %v3482, %v3486
      %v3489 = vadd.f32 %v3446, %v3487
      %v3490 = vadd.f32 %v3447, %v3487
      %v3491 = vadd.f32 %v3448, %v3487
      %v3492 = vadd.f32 %v3449, %v3487
      %v3493 = vadd.f32 %v3450, %v3487
      %v3494 = vadd.f32 %v3451, %v3487
      %v3495 = vadd.f32 %v3452, %v3487
      %v3496 = vadd.f32 %v3453, %v3487
      %v3497 = vadd.f32 %v3454, %v3487
      %v3498 = vadd.f32 %v3455, %v3487
      %v3499 = vadd.f32 %v3456, %v3487
      %v3500 = vadd.f32 %v3457, %v3487
      %v3501 = vadd.f32 %v3458, %v3487
      %v3502 = vadd.f32 %v3459, %v3487
      %v3503 = vadd.f32 %v3460, %v3487
      %v3504 = vadd.f32 %v3461, %v3487
      %v3505 = vadd.f32 %v3462, %v3487
      %v3506 = vadd.f32 %v3463, %v3487
      %v3507 = vadd.f32 %v3464, %v3487
      %v3508 = vadd.f32 %v3465, %v3487
      %v3509 = vadd.f32 %v3466, %v3487
      %v3510 = vadd.f32 %v3467, %v3487
      %v3511 = vadd.f32 %v3468, %v3487
      %v3512 = vadd.f32 %v3469, %v3487
      %v3513 = vadd.f32 %v3470, %v3487
      %v3514 = vadd.f32 %v3471, %v3487
      %v3515 = vadd.f32 %v3472, %v3487
      %v3516 = vadd.f32 %v3473, %v3487
      %v3517 = vadd.f32 %v3474, %v3487
      %v3518 = vadd.f32 %v3475, %v3487
      %v3519 = vadd.f32 %v3476, %v3487
      %v3520 = vadd.f32 %v3477, %v3487
      %v3521 = vadd.f32 %v3478, %v3487
      %v3522 = vadd.f32 %v3479, %v3487
      %v3523 = vadd.f32 %v3480, %v3487
      %v3524 = vadd.f32 %v3481, %v3487
      %v3525 = vld [vmem:[%s2] sm:$0xff]
      %v3526 = vld [vmem:[%s2 + $0x8] sm:$0xff]
      %v3527 = vld [vmem:[%s2 + $0x10] sm:$0xff]
      %v3528 = vld [vmem:[%s2 + $0x18] sm:$0xff]
      %v3529 = vld [vmem:[%s2 + $0x20] sm:$0xff]
      %v3530 = vld [vmem:[%s2 + $0x28] sm:$0xff]
      %v3531 = vld [vmem:[%s2 + $0x30] sm:$0xff]
      %v3532 = vld [vmem:[%s2 + $0x38] sm:$0xff]
      %v3533 = vld [vmem:[%s2 + $0x40] sm:$0xff]
      %v3534 = vld [vmem:[%s2 + $0x48] sm:$0xff]
      %v3535 = vld [vmem:[%s2 + $0x50] sm:$0xff]
      %v3536 = vld [vmem:[%s2 + $0x58] sm:$0xff]
      %v3537 = vld [vmem:[%s2 + $0x60] sm:$0xff]
      %v3538 = vld [vmem:[%s2 + $0x68] sm:$0xff]
      %v3539 = vld [vmem:[%s2 + $0x70] sm:$0xff]
      %v3540 = vld [vmem:[%s2 + $0x78] sm:$0xff]
      %v3541 = vld [vmem:[%s2 + $0x80] sm:$0xff]
      %v3542 = vld [vmem:[%s2 + $0x88] sm:$0xff]
      %v3543 = vld [vmem:[%s2 + $0x90] sm:$0xff]
      %v3544 = vld [vmem:[%s2 + $0x98] sm:$0xff]
      %v3545 = vld [vmem:[%s2 + $0xa0] sm:$0xff]
      %v3546 = vld [vmem:[%s2 + $0xa8] sm:$0xff]
      %v3547 = vld [vmem:[%s2 + $0xb0] sm:$0xff]
      %v3548 = vld [vmem:[%s2 + $0xb8] sm:$0xff]
      %v3549 = vld [vmem:[%s2 + $0xc0] sm:$0xff]
      %v3550 = vld [vmem:[%s2 + $0xc8] sm:$0xff]
      %v3551 = vld [vmem:[%s2 + $0xd0] sm:$0xff]
      %v3552 = vld [vmem:[%s2 + $0xd8] sm:$0xff]
      %v3553 = vld [vmem:[%s2 + $0xe0] sm:$0xff]
      %v3554 = vld [vmem:[%s2 + $0xe8] sm:$0xff]
      %v3555 = vld [vmem:[%s2 + $0xf0] sm:$0xff]
      %v3556 = vld [vmem:[%s2 + $0xf8] sm:$0xff]
      %v3557 = vld [vmem:[%s2 + $0x100] sm:$0xff]
      %v3558 = vld [vmem:[%s2 + $0x108] sm:$0xff]
      %v3559 = vld [vmem:[%s2 + $0x110] sm:$0xff]
      %v3560 = vld [vmem:[%s2 + $0x118] sm:$0x3f]
      %3562 = vset.pattern.permute.xlu0 0
      %3563 = vperm.xlu0 %3562, %v3525
      %v3564 = vpop.permute.xlu0 %3563
      %3567 = vset.pattern.permute.xlu0 0
      %3568 = vperm.xlu0 %3567, %v3526
      %v3569 = vpop.permute.xlu0 %3568
      %3572 = vset.pattern.permute.xlu0 0
      %3573 = vperm.xlu0 %3572, %v3527
      %v3574 = vpop.permute.xlu0 %3573
      %3577 = vset.pattern.permute.xlu0 0
      %3578 = vperm.xlu0 %3577, %v3528
      %v3579 = vpop.permute.xlu0 %3578
      %3582 = vset.pattern.permute.xlu0 0
      %3583 = vperm.xlu0 %3582, %v3529
      %v3584 = vpop.permute.xlu0 %3583
      %3587 = vset.pattern.permute.xlu0 0
      %3588 = vperm.xlu0 %3587, %v3530
      %v3589 = vpop.permute.xlu0 %3588
      %3592 = vset.pattern.permute.xlu0 0
      %3593 = vperm.xlu0 %3592, %v3531
      %v3594 = vpop.permute.xlu0 %3593
      %3597 = vset.pattern.permute.xlu0 0
      %3598 = vperm.xlu0 %3597, %v3532
      %v3599 = vpop.permute.xlu0 %3598
      %3602 = vset.pattern.permute.xlu0 0
      %3603 = vperm.xlu0 %3602, %v3533
      %v3604 = vpop.permute.xlu0 %3603
      %3607 = vset.pattern.permute.xlu0 0
      %3608 = vperm.xlu0 %3607, %v3534
      %v3609 = vpop.permute.xlu0 %3608
      %3612 = vset.pattern.permute.xlu0 0
      %3613 = vperm.xlu0 %3612, %v3535
      %v3614 = vpop.permute.xlu0 %3613
      %3617 = vset.pattern.permute.xlu0 0
      %3618 = vperm.xlu0 %3617, %v3536
      %v3619 = vpop.permute.xlu0 %3618
      %3622 = vset.pattern.permute.xlu0 0
      %3623 = vperm.xlu0 %3622, %v3537
      %v3624 = vpop.permute.xlu0 %3623
      %3627 = vset.pattern.permute.xlu0 0
      %3628 = vperm.xlu0 %3627, %v3538
      %v3629 = vpop.permute.xlu0 %3628
      %3632 = vset.pattern.permute.xlu0 0
      %3633 = vperm.xlu0 %3632, %v3539
      %v3634 = vpop.permute.xlu0 %3633
      %3637 = vset.pattern.permute.xlu0 0
      %3638 = vperm.xlu0 %3637, %v3540
      %v3639 = vpop.permute.xlu0 %3638
      %3642 = vset.pattern.permute.xlu0 0
      %3643 = vperm.xlu0 %3642, %v3541
      %v3644 = vpop.permute.xlu0 %3643
      %3647 = vset.pattern.permute.xlu0 0
      %3648 = vperm.xlu0 %3647, %v3542
      %v3649 = vpop.permute.xlu0 %3648
      %3652 = vset.pattern.permute.xlu0 0
      %3653 = vperm.xlu0 %3652, %v3543
      %v3654 = vpop.permute.xlu0 %3653
      %3657 = vset.pattern.permute.xlu0 0
      %3658 = vperm.xlu0 %3657, %v3544
      %v3659 = vpop.permute.xlu0 %3658
      %3662 = vset.pattern.permute.xlu0 0
      %3663 = vperm.xlu0 %3662, %v3545
      %v3664 = vpop.permute.xlu0 %3663
      %3667 = vset.pattern.permute.xlu0 0
      %3668 = vperm.xlu0 %3667, %v3546
      %v3669 = vpop.permute.xlu0 %3668
      %3672 = vset.pattern.permute.xlu0 0
      %3673 = vperm.xlu0 %3672, %v3547
      %v3674 = vpop.permute.xlu0 %3673
      %3677 = vset.pattern.permute.xlu0 0
      %3678 = vperm.xlu0 %3677, %v3548
      %v3679 = vpop.permute.xlu0 %3678
      %3682 = vset.pattern.permute.xlu0 0
      %3683 = vperm.xlu0 %3682, %v3549
      %v3684 = vpop.permute.xlu0 %3683
      %3687 = vset.pattern.permute.xlu0 0
      %3688 = vperm.xlu0 %3687, %v3550
      %v3689 = vpop.permute.xlu0 %3688
      %3692 = vset.pattern.permute.xlu0 0
      %3693 = vperm.xlu0 %3692, %v3551
      %v3694 = vpop.permute.xlu0 %3693
      %3697 = vset.pattern.permute.xlu0 0
      %3698 = vperm.xlu0 %3697, %v3552
      %v3699 = vpop.permute.xlu0 %3698
      %3702 = vset.pattern.permute.xlu0 0
      %3703 = vperm.xlu0 %3702, %v3553
      %v3704 = vpop.permute.xlu0 %3703
      %3707 = vset.pattern.permute.xlu0 0
      %3708 = vperm.xlu0 %3707, %v3554
      %v3709 = vpop.permute.xlu0 %3708
      %3712 = vset.pattern.permute.xlu0 0
      %3713 = vperm.xlu0 %3712, %v3555
      %v3714 = vpop.permute.xlu0 %3713
      %3717 = vset.pattern.permute.xlu0 0
      %3718 = vperm.xlu0 %3717, %v3556
      %v3719 = vpop.permute.xlu0 %3718
      %3722 = vset.pattern.permute.xlu0 0
      %3723 = vperm.xlu0 %3722, %v3557
      %v3724 = vpop.permute.xlu0 %3723
      %3727 = vset.pattern.permute.xlu0 0
      %3728 = vperm.xlu0 %3727, %v3558
      %v3729 = vpop.permute.xlu0 %3728
      %3732 = vset.pattern.permute.xlu0 0
      %3733 = vperm.xlu0 %3732, %v3559
      %v3734 = vpop.permute.xlu0 %3733
      %3737 = vset.pattern.permute.xlu0 0
      %3738 = vperm.xlu0 %3737, %v3560
      %v3739 = vpop.permute.xlu0 %3738
      %v3741 = vmul.f32 %v3489, %v3564
      %v3742 = vmul.f32 %v3490, %v3569
      %v3743 = vmul.f32 %v3491, %v3574
      %v3744 = vmul.f32 %v3492, %v3579
      %v3745 = vmul.f32 %v3493, %v3584
      %v3746 = vmul.f32 %v3494, %v3589
      %v3747 = vmul.f32 %v3495, %v3594
      %v3748 = vmul.f32 %v3496, %v3599
      %v3749 = vmul.f32 %v3497, %v3604
      %v3750 = vmul.f32 %v3498, %v3609
      %v3751 = vmul.f32 %v3499, %v3614
      %v3752 = vmul.f32 %v3500, %v3619
      %v3753 = vmul.f32 %v3501, %v3624
      %v3754 = vmul.f32 %v3502, %v3629
      %v3755 = vmul.f32 %v3503, %v3634
      %v3756 = vmul.f32 %v3504, %v3639
      %v3757 = vmul.f32 %v3505, %v3644
      %v3758 = vmul.f32 %v3506, %v3649
      %v3759 = vmul.f32 %v3507, %v3654
      %v3760 = vmul.f32 %v3508, %v3659
      %v3761 = vmul.f32 %v3509, %v3664
      %v3762 = vmul.f32 %v3510, %v3669
      %v3763 = vmul.f32 %v3511, %v3674
      %v3764 = vmul.f32 %v3512, %v3679
      %v3765 = vmul.f32 %v3513, %v3684
      %v3766 = vmul.f32 %v3514, %v3689
      %v3767 = vmul.f32 %v3515, %v3694
      %v3768 = vmul.f32 %v3516, %v3699
      %v3769 = vmul.f32 %v3517, %v3704
      %v3770 = vmul.f32 %v3518, %v3709
      %v3771 = vmul.f32 %v3519, %v3714
      %v3772 = vmul.f32 %v3520, %v3719
      %v3773 = vmul.f32 %v3521, %v3724
      %v3774 = vmul.f32 %v3522, %v3729
      %v3775 = vmul.f32 %v3523, %v3734
      %v3776 = vmul.f32 %v3524, %v3739
      %3777 = vst [vmem:[#allocation3] sm:$0xff] 0.0
      %3778 = vst [vmem:[#allocation3 + $0x8] sm:$0xff] 0.0
      %3779 = vst [vmem:[#allocation3 + $0x10] sm:$0xff] 0.0
      %3780 = vst [vmem:[#allocation3 + $0x18] sm:$0xff] 0.0
      %3781 = vst [vmem:[#allocation3 + $0x20] sm:$0xff] 0.0
      %3782 = vst [vmem:[#allocation3 + $0x28] sm:$0xff] 0.0
      %3783 = vst [vmem:[#allocation3 + $0x30] sm:$0xff] 0.0
      %3784 = vst [vmem:[#allocation3 + $0x38] sm:$0xff] 0.0
      %3785 = vst [vmem:[#allocation3 + $0x40] sm:$0xff] 0.0
      %3786 = vst [vmem:[#allocation3 + $0x48] sm:$0xff] 0.0
      %3787 = vst [vmem:[#allocation3 + $0x50] sm:$0xff] 0.0
      %3788 = vst [vmem:[#allocation3 + $0x58] sm:$0xff] 0.0
      %3789 = vst [vmem:[#allocation3 + $0x60] sm:$0xff] 0.0
      %3790 = vst [vmem:[#allocation3 + $0x68] sm:$0xff] 0.0
      %3791 = vst [vmem:[#allocation3 + $0x70] sm:$0xff] 0.0
      %3792 = vst [vmem:[#allocation3 + $0x78] sm:$0xff] 0.0
      %3793 = vst [vmem:[#allocation3 + $0x80] sm:$0xff] 0.0
      %3794 = vst [vmem:[#allocation3 + $0x88] sm:$0xff] 0.0
      %3795 = vst [vmem:[#allocation3 + $0x90] sm:$0xff] 0.0
      %3796 = vst [vmem:[#allocation3 + $0x98] sm:$0xff] 0.0
      %3797 = vst [vmem:[#allocation3 + $0xa0] sm:$0xff] 0.0
      %3798 = vst [vmem:[#allocation3 + $0xa8] sm:$0xff] 0.0
      %3799 = vst [vmem:[#allocation3 + $0xb0] sm:$0xff] 0.0
      %3800 = vst [vmem:[#allocation3 + $0xb8] sm:$0xff] 0.0
      %3801 = vst [vmem:[#allocation3 + $0xc0] sm:$0xff] 0.0
      %3802 = vst [vmem:[#allocation3 + $0xc8] sm:$0xff] 0.0
      %3803 = vst [vmem:[#allocation3 + $0xd0] sm:$0xff] 0.0
      %3804 = vst [vmem:[#allocation3 + $0xd8] sm:$0xff] 0.0
      %3805 = vst [vmem:[#allocation3 + $0xe0] sm:$0xff] 0.0
      %3806 = vst [vmem:[#allocation3 + $0xe8] sm:$0xff] 0.0
      %3807 = vst [vmem:[#allocation3 + $0xf0] sm:$0xff] 0.0
      %3808 = vst [vmem:[#allocation3 + $0xf8] sm:$0xff] 0.0
      %3809 = vst [vmem:[#allocation3 + $0x100] sm:$0xff] 0.0
      %3810 = vst [vmem:[#allocation3 + $0x108] sm:$0xff] 0.0
      %3811 = vst [vmem:[#allocation3 + $0x110] sm:$0xff] 0.0
      %3812 = vst [vmem:[#allocation3 + $0x118] sm:$0xff] 0.0
      %3813 = vst [vmem:[#allocation3 + $0x120] sm:$0xff] 0.0
      %3814 = vst [vmem:[#allocation3 + $0x128] sm:$0xff] 0.0
      %3815 = vst [vmem:[#allocation3 + $0x130] sm:$0xff] 0.0
      %3816 = vst [vmem:[#allocation3 + $0x138] sm:$0xff] 0.0
      %3817 = vst [vmem:[#allocation3 + $0x140] sm:$0xf] 0.0
      %3818 = vst [vmem:[#allocation3 + $0x13] sm:$0xff] %v3741
      %3819 = vst [vmem:[#allocation3 + $0x1b] sm:$0xff] %v3742
      %3820 = vst [vmem:[#allocation3 + $0x23] sm:$0xff] %v3743
      %3821 = vst [vmem:[#allocation3 + $0x2b] sm:$0xff] %v3744
      %3822 = vst [vmem:[#allocation3 + $0x33] sm:$0xff] %v3745
      %3823 = vst [vmem:[#allocation3 + $0x3b] sm:$0xff] %v3746
      %3824 = vst [vmem:[#allocation3 + $0x43] sm:$0xff] %v3747
      %3825 = vst [vmem:[#allocation3 + $0x4b] sm:$0xff] %v3748
      %3826 = vst [vmem:[#allocation3 + $0x53] sm:$0xff] %v3749
      %3827 = vst [vmem:[#allocation3 + $0x5b] sm:$0xff] %v3750
      %3828 = vst [vmem:[#allocation3 + $0x63] sm:$0xff] %v3751
      %3829 = vst [vmem:[#allocation3 + $0x6b] sm:$0xff] %v3752
      %3830 = vst [vmem:[#allocation3 + $0x73] sm:$0xff] %v3753
      %3831 = vst [vmem:[#allocation3 + $0x7b] sm:$0xff] %v3754
      %3832 = vst [vmem:[#allocation3 + $0x83] sm:$0xff] %v3755
      %3833 = vst [vmem:[#allocation3 + $0x8b] sm:$0xff] %v3756
      %3834 = vst [vmem:[#allocation3 + $0x93] sm:$0xff] %v3757
      %3835 = vst [vmem:[#allocation3 + $0x9b] sm:$0xff] %v3758
      %3836 = vst [vmem:[#allocation3 + $0xa3] sm:$0xff] %v3759
      %3837 = vst [vmem:[#allocation3 + $0xab] sm:$0xff] %v3760
      %3838 = vst [vmem:[#allocation3 + $0xb3] sm:$0xff] %v3761
      %3839 = vst [vmem:[#allocation3 + $0xbb] sm:$0xff] %v3762
      %3840 = vst [vmem:[#allocation3 + $0xc3] sm:$0xff] %v3763
      %3841 = vst [vmem:[#allocation3 + $0xcb] sm:$0xff] %v3764
      %3842 = vst [vmem:[#allocation3 + $0xd3] sm:$0xff] %v3765
      %3843 = vst [vmem:[#allocation3 + $0xdb] sm:$0xff] %v3766
      %3844 = vst [vmem:[#allocation3 + $0xe3] sm:$0xff] %v3767
      %3845 = vst [vmem:[#allocation3 + $0xeb] sm:$0xff] %v3768
      %3846 = vst [vmem:[#allocation3 + $0xf3] sm:$0xff] %v3769
      %3847 = vst [vmem:[#allocation3 + $0xfb] sm:$0xff] %v3770
      %3848 = vst [vmem:[#allocation3 + $0x103] sm:$0xff] %v3771
      %3849 = vst [vmem:[#allocation3 + $0x10b] sm:$0xff] %v3772
      %3850 = vst [vmem:[#allocation3 + $0x113] sm:$0xff] %v3773
      %3851 = vst [vmem:[#allocation3 + $0x11b] sm:$0xff] %v3774
      %3852 = vst [vmem:[#allocation3 + $0x123] sm:$0xff] %v3775
      %3853 = vst [vmem:[#allocation3 + $0x12b] sm:$0x3f] %v3776
      %v3854 = vld [vmem:[#allocation3] sm:$0xff]
      %v3855 = vld [vmem:[#allocation3 + $0x8] sm:$0xff]
      %v3856 = vld [vmem:[#allocation3 + $0x10] sm:$0xff]
      %v3857 = vld [vmem:[#allocation3 + $0x18] sm:$0xff]
      %v3858 = vld [vmem:[#allocation3 + $0x20] sm:$0xff]
      %v3859 = vld [vmem:[#allocation3 + $0x28] sm:$0xff]
      %v3860 = vld [vmem:[#allocation3 + $0x30] sm:$0xff]
      %v3861 = vld [vmem:[#allocation3 + $0x38] sm:$0xff]
      %v3862 = vld [vmem:[#allocation3 + $0x40] sm:$0xff]
      %v3863 = vld [vmem:[#allocation3 + $0x48] sm:$0xff]
      %v3864 = vld [vmem:[#allocation3 + $0x50] sm:$0xff]
      %v3865 = vld [vmem:[#allocation3 + $0x58] sm:$0xff]
      %v3866 = vld [vmem:[#allocation3 + $0x60] sm:$0xff]
      %v3867 = vld [vmem:[#allocation3 + $0x68] sm:$0xff]
      %v3868 = vld [vmem:[#allocation3 + $0x70] sm:$0xff]
      %v3869 = vld [vmem:[#allocation3 + $0x78] sm:$0xff]
      %v3870 = vld [vmem:[#allocation3 + $0x80] sm:$0xff]
      %v3871 = vld [vmem:[#allocation3 + $0x88] sm:$0xff]
      %v3872 = vld [vmem:[#allocation3 + $0x90] sm:$0xff]
      %v3873 = vld [vmem:[#allocation3 + $0x98] sm:$0xff]
      %v3874 = vld [vmem:[#allocation3 + $0xa0] sm:$0xff]
      %v3875 = vld [vmem:[#allocation3 + $0xa8] sm:$0xff]
      %v3876 = vld [vmem:[#allocation3 + $0xb0] sm:$0xff]
      %v3877 = vld [vmem:[#allocation3 + $0xb8] sm:$0xff]
      %v3878 = vld [vmem:[#allocation3 + $0xc0] sm:$0xff]
      %v3879 = vld [vmem:[#allocation3 + $0xc8] sm:$0xff]
      %v3880 = vld [vmem:[#allocation3 + $0xd0] sm:$0xff]
      %v3881 = vld [vmem:[#allocation3 + $0xd8] sm:$0xff]
      %v3882 = vld [vmem:[#allocation3 + $0xe0] sm:$0xff]
      %v3883 = vld [vmem:[#allocation3 + $0xe8] sm:$0xff]
      %v3884 = vld [vmem:[#allocation3 + $0xf0] sm:$0xff]
      %v3885 = vld [vmem:[#allocation3 + $0xf8] sm:$0xff]
      %v3886 = vld [vmem:[#allocation3 + $0x100] sm:$0xff]
      %v3887 = vld [vmem:[#allocation3 + $0x108] sm:$0xff]
      %v3888 = vld [vmem:[#allocation3 + $0x110] sm:$0xff]
      %v3889 = vld [vmem:[#allocation3 + $0x118] sm:$0x3f]
      %v3890 = vld [vmem:[%s5] sm:$0xff]
      %v3891 = vld [vmem:[%s5 + $0x8] sm:$0xff]
      %v3892 = vld [vmem:[%s5 + $0x10] sm:$0xff]
      %v3893 = vld [vmem:[%s5 + $0x18] sm:$0xff]
      %v3894 = vld [vmem:[%s5 + $0x20] sm:$0xff]
      %v3895 = vld [vmem:[%s5 + $0x28] sm:$0xff]
      %v3896 = vld [vmem:[%s5 + $0x30] sm:$0xff]
      %v3897 = vld [vmem:[%s5 + $0x38] sm:$0xff]
      %v3898 = vld [vmem:[%s5 + $0x40] sm:$0xff]
      %v3899 = vld [vmem:[%s5 + $0x48] sm:$0xff]
      %v3900 = vld [vmem:[%s5 + $0x50] sm:$0xff]
      %v3901 = vld [vmem:[%s5 + $0x58] sm:$0xff]
      %v3902 = vld [vmem:[%s5 + $0x60] sm:$0xff]
      %v3903 = vld [vmem:[%s5 + $0x68] sm:$0xff]
      %v3904 = vld [vmem:[%s5 + $0x70] sm:$0xff]
      %v3905 = vld [vmem:[%s5 + $0x78] sm:$0xff]
      %v3906 = vld [vmem:[#allocation3 + $0x1] sm:$0xff]
      %v3907 = vld [vmem:[#allocation3 + $0x9] sm:$0xff]
      %v3908 = vld [vmem:[#allocation3 + $0x11] sm:$0xff]
      %v3909 = vld [vmem:[#allocation3 + $0x19] sm:$0xff]
      %v3910 = vld [vmem:[#allocation3 + $0x21] sm:$0xff]
      %v3911 = vld [vmem:[#allocation3 + $0x29] sm:$0xff]
      %v3912 = vld [vmem:[#allocation3 + $0x31] sm:$0xff]
      %v3913 = vld [vmem:[#allocation3 + $0x39] sm:$0xff]
      %v3914 = vld [vmem:[#allocation3 + $0x41] sm:$0xff]
      %v3915 = vld [vmem:[#allocation3 + $0x49] sm:$0xff]
      %v3916 = vld [vmem:[#allocation3 + $0x51] sm:$0xff]
      %v3917 = vld [vmem:[#allocation3 + $0x59] sm:$0xff]
      %v3918 = vld [vmem:[#allocation3 + $0x61] sm:$0xff]
      %v3919 = vld [vmem:[#allocation3 + $0x69] sm:$0xff]
      %v3920 = vld [vmem:[#allocation3 + $0x71] sm:$0xff]
      %v3921 = vld [vmem:[#allocation3 + $0x79] sm:$0xff]
      %v3922 = vld [vmem:[#allocation3 + $0x81] sm:$0xff]
      %v3923 = vld [vmem:[#allocation3 + $0x89] sm:$0xff]
      %v3924 = vld [vmem:[#allocation3 + $0x91] sm:$0xff]
      %v3925 = vld [vmem:[#allocation3 + $0x99] sm:$0xff]
      %v3926 = vld [vmem:[#allocation3 + $0xa1] sm:$0xff]
      %v3927 = vld [vmem:[#allocation3 + $0xa9] sm:$0xff]
      %v3928 = vld [vmem:[#allocation3 + $0xb1] sm:$0xff]
      %v3929 = vld [vmem:[#allocation3 + $0xb9] sm:$0xff]
      %v3930 = vld [vmem:[#allocation3 + $0xc1] sm:$0xff]
      %v3931 = vld [vmem:[#allocation3 + $0xc9] sm:$0xff]
      %v3932 = vld [vmem:[#allocation3 + $0xd1] sm:$0xff]
      %v3933 = vld [vmem:[#allocation3 + $0xd9] sm:$0xff]
      %v3934 = vld [vmem:[#allocation3 + $0xe1] sm:$0xff]
      %v3935 = vld [vmem:[#allocation3 + $0xe9] sm:$0xff]
      %v3936 = vld [vmem:[#allocation3 + $0xf1] sm:$0xff]
      %v3937 = vld [vmem:[#allocation3 + $0xf9] sm:$0xff]
      %v3938 = vld [vmem:[#allocation3 + $0x101] sm:$0xff]
      %v3939 = vld [vmem:[#allocation3 + $0x109] sm:$0xff]
      %v3940 = vld [vmem:[#allocation3 + $0x111] sm:$0xff]
      %v3941 = vld [vmem:[#allocation3 + $0x119] sm:$0x3f]
      %s3942 = scalar_lea.vmem %s5, 128
      %v3943 = vld [vmem:[%s3942] sm:$0xff]
      %v3944 = vld [vmem:[%s3942 + $0x8] sm:$0xff]
      %v3945 = vld [vmem:[%s3942 + $0x10] sm:$0xff]
      %v3946 = vld [vmem:[%s3942 + $0x18] sm:$0xff]
      %v3947 = vld [vmem:[%s3942 + $0x20] sm:$0xff]
      %v3948 = vld [vmem:[%s3942 + $0x28] sm:$0xff]
      %v3949 = vld [vmem:[%s3942 + $0x30] sm:$0xff]
      %v3950 = vld [vmem:[%s3942 + $0x38] sm:$0xff]
      %v3951 = vld [vmem:[%s3942 + $0x40] sm:$0xff]
      %v3952 = vld [vmem:[%s3942 + $0x48] sm:$0xff]
      %v3953 = vld [vmem:[%s3942 + $0x50] sm:$0xff]
      %v3954 = vld [vmem:[%s3942 + $0x58] sm:$0xff]
      %v3955 = vld [vmem:[%s3942 + $0x60] sm:$0xff]
      %v3956 = vld [vmem:[%s3942 + $0x68] sm:$0xff]
      %v3957 = vld [vmem:[%s3942 + $0x70] sm:$0xff]
      %v3958 = vld [vmem:[%s3942 + $0x78] sm:$0xff]
      %3959 = vmatprep.subr.mxu0 0.0
      %3960 = vmatpush1.msra.mxu0 %v3943
      %3961 = vmatprep.subr.mxu0 0.0
      %3962 = vmatpush1.msra.mxu0 %v3944
      %3963 = vmatprep.subr.mxu0 0.0
      %3964 = vmatpush1.msra.mxu0 %v3945
      %3965 = vmatprep.subr.mxu0 0.0
      %3966 = vmatpush1.msra.mxu0 %v3946
      %3967 = vmatprep.subr.mxu0 0.0
      %3968 = vmatpush1.msra.mxu0 %v3947
      %3969 = vmatprep.subr.mxu0 0.0
      %3970 = vmatpush1.msra.mxu0 %v3948
      %3971 = vmatprep.subr.mxu0 0.0
      %3972 = vmatpush1.msra.mxu0 %v3949
      %3973 = vmatprep.subr.mxu0 0.0
      %3974 = vmatpush1.msra.mxu0 %v3950
      %3975 = vmatprep.subr.mxu0 0.0
      %3976 = vmatpush1.msra.mxu0 %v3951
      %3977 = vmatprep.subr.mxu0 0.0
      %3978 = vmatpush1.msra.mxu0 %v3952
      %3979 = vmatprep.subr.mxu0 0.0
      %3980 = vmatpush1.msra.mxu0 %v3953
      %3981 = vmatprep.subr.mxu0 0.0
      %3982 = vmatpush1.msra.mxu0 %v3954
      %3983 = vmatprep.subr.mxu0 0.0
      %3984 = vmatpush1.msra.mxu0 %v3955
      %3985 = vmatprep.subr.mxu0 0.0
      %3986 = vmatpush1.msra.mxu0 %v3956
      %3987 = vmatprep.subr.mxu0 0.0
      %3988 = vmatpush1.msra.mxu0 %v3957
      %3989 = vmatprep.subr.mxu0 0.0
      %3990 = vmatpush1.msra.mxu0 %v3958
      %3991 = vmatprep.subr.mxu0 0.0
      %3992 = vmatpush1.msra.mxu0 0.0
      %3993 = vmatprep.subr.mxu0 0.0
      %3994 = vmatpush1.msra.mxu0 0.0
      %3995 = vmatprep.subr.mxu0 0.0
      %3996 = vmatpush1.msra.mxu0 0.0
      %3997 = vmatprep.subr.mxu0 0.0
      %3998 = vmatpush1.msra.mxu0 0.0
      %3999 = vmatprep.subr.mxu0 0.0
      %4000 = vmatpush1.msra.mxu0 0.0
      %4001 = vmatprep.subr.mxu0 0.0
      %4002 = vmatpush1.msra.mxu0 0.0
      %4003 = vmatprep.subr.mxu0 0.0
      %4004 = vmatpush1.msra.mxu0 0.0
      %4005 = vmatprep.subr.mxu0 0.0
      %4006 = vmatpush1.msra.mxu0 0.0
      %4007 = vmatprep.subr.mxu0 0.0
      %4008 = vmatpush1.msra.mxu0 0.0
      %4009 = vmatprep.subr.mxu0 0.0
      %4010 = vmatpush1.msra.mxu0 0.0
      %4011 = vmatprep.subr.mxu0 0.0
      %4012 = vmatpush1.msra.mxu0 0.0
      %4013 = vmatprep.subr.mxu0 0.0
      %4014 = vmatpush1.msra.mxu0 0.0
      %4015 = vmatprep.subr.mxu0 0.0
      %4016 = vmatpush1.msra.mxu0 0.0
      %4017 = vmatprep.subr.mxu0 0.0
      %4018 = vmatpush1.msra.mxu0 0.0
      %4019 = vmatprep.subr.mxu0 0.0
      %4020 = vmatpush1.msra.mxu0 0.0
      %4021 = vmatprep.subr.mxu0 0.0
      %4022 = vmatpush1.msra.mxu0 0.0
      %4023 = vmatprep.mubr.f32.mxu0 0.0
      %4024 = vmatmul.mubr.f32.gmra.mrb[0].mxu0 %v3906
      %v4025 = vpop.f32.mrb[0].mxu0
      %v4026 = vadd.f32 0.0, %v4025
      %v4027 = vpop.f32.mrb[0].mxu0
      %4028 = vmatprep.mubr.f32.mxu0 0.0
      %4029 = vmatmul.mubr.f32.gmra.mrb[0].mxu0 %v3907
      %v4030 = vpop.f32.mrb[0].mxu0
      %v4031 = vadd.f32 0.0, %v4030
      %v4032 = vpop.f32.mrb[0].mxu0
      %4033 = vmatprep.mubr.f32.mxu0 0.0
      %4034 = vmatmul.mubr.f32.gmra.mrb[0].mxu0 %v3908
      %v4035 = vpop.f32.mrb[0].mxu0
      %v4036 = vadd.f32 0.0, %v4035
      %v4037 = vpop.f32.mrb[0].mxu0
      %4038 = vmatprep.mubr.f32.mxu0 0.0
      %4039 = vmatmul.mubr.f32.gmra.mrb[0].mxu0 %v3909
      %v4040 = vpop.f32.mrb[0].mxu0
      %v4041 = vadd.f32 0.0, %v4040
      %v4042 = vpop.f32.mrb[0].mxu0
      %4043 = vmatprep.mubr.f32.mxu0 0.0
      %4044 = vmatmul.mubr.f32.gmra.mrb[0].mxu0 %v3910
      %v4045 = vpop.f32.mrb[0].mxu0
      %v4046 = vadd.f32 0.0, %v4045
      %v4047 = vpop.f32.mrb[0].mxu0
      %4048 = vmatprep.mubr.f32.mxu0 0.0
      %4049 = vmatmul.mubr.f32.gmra.mrb[0].mxu0 %v3911
      %v4050 = vpop.f32.mrb[0].mxu0
      %v4051 = vadd.f32 0.0, %v4050
      %v4052 = vpop.f32.mrb[0].mxu0
      %4053 = vmatprep.mubr.f32.mxu0 0.0
      %4054 = vmatmul.mubr.f32.gmra.mrb[0].mxu0 %v3912
      %v4055 = vpop.f32.mrb[0].mxu0
      %v4056 = vadd.f32 0.0, %v4055
      %v4057 = vpop.f32.mrb[0].mxu0
      %4058 = vmatprep.mubr.f32.mxu0 0.0
      %4059 = vmatmul.mubr.f32.gmra.mrb[0].mxu0 %v3913
      %v4060 = vpop.f32.mrb[0].mxu0
      %v4061 = vadd.f32 0.0, %v4060
      %v4062 = vpop.f32.mrb[0].mxu0
      %4063 = vmatprep.mubr.f32.mxu0 0.0
      %4064 = vmatmul.mubr.f32.gmra.mrb[0].mxu0 %v3914
      %v4065 = vpop.f32.mrb[0].mxu0
      %v4066 = vadd.f32 0.0, %v4065
      %v4067 = vpop.f32.mrb[0].mxu0
      %4068 = vmatprep.mubr.f32.mxu0 0.0
      %4069 = vmatmul.mubr.f32.gmra.mrb[0].mxu0 %v3915
      %v4070 = vpop.f32.mrb[0].mxu0
      %v4071 = vadd.f32 0.0, %v4070
      %v4072 = vpop.f32.mrb[0].mxu0
      %4073 = vmatprep.mubr.f32.mxu0 0.0
      %4074 = vmatmul.mubr.f32.gmra.mrb[0].mxu0 %v3916
      %v4075 = vpop.f32.mrb[0].mxu0
      %v4076 = vadd.f32 0.0, %v4075
      %v4077 = vpop.f32.mrb[0].mxu0
      %4078 = vmatprep.mubr.f32.mxu0 0.0
      %4079 = vmatmul.mubr.f32.gmra.mrb[0].mxu0 %v3917
      %v4080 = vpop.f32.mrb[0].mxu0
      %v4081 = vadd.f32 0.0, %v4080
      %v4082 = vpop.f32.mrb[0].mxu0
      %4083 = vmatprep.mubr.f32.mxu0 0.0
      %4084 = vmatmul.mubr.f32.gmra.mrb[0].mxu0 %v3918
      %v4085 = vpop.f32.mrb[0].mxu0
      %v4086 = vadd.f32 0.0, %v4085
      %v4087 = vpop.f32.mrb[0].mxu0
      %4088 = vmatprep.mubr.f32.mxu0 0.0
      %4089 = vmatmul.mubr.f32.gmra.mrb[0].mxu0 %v3919
      %v4090 = vpop.f32.mrb[0].mxu0
      %v4091 = vadd.f32 0.0, %v4090
      %v4092 = vpop.f32.mrb[0].mxu0
      %4093 = vmatprep.mubr.f32.mxu0 0.0
      %4094 = vmatmul.mubr.f32.gmra.mrb[0].mxu0 %v3920
      %v4095 = vpop.f32.mrb[0].mxu0
      %v4096 = vadd.f32 0.0, %v4095
      %v4097 = vpop.f32.mrb[0].mxu0
      %4098 = vmatprep.mubr.f32.mxu0 0.0
      %4099 = vmatmul.mubr.f32.gmra.mrb[0].mxu0 %v3921
      %v4100 = vpop.f32.mrb[0].mxu0
      %v4101 = vadd.f32 0.0, %v4100
      %v4102 = vpop.f32.mrb[0].mxu0
      %4103 = vmatprep.mubr.f32.mxu0 0.0
      %4104 = vmatmul.mubr.f32.gmra.mrb[0].mxu0 %v3922
      %v4105 = vpop.f32.mrb[0].mxu0
      %v4106 = vadd.f32 0.0, %v4105
      %v4107 = vpop.f32.mrb[0].mxu0
      %4108 = vmatprep.mubr.f32.mxu0 0.0
      %4109 = vmatmul.mubr.f32.gmra.mrb[0].mxu0 %v3923
      %v4110 = vpop.f32.mrb[0].mxu0
      %v4111 = vadd.f32 0.0, %v4110
      %v4112 = vpop.f32.mrb[0].mxu0
      %4113 = vmatprep.mubr.f32.mxu0 0.0
      %4114 = vmatmul.mubr.f32.gmra.mrb[0].mxu0 %v3924
      %v4115 = vpop.f32.mrb[0].mxu0
      %v4116 = vadd.f32 0.0, %v4115
      %v4117 = vpop.f32.mrb[0].mxu0
      %4118 = vmatprep.mubr.f32.mxu0 0.0
      %4119 = vmatmul.mubr.f32.gmra.mrb[0].mxu0 %v3925
      %v4120 = vpop.f32.mrb[0].mxu0
      %v4121 = vadd.f32 0.0, %v4120
      %v4122 = vpop.f32.mrb[0].mxu0
      %4123 = vmatprep.mubr.f32.mxu0 0.0
      %4124 = vmatmul.mubr.f32.gmra.mrb[0].mxu0 %v3926
      %v4125 = vpop.f32.mrb[0].mxu0
      %v4126 = vadd.f32 0.0, %v4125
      %v4127 = vpop.f32.mrb[0].mxu0
      %4128 = vmatprep.mubr.f32.mxu0 0.0
      %4129 = vmatmul.mubr.f32.gmra.mrb[0].mxu0 %v3927
      %v4130 = vpop.f32.mrb[0].mxu0
      %v4131 = vadd.f32 0.0, %v4130
      %v4132 = vpop.f32.mrb[0].mxu0
      %4133 = vmatprep.mubr.f32.mxu0 0.0
      %4134 = vmatmul.mubr.f32.gmra.mrb[0].mxu0 %v3928
      %v4135 = vpop.f32.mrb[0].mxu0
      %v4136 = vadd.f32 0.0, %v4135
      %v4137 = vpop.f32.mrb[0].mxu0
      %4138 = vmatprep.mubr.f32.mxu0 0.0
      %4139 = vmatmul.mubr.f32.gmra.mrb[0].mxu0 %v3929
      %v4140 = vpop.f32.mrb[0].mxu0
      %v4141 = vadd.f32 0.0, %v4140
      %v4142 = vpop.f32.mrb[0].mxu0
      %4143 = vmatprep.mubr.f32.mxu0 0.0
      %4144 = vmatmul.mubr.f32.gmra.mrb[0].mxu0 %v3930
      %v4145 = vpop.f32.mrb[0].mxu0
      %v4146 = vadd.f32 0.0, %v4145
      %v4147 = vpop.f32.mrb[0].mxu0
      %4148 = vmatprep.mubr.f32.mxu0 0.0
      %4149 = vmatmul.mubr.f32.gmra.mrb[0].mxu0 %v3931
      %v4150 = vpop.f32.mrb[0].mxu0
      %v4151 = vadd.f32 0.0, %v4150
      %v4152 = vpop.f32.mrb[0].mxu0
      %4153 = vmatprep.mubr.f32.mxu0 0.0
      %4154 = vmatmul.mubr.f32.gmra.mrb[0].mxu0 %v3932
      %v4155 = vpop.f32.mrb[0].mxu0
      %v4156 = vadd.f32 0.0, %v4155
      %v4157 = vpop.f32.mrb[0].mxu0
      %4158 = vmatprep.mubr.f32.mxu0 0.0
      %4159 = vmatmul.mubr.f32.gmra.mrb[0].mxu0 %v3933
      %v4160 = vpop.f32.mrb[0].mxu0
      %v4161 = vadd.f32 0.0, %v4160
      %v4162 = vpop.f32.mrb[0].mxu0
      %4163 = vmatprep.mubr.f32.mxu0 0.0
      %4164 = vmatmul.mubr.f32.gmra.mrb[0].mxu0 %v3934
      %v4165 = vpop.f32.mrb[0].mxu0
      %v4166 = vadd.f32 0.0, %v4165
      %v4167 = vpop.f32.mrb[0].mxu0
      %4168 = vmatprep.mubr.f32.mxu0 0.0
      %4169 = vmatmul.mubr.f32.gmra.mrb[0].mxu0 %v3935
      %v4170 = vpop.f32.mrb[0].mxu0
      %v4171 = vadd.f32 0.0, %v4170
      %v4172 = vpop.f32.mrb[0].mxu0
      %4173 = vmatprep.mubr.f32.mxu0 0.0
      %4174 = vmatmul.mubr.f32.gmra.mrb[0].mxu0 %v3936
      %v4175 = vpop.f32.mrb[0].mxu0
      %v4176 = vadd.f32 0.0, %v4175
      %v4177 = vpop.f32.mrb[0].mxu0
      %4178 = vmatprep.mubr.f32.mxu0 0.0
      %4179 = vmatmul.mubr.f32.gmra.mrb[0].mxu0 %v3937
      %v4180 = vpop.f32.mrb[0].mxu0
      %v4181 = vadd.f32 0.0, %v4180
      %v4182 = vpop.f32.mrb[0].mxu0
      %4183 = vmatprep.mubr.f32.mxu0 0.0
      %4184 = vmatmul.mubr.f32.gmra.mrb[0].mxu0 %v3938
      %v4185 = vpop.f32.mrb[0].mxu0
      %v4186 = vadd.f32 0.0, %v4185
      %v4187 = vpop.f32.mrb[0].mxu0
      %4188 = vmatprep.mubr.f32.mxu0 0.0
      %4189 = vmatmul.mubr.f32.gmra.mrb[0].mxu0 %v3939
      %v4190 = vpop.f32.mrb[0].mxu0
      %v4191 = vadd.f32 0.0, %v4190
      %v4192 = vpop.f32.mrb[0].mxu0
      %4193 = vmatprep.mubr.f32.mxu0 0.0
      %4194 = vmatmul.mubr.f32.gmra.mrb[0].mxu0 %v3940
      %v4195 = vpop.f32.mrb[0].mxu0
      %v4196 = vadd.f32 0.0, %v4195
      %v4197 = vpop.f32.mrb[0].mxu0
      %4198 = vmatprep.mubr.f32.mxu0 0.0
      %4199 = vmatmul.mubr.f32.gmra.mrb[0].mxu0 %v3941
      %v4200 = vpop.f32.mrb[0].mxu0
      %v4201 = vadd.f32 0.0, %v4200
      %v4202 = vpop.f32.mrb[0].mxu0
      %4203 = vdwg.mxu0
      %4204 = vmatprep.subr.mxu0 0.0
      %4205 = vmatpush1.msra.mxu0 %v3890
      %4206 = vmatprep.subr.mxu0 0.0
      %4207 = vmatpush1.msra.mxu0 %v3891
      %4208 = vmatprep.subr.mxu0 0.0
      %4209 = vmatpush1.msra.mxu0 %v3892
      %4210 = vmatprep.subr.mxu0 0.0
      %4211 = vmatpush1.msra.mxu0 %v3893
      %4212 = vmatprep.subr.mxu0 0.0
      %4213 = vmatpush1.msra.mxu0 %v3894
      %4214 = vmatprep.subr.mxu0 0.0
      %4215 = vmatpush1.msra.mxu0 %v3895
      %4216 = vmatprep.subr.mxu0 0.0
      %4217 = vmatpush1.msra.mxu0 %v3896
      %4218 = vmatprep.subr.mxu0 0.0
      %4219 = vmatpush1.msra.mxu0 %v3897
      %4220 = vmatprep.subr.mxu0 0.0
      %4221 = vmatpush1.msra.mxu0 %v3898
      %4222 = vmatprep.subr.mxu0 0.0
      %4223 = vmatpush1.msra.mxu0 %v3899
      %4224 = vmatprep.subr.mxu0 0.0
      %4225 = vmatpush1.msra.mxu0 %v3900
      %4226 = vmatprep.subr.mxu0 0.0
      %4227 = vmatpush1.msra.mxu0 %v3901
      %4228 = vmatprep.subr.mxu0 0.0
      %4229 = vmatpush1.msra.mxu0 %v3902
      %4230 = vmatprep.subr.mxu0 0.0
      %4231 = vmatpush1.msra.mxu0 %v3903
      %4232 = vmatprep.subr.mxu0 0.0
      %4233 = vmatpush1.msra.mxu0 %v3904
      %4234 = vmatprep.subr.mxu0 0.0
      %4235 = vmatpush1.msra.mxu0 %v3905
      %4236 = vmatprep.subr.mxu0 0.0
      %4237 = vmatpush1.msra.mxu0 0.0
      %4238 = vmatprep.subr.mxu0 0.0
      %4239 = vmatpush1.msra.mxu0 0.0
      %4240 = vmatprep.subr.mxu0 0.0
      %4241 = vmatpush1.msra.mxu0 0.0
      %4242 = vmatprep.subr.mxu0 0.0
      %4243 = vmatpush1.msra.mxu0 0.0
      %4244 = vmatprep.subr.mxu0 0.0
      %4245 = vmatpush1.msra.mxu0 0.0
      %4246 = vmatprep.subr.mxu0 0.0
      %4247 = vmatpush1.msra.mxu0 0.0
      %4248 = vmatprep.subr.mxu0 0.0
      %4249 = vmatpush1.msra.mxu0 0.0
      %4250 = vmatprep.subr.mxu0 0.0
      %4251 = vmatpush1.msra.mxu0 0.0
      %4252 = vmatprep.subr.mxu0 0.0
      %4253 = vmatpush1.msra.mxu0 0.0
      %4254 = vmatprep.subr.mxu0 0.0
      %4255 = vmatpush1.msra.mxu0 0.0
      %4256 = vmatprep.subr.mxu0 0.0
      %4257 = vmatpush1.msra.mxu0 0.0
      %4258 = vmatprep.subr.mxu0 0.0
      %4259 = vmatpush1.msra.mxu0 0.0
      %4260 = vmatprep.subr.mxu0 0.0
      %4261 = vmatpush1.msra.mxu0 0.0
      %4262 = vmatprep.subr.mxu0 0.0
      %4263 = vmatpush1.msra.mxu0 0.0
      %4264 = vmatprep.subr.mxu0 0.0
      %4265 = vmatpush1.msra.mxu0 0.0
      %4266 = vmatprep.subr.mxu0 0.0
      %4267 = vmatpush1.msra.mxu0 0.0
      %4268 = vmatprep.mubr.f32.mxu0 0.0
      %4269 = vmatmul.mubr.f32.gmra.mrb[0].mxu0 %v3854
      %v4270 = vpop.f32.mrb[0].mxu0
      %v4271 = vadd.f32 %v4026, %v4270
      %v4272 = vpop.f32.mrb[0].mxu0
      %4273 = vmatprep.mubr.f32.mxu0 0.0
      %4274 = vmatmul.mubr.f32.gmra.mrb[0].mxu0 %v3855
      %v4275 = vpop.f32.mrb[0].mxu0
      %v4276 = vadd.f32 %v4031, %v4275
      %v4277 = vpop.f32.mrb[0].mxu0
      %4278 = vmatprep.mubr.f32.mxu0 0.0
      %4279 = vmatmul.mubr.f32.gmra.mrb[0].mxu0 %v3856
      %v4280 = vpop.f32.mrb[0].mxu0
      %v4281 = vadd.f32 %v4036, %v4280
      %v4282 = vpop.f32.mrb[0].mxu0
      %4283 = vmatprep.mubr.f32.mxu0 0.0
      %4284 = vmatmul.mubr.f32.gmra.mrb[0].mxu0 %v3857
      %v4285 = vpop.f32.mrb[0].mxu0
      %v4286 = vadd.f32 %v4041, %v4285
      %v4287 = vpop.f32.mrb[0].mxu0
      %4288 = vmatprep.mubr.f32.mxu0 0.0
      %4289 = vmatmul.mubr.f32.gmra.mrb[0].mxu0 %v3858
      %v4290 = vpop.f32.mrb[0].mxu0
      %v4291 = vadd.f32 %v4046, %v4290
      %v4292 = vpop.f32.mrb[0].mxu0
      %4293 = vmatprep.mubr.f32.mxu0 0.0
      %4294 = vmatmul.mubr.f32.gmra.mrb[0].mxu0 %v3859
      %v4295 = vpop.f32.mrb[0].mxu0
      %v4296 = vadd.f32 %v4051, %v4295
      %v4297 = vpop.f32.mrb[0].mxu0
      %4298 = vmatprep.mubr.f32.mxu0 0.0
      %4299 = vmatmul.mubr.f32.gmra.mrb[0].mxu0 %v3860
      %v4300 = vpop.f32.mrb[0].mxu0
      %v4301 = vadd.f32 %v4056, %v4300
      %v4302 = vpop.f32.mrb[0].mxu0
      %4303 = vmatprep.mubr.f32.mxu0 0.0
      %4304 = vmatmul.mubr.f32.gmra.mrb[0].mxu0 %v3861
      %v4305 = vpop.f32.mrb[0].mxu0
      %v4306 = vadd.f32 %v4061, %v4305
      %v4307 = vpop.f32.mrb[0].mxu0
      %4308 = vmatprep.mubr.f32.mxu0 0.0
      %4309 = vmatmul.mubr.f32.gmra.mrb[0].mxu0 %v3862
      %v4310 = vpop.f32.mrb[0].mxu0
      %v4311 = vadd.f32 %v4066, %v4310
      %v4312 = vpop.f32.mrb[0].mxu0
      %4313 = vmatprep.mubr.f32.mxu0 0.0
      %4314 = vmatmul.mubr.f32.gmra.mrb[0].mxu0 %v3863
      %v4315 = vpop.f32.mrb[0].mxu0
      %v4316 = vadd.f32 %v4071, %v4315
      %v4317 = vpop.f32.mrb[0].mxu0
      %4318 = vmatprep.mubr.f32.mxu0 0.0
      %4319 = vmatmul.mubr.f32.gmra.mrb[0].mxu0 %v3864
      %v4320 = vpop.f32.mrb[0].mxu0
      %v4321 = vadd.f32 %v4076, %v4320
      %v4322 = vpop.f32.mrb[0].mxu0
      %4323 = vmatprep.mubr.f32.mxu0 0.0
      %4324 = vmatmul.mubr.f32.gmra.mrb[0].mxu0 %v3865
      %v4325 = vpop.f32.mrb[0].mxu0
      %v4326 = vadd.f32 %v4081, %v4325
      %v4327 = vpop.f32.mrb[0].mxu0
      %4328 = vmatprep.mubr.f32.mxu0 0.0
      %4329 = vmatmul.mubr.f32.gmra.mrb[0].mxu0 %v3866
      %v4330 = vpop.f32.mrb[0].mxu0
      %v4331 = vadd.f32 %v4086, %v4330
      %v4332 = vpop.f32.mrb[0].mxu0
      %4333 = vmatprep.mubr.f32.mxu0 0.0
      %4334 = vmatmul.mubr.f32.gmra.mrb[0].mxu0 %v3867
      %v4335 = vpop.f32.mrb[0].mxu0
      %v4336 = vadd.f32 %v4091, %v4335
      %v4337 = vpop.f32.mrb[0].mxu0
      %4338 = vmatprep.mubr.f32.mxu0 0.0
      %4339 = vmatmul.mubr.f32.gmra.mrb[0].mxu0 %v3868
      %v4340 = vpop.f32.mrb[0].mxu0
      %v4341 = vadd.f32 %v4096, %v4340
      %v4342 = vpop.f32.mrb[0].mxu0
      %4343 = vmatprep.mubr.f32.mxu0 0.0
      %4344 = vmatmul.mubr.f32.gmra.mrb[0].mxu0 %v3869
      %v4345 = vpop.f32.mrb[0].mxu0
      %v4346 = vadd.f32 %v4101, %v4345
      %v4347 = vpop.f32.mrb[0].mxu0
      %4348 = vmatprep.mubr.f32.mxu0 0.0
      %4349 = vmatmul.mubr.f32.gmra.mrb[0].mxu0 %v3870
      %v4350 = vpop.f32.mrb[0].mxu0
      %v4351 = vadd.f32 %v4106, %v4350
      %v4352 = vpop.f32.mrb[0].mxu0
      %4353 = vmatprep.mubr.f32.mxu0 0.0
      %4354 = vmatmul.mubr.f32.gmra.mrb[0].mxu0 %v3871
      %v4355 = vpop.f32.mrb[0].mxu0
      %v4356 = vadd.f32 %v4111, %v4355
      %v4357 = vpop.f32.mrb[0].mxu0
      %4358 = vmatprep.mubr.f32.mxu0 0.0
      %4359 = vmatmul.mubr.f32.gmra.mrb[0].mxu0 %v3872
      %v4360 = vpop.f32.mrb[0].mxu0
      %v4361 = vadd.f32 %v4116, %v4360
      %v4362 = vpop.f32.mrb[0].mxu0
      %4363 = vmatprep.mubr.f32.mxu0 0.0
      %4364 = vmatmul.mubr.f32.gmra.mrb[0].mxu0 %v3873
      %v4365 = vpop.f32.mrb[0].mxu0
      %v4366 = vadd.f32 %v4121, %v4365
      %v4367 = vpop.f32.mrb[0].mxu0
      %4368 = vmatprep.mubr.f32.mxu0 0.0
      %4369 = vmatmul.mubr.f32.gmra.mrb[0].mxu0 %v3874
      %v4370 = vpop.f32.mrb[0].mxu0
      %v4371 = vadd.f32 %v4126, %v4370
      %v4372 = vpop.f32.mrb[0].mxu0
      %4373 = vmatprep.mubr.f32.mxu0 0.0
      %4374 = vmatmul.mubr.f32.gmra.mrb[0].mxu0 %v3875
      %v4375 = vpop.f32.mrb[0].mxu0
      %v4376 = vadd.f32 %v4131, %v4375
      %v4377 = vpop.f32.mrb[0].mxu0
      %4378 = vmatprep.mubr.f32.mxu0 0.0
      %4379 = vmatmul.mubr.f32.gmra.mrb[0].mxu0 %v3876
      %v4380 = vpop.f32.mrb[0].mxu0
      %v4381 = vadd.f32 %v4136, %v4380
      %v4382 = vpop.f32.mrb[0].mxu0
      %4383 = vmatprep.mubr.f32.mxu0 0.0
      %4384 = vmatmul.mubr.f32.gmra.mrb[0].mxu0 %v3877
      %v4385 = vpop.f32.mrb[0].mxu0
      %v4386 = vadd.f32 %v4141, %v4385
      %v4387 = vpop.f32.mrb[0].mxu0
      %4388 = vmatprep.mubr.f32.mxu0 0.0
      %4389 = vmatmul.mubr.f32.gmra.mrb[0].mxu0 %v3878
      %v4390 = vpop.f32.mrb[0].mxu0
      %v4391 = vadd.f32 %v4146, %v4390
      %v4392 = vpop.f32.mrb[0].mxu0
      %4393 = vmatprep.mubr.f32.mxu0 0.0
      %4394 = vmatmul.mubr.f32.gmra.mrb[0].mxu0 %v3879
      %v4395 = vpop.f32.mrb[0].mxu0
      %v4396 = vadd.f32 %v4151, %v4395
      %v4397 = vpop.f32.mrb[0].mxu0
      %4398 = vmatprep.mubr.f32.mxu0 0.0
      %4399 = vmatmul.mubr.f32.gmra.mrb[0].mxu0 %v3880
      %v4400 = vpop.f32.mrb[0].mxu0
      %v4401 = vadd.f32 %v4156, %v4400
      %v4402 = vpop.f32.mrb[0].mxu0
      %4403 = vmatprep.mubr.f32.mxu0 0.0
      %4404 = vmatmul.mubr.f32.gmra.mrb[0].mxu0 %v3881
      %v4405 = vpop.f32.mrb[0].mxu0
      %v4406 = vadd.f32 %v4161, %v4405
      %v4407 = vpop.f32.mrb[0].mxu0
      %4408 = vmatprep.mubr.f32.mxu0 0.0
      %4409 = vmatmul.mubr.f32.gmra.mrb[0].mxu0 %v3882
      %v4410 = vpop.f32.mrb[0].mxu0
      %v4411 = vadd.f32 %v4166, %v4410
      %v4412 = vpop.f32.mrb[0].mxu0
      %4413 = vmatprep.mubr.f32.mxu0 0.0
      %4414 = vmatmul.mubr.f32.gmra.mrb[0].mxu0 %v3883
      %v4415 = vpop.f32.mrb[0].mxu0
      %v4416 = vadd.f32 %v4171, %v4415
      %v4417 = vpop.f32.mrb[0].mxu0
      %4418 = vmatprep.mubr.f32.mxu0 0.0
      %4419 = vmatmul.mubr.f32.gmra.mrb[0].mxu0 %v3884
      %v4420 = vpop.f32.mrb[0].mxu0
      %v4421 = vadd.f32 %v4176, %v4420
      %v4422 = vpop.f32.mrb[0].mxu0
      %4423 = vmatprep.mubr.f32.mxu0 0.0
      %4424 = vmatmul.mubr.f32.gmra.mrb[0].mxu0 %v3885
      %v4425 = vpop.f32.mrb[0].mxu0
      %v4426 = vadd.f32 %v4181, %v4425
      %v4427 = vpop.f32.mrb[0].mxu0
      %4428 = vmatprep.mubr.f32.mxu0 0.0
      %4429 = vmatmul.mubr.f32.gmra.mrb[0].mxu0 %v3886
      %v4430 = vpop.f32.mrb[0].mxu0
      %v4431 = vadd.f32 %v4186, %v4430
      %v4432 = vpop.f32.mrb[0].mxu0
      %4433 = vmatprep.mubr.f32.mxu0 0.0
      %4434 = vmatmul.mubr.f32.gmra.mrb[0].mxu0 %v3887
      %v4435 = vpop.f32.mrb[0].mxu0
      %v4436 = vadd.f32 %v4191, %v4435
      %v4437 = vpop.f32.mrb[0].mxu0
      %4438 = vmatprep.mubr.f32.mxu0 0.0
      %4439 = vmatmul.mubr.f32.gmra.mrb[0].mxu0 %v3888
      %v4440 = vpop.f32.mrb[0].mxu0
      %v4441 = vadd.f32 %v4196, %v4440
      %v4442 = vpop.f32.mrb[0].mxu0
      %4443 = vmatprep.mubr.f32.mxu0 0.0
      %4444 = vmatmul.mubr.f32.gmra.mrb[0].mxu0 %v3889
      %v4445 = vpop.f32.mrb[0].mxu0
      %v4446 = vadd.f32 %v4201, %v4445
      %v4447 = vpop.f32.mrb[0].mxu0
      %4448 = vdwg.mxu0
      %v4449 = vld [vmem:[#allocation3 + $0x2] sm:$0xff]
      %v4450 = vld [vmem:[#allocation3 + $0xa] sm:$0xff]
      %v4451 = vld [vmem:[#allocation3 + $0x12] sm:$0xff]
      %v4452 = vld [vmem:[#allocation3 + $0x1a] sm:$0xff]
      %v4453 = vld [vmem:[#allocation3 + $0x22] sm:$0xff]
      %v4454 = vld [vmem:[#allocation3 + $0x2a] sm:$0xff]
      %v4455 = vld [vmem:[#allocation3 + $0x32] sm:$0xff]
      %v4456 = vld [vmem:[#allocation3 + $0x3a] sm:$0xff]
      %v4457 = vld [vmem:[#allocation3 + $0x42] sm:$0xff]
      %v4458 = vld [vmem:[#allocation3 + $0x4a] sm:$0xff]
      %v4459 = vld [vmem:[#allocation3 + $0x52] sm:$0xff]
      %v4460 = vld [vmem:[#allocation3 + $0x5a] sm:$0xff]
      %v4461 = vld [vmem:[#allocation3 + $0x62] sm:$0xff]
      %v4462 = vld [vmem:[#allocation3 + $0x6a] sm:$0xff]
      %v4463 = vld [vmem:[#allocation3 + $0x72] sm:$0xff]
      %v4464 = vld [vmem:[#allocation3 + $0x7a] sm:$0xff]
      %v4465 = vld [vmem:[#allocation3 + $0x82] sm:$0xff]
      %v4466 = vld [vmem:[#allocation3 + $0x8a] sm:$0xff]
      %v4467 = vld [vmem:[#allocation3 + $0x92] sm:$0xff]
      %v4468 = vld [vmem:[#allocation3 + $0x9a] sm:$0xff]
      %v4469 = vld [vmem:[#allocation3 + $0xa2] sm:$0xff]
      %v4470 = vld [vmem:[#allocation3 + $0xaa] sm:$0xff]
      %v4471 = vld [vmem:[#allocation3 + $0xb2] sm:$0xff]
      %v4472 = vld [vmem:[#allocation3 + $0xba] sm:$0xff]
      %v4473 = vld [vmem:[#allocation3 + $0xc2] sm:$0xff]
      %v4474 = vld [vmem:[#allocation3 + $0xca] sm:$0xff]
      %v4475 = vld [vmem:[#allocation3 + $0xd2] sm:$0xff]
      %v4476 = vld [vmem:[#allocation3 + $0xda] sm:$0xff]
      %v4477 = vld [vmem:[#allocation3 + $0xe2] sm:$0xff]
      %v4478 = vld [vmem:[#allocation3 + $0xea] sm:$0xff]
      %v4479 = vld [vmem:[#allocation3 + $0xf2] sm:$0xff]
      %v4480 = vld [vmem:[#allocation3 + $0xfa] sm:$0xff]
      %v4481 = vld [vmem:[#allocation3 + $0x102] sm:$0xff]
      %v4482 = vld [vmem:[#allocation3 + $0x10a] sm:$0xff]
      %v4483 = vld [vmem:[#allocation3 + $0x112] sm:$0xff]
      %v4484 = vld [vmem:[#allocation3 + $0x11a] sm:$0x3f]
      %s4485 = scalar_lea.vmem %s5, 256
      %v4486 = vld [vmem:[%s4485] sm:$0xff]
      %v4487 = vld [vmem:[%s4485 + $0x8] sm:$0xff]
      %v4488 = vld [vmem:[%s4485 + $0x10] sm:$0xff]
      %v4489 = vld [vmem:[%s4485 + $0x18] sm:$0xff]
      %v4490 = vld [vmem:[%s4485 + $0x20] sm:$0xff]
      %v4491 = vld [vmem:[%s4485 + $0x28] sm:$0xff]
      %v4492 = vld [vmem:[%s4485 + $0x30] sm:$0xff]
      %v4493 = vld [vmem:[%s4485 + $0x38] sm:$0xff]
      %v4494 = vld [vmem:[%s4485 + $0x40] sm:$0xff]
      %v4495 = vld [vmem:[%s4485 + $0x48] sm:$0xff]
      %v4496 = vld [vmem:[%s4485 + $0x50] sm:$0xff]
      %v4497 = vld [vmem:[%s4485 + $0x58] sm:$0xff]
      %v4498 = vld [vmem:[%s4485 + $0x60] sm:$0xff]
      %v4499 = vld [vmem:[%s4485 + $0x68] sm:$0xff]
      %v4500 = vld [vmem:[%s4485 + $0x70] sm:$0xff]
      %v4501 = vld [vmem:[%s4485 + $0x78] sm:$0xff]
      %4502 = vmatprep.subr.mxu0 0.0
      %4503 = vmatpush1.msra.mxu0 %v4486
      %4504 = vmatprep.subr.mxu0 0.0
      %4505 = vmatpush1.msra.mxu0 %v4487
      %4506 = vmatprep.subr.mxu0 0.0
      %4507 = vmatpush1.msra.mxu0 %v4488
      %4508 = vmatprep.subr.mxu0 0.0
      %4509 = vmatpush1.msra.mxu0 %v4489
      %4510 = vmatprep.subr.mxu0 0.0
      %4511 = vmatpush1.msra.mxu0 %v4490
      %4512 = vmatprep.subr.mxu0 0.0
      %4513 = vmatpush1.msra.mxu0 %v4491
      %4514 = vmatprep.subr.mxu0 0.0
      %4515 = vmatpush1.msra.mxu0 %v4492
      %4516 = vmatprep.subr.mxu0 0.0
      %4517 = vmatpush1.msra.mxu0 %v4493
      %4518 = vmatprep.subr.mxu0 0.0
      %4519 = vmatpush1.msra.mxu0 %v4494
      %4520 = vmatprep.subr.mxu0 0.0
      %4521 = vmatpush1.msra.mxu0 %v4495
      %4522 = vmatprep.subr.mxu0 0.0
      %4523 = vmatpush1.msra.mxu0 %v4496
      %4524 = vmatprep.subr.mxu0 0.0
      %4525 = vmatpush1.msra.mxu0 %v4497
      %4526 = vmatprep.subr.mxu0 0.0
      %4527 = vmatpush1.msra.mxu0 %v4498
      %4528 = vmatprep.subr.mxu0 0.0
      %4529 = vmatpush1.msra.mxu0 %v4499
      %4530 = vmatprep.subr.mxu0 0.0
      %4531 = vmatpush1.msra.mxu0 %v4500
      %4532 = vmatprep.subr.mxu0 0.0
      %4533 = vmatpush1.msra.mxu0 %v4501
      %4534 = vmatprep.subr.mxu0 0.0
      %4535 = vmatpush1.msra.mxu0 0.0
      %4536 = vmatprep.subr.mxu0 0.0
      %4537 = vmatpush1.msra.mxu0 0.0
      %4538 = vmatprep.subr.mxu0 0.0
      %4539 = vmatpush1.msra.mxu0 0.0
      %4540 = vmatprep.subr.mxu0 0.0
      %4541 = vmatpush1.msra.mxu0 0.0
      %4542 = vmatprep.subr.mxu0 0.0
      %4543 = vmatpush1.msra.mxu0 0.0
      %4544 = vmatprep.subr.mxu0 0.0
      %4545 = vmatpush1.msra.mxu0 0.0
      %4546 = vmatprep.subr.mxu0 0.0
      %4547 = vmatpush1.msra.mxu0 0.0
      %4548 = vmatprep.subr.mxu0 0.0
      %4549 = vmatpush1.msra.mxu0 0.0
      %4550 = vmatprep.subr.mxu0 0.0
      %4551 = vmatpush1.msra.mxu0 0.0
      %4552 = vmatprep.subr.mxu0 0.0
      %4553 = vmatpush1.msra.mxu0 0.0
      %4554 = vmatprep.subr.mxu0 0.0
      %4555 = vmatpush1.msra.mxu0 0.0
      %4556 = vmatprep.subr.mxu0 0.0
      %4557 = vmatpush1.msra.mxu0 0.0
      %4558 = vmatprep.subr.mxu0 0.0
      %4559 = vmatpush1.msra.mxu0 0.0
      %4560 = vmatprep.subr.mxu0 0.0
      %4561 = vmatpush1.msra.mxu0 0.0
      %4562 = vmatprep.subr.mxu0 0.0
      %4563 = vmatpush1.msra.mxu0 0.0
      %4564 = vmatprep.subr.mxu0 0.0
      %4565 = vmatpush1.msra.mxu0 0.0
      %4566 = vmatprep.mubr.f32.mxu0 0.0
      %4567 = vmatmul.mubr.f32.gmra.mrb[0].mxu0 %v4449
      %v4568 = vpop.f32.mrb[0].mxu0
      %v4569 = vadd.f32 0.0, %v4568
      %v4570 = vpop.f32.mrb[0].mxu0
      %4571 = vmatprep.mubr.f32.mxu0 0.0
      %4572 = vmatmul.mubr.f32.gmra.mrb[0].mxu0 %v4450
      %v4573 = vpop.f32.mrb[0].mxu0
      %v4574 = vadd.f32 0.0, %v4573
      %v4575 = vpop.f32.mrb[0].mxu0
      %4576 = vmatprep.mubr.f32.mxu0 0.0
      %4577 = vmatmul.mubr.f32.gmra.mrb[0].mxu0 %v4451
      %v4578 = vpop.f32.mrb[0].mxu0
      %v4579 = vadd.f32 0.0, %v4578
      %v4580 = vpop.f32.mrb[0].mxu0
      %4581 = vmatprep.mubr.f32.mxu0 0.0
      %4582 = vmatmul.mubr.f32.gmra.mrb[0].mxu0 %v4452
      %v4583 = vpop.f32.mrb[0].mxu0
      %v4584 = vadd.f32 0.0, %v4583
      %v4585 = vpop.f32.mrb[0].mxu0
      %4586 = vmatprep.mubr.f32.mxu0 0.0
      %4587 = vmatmul.mubr.f32.gmra.mrb[0].mxu0 %v4453
      %v4588 = vpop.f32.mrb[0].mxu0
      %v4589 = vadd.f32 0.0, %v4588
      %v4590 = vpop.f32.mrb[0].mxu0
      %4591 = vmatprep.mubr.f32.mxu0 0.0
      %4592 = vmatmul.mubr.f32.gmra.mrb[0].mxu0 %v4454
      %v4593 = vpop.f32.mrb[0].mxu0
      %v4594 = vadd.f32 0.0, %v4593
      %v4595 = vpop.f32.mrb[0].mxu0
      %4596 = vmatprep.mubr.f32.mxu0 0.0
      %4597 = vmatmul.mubr.f32.gmra.mrb[0].mxu0 %v4455
      %v4598 = vpop.f32.mrb[0].mxu0
      %v4599 = vadd.f32 0.0, %v4598
      %v4600 = vpop.f32.mrb[0].mxu0
      %4601 = vmatprep.mubr.f32.mxu0 0.0
      %4602 = vmatmul.mubr.f32.gmra.mrb[0].mxu0 %v4456
      %v4603 = vpop.f32.mrb[0].mxu0
      %v4604 = vadd.f32 0.0, %v4603
      %v4605 = vpop.f32.mrb[0].mxu0
      %4606 = vmatprep.mubr.f32.mxu0 0.0
      %4607 = vmatmul.mubr.f32.gmra.mrb[0].mxu0 %v4457
      %v4608 = vpop.f32.mrb[0].mxu0
      %v4609 = vadd.f32 0.0, %v4608
      %v4610 = vpop.f32.mrb[0].mxu0
      %4611 = vmatprep.mubr.f32.mxu0 0.0
      %4612 = vmatmul.mubr.f32.gmra.mrb[0].mxu0 %v4458
      %v4613 = vpop.f32.mrb[0].mxu0
      %v4614 = vadd.f32 0.0, %v4613
      %v4615 = vpop.f32.mrb[0].mxu0
      %4616 = vmatprep.mubr.f32.mxu0 0.0
      %4617 = vmatmul.mubr.f32.gmra.mrb[0].mxu0 %v4459
      %v4618 = vpop.f32.mrb[0].mxu0
      %v4619 = vadd.f32 0.0, %v4618
      %v4620 = vpop.f32.mrb[0].mxu0
      %4621 = vmatprep.mubr.f32.mxu0 0.0
      %4622 = vmatmul.mubr.f32.gmra.mrb[0].mxu0 %v4460
      %v4623 = vpop.f32.mrb[0].mxu0
      %v4624 = vadd.f32 0.0, %v4623
      %v4625 = vpop.f32.mrb[0].mxu0
      %4626 = vmatprep.mubr.f32.mxu0 0.0
      %4627 = vmatmul.mubr.f32.gmra.mrb[0].mxu0 %v4461
      %v4628 = vpop.f32.mrb[0].mxu0
      %v4629 = vadd.f32 0.0, %v4628
      %v4630 = vpop.f32.mrb[0].mxu0
      %4631 = vmatprep.mubr.f32.mxu0 0.0
      %4632 = vmatmul.mubr.f32.gmra.mrb[0].mxu0 %v4462
      %v4633 = vpop.f32.mrb[0].mxu0
      %v4634 = vadd.f32 0.0, %v4633
      %v4635 = vpop.f32.mrb[0].mxu0
      %4636 = vmatprep.mubr.f32.mxu0 0.0
      %4637 = vmatmul.mubr.f32.gmra.mrb[0].mxu0 %v4463
      %v4638 = vpop.f32.mrb[0].mxu0
      %v4639 = vadd.f32 0.0, %v4638
      %v4640 = vpop.f32.mrb[0].mxu0
      %4641 = vmatprep.mubr.f32.mxu0 0.0
      %4642 = vmatmul.mubr.f32.gmra.mrb[0].mxu0 %v4464
      %v4643 = vpop.f32.mrb[0].mxu0
      %v4644 = vadd.f32 0.0, %v4643
      %v4645 = vpop.f32.mrb[0].mxu0
      %4646 = vmatprep.mubr.f32.mxu0 0.0
      %4647 = vmatmul.mubr.f32.gmra.mrb[0].mxu0 %v4465
      %v4648 = vpop.f32.mrb[0].mxu0
      %v4649 = vadd.f32 0.0, %v4648
      %v4650 = vpop.f32.mrb[0].mxu0
      %4651 = vmatprep.mubr.f32.mxu0 0.0
      %4652 = vmatmul.mubr.f32.gmra.mrb[0].mxu0 %v4466
      %v4653 = vpop.f32.mrb[0].mxu0
      %v4654 = vadd.f32 0.0, %v4653
      %v4655 = vpop.f32.mrb[0].mxu0
      %4656 = vmatprep.mubr.f32.mxu0 0.0
      %4657 = vmatmul.mubr.f32.gmra.mrb[0].mxu0 %v4467
      %v4658 = vpop.f32.mrb[0].mxu0
      %v4659 = vadd.f32 0.0, %v4658
      %v4660 = vpop.f32.mrb[0].mxu0
      %4661 = vmatprep.mubr.f32.mxu0 0.0
      %4662 = vmatmul.mubr.f32.gmra.mrb[0].mxu0 %v4468
      %v4663 = vpop.f32.mrb[0].mxu0
      %v4664 = vadd.f32 0.0, %v4663
      %v4665 = vpop.f32.mrb[0].mxu0
      %4666 = vmatprep.mubr.f32.mxu0 0.0
      %4667 = vmatmul.mubr.f32.gmra.mrb[0].mxu0 %v4469
      %v4668 = vpop.f32.mrb[0].mxu0
      %v4669 = vadd.f32 0.0, %v4668
      %v4670 = vpop.f32.mrb[0].mxu0
      %4671 = vmatprep.mubr.f32.mxu0 0.0
      %4672 = vmatmul.mubr.f32.gmra.mrb[0].mxu0 %v4470
      %v4673 = vpop.f32.mrb[0].mxu0
      %v4674 = vadd.f32 0.0, %v4673
      %v4675 = vpop.f32.mrb[0].mxu0
      %4676 = vmatprep.mubr.f32.mxu0 0.0
      %4677 = vmatmul.mubr.f32.gmra.mrb[0].mxu0 %v4471
      %v4678 = vpop.f32.mrb[0].mxu0
      %v4679 = vadd.f32 0.0, %v4678
      %v4680 = vpop.f32.mrb[0].mxu0
      %4681 = vmatprep.mubr.f32.mxu0 0.0
      %4682 = vmatmul.mubr.f32.gmra.mrb[0].mxu0 %v4472
      %v4683 = vpop.f32.mrb[0].mxu0
      %v4684 = vadd.f32 0.0, %v4683
      %v4685 = vpop.f32.mrb[0].mxu0
      %4686 = vmatprep.mubr.f32.mxu0 0.0
      %4687 = vmatmul.mubr.f32.gmra.mrb[0].mxu0 %v4473
      %v4688 = vpop.f32.mrb[0].mxu0
      %v4689 = vadd.f32 0.0, %v4688
      %v4690 = vpop.f32.mrb[0].mxu0
      %4691 = vmatprep.mubr.f32.mxu0 0.0
      %4692 = vmatmul.mubr.f32.gmra.mrb[0].mxu0 %v4474
      %v4693 = vpop.f32.mrb[0].mxu0
      %v4694 = vadd.f32 0.0, %v4693
      %v4695 = vpop.f32.mrb[0].mxu0
      %4696 = vmatprep.mubr.f32.mxu0 0.0
      %4697 = vmatmul.mubr.f32.gmra.mrb[0].mxu0 %v4475
      %v4698 = vpop.f32.mrb[0].mxu0
      %v4699 = vadd.f32 0.0, %v4698
      %v4700 = vpop.f32.mrb[0].mxu0
      %4701 = vmatprep.mubr.f32.mxu0 0.0
      %4702 = vmatmul.mubr.f32.gmra.mrb[0].mxu0 %v4476
      %v4703 = vpop.f32.mrb[0].mxu0
      %v4704 = vadd.f32 0.0, %v4703
      %v4705 = vpop.f32.mrb[0].mxu0
      %4706 = vmatprep.mubr.f32.mxu0 0.0
      %4707 = vmatmul.mubr.f32.gmra.mrb[0].mxu0 %v4477
      %v4708 = vpop.f32.mrb[0].mxu0
      %v4709 = vadd.f32 0.0, %v4708
      %v4710 = vpop.f32.mrb[0].mxu0
      %4711 = vmatprep.mubr.f32.mxu0 0.0
      %4712 = vmatmul.mubr.f32.gmra.mrb[0].mxu0 %v4478
      %v4713 = vpop.f32.mrb[0].mxu0
      %v4714 = vadd.f32 0.0, %v4713
      %v4715 = vpop.f32.mrb[0].mxu0
      %4716 = vmatprep.mubr.f32.mxu0 0.0
      %4717 = vmatmul.mubr.f32.gmra.mrb[0].mxu0 %v4479
      %v4718 = vpop.f32.mrb[0].mxu0
      %v4719 = vadd.f32 0.0, %v4718
      %v4720 = vpop.f32.mrb[0].mxu0
      %4721 = vmatprep.mubr.f32.mxu0 0.0
      %4722 = vmatmul.mubr.f32.gmra.mrb[0].mxu0 %v4480
      %v4723 = vpop.f32.mrb[0].mxu0
      %v4724 = vadd.f32 0.0, %v4723
      %v4725 = vpop.f32.mrb[0].mxu0
      %4726 = vmatprep.mubr.f32.mxu0 0.0
      %4727 = vmatmul.mubr.f32.gmra.mrb[0].mxu0 %v4481
      %v4728 = vpop.f32.mrb[0].mxu0
      %v4729 = vadd.f32 0.0, %v4728
      %v4730 = vpop.f32.mrb[0].mxu0
      %4731 = vmatprep.mubr.f32.mxu0 0.0
      %4732 = vmatmul.mubr.f32.gmra.mrb[0].mxu0 %v4482
      %v4733 = vpop.f32.mrb[0].mxu0
      %v4734 = vadd.f32 0.0, %v4733
      %v4735 = vpop.f32.mrb[0].mxu0
      %4736 = vmatprep.mubr.f32.mxu0 0.0
      %4737 = vmatmul.mubr.f32.gmra.mrb[0].mxu0 %v4483
      %v4738 = vpop.f32.mrb[0].mxu0
      %v4739 = vadd.f32 0.0, %v4738
      %v4740 = vpop.f32.mrb[0].mxu0
      %4741 = vmatprep.mubr.f32.mxu0 0.0
      %4742 = vmatmul.mubr.f32.gmra.mrb[0].mxu0 %v4484
      %v4743 = vpop.f32.mrb[0].mxu0
      %v4744 = vadd.f32 0.0, %v4743
      %v4745 = vpop.f32.mrb[0].mxu0
      %4746 = vdwg.mxu0
      %v4747 = vadd.f32 %v4271, %v4569
      %v4748 = vadd.f32 %v4276, %v4574
      %v4749 = vadd.f32 %v4281, %v4579
      %v4750 = vadd.f32 %v4286, %v4584
      %v4751 = vadd.f32 %v4291, %v4589
      %v4752 = vadd.f32 %v4296, %v4594
      %v4753 = vadd.f32 %v4301, %v4599
      %v4754 = vadd.f32 %v4306, %v4604
      %v4755 = vadd.f32 %v4311, %v4609
      %v4756 = vadd.f32 %v4316, %v4614
      %v4757 = vadd.f32 %v4321, %v4619
      %v4758 = vadd.f32 %v4326, %v4624
      %v4759 = vadd.f32 %v4331, %v4629
      %v4760 = vadd.f32 %v4336, %v4634
      %v4761 = vadd.f32 %v4341, %v4639
      %v4762 = vadd.f32 %v4346, %v4644
      %v4763 = vadd.f32 %v4351, %v4649
      %v4764 = vadd.f32 %v4356, %v4654
      %v4765 = vadd.f32 %v4361, %v4659
      %v4766 = vadd.f32 %v4366, %v4664
      %v4767 = vadd.f32 %v4371, %v4669
      %v4768 = vadd.f32 %v4376, %v4674
      %v4769 = vadd.f32 %v4381, %v4679
      %v4770 = vadd.f32 %v4386, %v4684
      %v4771 = vadd.f32 %v4391, %v4689
      %v4772 = vadd.f32 %v4396, %v4694
      %v4773 = vadd.f32 %v4401, %v4699
      %v4774 = vadd.f32 %v4406, %v4704
      %v4775 = vadd.f32 %v4411, %v4709
      %v4776 = vadd.f32 %v4416, %v4714
      %v4777 = vadd.f32 %v4421, %v4719
      %v4778 = vadd.f32 %v4426, %v4724
      %v4779 = vadd.f32 %v4431, %v4729
      %v4780 = vadd.f32 %v4436, %v4734
      %v4781 = vadd.f32 %v4441, %v4739
      %v4782 = vadd.f32 %v4446, %v4744
      %v4783 = vld [vmem:[#allocation3 + $0x12] sm:$0xff]
      %v4784 = vld [vmem:[#allocation3 + $0x1a] sm:$0xff]
      %v4785 = vld [vmem:[#allocation3 + $0x22] sm:$0xff]
      %v4786 = vld [vmem:[#allocation3 + $0x2a] sm:$0xff]
      %v4787 = vld [vmem:[#allocation3 + $0x32] sm:$0xff]
      %v4788 = vld [vmem:[#allocation3 + $0x3a] sm:$0xff]
      %v4789 = vld [vmem:[#allocation3 + $0x42] sm:$0xff]
      %v4790 = vld [vmem:[#allocation3 + $0x4a] sm:$0xff]
      %v4791 = vld [vmem:[#allocation3 + $0x52] sm:$0xff]
      %v4792 = vld [vmem:[#allocation3 + $0x5a] sm:$0xff]
      %v4793 = vld [vmem:[#allocation3 + $0x62] sm:$0xff]
      %v4794 = vld [vmem:[#allocation3 + $0x6a] sm:$0xff]
      %v4795 = vld [vmem:[#allocation3 + $0x72] sm:$0xff]
      %v4796 = vld [vmem:[#allocation3 + $0x7a] sm:$0xff]
      %v4797 = vld [vmem:[#allocation3 + $0x82] sm:$0xff]
      %v4798 = vld [vmem:[#allocation3 + $0x8a] sm:$0xff]
      %v4799 = vld [vmem:[#allocation3 + $0x92] sm:$0xff]
      %v4800 = vld [vmem:[#allocation3 + $0x9a] sm:$0xff]
      %v4801 = vld [vmem:[#allocation3 + $0xa2] sm:$0xff]
      %v4802 = vld [vmem:[#allocation3 + $0xaa] sm:$0xff]
      %v4803 = vld [vmem:[#allocation3 + $0xb2] sm:$0xff]
      %v4804 = vld [vmem:[#allocation3 + $0xba] sm:$0xff]
      %v4805 = vld [vmem:[#allocation3 + $0xc2] sm:$0xff]
      %v4806 = vld [vmem:[#allocation3 + $0xca] sm:$0xff]
      %v4807 = vld [vmem:[#allocation3 + $0xd2] sm:$0xff]
      %v4808 = vld [vmem:[#allocation3 + $0xda] sm:$0xff]
      %v4809 = vld [vmem:[#allocation3 + $0xe2] sm:$0xff]
      %v4810 = vld [vmem:[#allocation3 + $0xea] sm:$0xff]
      %v4811 = vld [vmem:[#allocation3 + $0xf2] sm:$0xff]
      %v4812 = vld [vmem:[#allocation3 + $0xfa] sm:$0xff]
      %v4813 = vld [vmem:[#allocation3 + $0x102] sm:$0xff]
      %v4814 = vld [vmem:[#allocation3 + $0x10a] sm:$0xff]
      %v4815 = vld [vmem:[#allocation3 + $0x112] sm:$0xff]
      %v4816 = vld [vmem:[#allocation3 + $0x11a] sm:$0xff]
      %v4817 = vld [vmem:[#allocation3 + $0x122] sm:$0xff]
      %v4818 = vld [vmem:[#allocation3 + $0x12a] sm:$0x3f]
      %s4819 = scalar_lea.vmem %s5, 384
      %v4820 = vld [vmem:[%s4819] sm:$0xff]
      %v4821 = vld [vmem:[%s4819 + $0x8] sm:$0xff]
      %v4822 = vld [vmem:[%s4819 + $0x10] sm:$0xff]
      %v4823 = vld [vmem:[%s4819 + $0x18] sm:$0xff]
      %v4824 = vld [vmem:[%s4819 + $0x20] sm:$0xff]
      %v4825 = vld [vmem:[%s4819 + $0x28] sm:$0xff]
      %v4826 = vld [vmem:[%s4819 + $0x30] sm:$0xff]
      %v4827 = vld [vmem:[%s4819 + $0x38] sm:$0xff]
      %v4828 = vld [vmem:[%s4819 + $0x40] sm:$0xff]
      %v4829 = vld [vmem:[%s4819 + $0x48] sm:$0xff]
      %v4830 = vld [vmem:[%s4819 + $0x50] sm:$0xff]
      %v4831 = vld [vmem:[%s4819 + $0x58] sm:$0xff]
      %v4832 = vld [vmem:[%s4819 + $0x60] sm:$0xff]
      %v4833 = vld [vmem:[%s4819 + $0x68] sm:$0xff]
      %v4834 = vld [vmem:[%s4819 + $0x70] sm:$0xff]
      %v4835 = vld [vmem:[%s4819 + $0x78] sm:$0xff]
      %4836 = vmatprep.subr.mxu0 0.0
      %4837 = vmatpush1.msra.mxu0 %v4820
      %4838 = vmatprep.subr.mxu0 0.0
      %4839 = vmatpush1.msra.mxu0 %v4821
      %4840 = vmatprep.subr.mxu0 0.0
      %4841 = vmatpush1.msra.mxu0 %v4822
      %4842 = vmatprep.subr.mxu0 0.0
      %4843 = vmatpush1.msra.mxu0 %v4823
      %4844 = vmatprep.subr.mxu0 0.0
      %4845 = vmatpush1.msra.mxu0 %v4824
      %4846 = vmatprep.subr.mxu0 0.0
      %4847 = vmatpush1.msra.mxu0 %v4825
      %4848 = vmatprep.subr.mxu0 0.0
      %4849 = vmatpush1.msra.mxu0 %v4826
      %4850 = vmatprep.subr.mxu0 0.0
      %4851 = vmatpush1.msra.mxu0 %v4827
      %4852 = vmatprep.subr.mxu0 0.0
      %4853 = vmatpush1.msra.mxu0 %v4828
      %4854 = vmatprep.subr.mxu0 0.0
      %4855 = vmatpush1.msra.mxu0 %v4829
      %4856 = vmatprep.subr.mxu0 0.0
      %4857 = vmatpush1.msra.mxu0 %v4830
      %4858 = vmatprep.subr.mxu0 0.0
      %4859 = vmatpush1.msra.mxu0 %v4831
      %4860 = vmatprep.subr.mxu0 0.0
      %4861 = vmatpush1.msra.mxu0 %v4832
      %4862 = vmatprep.subr.mxu0 0.0
      %4863 = vmatpush1.msra.mxu0 %v4833
      %4864 = vmatprep.subr.mxu0 0.0
      %4865 = vmatpush1.msra.mxu0 %v4834
      %4866 = vmatprep.subr.mxu0 0.0
      %4867 = vmatpush1.msra.mxu0 %v4835
      %4868 = vmatprep.subr.mxu0 0.0
      %4869 = vmatpush1.msra.mxu0 0.0
      %4870 = vmatprep.subr.mxu0 0.0
      %4871 = vmatpush1.msra.mxu0 0.0
      %4872 = vmatprep.subr.mxu0 0.0
      %4873 = vmatpush1.msra.mxu0 0.0
      %4874 = vmatprep.subr.mxu0 0.0
      %4875 = vmatpush1.msra.mxu0 0.0
      %4876 = vmatprep.subr.mxu0 0.0
      %4877 = vmatpush1.msra.mxu0 0.0
      %4878 = vmatprep.subr.mxu0 0.0
      %4879 = vmatpush1.msra.mxu0 0.0
      %4880 = vmatprep.subr.mxu0 0.0
      %4881 = vmatpush1.msra.mxu0 0.0
      %4882 = vmatprep.subr.mxu0 0.0
      %4883 = vmatpush1.msra.mxu0 0.0
      %4884 = vmatprep.subr.mxu0 0.0
      %4885 = vmatpush1.msra.mxu0 0.0
      %4886 = vmatprep.subr.mxu0 0.0
      %4887 = vmatpush1.msra.mxu0 0.0
      %4888 = vmatprep.subr.mxu0 0.0
      %4889 = vmatpush1.msra.mxu0 0.0
      %4890 = vmatprep.subr.mxu0 0.0
      %4891 = vmatpush1.msra.mxu0 0.0
      %4892 = vmatprep.subr.mxu0 0.0
      %4893 = vmatpush1.msra.mxu0 0.0
      %4894 = vmatprep.subr.mxu0 0.0
      %4895 = vmatpush1.msra.mxu0 0.0
      %4896 = vmatprep.subr.mxu0 0.0
      %4897 = vmatpush1.msra.mxu0 0.0
      %4898 = vmatprep.subr.mxu0 0.0
      %4899 = vmatpush1.msra.mxu0 0.0
      %4900 = vmatprep.mubr.f32.mxu0 0.0
      %4901 = vmatmul.mubr.f32.gmra.mrb[0].mxu0 %v4783
      %v4902 = vpop.f32.mrb[0].mxu0
      %v4903 = vadd.f32 0.0, %v4902
      %v4904 = vpop.f32.mrb[0].mxu0
      %4905 = vmatprep.mubr.f32.mxu0 0.0
      %4906 = vmatmul.mubr.f32.gmra.mrb[0].mxu0 %v4784
      %v4907 = vpop.f32.mrb[0].mxu0
      %v4908 = vadd.f32 0.0, %v4907
      %v4909 = vpop.f32.mrb[0].mxu0
      %4910 = vmatprep.mubr.f32.mxu0 0.0
      %4911 = vmatmul.mubr.f32.gmra.mrb[0].mxu0 %v4785
      %v4912 = vpop.f32.mrb[0].mxu0
      %v4913 = vadd.f32 0.0, %v4912
      %v4914 = vpop.f32.mrb[0].mxu0
      %4915 = vmatprep.mubr.f32.mxu0 0.0
      %4916 = vmatmul.mubr.f32.gmra.mrb[0].mxu0 %v4786
      %v4917 = vpop.f32.mrb[0].mxu0
      %v4918 = vadd.f32 0.0, %v4917
      %v4919 = vpop.f32.mrb[0].mxu0
      %4920 = vmatprep.mubr.f32.mxu0 0.0
      %4921 = vmatmul.mubr.f32.gmra.mrb[0].mxu0 %v4787
      %v4922 = vpop.f32.mrb[0].mxu0
      %v4923 = vadd.f32 0.0, %v4922
      %v4924 = vpop.f32.mrb[0].mxu0
      %4925 = vmatprep.mubr.f32.mxu0 0.0
      %4926 = vmatmul.mubr.f32.gmra.mrb[0].mxu0 %v4788
      %v4927 = vpop.f32.mrb[0].mxu0
      %v4928 = vadd.f32 0.0, %v4927
      %v4929 = vpop.f32.mrb[0].mxu0
      %4930 = vmatprep.mubr.f32.mxu0 0.0
      %4931 = vmatmul.mubr.f32.gmra.mrb[0].mxu0 %v4789
      %v4932 = vpop.f32.mrb[0].mxu0
      %v4933 = vadd.f32 0.0, %v4932
      %v4934 = vpop.f32.mrb[0].mxu0
      %4935 = vmatprep.mubr.f32.mxu0 0.0
      %4936 = vmatmul.mubr.f32.gmra.mrb[0].mxu0 %v4790
      %v4937 = vpop.f32.mrb[0].mxu0
      %v4938 = vadd.f32 0.0, %v4937
      %v4939 = vpop.f32.mrb[0].mxu0
      %4940 = vmatprep.mubr.f32.mxu0 0.0
      %4941 = vmatmul.mubr.f32.gmra.mrb[0].mxu0 %v4791
      %v4942 = vpop.f32.mrb[0].mxu0
      %v4943 = vadd.f32 0.0, %v4942
      %v4944 = vpop.f32.mrb[0].mxu0
      %4945 = vmatprep.mubr.f32.mxu0 0.0
      %4946 = vmatmul.mubr.f32.gmra.mrb[0].mxu0 %v4792
      %v4947 = vpop.f32.mrb[0].mxu0
      %v4948 = vadd.f32 0.0, %v4947
      %v4949 = vpop.f32.mrb[0].mxu0
      %4950 = vmatprep.mubr.f32.mxu0 0.0
      %4951 = vmatmul.mubr.f32.gmra.mrb[0].mxu0 %v4793
      %v4952 = vpop.f32.mrb[0].mxu0
      %v4953 = vadd.f32 0.0, %v4952
      %v4954 = vpop.f32.mrb[0].mxu0
      %4955 = vmatprep.mubr.f32.mxu0 0.0
      %4956 = vmatmul.mubr.f32.gmra.mrb[0].mxu0 %v4794
      %v4957 = vpop.f32.mrb[0].mxu0
      %v4958 = vadd.f32 0.0, %v4957
      %v4959 = vpop.f32.mrb[0].mxu0
      %4960 = vmatprep.mubr.f32.mxu0 0.0
      %4961 = vmatmul.mubr.f32.gmra.mrb[0].mxu0 %v4795
      %v4962 = vpop.f32.mrb[0].mxu0
      %v4963 = vadd.f32 0.0, %v4962
      %v4964 = vpop.f32.mrb[0].mxu0
      %4965 = vmatprep.mubr.f32.mxu0 0.0
      %4966 = vmatmul.mubr.f32.gmra.mrb[0].mxu0 %v4796
      %v4967 = vpop.f32.mrb[0].mxu0
      %v4968 = vadd.f32 0.0, %v4967
      %v4969 = vpop.f32.mrb[0].mxu0
      %4970 = vmatprep.mubr.f32.mxu0 0.0
      %4971 = vmatmul.mubr.f32.gmra.mrb[0].mxu0 %v4797
      %v4972 = vpop.f32.mrb[0].mxu0
      %v4973 = vadd.f32 0.0, %v4972
      %v4974 = vpop.f32.mrb[0].mxu0
      %4975 = vmatprep.mubr.f32.mxu0 0.0
      %4976 = vmatmul.mubr.f32.gmra.mrb[0].mxu0 %v4798
      %v4977 = vpop.f32.mrb[0].mxu0
      %v4978 = vadd.f32 0.0, %v4977
      %v4979 = vpop.f32.mrb[0].mxu0
      %4980 = vmatprep.mubr.f32.mxu0 0.0
      %4981 = vmatmul.mubr.f32.gmra.mrb[0].mxu0 %v4799
      %v4982 = vpop.f32.mrb[0].mxu0
      %v4983 = vadd.f32 0.0, %v4982
      %v4984 = vpop.f32.mrb[0].mxu0
      %4985 = vmatprep.mubr.f32.mxu0 0.0
      %4986 = vmatmul.mubr.f32.gmra.mrb[0].mxu0 %v4800
      %v4987 = vpop.f32.mrb[0].mxu0
      %v4988 = vadd.f32 0.0, %v4987
      %v4989 = vpop.f32.mrb[0].mxu0
      %4990 = vmatprep.mubr.f32.mxu0 0.0
      %4991 = vmatmul.mubr.f32.gmra.mrb[0].mxu0 %v4801
      %v4992 = vpop.f32.mrb[0].mxu0
      %v4993 = vadd.f32 0.0, %v4992
      %v4994 = vpop.f32.mrb[0].mxu0
      %4995 = vmatprep.mubr.f32.mxu0 0.0
      %4996 = vmatmul.mubr.f32.gmra.mrb[0].mxu0 %v4802
      %v4997 = vpop.f32.mrb[0].mxu0
      %v4998 = vadd.f32 0.0, %v4997
      %v4999 = vpop.f32.mrb[0].mxu0
      %5000 = vmatprep.mubr.f32.mxu0 0.0
      %5001 = vmatmul.mubr.f32.gmra.mrb[0].mxu0 %v4803
      %v5002 = vpop.f32.mrb[0].mxu0
      %v5003 = vadd.f32 0.0, %v5002
      %v5004 = vpop.f32.mrb[0].mxu0
      %5005 = vmatprep.mubr.f32.mxu0 0.0
      %5006 = vmatmul.mubr.f32.gmra.mrb[0].mxu0 %v4804
      %v5007 = vpop.f32.mrb[0].mxu0
      %v5008 = vadd.f32 0.0, %v5007
      %v5009 = vpop.f32.mrb[0].mxu0
      %5010 = vmatprep.mubr.f32.mxu0 0.0
      %5011 = vmatmul.mubr.f32.gmra.mrb[0].mxu0 %v4805
      %v5012 = vpop.f32.mrb[0].mxu0
      %v5013 = vadd.f32 0.0, %v5012
      %v5014 = vpop.f32.mrb[0].mxu0
      %5015 = vmatprep.mubr.f32.mxu0 0.0
      %5016 = vmatmul.mubr.f32.gmra.mrb[0].mxu0 %v4806
      %v5017 = vpop.f32.mrb[0].mxu0
      %v5018 = vadd.f32 0.0, %v5017
      %v5019 = vpop.f32.mrb[0].mxu0
      %5020 = vmatprep.mubr.f32.mxu0 0.0
      %5021 = vmatmul.mubr.f32.gmra.mrb[0].mxu0 %v4807
      %v5022 = vpop.f32.mrb[0].mxu0
      %v5023 = vadd.f32 0.0, %v5022
      %v5024 = vpop.f32.mrb[0].mxu0
      %5025 = vmatprep.mubr.f32.mxu0 0.0
      %5026 = vmatmul.mubr.f32.gmra.mrb[0].mxu0 %v4808
      %v5027 = vpop.f32.mrb[0].mxu0
      %v5028 = vadd.f32 0.0, %v5027
      %v5029 = vpop.f32.mrb[0].mxu0
      %5030 = vmatprep.mubr.f32.mxu0 0.0
      %5031 = vmatmul.mubr.f32.gmra.mrb[0].mxu0 %v4809
      %v5032 = vpop.f32.mrb[0].mxu0
      %v5033 = vadd.f32 0.0, %v5032
      %v5034 = vpop.f32.mrb[0].mxu0
      %5035 = vmatprep.mubr.f32.mxu0 0.0
      %5036 = vmatmul.mubr.f32.gmra.mrb[0].mxu0 %v4810
      %v5037 = vpop.f32.mrb[0].mxu0
      %v5038 = vadd.f32 0.0, %v5037
      %v5039 = vpop.f32.mrb[0].mxu0
      %5040 = vmatprep.mubr.f32.mxu0 0.0
      %5041 = vmatmul.mubr.f32.gmra.mrb[0].mxu0 %v4811
      %v5042 = vpop.f32.mrb[0].mxu0
      %v5043 = vadd.f32 0.0, %v5042
      %v5044 = vpop.f32.mrb[0].mxu0
      %5045 = vmatprep.mubr.f32.mxu0 0.0
      %5046 = vmatmul.mubr.f32.gmra.mrb[0].mxu0 %v4812
      %v5047 = vpop.f32.mrb[0].mxu0
      %v5048 = vadd.f32 0.0, %v5047
      %v5049 = vpop.f32.mrb[0].mxu0
      %5050 = vmatprep.mubr.f32.mxu0 0.0
      %5051 = vmatmul.mubr.f32.gmra.mrb[0].mxu0 %v4813
      %v5052 = vpop.f32.mrb[0].mxu0
      %v5053 = vadd.f32 0.0, %v5052
      %v5054 = vpop.f32.mrb[0].mxu0
      %5055 = vmatprep.mubr.f32.mxu0 0.0
      %5056 = vmatmul.mubr.f32.gmra.mrb[0].mxu0 %v4814
      %v5057 = vpop.f32.mrb[0].mxu0
      %v5058 = vadd.f32 0.0, %v5057
      %v5059 = vpop.f32.mrb[0].mxu0
      %5060 = vmatprep.mubr.f32.mxu0 0.0
      %5061 = vmatmul.mubr.f32.gmra.mrb[0].mxu0 %v4815
      %v5062 = vpop.f32.mrb[0].mxu0
      %v5063 = vadd.f32 0.0, %v5062
      %v5064 = vpop.f32.mrb[0].mxu0
      %5065 = vmatprep.mubr.f32.mxu0 0.0
      %5066 = vmatmul.mubr.f32.gmra.mrb[0].mxu0 %v4816
      %v5067 = vpop.f32.mrb[0].mxu0
      %v5068 = vadd.f32 0.0, %v5067
      %v5069 = vpop.f32.mrb[0].mxu0
      %5070 = vmatprep.mubr.f32.mxu0 0.0
      %5071 = vmatmul.mubr.f32.gmra.mrb[0].mxu0 %v4817
      %v5072 = vpop.f32.mrb[0].mxu0
      %v5073 = vadd.f32 0.0, %v5072
      %v5074 = vpop.f32.mrb[0].mxu0
      %5075 = vmatprep.mubr.f32.mxu0 0.0
      %5076 = vmatmul.mubr.f32.gmra.mrb[0].mxu0 %v4818
      %v5077 = vpop.f32.mrb[0].mxu0
      %v5078 = vadd.f32 0.0, %v5077
      %v5079 = vpop.f32.mrb[0].mxu0
      %5080 = vdwg.mxu0
      %v5081 = vadd.f32 %v4747, %v4903
      %v5082 = vadd.f32 %v4748, %v4908
      %v5083 = vadd.f32 %v4749, %v4913
      %v5084 = vadd.f32 %v4750, %v4918
      %v5085 = vadd.f32 %v4751, %v4923
      %v5086 = vadd.f32 %v4752, %v4928
      %v5087 = vadd.f32 %v4753, %v4933
      %v5088 = vadd.f32 %v4754, %v4938
      %v5089 = vadd.f32 %v4755, %v4943
      %v5090 = vadd.f32 %v4756, %v4948
      %v5091 = vadd.f32 %v4757, %v4953
      %v5092 = vadd.f32 %v4758, %v4958
      %v5093 = vadd.f32 %v4759, %v4963
      %v5094 = vadd.f32 %v4760, %v4968
      %v5095 = vadd.f32 %v4761, %v4973
      %v5096 = vadd.f32 %v4762, %v4978
      %v5097 = vadd.f32 %v4763, %v4983
      %v5098 = vadd.f32 %v4764, %v4988
      %v5099 = vadd.f32 %v4765, %v4993
      %v5100 = vadd.f32 %v4766, %v4998
      %v5101 = vadd.f32 %v4767, %v5003
      %v5102 = vadd.f32 %v4768, %v5008
      %v5103 = vadd.f32 %v4769, %v5013
      %v5104 = vadd.f32 %v4770, %v5018
      %v5105 = vadd.f32 %v4771, %v5023
      %v5106 = vadd.f32 %v4772, %v5028
      %v5107 = vadd.f32 %v4773, %v5033
      %v5108 = vadd.f32 %v4774, %v5038
      %v5109 = vadd.f32 %v4775, %v5043
      %v5110 = vadd.f32 %v4776, %v5048
      %v5111 = vadd.f32 %v4777, %v5053
      %v5112 = vadd.f32 %v4778, %v5058
      %v5113 = vadd.f32 %v4779, %v5063
      %v5114 = vadd.f32 %v4780, %v5068
      %v5115 = vadd.f32 %v4781, %v5073
      %v5116 = vadd.f32 %v4782, %v5078
      %v5117 = vld [vmem:[#allocation3 + $0x13] sm:$0xff]
      %v5118 = vld [vmem:[#allocation3 + $0x1b] sm:$0xff]
      %v5119 = vld [vmem:[#allocation3 + $0x23] sm:$0xff]
      %v5120 = vld [vmem:[#allocation3 + $0x2b] sm:$0xff]
      %v5121 = vld [vmem:[#allocation3 + $0x33] sm:$0xff]
      %v5122 = vld [vmem:[#allocation3 + $0x3b] sm:$0xff]
      %v5123 = vld [vmem:[#allocation3 + $0x43] sm:$0xff]
      %v5124 = vld [vmem:[#allocation3 + $0x4b] sm:$0xff]
      %v5125 = vld [vmem:[#allocation3 + $0x53] sm:$0xff]
      %v5126 = vld [vmem:[#allocation3 + $0x5b] sm:$0xff]
      %v5127 = vld [vmem:[#allocation3 + $0x63] sm:$0xff]
      %v5128 = vld [vmem:[#allocation3 + $0x6b] sm:$0xff]
      %v5129 = vld [vmem:[#allocation3 + $0x73] sm:$0xff]
      %v5130 = vld [vmem:[#allocation3 + $0x7b] sm:$0xff]
      %v5131 = vld [vmem:[#allocation3 + $0x83] sm:$0xff]
      %v5132 = vld [vmem:[#allocation3 + $0x8b] sm:$0xff]
      %v5133 = vld [vmem:[#allocation3 + $0x93] sm:$0xff]
      %v5134 = vld [vmem:[#allocation3 + $0x9b] sm:$0xff]
      %v5135 = vld [vmem:[#allocation3 + $0xa3] sm:$0xff]
      %v5136 = vld [vmem:[#allocation3 + $0xab] sm:$0xff]
      %v5137 = vld [vmem:[#allocation3 + $0xb3] sm:$0xff]
      %v5138 = vld [vmem:[#allocation3 + $0xbb] sm:$0xff]
      %v5139 = vld [vmem:[#allocation3 + $0xc3] sm:$0xff]
      %v5140 = vld [vmem:[#allocation3 + $0xcb] sm:$0xff]
      %v5141 = vld [vmem:[#allocation3 + $0xd3] sm:$0xff]
      %v5142 = vld [vmem:[#allocation3 + $0xdb] sm:$0xff]
      %v5143 = vld [vmem:[#allocation3 + $0xe3] sm:$0xff]
      %v5144 = vld [vmem:[#allocation3 + $0xeb] sm:$0xff]
      %v5145 = vld [vmem:[#allocation3 + $0xf3] sm:$0xff]
      %v5146 = vld [vmem:[#allocation3 + $0xfb] sm:$0xff]
      %v5147 = vld [vmem:[#allocation3 + $0x103] sm:$0xff]
      %v5148 = vld [vmem:[#allocation3 + $0x10b] sm:$0xff]
      %v5149 = vld [vmem:[#allocation3 + $0x113] sm:$0xff]
      %v5150 = vld [vmem:[#allocation3 + $0x11b] sm:$0xff]
      %v5151 = vld [vmem:[#allocation3 + $0x123] sm:$0xff]
      %v5152 = vld [vmem:[#allocation3 + $0x12b] sm:$0x3f]
      %s5153 = scalar_lea.vmem %s5, 512
      %v5154 = vld [vmem:[%s5153] sm:$0xff]
      %v5155 = vld [vmem:[%s5153 + $0x8] sm:$0xff]
      %v5156 = vld [vmem:[%s5153 + $0x10] sm:$0xff]
      %v5157 = vld [vmem:[%s5153 + $0x18] sm:$0xff]
      %v5158 = vld [vmem:[%s5153 + $0x20] sm:$0xff]
      %v5159 = vld [vmem:[%s5153 + $0x28] sm:$0xff]
      %v5160 = vld [vmem:[%s5153 + $0x30] sm:$0xff]
      %v5161 = vld [vmem:[%s5153 + $0x38] sm:$0xff]
      %v5162 = vld [vmem:[%s5153 + $0x40] sm:$0xff]
      %v5163 = vld [vmem:[%s5153 + $0x48] sm:$0xff]
      %v5164 = vld [vmem:[%s5153 + $0x50] sm:$0xff]
      %v5165 = vld [vmem:[%s5153 + $0x58] sm:$0xff]
      %v5166 = vld [vmem:[%s5153 + $0x60] sm:$0xff]
      %v5167 = vld [vmem:[%s5153 + $0x68] sm:$0xff]
      %v5168 = vld [vmem:[%s5153 + $0x70] sm:$0xff]
      %v5169 = vld [vmem:[%s5153 + $0x78] sm:$0xff]
      %5170 = vmatprep.subr.mxu0 0.0
      %5171 = vmatpush1.msra.mxu0 %v5154
      %5172 = vmatprep.subr.mxu0 0.0
      %5173 = vmatpush1.msra.mxu0 %v5155
      %5174 = vmatprep.subr.mxu0 0.0
      %5175 = vmatpush1.msra.mxu0 %v5156
      %5176 = vmatprep.subr.mxu0 0.0
      %5177 = vmatpush1.msra.mxu0 %v5157
      %5178 = vmatprep.subr.mxu0 0.0
      %5179 = vmatpush1.msra.mxu0 %v5158
      %5180 = vmatprep.subr.mxu0 0.0
      %5181 = vmatpush1.msra.mxu0 %v5159
      %5182 = vmatprep.subr.mxu0 0.0
      %5183 = vmatpush1.msra.mxu0 %v5160
      %5184 = vmatprep.subr.mxu0 0.0
      %5185 = vmatpush1.msra.mxu0 %v5161
      %5186 = vmatprep.subr.mxu0 0.0
      %5187 = vmatpush1.msra.mxu0 %v5162
      %5188 = vmatprep.subr.mxu0 0.0
      %5189 = vmatpush1.msra.mxu0 %v5163
      %5190 = vmatprep.subr.mxu0 0.0
      %5191 = vmatpush1.msra.mxu0 %v5164
      %5192 = vmatprep.subr.mxu0 0.0
      %5193 = vmatpush1.msra.mxu0 %v5165
      %5194 = vmatprep.subr.mxu0 0.0
      %5195 = vmatpush1.msra.mxu0 %v5166
      %5196 = vmatprep.subr.mxu0 0.0
      %5197 = vmatpush1.msra.mxu0 %v5167
      %5198 = vmatprep.subr.mxu0 0.0
      %5199 = vmatpush1.msra.mxu0 %v5168
      %5200 = vmatprep.subr.mxu0 0.0
      %5201 = vmatpush1.msra.mxu0 %v5169
      %5202 = vmatprep.subr.mxu0 0.0
      %5203 = vmatpush1.msra.mxu0 0.0
      %5204 = vmatprep.subr.mxu0 0.0
      %5205 = vmatpush1.msra.mxu0 0.0
      %5206 = vmatprep.subr.mxu0 0.0
      %5207 = vmatpush1.msra.mxu0 0.0
      %5208 = vmatprep.subr.mxu0 0.0
      %5209 = vmatpush1.msra.mxu0 0.0
      %5210 = vmatprep.subr.mxu0 0.0
      %5211 = vmatpush1.msra.mxu0 0.0
      %5212 = vmatprep.subr.mxu0 0.0
      %5213 = vmatpush1.msra.mxu0 0.0
      %5214 = vmatprep.subr.mxu0 0.0
      %5215 = vmatpush1.msra.mxu0 0.0
      %5216 = vmatprep.subr.mxu0 0.0
      %5217 = vmatpush1.msra.mxu0 0.0
      %5218 = vmatprep.subr.mxu0 0.0
      %5219 = vmatpush1.msra.mxu0 0.0
      %5220 = vmatprep.subr.mxu0 0.0
      %5221 = vmatpush1.msra.mxu0 0.0
      %5222 = vmatprep.subr.mxu0 0.0
      %5223 = vmatpush1.msra.mxu0 0.0
      %5224 = vmatprep.subr.mxu0 0.0
      %5225 = vmatpush1.msra.mxu0 0.0
      %5226 = vmatprep.subr.mxu0 0.0
      %5227 = vmatpush1.msra.mxu0 0.0
      %5228 = vmatprep.subr.mxu0 0.0
      %5229 = vmatpush1.msra.mxu0 0.0
      %5230 = vmatprep.subr.mxu0 0.0
      %5231 = vmatpush1.msra.mxu0 0.0
      %5232 = vmatprep.subr.mxu0 0.0
      %5233 = vmatpush1.msra.mxu0 0.0
      %5234 = vmatprep.mubr.f32.mxu0 0.0
      %5235 = vmatmul.mubr.f32.gmra.mrb[0].mxu0 %v5117
      %v5236 = vpop.f32.mrb[0].mxu0
      %v5237 = vadd.f32 0.0, %v5236
      %v5238 = vpop.f32.mrb[0].mxu0
      %5239 = vmatprep.mubr.f32.mxu0 0.0
      %5240 = vmatmul.mubr.f32.gmra.mrb[0].mxu0 %v5118
      %v5241 = vpop.f32.mrb[0].mxu0
      %v5242 = vadd.f32 0.0, %v5241
      %v5243 = vpop.f32.mrb[0].mxu0
      %5244 = vmatprep.mubr.f32.mxu0 0.0
      %5245 = vmatmul.mubr.f32.gmra.mrb[0].mxu0 %v5119
      %v5246 = vpop.f32.mrb[0].mxu0
      %v5247 = vadd.f32 0.0, %v5246
      %v5248 = vpop.f32.mrb[0].mxu0
      %5249 = vmatprep.mubr.f32.mxu0 0.0
      %5250 = vmatmul.mubr.f32.gmra.mrb[0].mxu0 %v5120
      %v5251 = vpop.f32.mrb[0].mxu0
      %v5252 = vadd.f32 0.0, %v5251
      %v5253 = vpop.f32.mrb[0].mxu0
      %5254 = vmatprep.mubr.f32.mxu0 0.0
      %5255 = vmatmul.mubr.f32.gmra.mrb[0].mxu0 %v5121
      %v5256 = vpop.f32.mrb[0].mxu0
      %v5257 = vadd.f32 0.0, %v5256
      %v5258 = vpop.f32.mrb[0].mxu0
      %5259 = vmatprep.mubr.f32.mxu0 0.0
      %5260 = vmatmul.mubr.f32.gmra.mrb[0].mxu0 %v5122
      %v5261 = vpop.f32.mrb[0].mxu0
      %v5262 = vadd.f32 0.0, %v5261
      %v5263 = vpop.f32.mrb[0].mxu0
      %5264 = vmatprep.mubr.f32.mxu0 0.0
      %5265 = vmatmul.mubr.f32.gmra.mrb[0].mxu0 %v5123
      %v5266 = vpop.f32.mrb[0].mxu0
      %v5267 = vadd.f32 0.0, %v5266
      %v5268 = vpop.f32.mrb[0].mxu0
      %5269 = vmatprep.mubr.f32.mxu0 0.0
      %5270 = vmatmul.mubr.f32.gmra.mrb[0].mxu0 %v5124
      %v5271 = vpop.f32.mrb[0].mxu0
      %v5272 = vadd.f32 0.0, %v5271
      %v5273 = vpop.f32.mrb[0].mxu0
      %5274 = vmatprep.mubr.f32.mxu0 0.0
      %5275 = vmatmul.mubr.f32.gmra.mrb[0].mxu0 %v5125
      %v5276 = vpop.f32.mrb[0].mxu0
      %v5277 = vadd.f32 0.0, %v5276
      %v5278 = vpop.f32.mrb[0].mxu0
      %5279 = vmatprep.mubr.f32.mxu0 0.0
      %5280 = vmatmul.mubr.f32.gmra.mrb[0].mxu0 %v5126
      %v5281 = vpop.f32.mrb[0].mxu0
      %v5282 = vadd.f32 0.0, %v5281
      %v5283 = vpop.f32.mrb[0].mxu0
      %5284 = vmatprep.mubr.f32.mxu0 0.0
      %5285 = vmatmul.mubr.f32.gmra.mrb[0].mxu0 %v5127
      %v5286 = vpop.f32.mrb[0].mxu0
      %v5287 = vadd.f32 0.0, %v5286
      %v5288 = vpop.f32.mrb[0].mxu0
      %5289 = vmatprep.mubr.f32.mxu0 0.0
      %5290 = vmatmul.mubr.f32.gmra.mrb[0].mxu0 %v5128
      %v5291 = vpop.f32.mrb[0].mxu0
      %v5292 = vadd.f32 0.0, %v5291
      %v5293 = vpop.f32.mrb[0].mxu0
      %5294 = vmatprep.mubr.f32.mxu0 0.0
      %5295 = vmatmul.mubr.f32.gmra.mrb[0].mxu0 %v5129
      %v5296 = vpop.f32.mrb[0].mxu0
      %v5297 = vadd.f32 0.0, %v5296
      %v5298 = vpop.f32.mrb[0].mxu0
      %5299 = vmatprep.mubr.f32.mxu0 0.0
      %5300 = vmatmul.mubr.f32.gmra.mrb[0].mxu0 %v5130
      %v5301 = vpop.f32.mrb[0].mxu0
      %v5302 = vadd.f32 0.0, %v5301
      %v5303 = vpop.f32.mrb[0].mxu0
      %5304 = vmatprep.mubr.f32.mxu0 0.0
      %5305 = vmatmul.mubr.f32.gmra.mrb[0].mxu0 %v5131
      %v5306 = vpop.f32.mrb[0].mxu0
      %v5307 = vadd.f32 0.0, %v5306
      %v5308 = vpop.f32.mrb[0].mxu0
      %5309 = vmatprep.mubr.f32.mxu0 0.0
      %5310 = vmatmul.mubr.f32.gmra.mrb[0].mxu0 %v5132
      %v5311 = vpop.f32.mrb[0].mxu0
      %v5312 = vadd.f32 0.0, %v5311
      %v5313 = vpop.f32.mrb[0].mxu0
      %5314 = vmatprep.mubr.f32.mxu0 0.0
      %5315 = vmatmul.mubr.f32.gmra.mrb[0].mxu0 %v5133
      %v5316 = vpop.f32.mrb[0].mxu0
      %v5317 = vadd.f32 0.0, %v5316
      %v5318 = vpop.f32.mrb[0].mxu0
      %5319 = vmatprep.mubr.f32.mxu0 0.0
      %5320 = vmatmul.mubr.f32.gmra.mrb[0].mxu0 %v5134
      %v5321 = vpop.f32.mrb[0].mxu0
      %v5322 = vadd.f32 0.0, %v5321
      %v5323 = vpop.f32.mrb[0].mxu0
      %5324 = vmatprep.mubr.f32.mxu0 0.0
      %5325 = vmatmul.mubr.f32.gmra.mrb[0].mxu0 %v5135
      %v5326 = vpop.f32.mrb[0].mxu0
      %v5327 = vadd.f32 0.0, %v5326
      %v5328 = vpop.f32.mrb[0].mxu0
      %5329 = vmatprep.mubr.f32.mxu0 0.0
      %5330 = vmatmul.mubr.f32.gmra.mrb[0].mxu0 %v5136
      %v5331 = vpop.f32.mrb[0].mxu0
      %v5332 = vadd.f32 0.0, %v5331
      %v5333 = vpop.f32.mrb[0].mxu0
      %5334 = vmatprep.mubr.f32.mxu0 0.0
      %5335 = vmatmul.mubr.f32.gmra.mrb[0].mxu0 %v5137
      %v5336 = vpop.f32.mrb[0].mxu0
      %v5337 = vadd.f32 0.0, %v5336
      %v5338 = vpop.f32.mrb[0].mxu0
      %5339 = vmatprep.mubr.f32.mxu0 0.0
      %5340 = vmatmul.mubr.f32.gmra.mrb[0].mxu0 %v5138
      %v5341 = vpop.f32.mrb[0].mxu0
      %v5342 = vadd.f32 0.0, %v5341
      %v5343 = vpop.f32.mrb[0].mxu0
      %5344 = vmatprep.mubr.f32.mxu0 0.0
      %5345 = vmatmul.mubr.f32.gmra.mrb[0].mxu0 %v5139
      %v5346 = vpop.f32.mrb[0].mxu0
      %v5347 = vadd.f32 0.0, %v5346
      %v5348 = vpop.f32.mrb[0].mxu0
      %5349 = vmatprep.mubr.f32.mxu0 0.0
      %5350 = vmatmul.mubr.f32.gmra.mrb[0].mxu0 %v5140
      %v5351 = vpop.f32.mrb[0].mxu0
      %v5352 = vadd.f32 0.0, %v5351
      %v5353 = vpop.f32.mrb[0].mxu0
      %5354 = vmatprep.mubr.f32.mxu0 0.0
      %5355 = vmatmul.mubr.f32.gmra.mrb[0].mxu0 %v5141
      %v5356 = vpop.f32.mrb[0].mxu0
      %v5357 = vadd.f32 0.0, %v5356
      %v5358 = vpop.f32.mrb[0].mxu0
      %5359 = vmatprep.mubr.f32.mxu0 0.0
      %5360 = vmatmul.mubr.f32.gmra.mrb[0].mxu0 %v5142
      %v5361 = vpop.f32.mrb[0].mxu0
      %v5362 = vadd.f32 0.0, %v5361
      %v5363 = vpop.f32.mrb[0].mxu0
      %5364 = vmatprep.mubr.f32.mxu0 0.0
      %5365 = vmatmul.mubr.f32.gmra.mrb[0].mxu0 %v5143
      %v5366 = vpop.f32.mrb[0].mxu0
      %v5367 = vadd.f32 0.0, %v5366
      %v5368 = vpop.f32.mrb[0].mxu0
      %5369 = vmatprep.mubr.f32.mxu0 0.0
      %5370 = vmatmul.mubr.f32.gmra.mrb[0].mxu0 %v5144
      %v5371 = vpop.f32.mrb[0].mxu0
      %v5372 = vadd.f32 0.0, %v5371
      %v5373 = vpop.f32.mrb[0].mxu0
      %5374 = vmatprep.mubr.f32.mxu0 0.0
      %5375 = vmatmul.mubr.f32.gmra.mrb[0].mxu0 %v5145
      %v5376 = vpop.f32.mrb[0].mxu0
      %v5377 = vadd.f32 0.0, %v5376
      %v5378 = vpop.f32.mrb[0].mxu0
      %5379 = vmatprep.mubr.f32.mxu0 0.0
      %5380 = vmatmul.mubr.f32.gmra.mrb[0].mxu0 %v5146
      %v5381 = vpop.f32.mrb[0].mxu0
      %v5382 = vadd.f32 0.0, %v5381
      %v5383 = vpop.f32.mrb[0].mxu0
      %5384 = vmatprep.mubr.f32.mxu0 0.0
      %5385 = vmatmul.mubr.f32.gmra.mrb[0].mxu0 %v5147
      %v5386 = vpop.f32.mrb[0].mxu0
      %v5387 = vadd.f32 0.0, %v5386
      %v5388 = vpop.f32.mrb[0].mxu0
      %5389 = vmatprep.mubr.f32.mxu0 0.0
      %5390 = vmatmul.mubr.f32.gmra.mrb[0].mxu0 %v5148
      %v5391 = vpop.f32.mrb[0].mxu0
      %v5392 = vadd.f32 0.0, %v5391
      %v5393 = vpop.f32.mrb[0].mxu0
      %5394 = vmatprep.mubr.f32.mxu0 0.0
      %5395 = vmatmul.mubr.f32.gmra.mrb[0].mxu0 %v5149
      %v5396 = vpop.f32.mrb[0].mxu0
      %v5397 = vadd.f32 0.0, %v5396
      %v5398 = vpop.f32.mrb[0].mxu0
      %5399 = vmatprep.mubr.f32.mxu0 0.0
      %5400 = vmatmul.mubr.f32.gmra.mrb[0].mxu0 %v5150
      %v5401 = vpop.f32.mrb[0].mxu0
      %v5402 = vadd.f32 0.0, %v5401
      %v5403 = vpop.f32.mrb[0].mxu0
      %5404 = vmatprep.mubr.f32.mxu0 0.0
      %5405 = vmatmul.mubr.f32.gmra.mrb[0].mxu0 %v5151
      %v5406 = vpop.f32.mrb[0].mxu0
      %v5407 = vadd.f32 0.0, %v5406
      %v5408 = vpop.f32.mrb[0].mxu0
      %5409 = vmatprep.mubr.f32.mxu0 0.0
      %5410 = vmatmul.mubr.f32.gmra.mrb[0].mxu0 %v5152
      %v5411 = vpop.f32.mrb[0].mxu0
      %v5412 = vadd.f32 0.0, %v5411
      %v5413 = vpop.f32.mrb[0].mxu0
      %5414 = vdwg.mxu0
      %v5415 = vadd.f32 %v5081, %v5237
      %v5416 = vadd.f32 %v5082, %v5242
      %v5417 = vadd.f32 %v5083, %v5247
      %v5418 = vadd.f32 %v5084, %v5252
      %v5419 = vadd.f32 %v5085, %v5257
      %v5420 = vadd.f32 %v5086, %v5262
      %v5421 = vadd.f32 %v5087, %v5267
      %v5422 = vadd.f32 %v5088, %v5272
      %v5423 = vadd.f32 %v5089, %v5277
      %v5424 = vadd.f32 %v5090, %v5282
      %v5425 = vadd.f32 %v5091, %v5287
      %v5426 = vadd.f32 %v5092, %v5292
      %v5427 = vadd.f32 %v5093, %v5297
      %v5428 = vadd.f32 %v5094, %v5302
      %v5429 = vadd.f32 %v5095, %v5307
      %v5430 = vadd.f32 %v5096, %v5312
      %v5431 = vadd.f32 %v5097, %v5317
      %v5432 = vadd.f32 %v5098, %v5322
      %v5433 = vadd.f32 %v5099, %v5327
      %v5434 = vadd.f32 %v5100, %v5332
      %v5435 = vadd.f32 %v5101, %v5337
      %v5436 = vadd.f32 %v5102, %v5342
      %v5437 = vadd.f32 %v5103, %v5347
      %v5438 = vadd.f32 %v5104, %v5352
      %v5439 = vadd.f32 %v5105, %v5357
      %v5440 = vadd.f32 %v5106, %v5362
      %v5441 = vadd.f32 %v5107, %v5367
      %v5442 = vadd.f32 %v5108, %v5372
      %v5443 = vadd.f32 %v5109, %v5377
      %v5444 = vadd.f32 %v5110, %v5382
      %v5445 = vadd.f32 %v5111, %v5387
      %v5446 = vadd.f32 %v5112, %v5392
      %v5447 = vadd.f32 %v5113, %v5397
      %v5448 = vadd.f32 %v5114, %v5402
      %v5449 = vadd.f32 %v5115, %v5407
      %v5450 = vadd.f32 %v5116, %v5412
      %v5451 = vld [vmem:[#allocation3 + $0x14] sm:$0xff]
      %v5452 = vld [vmem:[#allocation3 + $0x1c] sm:$0xff]
      %v5453 = vld [vmem:[#allocation3 + $0x24] sm:$0xff]
      %v5454 = vld [vmem:[#allocation3 + $0x2c] sm:$0xff]
      %v5455 = vld [vmem:[#allocation3 + $0x34] sm:$0xff]
      %v5456 = vld [vmem:[#allocation3 + $0x3c] sm:$0xff]
      %v5457 = vld [vmem:[#allocation3 + $0x44] sm:$0xff]
      %v5458 = vld [vmem:[#allocation3 + $0x4c] sm:$0xff]
      %v5459 = vld [vmem:[#allocation3 + $0x54] sm:$0xff]
      %v5460 = vld [vmem:[#allocation3 + $0x5c] sm:$0xff]
      %v5461 = vld [vmem:[#allocation3 + $0x64] sm:$0xff]
      %v5462 = vld [vmem:[#allocation3 + $0x6c] sm:$0xff]
      %v5463 = vld [vmem:[#allocation3 + $0x74] sm:$0xff]
      %v5464 = vld [vmem:[#allocation3 + $0x7c] sm:$0xff]
      %v5465 = vld [vmem:[#allocation3 + $0x84] sm:$0xff]
      %v5466 = vld [vmem:[#allocation3 + $0x8c] sm:$0xff]
      %v5467 = vld [vmem:[#allocation3 + $0x94] sm:$0xff]
      %v5468 = vld [vmem:[#allocation3 + $0x9c] sm:$0xff]
      %v5469 = vld [vmem:[#allocation3 + $0xa4] sm:$0xff]
      %v5470 = vld [vmem:[#allocation3 + $0xac] sm:$0xff]
      %v5471 = vld [vmem:[#allocation3 + $0xb4] sm:$0xff]
      %v5472 = vld [vmem:[#allocation3 + $0xbc] sm:$0xff]
      %v5473 = vld [vmem:[#allocation3 + $0xc4] sm:$0xff]
      %v5474 = vld [vmem:[#allocation3 + $0xcc] sm:$0xff]
      %v5475 = vld [vmem:[#allocation3 + $0xd4] sm:$0xff]
      %v5476 = vld [vmem:[#allocation3 + $0xdc] sm:$0xff]
      %v5477 = vld [vmem:[#allocation3 + $0xe4] sm:$0xff]
      %v5478 = vld [vmem:[#allocation3 + $0xec] sm:$0xff]
      %v5479 = vld [vmem:[#allocation3 + $0xf4] sm:$0xff]
      %v5480 = vld [vmem:[#allocation3 + $0xfc] sm:$0xff]
      %v5481 = vld [vmem:[#allocation3 + $0x104] sm:$0xff]
      %v5482 = vld [vmem:[#allocation3 + $0x10c] sm:$0xff]
      %v5483 = vld [vmem:[#allocation3 + $0x114] sm:$0xff]
      %v5484 = vld [vmem:[#allocation3 + $0x11c] sm:$0xff]
      %v5485 = vld [vmem:[#allocation3 + $0x124] sm:$0xff]
      %v5486 = vld [vmem:[#allocation3 + $0x12c] sm:$0x3f]
      %s5487 = scalar_lea.vmem %s5, 640
      %v5488 = vld [vmem:[%s5487] sm:$0xff]
      %v5489 = vld [vmem:[%s5487 + $0x8] sm:$0xff]
      %v5490 = vld [vmem:[%s5487 + $0x10] sm:$0xff]
      %v5491 = vld [vmem:[%s5487 + $0x18] sm:$0xff]
      %v5492 = vld [vmem:[%s5487 + $0x20] sm:$0xff]
      %v5493 = vld [vmem:[%s5487 + $0x28] sm:$0xff]
      %v5494 = vld [vmem:[%s5487 + $0x30] sm:$0xff]
      %v5495 = vld [vmem:[%s5487 + $0x38] sm:$0xff]
      %v5496 = vld [vmem:[%s5487 + $0x40] sm:$0xff]
      %v5497 = vld [vmem:[%s5487 + $0x48] sm:$0xff]
      %v5498 = vld [vmem:[%s5487 + $0x50] sm:$0xff]
      %v5499 = vld [vmem:[%s5487 + $0x58] sm:$0xff]
      %v5500 = vld [vmem:[%s5487 + $0x60] sm:$0xff]
      %v5501 = vld [vmem:[%s5487 + $0x68] sm:$0xff]
      %v5502 = vld [vmem:[%s5487 + $0x70] sm:$0xff]
      %v5503 = vld [vmem:[%s5487 + $0x78] sm:$0xff]
      %5504 = vmatprep.subr.mxu0 0.0
      %5505 = vmatpush1.msra.mxu0 %v5488
      %5506 = vmatprep.subr.mxu0 0.0
      %5507 = vmatpush1.msra.mxu0 %v5489
      %5508 = vmatprep.subr.mxu0 0.0
      %5509 = vmatpush1.msra.mxu0 %v5490
      %5510 = vmatprep.subr.mxu0 0.0
      %5511 = vmatpush1.msra.mxu0 %v5491
      %5512 = vmatprep.subr.mxu0 0.0
      %5513 = vmatpush1.msra.mxu0 %v5492
      %5514 = vmatprep.subr.mxu0 0.0
      %5515 = vmatpush1.msra.mxu0 %v5493
      %5516 = vmatprep.subr.mxu0 0.0
      %5517 = vmatpush1.msra.mxu0 %v5494
      %5518 = vmatprep.subr.mxu0 0.0
      %5519 = vmatpush1.msra.mxu0 %v5495
      %5520 = vmatprep.subr.mxu0 0.0
      %5521 = vmatpush1.msra.mxu0 %v5496
      %5522 = vmatprep.subr.mxu0 0.0
      %5523 = vmatpush1.msra.mxu0 %v5497
      %5524 = vmatprep.subr.mxu0 0.0
      %5525 = vmatpush1.msra.mxu0 %v5498
      %5526 = vmatprep.subr.mxu0 0.0
      %5527 = vmatpush1.msra.mxu0 %v5499
      %5528 = vmatprep.subr.mxu0 0.0
      %5529 = vmatpush1.msra.mxu0 %v5500
      %5530 = vmatprep.subr.mxu0 0.0
      %5531 = vmatpush1.msra.mxu0 %v5501
      %5532 = vmatprep.subr.mxu0 0.0
      %5533 = vmatpush1.msra.mxu0 %v5502
      %5534 = vmatprep.subr.mxu0 0.0
      %5535 = vmatpush1.msra.mxu0 %v5503
      %5536 = vmatprep.subr.mxu0 0.0
      %5537 = vmatpush1.msra.mxu0 0.0
      %5538 = vmatprep.subr.mxu0 0.0
      %5539 = vmatpush1.msra.mxu0 0.0
      %5540 = vmatprep.subr.mxu0 0.0
      %5541 = vmatpush1.msra.mxu0 0.0
      %5542 = vmatprep.subr.mxu0 0.0
      %5543 = vmatpush1.msra.mxu0 0.0
      %5544 = vmatprep.subr.mxu0 0.0
      %5545 = vmatpush1.msra.mxu0 0.0
      %5546 = vmatprep.subr.mxu0 0.0
      %5547 = vmatpush1.msra.mxu0 0.0
      %5548 = vmatprep.subr.mxu0 0.0
      %5549 = vmatpush1.msra.mxu0 0.0
      %5550 = vmatprep.subr.mxu0 0.0
      %5551 = vmatpush1.msra.mxu0 0.0
      %5552 = vmatprep.subr.mxu0 0.0
      %5553 = vmatpush1.msra.mxu0 0.0
      %5554 = vmatprep.subr.mxu0 0.0
      %5555 = vmatpush1.msra.mxu0 0.0
      %5556 = vmatprep.subr.mxu0 0.0
      %5557 = vmatpush1.msra.mxu0 0.0
      %5558 = vmatprep.subr.mxu0 0.0
      %5559 = vmatpush1.msra.mxu0 0.0
      %5560 = vmatprep.subr.mxu0 0.0
      %5561 = vmatpush1.msra.mxu0 0.0
      %5562 = vmatprep.subr.mxu0 0.0
      %5563 = vmatpush1.msra.mxu0 0.0
      %5564 = vmatprep.subr.mxu0 0.0
      %5565 = vmatpush1.msra.mxu0 0.0
      %5566 = vmatprep.subr.mxu0 0.0
      %5567 = vmatpush1.msra.mxu0 0.0
      %5568 = vmatprep.mubr.f32.mxu0 0.0
      %5569 = vmatmul.mubr.f32.gmra.mrb[0].mxu0 %v5451
      %v5570 = vpop.f32.mrb[0].mxu0
      %v5571 = vadd.f32 0.0, %v5570
      %v5572 = vpop.f32.mrb[0].mxu0
      %5573 = vmatprep.mubr.f32.mxu0 0.0
      %5574 = vmatmul.mubr.f32.gmra.mrb[0].mxu0 %v5452
      %v5575 = vpop.f32.mrb[0].mxu0
      %v5576 = vadd.f32 0.0, %v5575
      %v5577 = vpop.f32.mrb[0].mxu0
      %5578 = vmatprep.mubr.f32.mxu0 0.0
      %5579 = vmatmul.mubr.f32.gmra.mrb[0].mxu0 %v5453
      %v5580 = vpop.f32.mrb[0].mxu0
      %v5581 = vadd.f32 0.0, %v5580
      %v5582 = vpop.f32.mrb[0].mxu0
      %5583 = vmatprep.mubr.f32.mxu0 0.0
      %5584 = vmatmul.mubr.f32.gmra.mrb[0].mxu0 %v5454
      %v5585 = vpop.f32.mrb[0].mxu0
      %v5586 = vadd.f32 0.0, %v5585
      %v5587 = vpop.f32.mrb[0].mxu0
      %5588 = vmatprep.mubr.f32.mxu0 0.0
      %5589 = vmatmul.mubr.f32.gmra.mrb[0].mxu0 %v5455
      %v5590 = vpop.f32.mrb[0].mxu0
      %v5591 = vadd.f32 0.0, %v5590
      %v5592 = vpop.f32.mrb[0].mxu0
      %5593 = vmatprep.mubr.f32.mxu0 0.0
      %5594 = vmatmul.mubr.f32.gmra.mrb[0].mxu0 %v5456
      %v5595 = vpop.f32.mrb[0].mxu0
      %v5596 = vadd.f32 0.0, %v5595
      %v5597 = vpop.f32.mrb[0].mxu0
      %5598 = vmatprep.mubr.f32.mxu0 0.0
      %5599 = vmatmul.mubr.f32.gmra.mrb[0].mxu0 %v5457
      %v5600 = vpop.f32.mrb[0].mxu0
      %v5601 = vadd.f32 0.0, %v5600
      %v5602 = vpop.f32.mrb[0].mxu0
      %5603 = vmatprep.mubr.f32.mxu0 0.0
      %5604 = vmatmul.mubr.f32.gmra.mrb[0].mxu0 %v5458
      %v5605 = vpop.f32.mrb[0].mxu0
      %v5606 = vadd.f32 0.0, %v5605
      %v5607 = vpop.f32.mrb[0].mxu0
      %5608 = vmatprep.mubr.f32.mxu0 0.0
      %5609 = vmatmul.mubr.f32.gmra.mrb[0].mxu0 %v5459
      %v5610 = vpop.f32.mrb[0].mxu0
      %v5611 = vadd.f32 0.0, %v5610
      %v5612 = vpop.f32.mrb[0].mxu0
      %5613 = vmatprep.mubr.f32.mxu0 0.0
      %5614 = vmatmul.mubr.f32.gmra.mrb[0].mxu0 %v5460
      %v5615 = vpop.f32.mrb[0].mxu0
      %v5616 = vadd.f32 0.0, %v5615
      %v5617 = vpop.f32.mrb[0].mxu0
      %5618 = vmatprep.mubr.f32.mxu0 0.0
      %5619 = vmatmul.mubr.f32.gmra.mrb[0].mxu0 %v5461
      %v5620 = vpop.f32.mrb[0].mxu0
      %v5621 = vadd.f32 0.0, %v5620
      %v5622 = vpop.f32.mrb[0].mxu0
      %5623 = vmatprep.mubr.f32.mxu0 0.0
      %5624 = vmatmul.mubr.f32.gmra.mrb[0].mxu0 %v5462
      %v5625 = vpop.f32.mrb[0].mxu0
      %v5626 = vadd.f32 0.0, %v5625
      %v5627 = vpop.f32.mrb[0].mxu0
      %5628 = vmatprep.mubr.f32.mxu0 0.0
      %5629 = vmatmul.mubr.f32.gmra.mrb[0].mxu0 %v5463
      %v5630 = vpop.f32.mrb[0].mxu0
      %v5631 = vadd.f32 0.0, %v5630
      %v5632 = vpop.f32.mrb[0].mxu0
      %5633 = vmatprep.mubr.f32.mxu0 0.0
      %5634 = vmatmul.mubr.f32.gmra.mrb[0].mxu0 %v5464
      %v5635 = vpop.f32.mrb[0].mxu0
      %v5636 = vadd.f32 0.0, %v5635
      %v5637 = vpop.f32.mrb[0].mxu0
      %5638 = vmatprep.mubr.f32.mxu0 0.0
      %5639 = vmatmul.mubr.f32.gmra.mrb[0].mxu0 %v5465
      %v5640 = vpop.f32.mrb[0].mxu0
      %v5641 = vadd.f32 0.0, %v5640
      %v5642 = vpop.f32.mrb[0].mxu0
      %5643 = vmatprep.mubr.f32.mxu0 0.0
      %5644 = vmatmul.mubr.f32.gmra.mrb[0].mxu0 %v5466
      %v5645 = vpop.f32.mrb[0].mxu0
      %v5646 = vadd.f32 0.0, %v5645
      %v5647 = vpop.f32.mrb[0].mxu0
      %5648 = vmatprep.mubr.f32.mxu0 0.0
      %5649 = vmatmul.mubr.f32.gmra.mrb[0].mxu0 %v5467
      %v5650 = vpop.f32.mrb[0].mxu0
      %v5651 = vadd.f32 0.0, %v5650
      %v5652 = vpop.f32.mrb[0].mxu0
      %5653 = vmatprep.mubr.f32.mxu0 0.0
      %5654 = vmatmul.mubr.f32.gmra.mrb[0].mxu0 %v5468
      %v5655 = vpop.f32.mrb[0].mxu0
      %v5656 = vadd.f32 0.0, %v5655
      %v5657 = vpop.f32.mrb[0].mxu0
      %5658 = vmatprep.mubr.f32.mxu0 0.0
      %5659 = vmatmul.mubr.f32.gmra.mrb[0].mxu0 %v5469
      %v5660 = vpop.f32.mrb[0].mxu0
      %v5661 = vadd.f32 0.0, %v5660
      %v5662 = vpop.f32.mrb[0].mxu0
      %5663 = vmatprep.mubr.f32.mxu0 0.0
      %5664 = vmatmul.mubr.f32.gmra.mrb[0].mxu0 %v5470
      %v5665 = vpop.f32.mrb[0].mxu0
      %v5666 = vadd.f32 0.0, %v5665
      %v5667 = vpop.f32.mrb[0].mxu0
      %5668 = vmatprep.mubr.f32.mxu0 0.0
      %5669 = vmatmul.mubr.f32.gmra.mrb[0].mxu0 %v5471
      %v5670 = vpop.f32.mrb[0].mxu0
      %v5671 = vadd.f32 0.0, %v5670
      %v5672 = vpop.f32.mrb[0].mxu0
      %5673 = vmatprep.mubr.f32.mxu0 0.0
      %5674 = vmatmul.mubr.f32.gmra.mrb[0].mxu0 %v5472
      %v5675 = vpop.f32.mrb[0].mxu0
      %v5676 = vadd.f32 0.0, %v5675
      %v5677 = vpop.f32.mrb[0].mxu0
      %5678 = vmatprep.mubr.f32.mxu0 0.0
      %5679 = vmatmul.mubr.f32.gmra.mrb[0].mxu0 %v5473
      %v5680 = vpop.f32.mrb[0].mxu0
      %v5681 = vadd.f32 0.0, %v5680
      %v5682 = vpop.f32.mrb[0].mxu0
      %5683 = vmatprep.mubr.f32.mxu0 0.0
      %5684 = vmatmul.mubr.f32.gmra.mrb[0].mxu0 %v5474
      %v5685 = vpop.f32.mrb[0].mxu0
      %v5686 = vadd.f32 0.0, %v5685
      %v5687 = vpop.f32.mrb[0].mxu0
      %5688 = vmatprep.mubr.f32.mxu0 0.0
      %5689 = vmatmul.mubr.f32.gmra.mrb[0].mxu0 %v5475
      %v5690 = vpop.f32.mrb[0].mxu0
      %v5691 = vadd.f32 0.0, %v5690
      %v5692 = vpop.f32.mrb[0].mxu0
      %5693 = vmatprep.mubr.f32.mxu0 0.0
      %5694 = vmatmul.mubr.f32.gmra.mrb[0].mxu0 %v5476
      %v5695 = vpop.f32.mrb[0].mxu0
      %v5696 = vadd.f32 0.0, %v5695
      %v5697 = vpop.f32.mrb[0].mxu0
      %5698 = vmatprep.mubr.f32.mxu0 0.0
      %5699 = vmatmul.mubr.f32.gmra.mrb[0].mxu0 %v5477
      %v5700 = vpop.f32.mrb[0].mxu0
      %v5701 = vadd.f32 0.0, %v5700
      %v5702 = vpop.f32.mrb[0].mxu0
      %5703 = vmatprep.mubr.f32.mxu0 0.0
      %5704 = vmatmul.mubr.f32.gmra.mrb[0].mxu0 %v5478
      %v5705 = vpop.f32.mrb[0].mxu0
      %v5706 = vadd.f32 0.0, %v5705
      %v5707 = vpop.f32.mrb[0].mxu0
      %5708 = vmatprep.mubr.f32.mxu0 0.0
      %5709 = vmatmul.mubr.f32.gmra.mrb[0].mxu0 %v5479
      %v5710 = vpop.f32.mrb[0].mxu0
      %v5711 = vadd.f32 0.0, %v5710
      %v5712 = vpop.f32.mrb[0].mxu0
      %5713 = vmatprep.mubr.f32.mxu0 0.0
      %5714 = vmatmul.mubr.f32.gmra.mrb[0].mxu0 %v5480
      %v5715 = vpop.f32.mrb[0].mxu0
      %v5716 = vadd.f32 0.0, %v5715
      %v5717 = vpop.f32.mrb[0].mxu0
      %5718 = vmatprep.mubr.f32.mxu0 0.0
      %5719 = vmatmul.mubr.f32.gmra.mrb[0].mxu0 %v5481
      %v5720 = vpop.f32.mrb[0].mxu0
      %v5721 = vadd.f32 0.0, %v5720
      %v5722 = vpop.f32.mrb[0].mxu0
      %5723 = vmatprep.mubr.f32.mxu0 0.0
      %5724 = vmatmul.mubr.f32.gmra.mrb[0].mxu0 %v5482
      %v5725 = vpop.f32.mrb[0].mxu0
      %v5726 = vadd.f32 0.0, %v5725
      %v5727 = vpop.f32.mrb[0].mxu0
      %5728 = vmatprep.mubr.f32.mxu0 0.0
      %5729 = vmatmul.mubr.f32.gmra.mrb[0].mxu0 %v5483
      %v5730 = vpop.f32.mrb[0].mxu0
      %v5731 = vadd.f32 0.0, %v5730
      %v5732 = vpop.f32.mrb[0].mxu0
      %5733 = vmatprep.mubr.f32.mxu0 0.0
      %5734 = vmatmul.mubr.f32.gmra.mrb[0].mxu0 %v5484
      %v5735 = vpop.f32.mrb[0].mxu0
      %v5736 = vadd.f32 0.0, %v5735
      %v5737 = vpop.f32.mrb[0].mxu0
      %5738 = vmatprep.mubr.f32.mxu0 0.0
      %5739 = vmatmul.mubr.f32.gmra.mrb[0].mxu0 %v5485
      %v5740 = vpop.f32.mrb[0].mxu0
      %v5741 = vadd.f32 0.0, %v5740
      %v5742 = vpop.f32.mrb[0].mxu0
      %5743 = vmatprep.mubr.f32.mxu0 0.0
      %5744 = vmatmul.mubr.f32.gmra.mrb[0].mxu0 %v5486
      %v5745 = vpop.f32.mrb[0].mxu0
      %v5746 = vadd.f32 0.0, %v5745
      %v5747 = vpop.f32.mrb[0].mxu0
      %5748 = vdwg.mxu0
      %v5749 = vadd.f32 %v5415, %v5571
      %v5750 = vadd.f32 %v5416, %v5576
      %v5751 = vadd.f32 %v5417, %v5581
      %v5752 = vadd.f32 %v5418, %v5586
      %v5753 = vadd.f32 %v5419, %v5591
      %v5754 = vadd.f32 %v5420, %v5596
      %v5755 = vadd.f32 %v5421, %v5601
      %v5756 = vadd.f32 %v5422, %v5606
      %v5757 = vadd.f32 %v5423, %v5611
      %v5758 = vadd.f32 %v5424, %v5616
      %v5759 = vadd.f32 %v5425, %v5621
      %v5760 = vadd.f32 %v5426, %v5626
      %v5761 = vadd.f32 %v5427, %v5631
      %v5762 = vadd.f32 %v5428, %v5636
      %v5763 = vadd.f32 %v5429, %v5641
      %v5764 = vadd.f32 %v5430, %v5646
      %v5765 = vadd.f32 %v5431, %v5651
      %v5766 = vadd.f32 %v5432, %v5656
      %v5767 = vadd.f32 %v5433, %v5661
      %v5768 = vadd.f32 %v5434, %v5666
      %v5769 = vadd.f32 %v5435, %v5671
      %v5770 = vadd.f32 %v5436, %v5676
      %v5771 = vadd.f32 %v5437, %v5681
      %v5772 = vadd.f32 %v5438, %v5686
      %v5773 = vadd.f32 %v5439, %v5691
      %v5774 = vadd.f32 %v5440, %v5696
      %v5775 = vadd.f32 %v5441, %v5701
      %v5776 = vadd.f32 %v5442, %v5706
      %v5777 = vadd.f32 %v5443, %v5711
      %v5778 = vadd.f32 %v5444, %v5716
      %v5779 = vadd.f32 %v5445, %v5721
      %v5780 = vadd.f32 %v5446, %v5726
      %v5781 = vadd.f32 %v5447, %v5731
      %v5782 = vadd.f32 %v5448, %v5736
      %v5783 = vadd.f32 %v5449, %v5741
      %v5784 = vadd.f32 %v5450, %v5746
      %v5785 = vld [vmem:[#allocation3 + $0x24] sm:$0xff]
      %v5786 = vld [vmem:[#allocation3 + $0x2c] sm:$0xff]
      %v5787 = vld [vmem:[#allocation3 + $0x34] sm:$0xff]
      %v5788 = vld [vmem:[#allocation3 + $0x3c] sm:$0xff]
      %v5789 = vld [vmem:[#allocation3 + $0x44] sm:$0xff]
      %v5790 = vld [vmem:[#allocation3 + $0x4c] sm:$0xff]
      %v5791 = vld [vmem:[#allocation3 + $0x54] sm:$0xff]
      %v5792 = vld [vmem:[#allocation3 + $0x5c] sm:$0xff]
      %v5793 = vld [vmem:[#allocation3 + $0x64] sm:$0xff]
      %v5794 = vld [vmem:[#allocation3 + $0x6c] sm:$0xff]
      %v5795 = vld [vmem:[#allocation3 + $0x74] sm:$0xff]
      %v5796 = vld [vmem:[#allocation3 + $0x7c] sm:$0xff]
      %v5797 = vld [vmem:[#allocation3 + $0x84] sm:$0xff]
      %v5798 = vld [vmem:[#allocation3 + $0x8c] sm:$0xff]
      %v5799 = vld [vmem:[#allocation3 + $0x94] sm:$0xff]
      %v5800 = vld [vmem:[#allocation3 + $0x9c] sm:$0xff]
      %v5801 = vld [vmem:[#allocation3 + $0xa4] sm:$0xff]
      %v5802 = vld [vmem:[#allocation3 + $0xac] sm:$0xff]
      %v5803 = vld [vmem:[#allocation3 + $0xb4] sm:$0xff]
      %v5804 = vld [vmem:[#allocation3 + $0xbc] sm:$0xff]
      %v5805 = vld [vmem:[#allocation3 + $0xc4] sm:$0xff]
      %v5806 = vld [vmem:[#allocation3 + $0xcc] sm:$0xff]
      %v5807 = vld [vmem:[#allocation3 + $0xd4] sm:$0xff]
      %v5808 = vld [vmem:[#allocation3 + $0xdc] sm:$0xff]
      %v5809 = vld [vmem:[#allocation3 + $0xe4] sm:$0xff]
      %v5810 = vld [vmem:[#allocation3 + $0xec] sm:$0xff]
      %v5811 = vld [vmem:[#allocation3 + $0xf4] sm:$0xff]
      %v5812 = vld [vmem:[#allocation3 + $0xfc] sm:$0xff]
      %v5813 = vld [vmem:[#allocation3 + $0x104] sm:$0xff]
      %v5814 = vld [vmem:[#allocation3 + $0x10c] sm:$0xff]
      %v5815 = vld [vmem:[#allocation3 + $0x114] sm:$0xff]
      %v5816 = vld [vmem:[#allocation3 + $0x11c] sm:$0xff]
      %v5817 = vld [vmem:[#allocation3 + $0x124] sm:$0xff]
      %v5818 = vld [vmem:[#allocation3 + $0x12c] sm:$0xff]
      %v5819 = vld [vmem:[#allocation3 + $0x134] sm:$0xff]
      %v5820 = vld [vmem:[#allocation3 + $0x13c] sm:$0x3f]
      %s5821 = scalar_lea.vmem %s5, 768
      %v5822 = vld [vmem:[%s5821] sm:$0xff]
      %v5823 = vld [vmem:[%s5821 + $0x8] sm:$0xff]
      %v5824 = vld [vmem:[%s5821 + $0x10] sm:$0xff]
      %v5825 = vld [vmem:[%s5821 + $0x18] sm:$0xff]
      %v5826 = vld [vmem:[%s5821 + $0x20] sm:$0xff]
      %v5827 = vld [vmem:[%s5821 + $0x28] sm:$0xff]
      %v5828 = vld [vmem:[%s5821 + $0x30] sm:$0xff]
      %v5829 = vld [vmem:[%s5821 + $0x38] sm:$0xff]
      %v5830 = vld [vmem:[%s5821 + $0x40] sm:$0xff]
      %v5831 = vld [vmem:[%s5821 + $0x48] sm:$0xff]
      %v5832 = vld [vmem:[%s5821 + $0x50] sm:$0xff]
      %v5833 = vld [vmem:[%s5821 + $0x58] sm:$0xff]
      %v5834 = vld [vmem:[%s5821 + $0x60] sm:$0xff]
      %v5835 = vld [vmem:[%s5821 + $0x68] sm:$0xff]
      %v5836 = vld [vmem:[%s5821 + $0x70] sm:$0xff]
      %v5837 = vld [vmem:[%s5821 + $0x78] sm:$0xff]
      %5838 = vmatprep.subr.mxu0 0.0
      %5839 = vmatpush1.msra.mxu0 %v5822
      %5840 = vmatprep.subr.mxu0 0.0
      %5841 = vmatpush1.msra.mxu0 %v5823
      %5842 = vmatprep.subr.mxu0 0.0
      %5843 = vmatpush1.msra.mxu0 %v5824
      %5844 = vmatprep.subr.mxu0 0.0
      %5845 = vmatpush1.msra.mxu0 %v5825
      %5846 = vmatprep.subr.mxu0 0.0
      %5847 = vmatpush1.msra.mxu0 %v5826
      %5848 = vmatprep.subr.mxu0 0.0
      %5849 = vmatpush1.msra.mxu0 %v5827
      %5850 = vmatprep.subr.mxu0 0.0
      %5851 = vmatpush1.msra.mxu0 %v5828
      %5852 = vmatprep.subr.mxu0 0.0
      %5853 = vmatpush1.msra.mxu0 %v5829
      %5854 = vmatprep.subr.mxu0 0.0
      %5855 = vmatpush1.msra.mxu0 %v5830
      %5856 = vmatprep.subr.mxu0 0.0
      %5857 = vmatpush1.msra.mxu0 %v5831
      %5858 = vmatprep.subr.mxu0 0.0
      %5859 = vmatpush1.msra.mxu0 %v5832
      %5860 = vmatprep.subr.mxu0 0.0
      %5861 = vmatpush1.msra.mxu0 %v5833
      %5862 = vmatprep.subr.mxu0 0.0
      %5863 = vmatpush1.msra.mxu0 %v5834
      %5864 = vmatprep.subr.mxu0 0.0
      %5865 = vmatpush1.msra.mxu0 %v5835
      %5866 = vmatprep.subr.mxu0 0.0
      %5867 = vmatpush1.msra.mxu0 %v5836
      %5868 = vmatprep.subr.mxu0 0.0
      %5869 = vmatpush1.msra.mxu0 %v5837
      %5870 = vmatprep.subr.mxu0 0.0
      %5871 = vmatpush1.msra.mxu0 0.0
      %5872 = vmatprep.subr.mxu0 0.0
      %5873 = vmatpush1.msra.mxu0 0.0
      %5874 = vmatprep.subr.mxu0 0.0
      %5875 = vmatpush1.msra.mxu0 0.0
      %5876 = vmatprep.subr.mxu0 0.0
      %5877 = vmatpush1.msra.mxu0 0.0
      %5878 = vmatprep.subr.mxu0 0.0
      %5879 = vmatpush1.msra.mxu0 0.0
      %5880 = vmatprep.subr.mxu0 0.0
      %5881 = vmatpush1.msra.mxu0 0.0
      %5882 = vmatprep.subr.mxu0 0.0
      %5883 = vmatpush1.msra.mxu0 0.0
      %5884 = vmatprep.subr.mxu0 0.0
      %5885 = vmatpush1.msra.mxu0 0.0
      %5886 = vmatprep.subr.mxu0 0.0
      %5887 = vmatpush1.msra.mxu0 0.0
      %5888 = vmatprep.subr.mxu0 0.0
      %5889 = vmatpush1.msra.mxu0 0.0
      %5890 = vmatprep.subr.mxu0 0.0
      %5891 = vmatpush1.msra.mxu0 0.0
      %5892 = vmatprep.subr.mxu0 0.0
      %5893 = vmatpush1.msra.mxu0 0.0
      %5894 = vmatprep.subr.mxu0 0.0
      %5895 = vmatpush1.msra.mxu0 0.0
      %5896 = vmatprep.subr.mxu0 0.0
      %5897 = vmatpush1.msra.mxu0 0.0
      %5898 = vmatprep.subr.mxu0 0.0
      %5899 = vmatpush1.msra.mxu0 0.0
      %5900 = vmatprep.subr.mxu0 0.0
      %5901 = vmatpush1.msra.mxu0 0.0
      %5902 = vmatprep.mubr.f32.mxu0 0.0
      %5903 = vmatmul.mubr.f32.gmra.mrb[0].mxu0 %v5785
      %v5904 = vpop.f32.mrb[0].mxu0
      %v5905 = vadd.f32 0.0, %v5904
      %v5906 = vpop.f32.mrb[0].mxu0
      %5907 = vmatprep.mubr.f32.mxu0 0.0
      %5908 = vmatmul.mubr.f32.gmra.mrb[0].mxu0 %v5786
      %v5909 = vpop.f32.mrb[0].mxu0
      %v5910 = vadd.f32 0.0, %v5909
      %v5911 = vpop.f32.mrb[0].mxu0
      %5912 = vmatprep.mubr.f32.mxu0 0.0
      %5913 = vmatmul.mubr.f32.gmra.mrb[0].mxu0 %v5787
      %v5914 = vpop.f32.mrb[0].mxu0
      %v5915 = vadd.f32 0.0, %v5914
      %v5916 = vpop.f32.mrb[0].mxu0
      %5917 = vmatprep.mubr.f32.mxu0 0.0
      %5918 = vmatmul.mubr.f32.gmra.mrb[0].mxu0 %v5788
      %v5919 = vpop.f32.mrb[0].mxu0
      %v5920 = vadd.f32 0.0, %v5919
      %v5921 = vpop.f32.mrb[0].mxu0
      %5922 = vmatprep.mubr.f32.mxu0 0.0
      %5923 = vmatmul.mubr.f32.gmra.mrb[0].mxu0 %v5789
      %v5924 = vpop.f32.mrb[0].mxu0
      %v5925 = vadd.f32 0.0, %v5924
      %v5926 = vpop.f32.mrb[0].mxu0
      %5927 = vmatprep.mubr.f32.mxu0 0.0
      %5928 = vmatmul.mubr.f32.gmra.mrb[0].mxu0 %v5790
      %v5929 = vpop.f32.mrb[0].mxu0
      %v5930 = vadd.f32 0.0, %v5929
      %v5931 = vpop.f32.mrb[0].mxu0
      %5932 = vmatprep.mubr.f32.mxu0 0.0
      %5933 = vmatmul.mubr.f32.gmra.mrb[0].mxu0 %v5791
      %v5934 = vpop.f32.mrb[0].mxu0
      %v5935 = vadd.f32 0.0, %v5934
      %v5936 = vpop.f32.mrb[0].mxu0
      %5937 = vmatprep.mubr.f32.mxu0 0.0
      %5938 = vmatmul.mubr.f32.gmra.mrb[0].mxu0 %v5792
      %v5939 = vpop.f32.mrb[0].mxu0
      %v5940 = vadd.f32 0.0, %v5939
      %v5941 = vpop.f32.mrb[0].mxu0
      %5942 = vmatprep.mubr.f32.mxu0 0.0
      %5943 = vmatmul.mubr.f32.gmra.mrb[0].mxu0 %v5793
      %v5944 = vpop.f32.mrb[0].mxu0
      %v5945 = vadd.f32 0.0, %v5944
      %v5946 = vpop.f32.mrb[0].mxu0
      %5947 = vmatprep.mubr.f32.mxu0 0.0
      %5948 = vmatmul.mubr.f32.gmra.mrb[0].mxu0 %v5794
      %v5949 = vpop.f32.mrb[0].mxu0
      %v5950 = vadd.f32 0.0, %v5949
      %v5951 = vpop.f32.mrb[0].mxu0
      %5952 = vmatprep.mubr.f32.mxu0 0.0
      %5953 = vmatmul.mubr.f32.gmra.mrb[0].mxu0 %v5795
      %v5954 = vpop.f32.mrb[0].mxu0
      %v5955 = vadd.f32 0.0, %v5954
      %v5956 = vpop.f32.mrb[0].mxu0
      %5957 = vmatprep.mubr.f32.mxu0 0.0
      %5958 = vmatmul.mubr.f32.gmra.mrb[0].mxu0 %v5796
      %v5959 = vpop.f32.mrb[0].mxu0
      %v5960 = vadd.f32 0.0, %v5959
      %v5961 = vpop.f32.mrb[0].mxu0
      %5962 = vmatprep.mubr.f32.mxu0 0.0
      %5963 = vmatmul.mubr.f32.gmra.mrb[0].mxu0 %v5797
      %v5964 = vpop.f32.mrb[0].mxu0
      %v5965 = vadd.f32 0.0, %v5964
      %v5966 = vpop.f32.mrb[0].mxu0
      %5967 = vmatprep.mubr.f32.mxu0 0.0
      %5968 = vmatmul.mubr.f32.gmra.mrb[0].mxu0 %v5798
      %v5969 = vpop.f32.mrb[0].mxu0
      %v5970 = vadd.f32 0.0, %v5969
      %v5971 = vpop.f32.mrb[0].mxu0
      %5972 = vmatprep.mubr.f32.mxu0 0.0
      %5973 = vmatmul.mubr.f32.gmra.mrb[0].mxu0 %v5799
      %v5974 = vpop.f32.mrb[0].mxu0
      %v5975 = vadd.f32 0.0, %v5974
      %v5976 = vpop.f32.mrb[0].mxu0
      %5977 = vmatprep.mubr.f32.mxu0 0.0
      %5978 = vmatmul.mubr.f32.gmra.mrb[0].mxu0 %v5800
      %v5979 = vpop.f32.mrb[0].mxu0
      %v5980 = vadd.f32 0.0, %v5979
      %v5981 = vpop.f32.mrb[0].mxu0
      %5982 = vmatprep.mubr.f32.mxu0 0.0
      %5983 = vmatmul.mubr.f32.gmra.mrb[0].mxu0 %v5801
      %v5984 = vpop.f32.mrb[0].mxu0
      %v5985 = vadd.f32 0.0, %v5984
      %v5986 = vpop.f32.mrb[0].mxu0
      %5987 = vmatprep.mubr.f32.mxu0 0.0
      %5988 = vmatmul.mubr.f32.gmra.mrb[0].mxu0 %v5802
      %v5989 = vpop.f32.mrb[0].mxu0
      %v5990 = vadd.f32 0.0, %v5989
      %v5991 = vpop.f32.mrb[0].mxu0
      %5992 = vmatprep.mubr.f32.mxu0 0.0
      %5993 = vmatmul.mubr.f32.gmra.mrb[0].mxu0 %v5803
      %v5994 = vpop.f32.mrb[0].mxu0
      %v5995 = vadd.f32 0.0, %v5994
      %v5996 = vpop.f32.mrb[0].mxu0
      %5997 = vmatprep.mubr.f32.mxu0 0.0
      %5998 = vmatmul.mubr.f32.gmra.mrb[0].mxu0 %v5804
      %v5999 = vpop.f32.mrb[0].mxu0
      %v6000 = vadd.f32 0.0, %v5999
      %v6001 = vpop.f32.mrb[0].mxu0
      %6002 = vmatprep.mubr.f32.mxu0 0.0
      %6003 = vmatmul.mubr.f32.gmra.mrb[0].mxu0 %v5805
      %v6004 = vpop.f32.mrb[0].mxu0
      %v6005 = vadd.f32 0.0, %v6004
      %v6006 = vpop.f32.mrb[0].mxu0
      %6007 = vmatprep.mubr.f32.mxu0 0.0
      %6008 = vmatmul.mubr.f32.gmra.mrb[0].mxu0 %v5806
      %v6009 = vpop.f32.mrb[0].mxu0
      %v6010 = vadd.f32 0.0, %v6009
      %v6011 = vpop.f32.mrb[0].mxu0
      %6012 = vmatprep.mubr.f32.mxu0 0.0
      %6013 = vmatmul.mubr.f32.gmra.mrb[0].mxu0 %v5807
      %v6014 = vpop.f32.mrb[0].mxu0
      %v6015 = vadd.f32 0.0, %v6014
      %v6016 = vpop.f32.mrb[0].mxu0
      %6017 = vmatprep.mubr.f32.mxu0 0.0
      %6018 = vmatmul.mubr.f32.gmra.mrb[0].mxu0 %v5808
      %v6019 = vpop.f32.mrb[0].mxu0
      %v6020 = vadd.f32 0.0, %v6019
      %v6021 = vpop.f32.mrb[0].mxu0
      %6022 = vmatprep.mubr.f32.mxu0 0.0
      %6023 = vmatmul.mubr.f32.gmra.mrb[0].mxu0 %v5809
      %v6024 = vpop.f32.mrb[0].mxu0
      %v6025 = vadd.f32 0.0, %v6024
      %v6026 = vpop.f32.mrb[0].mxu0
      %6027 = vmatprep.mubr.f32.mxu0 0.0
      %6028 = vmatmul.mubr.f32.gmra.mrb[0].mxu0 %v5810
      %v6029 = vpop.f32.mrb[0].mxu0
      %v6030 = vadd.f32 0.0, %v6029
      %v6031 = vpop.f32.mrb[0].mxu0
      %6032 = vmatprep.mubr.f32.mxu0 0.0
      %6033 = vmatmul.mubr.f32.gmra.mrb[0].mxu0 %v5811
      %v6034 = vpop.f32.mrb[0].mxu0
      %v6035 = vadd.f32 0.0, %v6034
      %v6036 = vpop.f32.mrb[0].mxu0
      %6037 = vmatprep.mubr.f32.mxu0 0.0
      %6038 = vmatmul.mubr.f32.gmra.mrb[0].mxu0 %v5812
      %v6039 = vpop.f32.mrb[0].mxu0
      %v6040 = vadd.f32 0.0, %v6039
      %v6041 = vpop.f32.mrb[0].mxu0
      %6042 = vmatprep.mubr.f32.mxu0 0.0
      %6043 = vmatmul.mubr.f32.gmra.mrb[0].mxu0 %v5813
      %v6044 = vpop.f32.mrb[0].mxu0
      %v6045 = vadd.f32 0.0, %v6044
      %v6046 = vpop.f32.mrb[0].mxu0
      %6047 = vmatprep.mubr.f32.mxu0 0.0
      %6048 = vmatmul.mubr.f32.gmra.mrb[0].mxu0 %v5814
      %v6049 = vpop.f32.mrb[0].mxu0
      %v6050 = vadd.f32 0.0, %v6049
      %v6051 = vpop.f32.mrb[0].mxu0
      %6052 = vmatprep.mubr.f32.mxu0 0.0
      %6053 = vmatmul.mubr.f32.gmra.mrb[0].mxu0 %v5815
      %v6054 = vpop.f32.mrb[0].mxu0
      %v6055 = vadd.f32 0.0, %v6054
      %v6056 = vpop.f32.mrb[0].mxu0
      %6057 = vmatprep.mubr.f32.mxu0 0.0
      %6058 = vmatmul.mubr.f32.gmra.mrb[0].mxu0 %v5816
      %v6059 = vpop.f32.mrb[0].mxu0
      %v6060 = vadd.f32 0.0, %v6059
      %v6061 = vpop.f32.mrb[0].mxu0
      %6062 = vmatprep.mubr.f32.mxu0 0.0
      %6063 = vmatmul.mubr.f32.gmra.mrb[0].mxu0 %v5817
      %v6064 = vpop.f32.mrb[0].mxu0
      %v6065 = vadd.f32 0.0, %v6064
      %v6066 = vpop.f32.mrb[0].mxu0
      %6067 = vmatprep.mubr.f32.mxu0 0.0
      %6068 = vmatmul.mubr.f32.gmra.mrb[0].mxu0 %v5818
      %v6069 = vpop.f32.mrb[0].mxu0
      %v6070 = vadd.f32 0.0, %v6069
      %v6071 = vpop.f32.mrb[0].mxu0
      %6072 = vmatprep.mubr.f32.mxu0 0.0
      %6073 = vmatmul.mubr.f32.gmra.mrb[0].mxu0 %v5819
      %v6074 = vpop.f32.mrb[0].mxu0
      %v6075 = vadd.f32 0.0, %v6074
      %v6076 = vpop.f32.mrb[0].mxu0
      %6077 = vmatprep.mubr.f32.mxu0 0.0
      %6078 = vmatmul.mubr.f32.gmra.mrb[0].mxu0 %v5820
      %v6079 = vpop.f32.mrb[0].mxu0
      %v6080 = vadd.f32 0.0, %v6079
      %v6081 = vpop.f32.mrb[0].mxu0
      %6082 = vdwg.mxu0
      %v6083 = vadd.f32 %v5749, %v5905
      %v6084 = vadd.f32 %v5750, %v5910
      %v6085 = vadd.f32 %v5751, %v5915
      %v6086 = vadd.f32 %v5752, %v5920
      %v6087 = vadd.f32 %v5753, %v5925
      %v6088 = vadd.f32 %v5754, %v5930
      %v6089 = vadd.f32 %v5755, %v5935
      %v6090 = vadd.f32 %v5756, %v5940
      %v6091 = vadd.f32 %v5757, %v5945
      %v6092 = vadd.f32 %v5758, %v5950
      %v6093 = vadd.f32 %v5759, %v5955
      %v6094 = vadd.f32 %v5760, %v5960
      %v6095 = vadd.f32 %v5761, %v5965
      %v6096 = vadd.f32 %v5762, %v5970
      %v6097 = vadd.f32 %v5763, %v5975
      %v6098 = vadd.f32 %v5764, %v5980
      %v6099 = vadd.f32 %v5765, %v5985
      %v6100 = vadd.f32 %v5766, %v5990
      %v6101 = vadd.f32 %v5767, %v5995
      %v6102 = vadd.f32 %v5768, %v6000
      %v6103 = vadd.f32 %v5769, %v6005
      %v6104 = vadd.f32 %v5770, %v6010
      %v6105 = vadd.f32 %v5771, %v6015
      %v6106 = vadd.f32 %v5772, %v6020
      %v6107 = vadd.f32 %v5773, %v6025
      %v6108 = vadd.f32 %v5774, %v6030
      %v6109 = vadd.f32 %v5775, %v6035
      %v6110 = vadd.f32 %v5776, %v6040
      %v6111 = vadd.f32 %v5777, %v6045
      %v6112 = vadd.f32 %v5778, %v6050
      %v6113 = vadd.f32 %v5779, %v6055
      %v6114 = vadd.f32 %v5780, %v6060
      %v6115 = vadd.f32 %v5781, %v6065
      %v6116 = vadd.f32 %v5782, %v6070
      %v6117 = vadd.f32 %v5783, %v6075
      %v6118 = vadd.f32 %v5784, %v6080
      %v6119 = vld [vmem:[#allocation3 + $0x25] sm:$0xff]
      %v6120 = vld [vmem:[#allocation3 + $0x2d] sm:$0xff]
      %v6121 = vld [vmem:[#allocation3 + $0x35] sm:$0xff]
      %v6122 = vld [vmem:[#allocation3 + $0x3d] sm:$0xff]
      %v6123 = vld [vmem:[#allocation3 + $0x45] sm:$0xff]
      %v6124 = vld [vmem:[#allocation3 + $0x4d] sm:$0xff]
      %v6125 = vld [vmem:[#allocation3 + $0x55] sm:$0xff]
      %v6126 = vld [vmem:[#allocation3 + $0x5d] sm:$0xff]
      %v6127 = vld [vmem:[#allocation3 + $0x65] sm:$0xff]
      %v6128 = vld [vmem:[#allocation3 + $0x6d] sm:$0xff]
      %v6129 = vld [vmem:[#allocation3 + $0x75] sm:$0xff]
      %v6130 = vld [vmem:[#allocation3 + $0x7d] sm:$0xff]
      %v6131 = vld [vmem:[#allocation3 + $0x85] sm:$0xff]
      %v6132 = vld [vmem:[#allocation3 + $0x8d] sm:$0xff]
      %v6133 = vld [vmem:[#allocation3 + $0x95] sm:$0xff]
      %v6134 = vld [vmem:[#allocation3 + $0x9d] sm:$0xff]
      %v6135 = vld [vmem:[#allocation3 + $0xa5] sm:$0xff]
      %v6136 = vld [vmem:[#allocation3 + $0xad] sm:$0xff]
      %v6137 = vld [vmem:[#allocation3 + $0xb5] sm:$0xff]
      %v6138 = vld [vmem:[#allocation3 + $0xbd] sm:$0xff]
      %v6139 = vld [vmem:[#allocation3 + $0xc5] sm:$0xff]
      %v6140 = vld [vmem:[#allocation3 + $0xcd] sm:$0xff]
      %v6141 = vld [vmem:[#allocation3 + $0xd5] sm:$0xff]
      %v6142 = vld [vmem:[#allocation3 + $0xdd] sm:$0xff]
      %v6143 = vld [vmem:[#allocation3 + $0xe5] sm:$0xff]
      %v6144 = vld [vmem:[#allocation3 + $0xed] sm:$0xff]
      %v6145 = vld [vmem:[#allocation3 + $0xf5] sm:$0xff]
      %v6146 = vld [vmem:[#allocation3 + $0xfd] sm:$0xff]
      %v6147 = vld [vmem:[#allocation3 + $0x105] sm:$0xff]
      %v6148 = vld [vmem:[#allocation3 + $0x10d] sm:$0xff]
      %v6149 = vld [vmem:[#allocation3 + $0x115] sm:$0xff]
      %v6150 = vld [vmem:[#allocation3 + $0x11d] sm:$0xff]
      %v6151 = vld [vmem:[#allocation3 + $0x125] sm:$0xff]
      %v6152 = vld [vmem:[#allocation3 + $0x12d] sm:$0xff]
      %v6153 = vld [vmem:[#allocation3 + $0x135] sm:$0xff]
      %v6154 = vld [vmem:[#allocation3 + $0x13d] sm:$0x3f]
      %s6155 = scalar_lea.vmem %s5, 896
      %v6156 = vld [vmem:[%s6155] sm:$0xff]
      %v6157 = vld [vmem:[%s6155 + $0x8] sm:$0xff]
      %v6158 = vld [vmem:[%s6155 + $0x10] sm:$0xff]
      %v6159 = vld [vmem:[%s6155 + $0x18] sm:$0xff]
      %v6160 = vld [vmem:[%s6155 + $0x20] sm:$0xff]
      %v6161 = vld [vmem:[%s6155 + $0x28] sm:$0xff]
      %v6162 = vld [vmem:[%s6155 + $0x30] sm:$0xff]
      %v6163 = vld [vmem:[%s6155 + $0x38] sm:$0xff]
      %v6164 = vld [vmem:[%s6155 + $0x40] sm:$0xff]
      %v6165 = vld [vmem:[%s6155 + $0x48] sm:$0xff]
      %v6166 = vld [vmem:[%s6155 + $0x50] sm:$0xff]
      %v6167 = vld [vmem:[%s6155 + $0x58] sm:$0xff]
      %v6168 = vld [vmem:[%s6155 + $0x60] sm:$0xff]
      %v6169 = vld [vmem:[%s6155 + $0x68] sm:$0xff]
      %v6170 = vld [vmem:[%s6155 + $0x70] sm:$0xff]
      %v6171 = vld [vmem:[%s6155 + $0x78] sm:$0xff]
      %6172 = vmatprep.subr.mxu0 0.0
      %6173 = vmatpush1.msra.mxu0 %v6156
      %6174 = vmatprep.subr.mxu0 0.0
      %6175 = vmatpush1.msra.mxu0 %v6157
      %6176 = vmatprep.subr.mxu0 0.0
      %6177 = vmatpush1.msra.mxu0 %v6158
      %6178 = vmatprep.subr.mxu0 0.0
      %6179 = vmatpush1.msra.mxu0 %v6159
      %6180 = vmatprep.subr.mxu0 0.0
      %6181 = vmatpush1.msra.mxu0 %v6160
      %6182 = vmatprep.subr.mxu0 0.0
      %6183 = vmatpush1.msra.mxu0 %v6161
      %6184 = vmatprep.subr.mxu0 0.0
      %6185 = vmatpush1.msra.mxu0 %v6162
      %6186 = vmatprep.subr.mxu0 0.0
      %6187 = vmatpush1.msra.mxu0 %v6163
      %6188 = vmatprep.subr.mxu0 0.0
      %6189 = vmatpush1.msra.mxu0 %v6164
      %6190 = vmatprep.subr.mxu0 0.0
      %6191 = vmatpush1.msra.mxu0 %v6165
      %6192 = vmatprep.subr.mxu0 0.0
      %6193 = vmatpush1.msra.mxu0 %v6166
      %6194 = vmatprep.subr.mxu0 0.0
      %6195 = vmatpush1.msra.mxu0 %v6167
      %6196 = vmatprep.subr.mxu0 0.0
      %6197 = vmatpush1.msra.mxu0 %v6168
      %6198 = vmatprep.subr.mxu0 0.0
      %6199 = vmatpush1.msra.mxu0 %v6169
      %6200 = vmatprep.subr.mxu0 0.0
      %6201 = vmatpush1.msra.mxu0 %v6170
      %6202 = vmatprep.subr.mxu0 0.0
      %6203 = vmatpush1.msra.mxu0 %v6171
      %6204 = vmatprep.subr.mxu0 0.0
      %6205 = vmatpush1.msra.mxu0 0.0
      %6206 = vmatprep.subr.mxu0 0.0
      %6207 = vmatpush1.msra.mxu0 0.0
      %6208 = vmatprep.subr.mxu0 0.0
      %6209 = vmatpush1.msra.mxu0 0.0
      %6210 = vmatprep.subr.mxu0 0.0
      %6211 = vmatpush1.msra.mxu0 0.0
      %6212 = vmatprep.subr.mxu0 0.0
      %6213 = vmatpush1.msra.mxu0 0.0
      %6214 = vmatprep.subr.mxu0 0.0
      %6215 = vmatpush1.msra.mxu0 0.0
      %6216 = vmatprep.subr.mxu0 0.0
      %6217 = vmatpush1.msra.mxu0 0.0
      %6218 = vmatprep.subr.mxu0 0.0
      %6219 = vmatpush1.msra.mxu0 0.0
      %6220 = vmatprep.subr.mxu0 0.0
      %6221 = vmatpush1.msra.mxu0 0.0
      %6222 = vmatprep.subr.mxu0 0.0
      %6223 = vmatpush1.msra.mxu0 0.0
      %6224 = vmatprep.subr.mxu0 0.0
      %6225 = vmatpush1.msra.mxu0 0.0
      %6226 = vmatprep.subr.mxu0 0.0
      %6227 = vmatpush1.msra.mxu0 0.0
      %6228 = vmatprep.subr.mxu0 0.0
      %6229 = vmatpush1.msra.mxu0 0.0
      %6230 = vmatprep.subr.mxu0 0.0
      %6231 = vmatpush1.msra.mxu0 0.0
      %6232 = vmatprep.subr.mxu0 0.0
      %6233 = vmatpush1.msra.mxu0 0.0
      %6234 = vmatprep.subr.mxu0 0.0
      %6235 = vmatpush1.msra.mxu0 0.0
      %6236 = vmatprep.mubr.f32.mxu0 0.0
      %6237 = vmatmul.mubr.f32.gmra.mrb[0].mxu0 %v6119
      %v6238 = vpop.f32.mrb[0].mxu0
      %v6239 = vadd.f32 0.0, %v6238
      %v6240 = vpop.f32.mrb[0].mxu0
      %6241 = vmatprep.mubr.f32.mxu0 0.0
      %6242 = vmatmul.mubr.f32.gmra.mrb[0].mxu0 %v6120
      %v6243 = vpop.f32.mrb[0].mxu0
      %v6244 = vadd.f32 0.0, %v6243
      %v6245 = vpop.f32.mrb[0].mxu0
      %6246 = vmatprep.mubr.f32.mxu0 0.0
      %6247 = vmatmul.mubr.f32.gmra.mrb[0].mxu0 %v6121
      %v6248 = vpop.f32.mrb[0].mxu0
      %v6249 = vadd.f32 0.0, %v6248
      %v6250 = vpop.f32.mrb[0].mxu0
      %6251 = vmatprep.mubr.f32.mxu0 0.0
      %6252 = vmatmul.mubr.f32.gmra.mrb[0].mxu0 %v6122
      %v6253 = vpop.f32.mrb[0].mxu0
      %v6254 = vadd.f32 0.0, %v6253
      %v6255 = vpop.f32.mrb[0].mxu0
      %6256 = vmatprep.mubr.f32.mxu0 0.0
      %6257 = vmatmul.mubr.f32.gmra.mrb[0].mxu0 %v6123
      %v6258 = vpop.f32.mrb[0].mxu0
      %v6259 = vadd.f32 0.0, %v6258
      %v6260 = vpop.f32.mrb[0].mxu0
      %6261 = vmatprep.mubr.f32.mxu0 0.0
      %6262 = vmatmul.mubr.f32.gmra.mrb[0].mxu0 %v6124
      %v6263 = vpop.f32.mrb[0].mxu0
      %v6264 = vadd.f32 0.0, %v6263
      %v6265 = vpop.f32.mrb[0].mxu0
      %6266 = vmatprep.mubr.f32.mxu0 0.0
      %6267 = vmatmul.mubr.f32.gmra.mrb[0].mxu0 %v6125
      %v6268 = vpop.f32.mrb[0].mxu0
      %v6269 = vadd.f32 0.0, %v6268
      %v6270 = vpop.f32.mrb[0].mxu0
      %6271 = vmatprep.mubr.f32.mxu0 0.0
      %6272 = vmatmul.mubr.f32.gmra.mrb[0].mxu0 %v6126
      %v6273 = vpop.f32.mrb[0].mxu0
      %v6274 = vadd.f32 0.0, %v6273
      %v6275 = vpop.f32.mrb[0].mxu0
      %6276 = vmatprep.mubr.f32.mxu0 0.0
      %6277 = vmatmul.mubr.f32.gmra.mrb[0].mxu0 %v6127
      %v6278 = vpop.f32.mrb[0].mxu0
      %v6279 = vadd.f32 0.0, %v6278
      %v6280 = vpop.f32.mrb[0].mxu0
      %6281 = vmatprep.mubr.f32.mxu0 0.0
      %6282 = vmatmul.mubr.f32.gmra.mrb[0].mxu0 %v6128
      %v6283 = vpop.f32.mrb[0].mxu0
      %v6284 = vadd.f32 0.0, %v6283
      %v6285 = vpop.f32.mrb[0].mxu0
      %6286 = vmatprep.mubr.f32.mxu0 0.0
      %6287 = vmatmul.mubr.f32.gmra.mrb[0].mxu0 %v6129
      %v6288 = vpop.f32.mrb[0].mxu0
      %v6289 = vadd.f32 0.0, %v6288
      %v6290 = vpop.f32.mrb[0].mxu0
      %6291 = vmatprep.mubr.f32.mxu0 0.0
      %6292 = vmatmul.mubr.f32.gmra.mrb[0].mxu0 %v6130
      %v6293 = vpop.f32.mrb[0].mxu0
      %v6294 = vadd.f32 0.0, %v6293
      %v6295 = vpop.f32.mrb[0].mxu0
      %6296 = vmatprep.mubr.f32.mxu0 0.0
      %6297 = vmatmul.mubr.f32.gmra.mrb[0].mxu0 %v6131
      %v6298 = vpop.f32.mrb[0].mxu0
      %v6299 = vadd.f32 0.0, %v6298
      %v6300 = vpop.f32.mrb[0].mxu0
      %6301 = vmatprep.mubr.f32.mxu0 0.0
      %6302 = vmatmul.mubr.f32.gmra.mrb[0].mxu0 %v6132
      %v6303 = vpop.f32.mrb[0].mxu0
      %v6304 = vadd.f32 0.0, %v6303
      %v6305 = vpop.f32.mrb[0].mxu0
      %6306 = vmatprep.mubr.f32.mxu0 0.0
      %6307 = vmatmul.mubr.f32.gmra.mrb[0].mxu0 %v6133
      %v6308 = vpop.f32.mrb[0].mxu0
      %v6309 = vadd.f32 0.0, %v6308
      %v6310 = vpop.f32.mrb[0].mxu0
      %6311 = vmatprep.mubr.f32.mxu0 0.0
      %6312 = vmatmul.mubr.f32.gmra.mrb[0].mxu0 %v6134
      %v6313 = vpop.f32.mrb[0].mxu0
      %v6314 = vadd.f32 0.0, %v6313
      %v6315 = vpop.f32.mrb[0].mxu0
      %6316 = vmatprep.mubr.f32.mxu0 0.0
      %6317 = vmatmul.mubr.f32.gmra.mrb[0].mxu0 %v6135
      %v6318 = vpop.f32.mrb[0].mxu0
      %v6319 = vadd.f32 0.0, %v6318
      %v6320 = vpop.f32.mrb[0].mxu0
      %6321 = vmatprep.mubr.f32.mxu0 0.0
      %6322 = vmatmul.mubr.f32.gmra.mrb[0].mxu0 %v6136
      %v6323 = vpop.f32.mrb[0].mxu0
      %v6324 = vadd.f32 0.0, %v6323
      %v6325 = vpop.f32.mrb[0].mxu0
      %6326 = vmatprep.mubr.f32.mxu0 0.0
      %6327 = vmatmul.mubr.f32.gmra.mrb[0].mxu0 %v6137
      %v6328 = vpop.f32.mrb[0].mxu0
      %v6329 = vadd.f32 0.0, %v6328
      %v6330 = vpop.f32.mrb[0].mxu0
      %6331 = vmatprep.mubr.f32.mxu0 0.0
      %6332 = vmatmul.mubr.f32.gmra.mrb[0].mxu0 %v6138
      %v6333 = vpop.f32.mrb[0].mxu0
      %v6334 = vadd.f32 0.0, %v6333
      %v6335 = vpop.f32.mrb[0].mxu0
      %6336 = vmatprep.mubr.f32.mxu0 0.0
      %6337 = vmatmul.mubr.f32.gmra.mrb[0].mxu0 %v6139
      %v6338 = vpop.f32.mrb[0].mxu0
      %v6339 = vadd.f32 0.0, %v6338
      %v6340 = vpop.f32.mrb[0].mxu0
      %6341 = vmatprep.mubr.f32.mxu0 0.0
      %6342 = vmatmul.mubr.f32.gmra.mrb[0].mxu0 %v6140
      %v6343 = vpop.f32.mrb[0].mxu0
      %v6344 = vadd.f32 0.0, %v6343
      %v6345 = vpop.f32.mrb[0].mxu0
      %6346 = vmatprep.mubr.f32.mxu0 0.0
      %6347 = vmatmul.mubr.f32.gmra.mrb[0].mxu0 %v6141
      %v6348 = vpop.f32.mrb[0].mxu0
      %v6349 = vadd.f32 0.0, %v6348
      %v6350 = vpop.f32.mrb[0].mxu0
      %6351 = vmatprep.mubr.f32.mxu0 0.0
      %6352 = vmatmul.mubr.f32.gmra.mrb[0].mxu0 %v6142
      %v6353 = vpop.f32.mrb[0].mxu0
      %v6354 = vadd.f32 0.0, %v6353
      %v6355 = vpop.f32.mrb[0].mxu0
      %6356 = vmatprep.mubr.f32.mxu0 0.0
      %6357 = vmatmul.mubr.f32.gmra.mrb[0].mxu0 %v6143
      %v6358 = vpop.f32.mrb[0].mxu0
      %v6359 = vadd.f32 0.0, %v6358
      %v6360 = vpop.f32.mrb[0].mxu0
      %6361 = vmatprep.mubr.f32.mxu0 0.0
      %6362 = vmatmul.mubr.f32.gmra.mrb[0].mxu0 %v6144
      %v6363 = vpop.f32.mrb[0].mxu0
      %v6364 = vadd.f32 0.0, %v6363
      %v6365 = vpop.f32.mrb[0].mxu0
      %6366 = vmatprep.mubr.f32.mxu0 0.0
      %6367 = vmatmul.mubr.f32.gmra.mrb[0].mxu0 %v6145
      %v6368 = vpop.f32.mrb[0].mxu0
      %v6369 = vadd.f32 0.0, %v6368
      %v6370 = vpop.f32.mrb[0].mxu0
      %6371 = vmatprep.mubr.f32.mxu0 0.0
      %6372 = vmatmul.mubr.f32.gmra.mrb[0].mxu0 %v6146
      %v6373 = vpop.f32.mrb[0].mxu0
      %v6374 = vadd.f32 0.0, %v6373
      %v6375 = vpop.f32.mrb[0].mxu0
      %6376 = vmatprep.mubr.f32.mxu0 0.0
      %6377 = vmatmul.mubr.f32.gmra.mrb[0].mxu0 %v6147
      %v6378 = vpop.f32.mrb[0].mxu0
      %v6379 = vadd.f32 0.0, %v6378
      %v6380 = vpop.f32.mrb[0].mxu0
      %6381 = vmatprep.mubr.f32.mxu0 0.0
      %6382 = vmatmul.mubr.f32.gmra.mrb[0].mxu0 %v6148
      %v6383 = vpop.f32.mrb[0].mxu0
      %v6384 = vadd.f32 0.0, %v6383
      %v6385 = vpop.f32.mrb[0].mxu0
      %6386 = vmatprep.mubr.f32.mxu0 0.0
      %6387 = vmatmul.mubr.f32.gmra.mrb[0].mxu0 %v6149
      %v6388 = vpop.f32.mrb[0].mxu0
      %v6389 = vadd.f32 0.0, %v6388
      %v6390 = vpop.f32.mrb[0].mxu0
      %6391 = vmatprep.mubr.f32.mxu0 0.0
      %6392 = vmatmul.mubr.f32.gmra.mrb[0].mxu0 %v6150
      %v6393 = vpop.f32.mrb[0].mxu0
      %v6394 = vadd.f32 0.0, %v6393
      %v6395 = vpop.f32.mrb[0].mxu0
      %6396 = vmatprep.mubr.f32.mxu0 0.0
      %6397 = vmatmul.mubr.f32.gmra.mrb[0].mxu0 %v6151
      %v6398 = vpop.f32.mrb[0].mxu0
      %v6399 = vadd.f32 0.0, %v6398
      %v6400 = vpop.f32.mrb[0].mxu0
      %6401 = vmatprep.mubr.f32.mxu0 0.0
      %6402 = vmatmul.mubr.f32.gmra.mrb[0].mxu0 %v6152
      %v6403 = vpop.f32.mrb[0].mxu0
      %v6404 = vadd.f32 0.0, %v6403
      %v6405 = vpop.f32.mrb[0].mxu0
      %6406 = vmatprep.mubr.f32.mxu0 0.0
      %6407 = vmatmul.mubr.f32.gmra.mrb[0].mxu0 %v6153
      %v6408 = vpop.f32.mrb[0].mxu0
      %v6409 = vadd.f32 0.0, %v6408
      %v6410 = vpop.f32.mrb[0].mxu0
      %6411 = vmatprep.mubr.f32.mxu0 0.0
      %6412 = vmatmul.mubr.f32.gmra.mrb[0].mxu0 %v6154
      %v6413 = vpop.f32.mrb[0].mxu0
      %v6414 = vadd.f32 0.0, %v6413
      %v6415 = vpop.f32.mrb[0].mxu0
      %6416 = vdwg.mxu0
      %v6417 = vadd.f32 %v6083, %v6239
      %v6418 = vadd.f32 %v6084, %v6244
      %v6419 = vadd.f32 %v6085, %v6249
      %v6420 = vadd.f32 %v6086, %v6254
      %v6421 = vadd.f32 %v6087, %v6259
      %v6422 = vadd.f32 %v6088, %v6264
      %v6423 = vadd.f32 %v6089, %v6269
      %v6424 = vadd.f32 %v6090, %v6274
      %v6425 = vadd.f32 %v6091, %v6279
      %v6426 = vadd.f32 %v6092, %v6284
      %v6427 = vadd.f32 %v6093, %v6289
      %v6428 = vadd.f32 %v6094, %v6294
      %v6429 = vadd.f32 %v6095, %v6299
      %v6430 = vadd.f32 %v6096, %v6304
      %v6431 = vadd.f32 %v6097, %v6309
      %v6432 = vadd.f32 %v6098, %v6314
      %v6433 = vadd.f32 %v6099, %v6319
      %v6434 = vadd.f32 %v6100, %v6324
      %v6435 = vadd.f32 %v6101, %v6329
      %v6436 = vadd.f32 %v6102, %v6334
      %v6437 = vadd.f32 %v6103, %v6339
      %v6438 = vadd.f32 %v6104, %v6344
      %v6439 = vadd.f32 %v6105, %v6349
      %v6440 = vadd.f32 %v6106, %v6354
      %v6441 = vadd.f32 %v6107, %v6359
      %v6442 = vadd.f32 %v6108, %v6364
      %v6443 = vadd.f32 %v6109, %v6369
      %v6444 = vadd.f32 %v6110, %v6374
      %v6445 = vadd.f32 %v6111, %v6379
      %v6446 = vadd.f32 %v6112, %v6384
      %v6447 = vadd.f32 %v6113, %v6389
      %v6448 = vadd.f32 %v6114, %v6394
      %v6449 = vadd.f32 %v6115, %v6399
      %v6450 = vadd.f32 %v6116, %v6404
      %v6451 = vadd.f32 %v6117, %v6409
      %v6452 = vadd.f32 %v6118, %v6414
      %v6453 = vld [vmem:[#allocation3 + $0x26] sm:$0xff]
      %v6454 = vld [vmem:[#allocation3 + $0x2e] sm:$0xff]
      %v6455 = vld [vmem:[#allocation3 + $0x36] sm:$0xff]
      %v6456 = vld [vmem:[#allocation3 + $0x3e] sm:$0xff]
      %v6457 = vld [vmem:[#allocation3 + $0x46] sm:$0xff]
      %v6458 = vld [vmem:[#allocation3 + $0x4e] sm:$0xff]
      %v6459 = vld [vmem:[#allocation3 + $0x56] sm:$0xff]
      %v6460 = vld [vmem:[#allocation3 + $0x5e] sm:$0xff]
      %v6461 = vld [vmem:[#allocation3 + $0x66] sm:$0xff]
      %v6462 = vld [vmem:[#allocation3 + $0x6e] sm:$0xff]
      %v6463 = vld [vmem:[#allocation3 + $0x76] sm:$0xff]
      %v6464 = vld [vmem:[#allocation3 + $0x7e] sm:$0xff]
      %v6465 = vld [vmem:[#allocation3 + $0x86] sm:$0xff]
      %v6466 = vld [vmem:[#allocation3 + $0x8e] sm:$0xff]
      %v6467 = vld [vmem:[#allocation3 + $0x96] sm:$0xff]
      %v6468 = vld [vmem:[#allocation3 + $0x9e] sm:$0xff]
      %v6469 = vld [vmem:[#allocation3 + $0xa6] sm:$0xff]
      %v6470 = vld [vmem:[#allocation3 + $0xae] sm:$0xff]
      %v6471 = vld [vmem:[#allocation3 + $0xb6] sm:$0xff]
      %v6472 = vld [vmem:[#allocation3 + $0xbe] sm:$0xff]
      %v6473 = vld [vmem:[#allocation3 + $0xc6] sm:$0xff]
      %v6474 = vld [vmem:[#allocation3 + $0xce] sm:$0xff]
      %v6475 = vld [vmem:[#allocation3 + $0xd6] sm:$0xff]
      %v6476 = vld [vmem:[#allocation3 + $0xde] sm:$0xff]
      %v6477 = vld [vmem:[#allocation3 + $0xe6] sm:$0xff]
      %v6478 = vld [vmem:[#allocation3 + $0xee] sm:$0xff]
      %v6479 = vld [vmem:[#allocation3 + $0xf6] sm:$0xff]
      %v6480 = vld [vmem:[#allocation3 + $0xfe] sm:$0xff]
      %v6481 = vld [vmem:[#allocation3 + $0x106] sm:$0xff]
      %v6482 = vld [vmem:[#allocation3 + $0x10e] sm:$0xff]
      %v6483 = vld [vmem:[#allocation3 + $0x116] sm:$0xff]
      %v6484 = vld [vmem:[#allocation3 + $0x11e] sm:$0xff]
      %v6485 = vld [vmem:[#allocation3 + $0x126] sm:$0xff]
      %v6486 = vld [vmem:[#allocation3 + $0x12e] sm:$0xff]
      %v6487 = vld [vmem:[#allocation3 + $0x136] sm:$0xff]
      %v6488 = vld [vmem:[#allocation3 + $0x13e] sm:$0x3f]
      %s6489 = scalar_lea.vmem %s5, 1024
      %v6490 = vld [vmem:[%s6489] sm:$0xff]
      %v6491 = vld [vmem:[%s6489 + $0x8] sm:$0xff]
      %v6492 = vld [vmem:[%s6489 + $0x10] sm:$0xff]
      %v6493 = vld [vmem:[%s6489 + $0x18] sm:$0xff]
      %v6494 = vld [vmem:[%s6489 + $0x20] sm:$0xff]
      %v6495 = vld [vmem:[%s6489 + $0x28] sm:$0xff]
      %v6496 = vld [vmem:[%s6489 + $0x30] sm:$0xff]
      %v6497 = vld [vmem:[%s6489 + $0x38] sm:$0xff]
      %v6498 = vld [vmem:[%s6489 + $0x40] sm:$0xff]
      %v6499 = vld [vmem:[%s6489 + $0x48] sm:$0xff]
      %v6500 = vld [vmem:[%s6489 + $0x50] sm:$0xff]
      %v6501 = vld [vmem:[%s6489 + $0x58] sm:$0xff]
      %v6502 = vld [vmem:[%s6489 + $0x60] sm:$0xff]
      %v6503 = vld [vmem:[%s6489 + $0x68] sm:$0xff]
      %v6504 = vld [vmem:[%s6489 + $0x70] sm:$0xff]
      %v6505 = vld [vmem:[%s6489 + $0x78] sm:$0xff]
      %6506 = vmatprep.subr.mxu0 0.0
      %6507 = vmatpush1.msra.mxu0 %v6490
      %6508 = vmatprep.subr.mxu0 0.0
      %6509 = vmatpush1.msra.mxu0 %v6491
      %6510 = vmatprep.subr.mxu0 0.0
      %6511 = vmatpush1.msra.mxu0 %v6492
      %6512 = vmatprep.subr.mxu0 0.0
      %6513 = vmatpush1.msra.mxu0 %v6493
      %6514 = vmatprep.subr.mxu0 0.0
      %6515 = vmatpush1.msra.mxu0 %v6494
      %6516 = vmatprep.subr.mxu0 0.0
      %6517 = vmatpush1.msra.mxu0 %v6495
      %6518 = vmatprep.subr.mxu0 0.0
      %6519 = vmatpush1.msra.mxu0 %v6496
      %6520 = vmatprep.subr.mxu0 0.0
      %6521 = vmatpush1.msra.mxu0 %v6497
      %6522 = vmatprep.subr.mxu0 0.0
      %6523 = vmatpush1.msra.mxu0 %v6498
      %6524 = vmatprep.subr.mxu0 0.0
      %6525 = vmatpush1.msra.mxu0 %v6499
      %6526 = vmatprep.subr.mxu0 0.0
      %6527 = vmatpush1.msra.mxu0 %v6500
      %6528 = vmatprep.subr.mxu0 0.0
      %6529 = vmatpush1.msra.mxu0 %v6501
      %6530 = vmatprep.subr.mxu0 0.0
      %6531 = vmatpush1.msra.mxu0 %v6502
      %6532 = vmatprep.subr.mxu0 0.0
      %6533 = vmatpush1.msra.mxu0 %v6503
      %6534 = vmatprep.subr.mxu0 0.0
      %6535 = vmatpush1.msra.mxu0 %v6504
      %6536 = vmatprep.subr.mxu0 0.0
      %6537 = vmatpush1.msra.mxu0 %v6505
      %6538 = vmatprep.subr.mxu0 0.0
      %6539 = vmatpush1.msra.mxu0 0.0
      %6540 = vmatprep.subr.mxu0 0.0
      %6541 = vmatpush1.msra.mxu0 0.0
      %6542 = vmatprep.subr.mxu0 0.0
      %6543 = vmatpush1.msra.mxu0 0.0
      %6544 = vmatprep.subr.mxu0 0.0
      %6545 = vmatpush1.msra.mxu0 0.0
      %6546 = vmatprep.subr.mxu0 0.0
      %6547 = vmatpush1.msra.mxu0 0.0
      %6548 = vmatprep.subr.mxu0 0.0
      %6549 = vmatpush1.msra.mxu0 0.0
      %6550 = vmatprep.subr.mxu0 0.0
      %6551 = vmatpush1.msra.mxu0 0.0
      %6552 = vmatprep.subr.mxu0 0.0
      %6553 = vmatpush1.msra.mxu0 0.0
      %6554 = vmatprep.subr.mxu0 0.0
      %6555 = vmatpush1.msra.mxu0 0.0
      %6556 = vmatprep.subr.mxu0 0.0
      %6557 = vmatpush1.msra.mxu0 0.0
      %6558 = vmatprep.subr.mxu0 0.0
      %6559 = vmatpush1.msra.mxu0 0.0
      %6560 = vmatprep.subr.mxu0 0.0
      %6561 = vmatpush1.msra.mxu0 0.0
      %6562 = vmatprep.subr.mxu0 0.0
      %6563 = vmatpush1.msra.mxu0 0.0
      %6564 = vmatprep.subr.mxu0 0.0
      %6565 = vmatpush1.msra.mxu0 0.0
      %6566 = vmatprep.subr.mxu0 0.0
      %6567 = vmatpush1.msra.mxu0 0.0
      %6568 = vmatprep.subr.mxu0 0.0
      %6569 = vmatpush1.msra.mxu0 0.0
      %6570 = vmatprep.mubr.f32.mxu0 0.0
      %6571 = vmatmul.mubr.f32.gmra.mrb[0].mxu0 %v6453
      %v6572 = vpop.f32.mrb[0].mxu0
      %v6573 = vadd.f32 0.0, %v6572
      %v6574 = vpop.f32.mrb[0].mxu0
      %6575 = vmatprep.mubr.f32.mxu0 0.0
      %6576 = vmatmul.mubr.f32.gmra.mrb[0].mxu0 %v6454
      %v6577 = vpop.f32.mrb[0].mxu0
      %v6578 = vadd.f32 0.0, %v6577
      %v6579 = vpop.f32.mrb[0].mxu0
      %6580 = vmatprep.mubr.f32.mxu0 0.0
      %6581 = vmatmul.mubr.f32.gmra.mrb[0].mxu0 %v6455
      %v6582 = vpop.f32.mrb[0].mxu0
      %v6583 = vadd.f32 0.0, %v6582
      %v6584 = vpop.f32.mrb[0].mxu0
      %6585 = vmatprep.mubr.f32.mxu0 0.0
      %6586 = vmatmul.mubr.f32.gmra.mrb[0].mxu0 %v6456
      %v6587 = vpop.f32.mrb[0].mxu0
      %v6588 = vadd.f32 0.0, %v6587
      %v6589 = vpop.f32.mrb[0].mxu0
      %6590 = vmatprep.mubr.f32.mxu0 0.0
      %6591 = vmatmul.mubr.f32.gmra.mrb[0].mxu0 %v6457
      %v6592 = vpop.f32.mrb[0].mxu0
      %v6593 = vadd.f32 0.0, %v6592
      %v6594 = vpop.f32.mrb[0].mxu0
      %6595 = vmatprep.mubr.f32.mxu0 0.0
      %6596 = vmatmul.mubr.f32.gmra.mrb[0].mxu0 %v6458
      %v6597 = vpop.f32.mrb[0].mxu0
      %v6598 = vadd.f32 0.0, %v6597
      %v6599 = vpop.f32.mrb[0].mxu0
      %6600 = vmatprep.mubr.f32.mxu0 0.0
      %6601 = vmatmul.mubr.f32.gmra.mrb[0].mxu0 %v6459
      %v6602 = vpop.f32.mrb[0].mxu0
      %v6603 = vadd.f32 0.0, %v6602
      %v6604 = vpop.f32.mrb[0].mxu0
      %6605 = vmatprep.mubr.f32.mxu0 0.0
      %6606 = vmatmul.mubr.f32.gmra.mrb[0].mxu0 %v6460
      %v6607 = vpop.f32.mrb[0].mxu0
      %v6608 = vadd.f32 0.0, %v6607
      %v6609 = vpop.f32.mrb[0].mxu0
      %6610 = vmatprep.mubr.f32.mxu0 0.0
      %6611 = vmatmul.mubr.f32.gmra.mrb[0].mxu0 %v6461
      %v6612 = vpop.f32.mrb[0].mxu0
      %v6613 = vadd.f32 0.0, %v6612
      %v6614 = vpop.f32.mrb[0].mxu0
      %6615 = vmatprep.mubr.f32.mxu0 0.0
      %6616 = vmatmul.mubr.f32.gmra.mrb[0].mxu0 %v6462
      %v6617 = vpop.f32.mrb[0].mxu0
      %v6618 = vadd.f32 0.0, %v6617
      %v6619 = vpop.f32.mrb[0].mxu0
      %6620 = vmatprep.mubr.f32.mxu0 0.0
      %6621 = vmatmul.mubr.f32.gmra.mrb[0].mxu0 %v6463
      %v6622 = vpop.f32.mrb[0].mxu0
      %v6623 = vadd.f32 0.0, %v6622
      %v6624 = vpop.f32.mrb[0].mxu0
      %6625 = vmatprep.mubr.f32.mxu0 0.0
      %6626 = vmatmul.mubr.f32.gmra.mrb[0].mxu0 %v6464
      %v6627 = vpop.f32.mrb[0].mxu0
      %v6628 = vadd.f32 0.0, %v6627
      %v6629 = vpop.f32.mrb[0].mxu0
      %6630 = vmatprep.mubr.f32.mxu0 0.0
      %6631 = vmatmul.mubr.f32.gmra.mrb[0].mxu0 %v6465
      %v6632 = vpop.f32.mrb[0].mxu0
      %v6633 = vadd.f32 0.0, %v6632
      %v6634 = vpop.f32.mrb[0].mxu0
      %6635 = vmatprep.mubr.f32.mxu0 0.0
      %6636 = vmatmul.mubr.f32.gmra.mrb[0].mxu0 %v6466
      %v6637 = vpop.f32.mrb[0].mxu0
      %v6638 = vadd.f32 0.0, %v6637
      %v6639 = vpop.f32.mrb[0].mxu0
      %6640 = vmatprep.mubr.f32.mxu0 0.0
      %6641 = vmatmul.mubr.f32.gmra.mrb[0].mxu0 %v6467
      %v6642 = vpop.f32.mrb[0].mxu0
      %v6643 = vadd.f32 0.0, %v6642
      %v6644 = vpop.f32.mrb[0].mxu0
      %6645 = vmatprep.mubr.f32.mxu0 0.0
      %6646 = vmatmul.mubr.f32.gmra.mrb[0].mxu0 %v6468
      %v6647 = vpop.f32.mrb[0].mxu0
      %v6648 = vadd.f32 0.0, %v6647
      %v6649 = vpop.f32.mrb[0].mxu0
      %6650 = vmatprep.mubr.f32.mxu0 0.0
      %6651 = vmatmul.mubr.f32.gmra.mrb[0].mxu0 %v6469
      %v6652 = vpop.f32.mrb[0].mxu0
      %v6653 = vadd.f32 0.0, %v6652
      %v6654 = vpop.f32.mrb[0].mxu0
      %6655 = vmatprep.mubr.f32.mxu0 0.0
      %6656 = vmatmul.mubr.f32.gmra.mrb[0].mxu0 %v6470
      %v6657 = vpop.f32.mrb[0].mxu0
      %v6658 = vadd.f32 0.0, %v6657
      %v6659 = vpop.f32.mrb[0].mxu0
      %6660 = vmatprep.mubr.f32.mxu0 0.0
      %6661 = vmatmul.mubr.f32.gmra.mrb[0].mxu0 %v6471
      %v6662 = vpop.f32.mrb[0].mxu0
      %v6663 = vadd.f32 0.0, %v6662
      %v6664 = vpop.f32.mrb[0].mxu0
      %6665 = vmatprep.mubr.f32.mxu0 0.0
      %6666 = vmatmul.mubr.f32.gmra.mrb[0].mxu0 %v6472
      %v6667 = vpop.f32.mrb[0].mxu0
      %v6668 = vadd.f32 0.0, %v6667
      %v6669 = vpop.f32.mrb[0].mxu0
      %6670 = vmatprep.mubr.f32.mxu0 0.0
      %6671 = vmatmul.mubr.f32.gmra.mrb[0].mxu0 %v6473
      %v6672 = vpop.f32.mrb[0].mxu0
      %v6673 = vadd.f32 0.0, %v6672
      %v6674 = vpop.f32.mrb[0].mxu0
      %6675 = vmatprep.mubr.f32.mxu0 0.0
      %6676 = vmatmul.mubr.f32.gmra.mrb[0].mxu0 %v6474
      %v6677 = vpop.f32.mrb[0].mxu0
      %v6678 = vadd.f32 0.0, %v6677
      %v6679 = vpop.f32.mrb[0].mxu0
      %6680 = vmatprep.mubr.f32.mxu0 0.0
      %6681 = vmatmul.mubr.f32.gmra.mrb[0].mxu0 %v6475
      %v6682 = vpop.f32.mrb[0].mxu0
      %v6683 = vadd.f32 0.0, %v6682
      %v6684 = vpop.f32.mrb[0].mxu0
      %6685 = vmatprep.mubr.f32.mxu0 0.0
      %6686 = vmatmul.mubr.f32.gmra.mrb[0].mxu0 %v6476
      %v6687 = vpop.f32.mrb[0].mxu0
      %v6688 = vadd.f32 0.0, %v6687
      %v6689 = vpop.f32.mrb[0].mxu0
      %6690 = vmatprep.mubr.f32.mxu0 0.0
      %6691 = vmatmul.mubr.f32.gmra.mrb[0].mxu0 %v6477
      %v6692 = vpop.f32.mrb[0].mxu0
      %v6693 = vadd.f32 0.0, %v6692
      %v6694 = vpop.f32.mrb[0].mxu0
      %6695 = vmatprep.mubr.f32.mxu0 0.0
      %6696 = vmatmul.mubr.f32.gmra.mrb[0].mxu0 %v6478
      %v6697 = vpop.f32.mrb[0].mxu0
      %v6698 = vadd.f32 0.0, %v6697
      %v6699 = vpop.f32.mrb[0].mxu0
      %6700 = vmatprep.mubr.f32.mxu0 0.0
      %6701 = vmatmul.mubr.f32.gmra.mrb[0].mxu0 %v6479
      %v6702 = vpop.f32.mrb[0].mxu0
      %v6703 = vadd.f32 0.0, %v6702
      %v6704 = vpop.f32.mrb[0].mxu0
      %6705 = vmatprep.mubr.f32.mxu0 0.0
      %6706 = vmatmul.mubr.f32.gmra.mrb[0].mxu0 %v6480
      %v6707 = vpop.f32.mrb[0].mxu0
      %v6708 = vadd.f32 0.0, %v6707
      %v6709 = vpop.f32.mrb[0].mxu0
      %6710 = vmatprep.mubr.f32.mxu0 0.0
      %6711 = vmatmul.mubr.f32.gmra.mrb[0].mxu0 %v6481
      %v6712 = vpop.f32.mrb[0].mxu0
      %v6713 = vadd.f32 0.0, %v6712
      %v6714 = vpop.f32.mrb[0].mxu0
      %6715 = vmatprep.mubr.f32.mxu0 0.0
      %6716 = vmatmul.mubr.f32.gmra.mrb[0].mxu0 %v6482
      %v6717 = vpop.f32.mrb[0].mxu0
      %v6718 = vadd.f32 0.0, %v6717
      %v6719 = vpop.f32.mrb[0].mxu0
      %6720 = vmatprep.mubr.f32.mxu0 0.0
      %6721 = vmatmul.mubr.f32.gmra.mrb[0].mxu0 %v6483
      %v6722 = vpop.f32.mrb[0].mxu0
      %v6723 = vadd.f32 0.0, %v6722
      %v6724 = vpop.f32.mrb[0].mxu0
      %6725 = vmatprep.mubr.f32.mxu0 0.0
      %6726 = vmatmul.mubr.f32.gmra.mrb[0].mxu0 %v6484
      %v6727 = vpop.f32.mrb[0].mxu0
      %v6728 = vadd.f32 0.0, %v6727
      %v6729 = vpop.f32.mrb[0].mxu0
      %6730 = vmatprep.mubr.f32.mxu0 0.0
      %6731 = vmatmul.mubr.f32.gmra.mrb[0].mxu0 %v6485
      %v6732 = vpop.f32.mrb[0].mxu0
      %v6733 = vadd.f32 0.0, %v6732
      %v6734 = vpop.f32.mrb[0].mxu0
      %6735 = vmatprep.mubr.f32.mxu0 0.0
      %6736 = vmatmul.mubr.f32.gmra.mrb[0].mxu0 %v6486
      %v6737 = vpop.f32.mrb[0].mxu0
      %v6738 = vadd.f32 0.0, %v6737
      %v6739 = vpop.f32.mrb[0].mxu0
      %6740 = vmatprep.mubr.f32.mxu0 0.0
      %6741 = vmatmul.mubr.f32.gmra.mrb[0].mxu0 %v6487
      %v6742 = vpop.f32.mrb[0].mxu0
      %v6743 = vadd.f32 0.0, %v6742
      %v6744 = vpop.f32.mrb[0].mxu0
      %6745 = vmatprep.mubr.f32.mxu0 0.0
      %6746 = vmatmul.mubr.f32.gmra.mrb[0].mxu0 %v6488
      %v6747 = vpop.f32.mrb[0].mxu0
      %v6748 = vadd.f32 0.0, %v6747
      %v6749 = vpop.f32.mrb[0].mxu0
      %6750 = vdwg.mxu0
      %v6751 = vadd.f32 %v6417, %v6573
      %v6752 = vadd.f32 %v6418, %v6578
      %v6753 = vadd.f32 %v6419, %v6583
      %v6754 = vadd.f32 %v6420, %v6588
      %v6755 = vadd.f32 %v6421, %v6593
      %v6756 = vadd.f32 %v6422, %v6598
      %v6757 = vadd.f32 %v6423, %v6603
      %v6758 = vadd.f32 %v6424, %v6608
      %v6759 = vadd.f32 %v6425, %v6613
      %v6760 = vadd.f32 %v6426, %v6618
      %v6761 = vadd.f32 %v6427, %v6623
      %v6762 = vadd.f32 %v6428, %v6628
      %v6763 = vadd.f32 %v6429, %v6633
      %v6764 = vadd.f32 %v6430, %v6638
      %v6765 = vadd.f32 %v6431, %v6643
      %v6766 = vadd.f32 %v6432, %v6648
      %v6767 = vadd.f32 %v6433, %v6653
      %v6768 = vadd.f32 %v6434, %v6658
      %v6769 = vadd.f32 %v6435, %v6663
      %v6770 = vadd.f32 %v6436, %v6668
      %v6771 = vadd.f32 %v6437, %v6673
      %v6772 = vadd.f32 %v6438, %v6678
      %v6773 = vadd.f32 %v6439, %v6683
      %v6774 = vadd.f32 %v6440, %v6688
      %v6775 = vadd.f32 %v6441, %v6693
      %v6776 = vadd.f32 %v6442, %v6698
      %v6777 = vadd.f32 %v6443, %v6703
      %v6778 = vadd.f32 %v6444, %v6708
      %v6779 = vadd.f32 %v6445, %v6713
      %v6780 = vadd.f32 %v6446, %v6718
      %v6781 = vadd.f32 %v6447, %v6723
      %v6782 = vadd.f32 %v6448, %v6728
      %v6783 = vadd.f32 %v6449, %v6733
      %v6784 = vadd.f32 %v6450, %v6738
      %v6785 = vadd.f32 %v6451, %v6743
      %v6786 = vadd.f32 %v6452, %v6748
      %v6787 = vld [vmem:[%s6] sm:$0x1]
      %v6789 = vlaneseq
      %v6790 = vshrl.u32 %v6789, 7
      %v6791 = vsub.s32 0, %v6790
      %v6792 = vrot.slane %v6787, %v6791
      %v6794 = vadd.f32 %v6751, %v6792
      %v6795 = vadd.f32 %v6752, %v6792
      %v6796 = vadd.f32 %v6753, %v6792
      %v6797 = vadd.f32 %v6754, %v6792
      %v6798 = vadd.f32 %v6755, %v6792
      %v6799 = vadd.f32 %v6756, %v6792
      %v6800 = vadd.f32 %v6757, %v6792
      %v6801 = vadd.f32 %v6758, %v6792
      %v6802 = vadd.f32 %v6759, %v6792
      %v6803 = vadd.f32 %v6760, %v6792
      %v6804 = vadd.f32 %v6761, %v6792
      %v6805 = vadd.f32 %v6762, %v6792
      %v6806 = vadd.f32 %v6763, %v6792
      %v6807 = vadd.f32 %v6764, %v6792
      %v6808 = vadd.f32 %v6765, %v6792
      %v6809 = vadd.f32 %v6766, %v6792
      %v6810 = vadd.f32 %v6767, %v6792
      %v6811 = vadd.f32 %v6768, %v6792
      %v6812 = vadd.f32 %v6769, %v6792
      %v6813 = vadd.f32 %v6770, %v6792
      %v6814 = vadd.f32 %v6771, %v6792
      %v6815 = vadd.f32 %v6772, %v6792
      %v6816 = vadd.f32 %v6773, %v6792
      %v6817 = vadd.f32 %v6774, %v6792
      %v6818 = vadd.f32 %v6775, %v6792
      %v6819 = vadd.f32 %v6776, %v6792
      %v6820 = vadd.f32 %v6777, %v6792
      %v6821 = vadd.f32 %v6778, %v6792
      %v6822 = vadd.f32 %v6779, %v6792
      %v6823 = vadd.f32 %v6780, %v6792
      %v6824 = vadd.f32 %v6781, %v6792
      %v6825 = vadd.f32 %v6782, %v6792
      %v6826 = vadd.f32 %v6783, %v6792
      %v6827 = vadd.f32 %v6784, %v6792
      %v6828 = vadd.f32 %v6785, %v6792
      %v6829 = vadd.f32 %v6786, %v6792
      %v6830 = vmax.f32 %v6794, 0.0
      %v6831 = vmax.f32 %v6795, 0.0
      %v6832 = vmax.f32 %v6796, 0.0
      %v6833 = vmax.f32 %v6797, 0.0
      %v6834 = vmax.f32 %v6798, 0.0
      %v6835 = vmax.f32 %v6799, 0.0
      %v6836 = vmax.f32 %v6800, 0.0
      %v6837 = vmax.f32 %v6801, 0.0
      %v6838 = vmax.f32 %v6802, 0.0
      %v6839 = vmax.f32 %v6803, 0.0
      %v6840 = vmax.f32 %v6804, 0.0
      %v6841 = vmax.f32 %v6805, 0.0
      %v6842 = vmax.f32 %v6806, 0.0
      %v6843 = vmax.f32 %v6807, 0.0
      %v6844 = vmax.f32 %v6808, 0.0
      %v6845 = vmax.f32 %v6809, 0.0
      %v6846 = vmax.f32 %v6810, 0.0
      %v6847 = vmax.f32 %v6811, 0.0
      %v6848 = vmax.f32 %v6812, 0.0
      %v6849 = vmax.f32 %v6813, 0.0
      %v6850 = vmax.f32 %v6814, 0.0
      %v6851 = vmax.f32 %v6815, 0.0
      %v6852 = vmax.f32 %v6816, 0.0
      %v6853 = vmax.f32 %v6817, 0.0
      %v6854 = vmax.f32 %v6818, 0.0
      %v6855 = vmax.f32 %v6819, 0.0
      %v6856 = vmax.f32 %v6820, 0.0
      %v6857 = vmax.f32 %v6821, 0.0
      %v6858 = vmax.f32 %v6822, 0.0
      %v6859 = vmax.f32 %v6823, 0.0
      %v6860 = vmax.f32 %v6824, 0.0
      %v6861 = vmax.f32 %v6825, 0.0
      %v6862 = vmax.f32 %v6826, 0.0
      %v6863 = vmax.f32 %v6827, 0.0
      %v6864 = vmax.f32 %v6828, 0.0
      %v6865 = vmax.f32 %v6829, 0.0
      %v6866 = vld [vmem:[#allocation2 + $0x13] sm:$0xff]
      %v6867 = vld [vmem:[#allocation2 + $0x1b] sm:$0xff]
      %v6868 = vld [vmem:[#allocation2 + $0x23] sm:$0xff]
      %v6869 = vld [vmem:[#allocation2 + $0x2b] sm:$0xff]
      %v6870 = vld [vmem:[#allocation2 + $0x33] sm:$0xff]
      %v6871 = vld [vmem:[#allocation2 + $0x3b] sm:$0xff]
      %v6872 = vld [vmem:[#allocation2 + $0x43] sm:$0xff]
      %v6873 = vld [vmem:[#allocation2 + $0x4b] sm:$0xff]
      %v6874 = vld [vmem:[#allocation2 + $0x53] sm:$0xff]
      %v6875 = vld [vmem:[#allocation2 + $0x5b] sm:$0xff]
      %v6876 = vld [vmem:[#allocation2 + $0x63] sm:$0xff]
      %v6877 = vld [vmem:[#allocation2 + $0x6b] sm:$0xff]
      %v6878 = vld [vmem:[#allocation2 + $0x73] sm:$0xff]
      %v6879 = vld [vmem:[#allocation2 + $0x7b] sm:$0xff]
      %v6880 = vld [vmem:[#allocation2 + $0x83] sm:$0xff]
      %v6881 = vld [vmem:[#allocation2 + $0x8b] sm:$0xff]
      %v6882 = vld [vmem:[#allocation2 + $0x93] sm:$0xff]
      %v6883 = vld [vmem:[#allocation2 + $0x9b] sm:$0xff]
      %v6884 = vld [vmem:[#allocation2 + $0xa3] sm:$0xff]
      %v6885 = vld [vmem:[#allocation2 + $0xab] sm:$0xff]
      %v6886 = vld [vmem:[#allocation2 + $0xb3] sm:$0xff]
      %v6887 = vld [vmem:[#allocation2 + $0xbb] sm:$0xff]
      %v6888 = vld [vmem:[#allocation2 + $0xc3] sm:$0xff]
      %v6889 = vld [vmem:[#allocation2 + $0xcb] sm:$0xff]
      %v6890 = vld [vmem:[#allocation2 + $0xd3] sm:$0xff]
      %v6891 = vld [vmem:[#allocation2 + $0xdb] sm:$0xff]
      %v6892 = vld [vmem:[#allocation2 + $0xe3] sm:$0xff]
      %v6893 = vld [vmem:[#allocation2 + $0xeb] sm:$0xff]
      %v6894 = vld [vmem:[#allocation2 + $0xf3] sm:$0xff]
      %v6895 = vld [vmem:[#allocation2 + $0xfb] sm:$0xff]
      %v6896 = vld [vmem:[#allocation2 + $0x103] sm:$0xff]
      %v6897 = vld [vmem:[#allocation2 + $0x10b] sm:$0xff]
      %v6898 = vld [vmem:[#allocation2 + $0x113] sm:$0xff]
      %v6899 = vld [vmem:[#allocation2 + $0x11b] sm:$0xff]
      %v6900 = vld [vmem:[#allocation2 + $0x123] sm:$0xff]
      %v6901 = vld [vmem:[#allocation2 + $0x12b] sm:$0x3f]
      %v6902 = vld [vmem:[%s7] sm:$0xff]
      %v6903 = vld [vmem:[%s7 + $0x8] sm:$0xff]
      %v6904 = vld [vmem:[%s7 + $0x10] sm:$0xff]
      %v6905 = vld [vmem:[%s7 + $0x18] sm:$0xff]
      %v6906 = vld [vmem:[%s7 + $0x20] sm:$0xff]
      %v6907 = vld [vmem:[%s7 + $0x28] sm:$0xff]
      %v6908 = vld [vmem:[%s7 + $0x30] sm:$0xff]
      %v6909 = vld [vmem:[%s7 + $0x38] sm:$0xff]
      %v6910 = vld [vmem:[%s7 + $0x40] sm:$0xff]
      %v6911 = vld [vmem:[%s7 + $0x48] sm:$0xff]
      %v6912 = vld [vmem:[%s7 + $0x50] sm:$0xff]
      %v6913 = vld [vmem:[%s7 + $0x58] sm:$0xff]
      %v6914 = vld [vmem:[%s7 + $0x60] sm:$0xff]
      %v6915 = vld [vmem:[%s7 + $0x68] sm:$0xff]
      %v6916 = vld [vmem:[%s7 + $0x70] sm:$0xff]
      %v6917 = vld [vmem:[%s7 + $0x78] sm:$0xff]
      %6918 = vmatprep.subr.mxu0 0.0
      %6919 = vmatpush1.msra.mxu0 %v6902
      %6920 = vmatprep.subr.mxu0 0.0
      %6921 = vmatpush1.msra.mxu0 %v6903
      %6922 = vmatprep.subr.mxu0 0.0
      %6923 = vmatpush1.msra.mxu0 %v6904
      %6924 = vmatprep.subr.mxu0 0.0
      %6925 = vmatpush1.msra.mxu0 %v6905
      %6926 = vmatprep.subr.mxu0 0.0
      %6927 = vmatpush1.msra.mxu0 %v6906
      %6928 = vmatprep.subr.mxu0 0.0
      %6929 = vmatpush1.msra.mxu0 %v6907
      %6930 = vmatprep.subr.mxu0 0.0
      %6931 = vmatpush1.msra.mxu0 %v6908
      %6932 = vmatprep.subr.mxu0 0.0
      %6933 = vmatpush1.msra.mxu0 %v6909
      %6934 = vmatprep.subr.mxu0 0.0
      %6935 = vmatpush1.msra.mxu0 %v6910
      %6936 = vmatprep.subr.mxu0 0.0
      %6937 = vmatpush1.msra.mxu0 %v6911
      %6938 = vmatprep.subr.mxu0 0.0
      %6939 = vmatpush1.msra.mxu0 %v6912
      %6940 = vmatprep.subr.mxu0 0.0
      %6941 = vmatpush1.msra.mxu0 %v6913
      %6942 = vmatprep.subr.mxu0 0.0
      %6943 = vmatpush1.msra.mxu0 %v6914
      %6944 = vmatprep.subr.mxu0 0.0
      %6945 = vmatpush1.msra.mxu0 %v6915
      %6946 = vmatprep.subr.mxu0 0.0
      %6947 = vmatpush1.msra.mxu0 %v6916
      %6948 = vmatprep.subr.mxu0 0.0
      %6949 = vmatpush1.msra.mxu0 %v6917
      %6950 = vmatprep.subr.mxu0 0.0
      %6951 = vmatpush1.msra.mxu0 0.0
      %6952 = vmatprep.subr.mxu0 0.0
      %6953 = vmatpush1.msra.mxu0 0.0
      %6954 = vmatprep.subr.mxu0 0.0
      %6955 = vmatpush1.msra.mxu0 0.0
      %6956 = vmatprep.subr.mxu0 0.0
      %6957 = vmatpush1.msra.mxu0 0.0
      %6958 = vmatprep.subr.mxu0 0.0
      %6959 = vmatpush1.msra.mxu0 0.0
      %6960 = vmatprep.subr.mxu0 0.0
      %6961 = vmatpush1.msra.mxu0 0.0
      %6962 = vmatprep.subr.mxu0 0.0
      %6963 = vmatpush1.msra.mxu0 0.0
      %6964 = vmatprep.subr.mxu0 0.0
      %6965 = vmatpush1.msra.mxu0 0.0
      %6966 = vmatprep.subr.mxu0 0.0
      %6967 = vmatpush1.msra.mxu0 0.0
      %6968 = vmatprep.subr.mxu0 0.0
      %6969 = vmatpush1.msra.mxu0 0.0
      %6970 = vmatprep.subr.mxu0 0.0
      %6971 = vmatpush1.msra.mxu0 0.0
      %6972 = vmatprep.subr.mxu0 0.0
      %6973 = vmatpush1.msra.mxu0 0.0
      %6974 = vmatprep.subr.mxu0 0.0
      %6975 = vmatpush1.msra.mxu0 0.0
      %6976 = vmatprep.subr.mxu0 0.0
      %6977 = vmatpush1.msra.mxu0 0.0
      %6978 = vmatprep.subr.mxu0 0.0
      %6979 = vmatpush1.msra.mxu0 0.0
      %6980 = vmatprep.subr.mxu0 0.0
      %6981 = vmatpush1.msra.mxu0 0.0
      %6982 = vmatprep.mubr.f32.mxu0 0.0
      %6983 = vmatmul.mubr.f32.gmra.mrb[0].mxu0 %v6866
      %v6984 = vpop.f32.mrb[0].mxu0
      %v6985 = vadd.f32 0.0, %v6984
      %v6986 = vpop.f32.mrb[0].mxu0
      %6987 = vmatprep.mubr.f32.mxu0 0.0
      %6988 = vmatmul.mubr.f32.gmra.mrb[0].mxu0 %v6867
      %v6989 = vpop.f32.mrb[0].mxu0
      %v6990 = vadd.f32 0.0, %v6989
      %v6991 = vpop.f32.mrb[0].mxu0
      %6992 = vmatprep.mubr.f32.mxu0 0.0
      %6993 = vmatmul.mubr.f32.gmra.mrb[0].mxu0 %v6868
      %v6994 = vpop.f32.mrb[0].mxu0
      %v6995 = vadd.f32 0.0, %v6994
      %v6996 = vpop.f32.mrb[0].mxu0
      %6997 = vmatprep.mubr.f32.mxu0 0.0
      %6998 = vmatmul.mubr.f32.gmra.mrb[0].mxu0 %v6869
      %v6999 = vpop.f32.mrb[0].mxu0
      %v7000 = vadd.f32 0.0, %v6999
      %v7001 = vpop.f32.mrb[0].mxu0
      %7002 = vmatprep.mubr.f32.mxu0 0.0
      %7003 = vmatmul.mubr.f32.gmra.mrb[0].mxu0 %v6870
      %v7004 = vpop.f32.mrb[0].mxu0
      %v7005 = vadd.f32 0.0, %v7004
      %v7006 = vpop.f32.mrb[0].mxu0
      %7007 = vmatprep.mubr.f32.mxu0 0.0
      %7008 = vmatmul.mubr.f32.gmra.mrb[0].mxu0 %v6871
      %v7009 = vpop.f32.mrb[0].mxu0
      %v7010 = vadd.f32 0.0, %v7009
      %v7011 = vpop.f32.mrb[0].mxu0
      %7012 = vmatprep.mubr.f32.mxu0 0.0
      %7013 = vmatmul.mubr.f32.gmra.mrb[0].mxu0 %v6872
      %v7014 = vpop.f32.mrb[0].mxu0
      %v7015 = vadd.f32 0.0, %v7014
      %v7016 = vpop.f32.mrb[0].mxu0
      %7017 = vmatprep.mubr.f32.mxu0 0.0
      %7018 = vmatmul.mubr.f32.gmra.mrb[0].mxu0 %v6873
      %v7019 = vpop.f32.mrb[0].mxu0
      %v7020 = vadd.f32 0.0, %v7019
      %v7021 = vpop.f32.mrb[0].mxu0
      %7022 = vmatprep.mubr.f32.mxu0 0.0
      %7023 = vmatmul.mubr.f32.gmra.mrb[0].mxu0 %v6874
      %v7024 = vpop.f32.mrb[0].mxu0
      %v7025 = vadd.f32 0.0, %v7024
      %v7026 = vpop.f32.mrb[0].mxu0
      %7027 = vmatprep.mubr.f32.mxu0 0.0
      %7028 = vmatmul.mubr.f32.gmra.mrb[0].mxu0 %v6875
      %v7029 = vpop.f32.mrb[0].mxu0
      %v7030 = vadd.f32 0.0, %v7029
      %v7031 = vpop.f32.mrb[0].mxu0
      %7032 = vmatprep.mubr.f32.mxu0 0.0
      %7033 = vmatmul.mubr.f32.gmra.mrb[0].mxu0 %v6876
      %v7034 = vpop.f32.mrb[0].mxu0
      %v7035 = vadd.f32 0.0, %v7034
      %v7036 = vpop.f32.mrb[0].mxu0
      %7037 = vmatprep.mubr.f32.mxu0 0.0
      %7038 = vmatmul.mubr.f32.gmra.mrb[0].mxu0 %v6877
      %v7039 = vpop.f32.mrb[0].mxu0
      %v7040 = vadd.f32 0.0, %v7039
      %v7041 = vpop.f32.mrb[0].mxu0
      %7042 = vmatprep.mubr.f32.mxu0 0.0
      %7043 = vmatmul.mubr.f32.gmra.mrb[0].mxu0 %v6878
      %v7044 = vpop.f32.mrb[0].mxu0
      %v7045 = vadd.f32 0.0, %v7044
      %v7046 = vpop.f32.mrb[0].mxu0
      %7047 = vmatprep.mubr.f32.mxu0 0.0
      %7048 = vmatmul.mubr.f32.gmra.mrb[0].mxu0 %v6879
      %v7049 = vpop.f32.mrb[0].mxu0
      %v7050 = vadd.f32 0.0, %v7049
      %v7051 = vpop.f32.mrb[0].mxu0
      %7052 = vmatprep.mubr.f32.mxu0 0.0
      %7053 = vmatmul.mubr.f32.gmra.mrb[0].mxu0 %v6880
      %v7054 = vpop.f32.mrb[0].mxu0
      %v7055 = vadd.f32 0.0, %v7054
      %v7056 = vpop.f32.mrb[0].mxu0
      %7057 = vmatprep.mubr.f32.mxu0 0.0
      %7058 = vmatmul.mubr.f32.gmra.mrb[0].mxu0 %v6881
      %v7059 = vpop.f32.mrb[0].mxu0
      %v7060 = vadd.f32 0.0, %v7059
      %v7061 = vpop.f32.mrb[0].mxu0
      %7062 = vmatprep.mubr.f32.mxu0 0.0
      %7063 = vmatmul.mubr.f32.gmra.mrb[0].mxu0 %v6882
      %v7064 = vpop.f32.mrb[0].mxu0
      %v7065 = vadd.f32 0.0, %v7064
      %v7066 = vpop.f32.mrb[0].mxu0
      %7067 = vmatprep.mubr.f32.mxu0 0.0
      %7068 = vmatmul.mubr.f32.gmra.mrb[0].mxu0 %v6883
      %v7069 = vpop.f32.mrb[0].mxu0
      %v7070 = vadd.f32 0.0, %v7069
      %v7071 = vpop.f32.mrb[0].mxu0
      %7072 = vmatprep.mubr.f32.mxu0 0.0
      %7073 = vmatmul.mubr.f32.gmra.mrb[0].mxu0 %v6884
      %v7074 = vpop.f32.mrb[0].mxu0
      %v7075 = vadd.f32 0.0, %v7074
      %v7076 = vpop.f32.mrb[0].mxu0
      %7077 = vmatprep.mubr.f32.mxu0 0.0
      %7078 = vmatmul.mubr.f32.gmra.mrb[0].mxu0 %v6885
      %v7079 = vpop.f32.mrb[0].mxu0
      %v7080 = vadd.f32 0.0, %v7079
      %v7081 = vpop.f32.mrb[0].mxu0
      %7082 = vmatprep.mubr.f32.mxu0 0.0
      %7083 = vmatmul.mubr.f32.gmra.mrb[0].mxu0 %v6886
      %v7084 = vpop.f32.mrb[0].mxu0
      %v7085 = vadd.f32 0.0, %v7084
      %v7086 = vpop.f32.mrb[0].mxu0
      %7087 = vmatprep.mubr.f32.mxu0 0.0
      %7088 = vmatmul.mubr.f32.gmra.mrb[0].mxu0 %v6887
      %v7089 = vpop.f32.mrb[0].mxu0
      %v7090 = vadd.f32 0.0, %v7089
      %v7091 = vpop.f32.mrb[0].mxu0
      %7092 = vmatprep.mubr.f32.mxu0 0.0
      %7093 = vmatmul.mubr.f32.gmra.mrb[0].mxu0 %v6888
      %v7094 = vpop.f32.mrb[0].mxu0
      %v7095 = vadd.f32 0.0, %v7094
      %v7096 = vpop.f32.mrb[0].mxu0
      %7097 = vmatprep.mubr.f32.mxu0 0.0
      %7098 = vmatmul.mubr.f32.gmra.mrb[0].mxu0 %v6889
      %v7099 = vpop.f32.mrb[0].mxu0
      %v7100 = vadd.f32 0.0, %v7099
      %v7101 = vpop.f32.mrb[0].mxu0
      %7102 = vmatprep.mubr.f32.mxu0 0.0
      %7103 = vmatmul.mubr.f32.gmra.mrb[0].mxu0 %v6890
      %v7104 = vpop.f32.mrb[0].mxu0
      %v7105 = vadd.f32 0.0, %v7104
      %v7106 = vpop.f32.mrb[0].mxu0
      %7107 = vmatprep.mubr.f32.mxu0 0.0
      %7108 = vmatmul.mubr.f32.gmra.mrb[0].mxu0 %v6891
      %v7109 = vpop.f32.mrb[0].mxu0
      %v7110 = vadd.f32 0.0, %v7109
      %v7111 = vpop.f32.mrb[0].mxu0
      %7112 = vmatprep.mubr.f32.mxu0 0.0
      %7113 = vmatmul.mubr.f32.gmra.mrb[0].mxu0 %v6892
      %v7114 = vpop.f32.mrb[0].mxu0
      %v7115 = vadd.f32 0.0, %v7114
      %v7116 = vpop.f32.mrb[0].mxu0
      %7117 = vmatprep.mubr.f32.mxu0 0.0
      %7118 = vmatmul.mubr.f32.gmra.mrb[0].mxu0 %v6893
      %v7119 = vpop.f32.mrb[0].mxu0
      %v7120 = vadd.f32 0.0, %v7119
      %v7121 = vpop.f32.mrb[0].mxu0
      %7122 = vmatprep.mubr.f32.mxu0 0.0
      %7123 = vmatmul.mubr.f32.gmra.mrb[0].mxu0 %v6894
      %v7124 = vpop.f32.mrb[0].mxu0
      %v7125 = vadd.f32 0.0, %v7124
      %v7126 = vpop.f32.mrb[0].mxu0
      %7127 = vmatprep.mubr.f32.mxu0 0.0
      %7128 = vmatmul.mubr.f32.gmra.mrb[0].mxu0 %v6895
      %v7129 = vpop.f32.mrb[0].mxu0
      %v7130 = vadd.f32 0.0, %v7129
      %v7131 = vpop.f32.mrb[0].mxu0
      %7132 = vmatprep.mubr.f32.mxu0 0.0
      %7133 = vmatmul.mubr.f32.gmra.mrb[0].mxu0 %v6896
      %v7134 = vpop.f32.mrb[0].mxu0
      %v7135 = vadd.f32 0.0, %v7134
      %v7136 = vpop.f32.mrb[0].mxu0
      %7137 = vmatprep.mubr.f32.mxu0 0.0
      %7138 = vmatmul.mubr.f32.gmra.mrb[0].mxu0 %v6897
      %v7139 = vpop.f32.mrb[0].mxu0
      %v7140 = vadd.f32 0.0, %v7139
      %v7141 = vpop.f32.mrb[0].mxu0
      %7142 = vmatprep.mubr.f32.mxu0 0.0
      %7143 = vmatmul.mubr.f32.gmra.mrb[0].mxu0 %v6898
      %v7144 = vpop.f32.mrb[0].mxu0
      %v7145 = vadd.f32 0.0, %v7144
      %v7146 = vpop.f32.mrb[0].mxu0
      %7147 = vmatprep.mubr.f32.mxu0 0.0
      %7148 = vmatmul.mubr.f32.gmra.mrb[0].mxu0 %v6899
      %v7149 = vpop.f32.mrb[0].mxu0
      %v7150 = vadd.f32 0.0, %v7149
      %v7151 = vpop.f32.mrb[0].mxu0
      %7152 = vmatprep.mubr.f32.mxu0 0.0
      %7153 = vmatmul.mubr.f32.gmra.mrb[0].mxu0 %v6900
      %v7154 = vpop.f32.mrb[0].mxu0
      %v7155 = vadd.f32 0.0, %v7154
      %v7156 = vpop.f32.mrb[0].mxu0
      %7157 = vmatprep.mubr.f32.mxu0 0.0
      %7158 = vmatmul.mubr.f32.gmra.mrb[0].mxu0 %v6901
      %v7159 = vpop.f32.mrb[0].mxu0
      %v7160 = vadd.f32 0.0, %v7159
      %v7161 = vpop.f32.mrb[0].mxu0
      %7162 = vdwg.mxu0
      %v7163 = vadd.f32 %v6830, %v6985
      %v7164 = vadd.f32 %v6831, %v6990
      %v7165 = vadd.f32 %v6832, %v6995
      %v7166 = vadd.f32 %v6833, %v7000
      %v7167 = vadd.f32 %v6834, %v7005
      %v7168 = vadd.f32 %v6835, %v7010
      %v7169 = vadd.f32 %v6836, %v7015
      %v7170 = vadd.f32 %v6837, %v7020
      %v7171 = vadd.f32 %v6838, %v7025
      %v7172 = vadd.f32 %v6839, %v7030
      %v7173 = vadd.f32 %v6840, %v7035
      %v7174 = vadd.f32 %v6841, %v7040
      %v7175 = vadd.f32 %v6842, %v7045
      %v7176 = vadd.f32 %v6843, %v7050
      %v7177 = vadd.f32 %v6844, %v7055
      %v7178 = vadd.f32 %v6845, %v7060
      %v7179 = vadd.f32 %v6846, %v7065
      %v7180 = vadd.f32 %v6847, %v7070
      %v7181 = vadd.f32 %v6848, %v7075
      %v7182 = vadd.f32 %v6849, %v7080
      %v7183 = vadd.f32 %v6850, %v7085
      %v7184 = vadd.f32 %v6851, %v7090
      %v7185 = vadd.f32 %v6852, %v7095
      %v7186 = vadd.f32 %v6853, %v7100
      %v7187 = vadd.f32 %v6854, %v7105
      %v7188 = vadd.f32 %v6855, %v7110
      %v7189 = vadd.f32 %v6856, %v7115
      %v7190 = vadd.f32 %v6857, %v7120
      %v7191 = vadd.f32 %v6858, %v7125
      %v7192 = vadd.f32 %v6859, %v7130
      %v7193 = vadd.f32 %v6860, %v7135
      %v7194 = vadd.f32 %v6861, %v7140
      %v7195 = vadd.f32 %v6862, %v7145
      %v7196 = vadd.f32 %v6863, %v7150
      %v7197 = vadd.f32 %v6864, %v7155
      %v7198 = vadd.f32 %v6865, %v7160
      %v7199 = vld [vmem:[%s8] sm:$0x1]
      %v7201 = vlaneseq
      %v7202 = vshrl.u32 %v7201, 7
      %v7203 = vsub.s32 0, %v7202
      %v7204 = vrot.slane %v7199, %v7203
      %v7206 = vadd.f32 %v7163, %v7204
      %v7207 = vadd.f32 %v7164, %v7204
      %v7208 = vadd.f32 %v7165, %v7204
      %v7209 = vadd.f32 %v7166, %v7204
      %v7210 = vadd.f32 %v7167, %v7204
      %v7211 = vadd.f32 %v7168, %v7204
      %v7212 = vadd.f32 %v7169, %v7204
      %v7213 = vadd.f32 %v7170, %v7204
      %v7214 = vadd.f32 %v7171, %v7204
      %v7215 = vadd.f32 %v7172, %v7204
      %v7216 = vadd.f32 %v7173, %v7204
      %v7217 = vadd.f32 %v7174, %v7204
      %v7218 = vadd.f32 %v7175, %v7204
      %v7219 = vadd.f32 %v7176, %v7204
      %v7220 = vadd.f32 %v7177, %v7204
      %v7221 = vadd.f32 %v7178, %v7204
      %v7222 = vadd.f32 %v7179, %v7204
      %v7223 = vadd.f32 %v7180, %v7204
      %v7224 = vadd.f32 %v7181, %v7204
      %v7225 = vadd.f32 %v7182, %v7204
      %v7226 = vadd.f32 %v7183, %v7204
      %v7227 = vadd.f32 %v7184, %v7204
      %v7228 = vadd.f32 %v7185, %v7204
      %v7229 = vadd.f32 %v7186, %v7204
      %v7230 = vadd.f32 %v7187, %v7204
      %v7231 = vadd.f32 %v7188, %v7204
      %v7232 = vadd.f32 %v7189, %v7204
      %v7233 = vadd.f32 %v7190, %v7204
      %v7234 = vadd.f32 %v7191, %v7204
      %v7235 = vadd.f32 %v7192, %v7204
      %v7236 = vadd.f32 %v7193, %v7204
      %v7237 = vadd.f32 %v7194, %v7204
      %v7238 = vadd.f32 %v7195, %v7204
      %v7239 = vadd.f32 %v7196, %v7204
      %v7240 = vadd.f32 %v7197, %v7204
      %v7241 = vadd.f32 %v7198, %v7204
      %7242 = vst [vmem:[%s346] sm:$0xff] %v7206
      %7243 = vst [vmem:[%s346 + $0x8] sm:$0xff] %v7207
      %7244 = vst [vmem:[%s346 + $0x10] sm:$0xff] %v7208
      %7245 = vst [vmem:[%s346 + $0x18] sm:$0xff] %v7209
      %7246 = vst [vmem:[%s346 + $0x20] sm:$0xff] %v7210
      %7247 = vst [vmem:[%s346 + $0x28] sm:$0xff] %v7211
      %7248 = vst [vmem:[%s346 + $0x30] sm:$0xff] %v7212
      %7249 = vst [vmem:[%s346 + $0x38] sm:$0xff] %v7213
      %7250 = vst [vmem:[%s346 + $0x40] sm:$0xff] %v7214
      %7251 = vst [vmem:[%s346 + $0x48] sm:$0xff] %v7215
      %7252 = vst [vmem:[%s346 + $0x50] sm:$0xff] %v7216
      %7253 = vst [vmem:[%s346 + $0x58] sm:$0xff] %v7217
      %7254 = vst [vmem:[%s346 + $0x60] sm:$0xff] %v7218
      %7255 = vst [vmem:[%s346 + $0x68] sm:$0xff] %v7219
      %7256 = vst [vmem:[%s346 + $0x70] sm:$0xff] %v7220
      %7257 = vst [vmem:[%s346 + $0x78] sm:$0xff] %v7221
      %7258 = vst [vmem:[%s346 + $0x80] sm:$0xff] %v7222
      %7259 = vst [vmem:[%s346 + $0x88] sm:$0xff] %v7223
      %7260 = vst [vmem:[%s346 + $0x90] sm:$0xff] %v7224
      %7261 = vst [vmem:[%s346 + $0x98] sm:$0xff] %v7225
      %7262 = vst [vmem:[%s346 + $0xa0] sm:$0xff] %v7226
      %7263 = vst [vmem:[%s346 + $0xa8] sm:$0xff] %v7227
      %7264 = vst [vmem:[%s346 + $0xb0] sm:$0xff] %v7228
      %7265 = vst [vmem:[%s346 + $0xb8] sm:$0xff] %v7229
      %7266 = vst [vmem:[%s346 + $0xc0] sm:$0xff] %v7230
      %7267 = vst [vmem:[%s346 + $0xc8] sm:$0xff] %v7231
      %7268 = vst [vmem:[%s346 + $0xd0] sm:$0xff] %v7232
      %7269 = vst [vmem:[%s346 + $0xd8] sm:$0xff] %v7233
      %7270 = vst [vmem:[%s346 + $0xe0] sm:$0xff] %v7234
      %7271 = vst [vmem:[%s346 + $0xe8] sm:$0xff] %v7235
      %7272 = vst [vmem:[%s346 + $0xf0] sm:$0xff] %v7236
      %7273 = vst [vmem:[%s346 + $0xf8] sm:$0xff] %v7237
      %7274 = vst [vmem:[%s346 + $0x100] sm:$0xff] %v7238
      %7275 = vst [vmem:[%s346 + $0x108] sm:$0xff] %v7239
      %7276 = vst [vmem:[%s346 + $0x110] sm:$0xff] %v7240
      %7277 = vst [vmem:[%s346 + $0x118] sm:$0x3f] %v7241
      %7278 = vst [vmem:[%s346 + $0x11e] sm:$0x3] 0.0
      %p7279 = scmp.lt.s32.totalorder %s20, 1
      %s7280 = scalar_select %p7279, %s20, 1
      %s7281 = smul.addr %s7280, 36
      %s7282 = smul.addr %s7281, 8
      %s7283 = scalar_lea.vmem %s9, %s7282
      // Predicated region
      $region57: #{resblock_forward.1} parent=55 // pred_check
        %p7284 = pneg %p237
      $region58: #{resblock_forward.1} parent=55 // pred_check_branch
        %7286 = sbr.rel (%p7284) target = $region60
      $region59: #{resblock_forward.1} parent=55 // pred_region
        _
      $region60: #{resblock_forward.1} parent=55 // pred_fallthru
        _
    $region56: #{resblock_forward.1} parent=5 // pred_fallthru
      _
    %p7287 = scmp.le.s32.totalorder 2, %s15
    // Predicated region
    $region61: #{resblock_forward.1} parent=5 // pred_check
      %p7288 = pneg %p7287
    $region62: #{resblock_forward.1} parent=5 // pred_check_branch
      %7290 = sbr.rel (%p7288) target = $region64
    $region63: #{resblock_forward.1} parent=5 // pred_region
      %s7291 = ssub.s32 %s15, 2
      // Predicated region
      $region65: #{resblock_forward.1} parent=63 // pred_check
        %p7292 = pneg %p243
      $region66: #{resblock_forward.1} parent=63 // pred_check_branch
        %7294 = sbr.rel (%p7292) target = $region68
      $region67: #{resblock_forward.1} parent=63 // pred_region
        %p7295 = scmp.lt.s32.totalorder %s21, 1
        %s7296 = scalar_select %p7295, %s21, 1
        %s7297 = smul.addr %s7296, 36
        %s7298 = smul.addr %s7297, 8
        %s7299 = scalar_lea.vmem %s9, %s7298
      $region68: #{resblock_forward.1} parent=63 // pred_fallthru
        _
    $region64: #{resblock_forward.1} parent=5 // pred_fallthru
      _
  $region6: #{resblock_forward.1} parent=0 // loop_footer
    %s19 = sadd.s32 1, %s15
  $region7: #{resblock_forward.1} parent=0 // loop_footer_branch
    %14 = sbr.rel target = $region3
  $region8: #{resblock_forward.1} parent=0 // loop_exit
    _

</llo_original>
